<compile_context>
chip_gen: v6e
topology: v6e:2x2x1
jax: 0.10.0
libtpu: 0.0.40
codegen_flags: <defaults>
</compile_context>

<pallas_src>
import math
import functools

import jax
import jax.numpy as jnp
from jax.experimental import pallas as pl
from jax.experimental.pallas import tpu as pltpu


# ---------------------------------------------------------------------------
# In-kernel helpers
# ---------------------------------------------------------------------------
def _erf(x):
    # Exact-GELU needs erf; Abramowitz&Stegun 7.1.26 polynomial (|err|<1.5e-7)
    # built from ops with guaranteed Mosaic lowerings. The 1/(1+p*|x|) term is
    # routed to the EUP via pl.reciprocal.
    a1, a2, a3, a4, a5 = (0.254829592, -0.284496736, 1.421413741,
                          -1.453152027, 1.061405429)
    pc = 0.3275911
    sgn = jnp.where(x >= 0.0, 1.0, -1.0)
    ax = jnp.abs(x)
    t = pl.reciprocal(1.0 + pc * ax, approx=True)
    poly = ((((a5 * t + a4) * t + a3) * t + a2) * t + a1) * t
    return sgn * (1.0 - poly * jnp.exp(-ax * ax))


def _layernorm(v, g, b, eps=1e-5):
    # Single-pass: E[x] and E[x^2] together, var = E[x^2] - mu^2.
    mu = jnp.mean(v, axis=-1, keepdims=True)
    var = jnp.maximum(jnp.mean(v * v, axis=-1, keepdims=True) - mu * mu, 0.0)
    return (v - mu) * jax.lax.rsqrt(var + eps) * g + b


# ---------------------------------------------------------------------------
# Pallas kernel: embed_ln + all transformer Blocks
# ---------------------------------------------------------------------------
def transformer_kernel(x_ref, elng_ref, elnb_ref,
                       wq_ref, bq_ref, wk_ref, bk_ref, wv_ref, bv_ref,
                       wo_ref, bo_ref, ln1g_ref, ln1b_ref,
                       w1_ref, b1_ref, w2_ref, b2_ref,
                       ln2g_ref, ln2b_ref,
                       out_ref, attn_ref, *, n_blocks, n_heads, batch, seq):
    B, S = batch, seq
    H = x_ref.shape[-1]
    D = H // n_heads
    scale = 1.0 / math.sqrt(D)

    x = x_ref[...]                                     # (B*S, H)
    x = _layernorm(x, elng_ref[...], elnb_ref[...])    # embed_ln

    # Additive causal-mask bias built in-kernel (hoisted out of the layer loop).
    row = jax.lax.broadcasted_iota(jnp.int32, (S, S), 0)
    col = jax.lax.broadcasted_iota(jnp.int32, (S, S), 1)
    mask_bias = jnp.where(col > row, -1e30, 0.0).astype(jnp.float32)  # (S, S)

    for l in range(n_blocks):
        # ---- masked causal self-attention (batched over B; heads unrolled) ----
        att = jnp.zeros((B * S, H), jnp.float32)       # accumulator, no concats
        for h in range(n_heads):
            qh = (jnp.dot(x, wq_ref[l, h], preferred_element_type=jnp.float32)
                  + bq_ref[l, h]).reshape(B, S, D)
            kh = (jnp.dot(x, wk_ref[l, h], preferred_element_type=jnp.float32)
                  + bk_ref[l, h]).reshape(B, S, D)
            vh = (jnp.dot(x, wv_ref[l, h], preferred_element_type=jnp.float32)
                  + bv_ref[l, h]).reshape(B, S, D)

            s = jnp.einsum('bqd,bkd->bqk', qh, kh,
                           preferred_element_type=jnp.float32) * scale
            s = s + mask_bias                          # causal mask (additive)
            p = jnp.exp(s - jnp.max(s, axis=-1, keepdims=True))
            p = p * pl.reciprocal(jnp.sum(p, axis=-1, keepdims=True),
                                  approx=True)         # softmax (EUP recip)

            attn_ref[l, h, :, :, :] = p                # one store per (layer, head)

            oh = jnp.einsum('bqk,bkd->bqd', p, vh,
                            preferred_element_type=jnp.float32)
            # Fold the head-concat into the output projection (per-head rows of Wo).
            att = att + jnp.dot(oh.reshape(B * S, D), wo_ref[l, h],
                                preferred_element_type=jnp.float32)
        att = att + bo_ref[l]

        x = _layernorm(x + att, ln1g_ref[l], ln1b_ref[l])   # residual + ln1

        # ---- MLP: Linear(4H) -> exact GELU -> Linear(H) ----
        hmid = jnp.dot(x, w1_ref[l],
                       preferred_element_type=jnp.float32) + b1_ref[l]
        hmid = 0.5 * hmid * (1.0 + _erf(hmid * (1.0 / math.sqrt(2.0))))
        hout = jnp.dot(hmid, w2_ref[l],
                       preferred_element_type=jnp.float32) + b2_ref[l]

        x = _layernorm(x + hout, ln2g_ref[l], ln2b_ref[l])  # residual + ln2

    out_ref[...] = x                                    # lane-dense (B*S, H) slab


def run_transformer(h_pad, blk, embed_ln_g, embed_ln_b, n_blocks, n_heads):
    B, S, H = h_pad.shape
    L, N = n_blocks, n_heads
    D = H // N

    # XLA-side weight re-layout (inside jit, one-time, tiny): per-head slices so
    # the kernel never slices activations along the lane axis.
    def head_cols(w):                      # (L, H, H) -> (L, N, H, D)
        return w.reshape(L, H, N, D).transpose(0, 2, 1, 3)

    def head_cols_b(b):                    # (L, 1, H) -> (L, N, 1, D)
        return b.reshape(L, 1, N, D).transpose(0, 2, 1, 3)

    wq, bq = head_cols(blk['wq']), head_cols_b(blk['bq'])
    wk, bk = head_cols(blk['wk']), head_cols_b(blk['bk'])
    wv, bv = head_cols(blk['wv']), head_cols_b(blk['bv'])
    wo = blk['wo'].reshape(L, N, D, H)     # per-head rows of the output proj

    kernel = functools.partial(transformer_kernel, n_blocks=L, n_heads=N,
                               batch=B, seq=S)
    vmem = pl.BlockSpec(memory_space=pltpu.MemorySpace.VMEM)
    inputs = (h_pad.reshape(B * S, H), embed_ln_g, embed_ln_b,
              wq, bq, wk, bk, wv, bv, wo, blk['bo'],
              blk['ln1g'], blk['ln1b'],
              blk['w1'], blk['b1'], blk['w2'], blk['b2'],
              blk['ln2g'], blk['ln2b'])
    out_shapes = (jax.ShapeDtypeStruct((B * S, H), jnp.float32),
                  jax.ShapeDtypeStruct((L, N, B, S, S), jnp.float32))
    out, attn = pl.pallas_call(
        kernel,
        out_shape=out_shapes,
        in_specs=[vmem] * len(inputs),
        out_specs=(vmem, vmem),
    )(*inputs)
    # attn: (L, N, B, S, S) -> (L, B, N, S, S) outside the kernel.
    return out.reshape(B, S, H), attn.transpose(0, 2, 1, 3, 4)


# ---------------------------------------------------------------------------
# Parameters (deterministic, in-script)
# ---------------------------------------------------------------------------
def init_params(key, state_dim, act_dim, n_blocks, h_dim, n_heads,
                max_timestep=3 * 21):
    kit = iter(jax.random.split(key, 128))

    def w(*shape):
        return jax.random.normal(next(kit), shape, jnp.float32) * 0.02

    def zeros(*shape):
        return jnp.zeros(shape, jnp.float32)

    p = {}
    p['embed_timestep'] = w(max_timestep, h_dim)
    p['embed_action'] = w(act_dim, h_dim)
    p['embed_rtg_w'] = w(h_dim, 1)
    p['embed_rtg_b'] = w(h_dim)
    for i in range(4):
        p[f'es{i}_w'] = w(h_dim // 4, state_dim)
        p[f'es{i}_b'] = w(h_dim // 4)
    p['embed_ln_g'] = jnp.ones((1, h_dim), jnp.float32)
    p['embed_ln_b'] = zeros(1, h_dim)

    L, H = n_blocks, h_dim
    # Block weights stacked over layers; matmul weights stored pre-transposed
    # (in, out) so the kernel computes x @ W directly (== PyTorch x @ W.T).
    p['blocks'] = {
        'wq': w(L, H, H), 'bq': w(L, 1, H),
        'wk': w(L, H, H), 'bk': w(L, 1, H),
        'wv': w(L, H, H), 'bv': w(L, 1, H),
        'wo': w(L, H, H), 'bo': w(L, 1, H),
        'ln1g': jnp.ones((L, 1, H), jnp.float32), 'ln1b': zeros(L, 1, H),
        'w1': w(L, H, 4 * H), 'b1': w(L, 1, 4 * H),
        'w2': w(L, 4 * H, H), 'b2': w(L, 1, H),
        'ln2g': jnp.ones((L, 1, H), jnp.float32), 'ln2b': zeros(L, 1, H),
    }
    p['predict_rtg_w'] = w(1, h_dim)
    p['predict_rtg_b'] = w(1)
    p['predict_state_w'] = w(state_dim, h_dim)
    p['predict_state_b'] = w(state_dim)
    p['predict_action_w'] = w(act_dim, h_dim)
    p['predict_action_b'] = w(act_dim)
    return p


# ---------------------------------------------------------------------------
# Full forward pass (mirrors DecisionTransformer.forward), fully jitted
# ---------------------------------------------------------------------------
@functools.partial(jax.jit, static_argnames=("n_blocks", "n_heads"))
def decision_transformer_forward(params, timesteps, states, actions,
                                 returns_to_go, *, n_blocks, n_heads,
                                 temperature=1.0):
    B, T, _, state_dim = states.shape
    H = params['embed_timestep'].shape[1]

    time_emb = params['embed_timestep'][timesteps]            # (B, T, H)

    s_embs = []
    for i in range(4):
        s_embs.append(states[:, :, i, :] @ params[f'es{i}_w'].T
                      + params[f'es{i}_b'])                   # (B, T, H//4)
    embedded_state = jnp.concatenate(s_embs, axis=-1)         # (B, T, H)

    state_emb = embedded_state + time_emb
    action_emb = params['embed_action'][actions] + time_emb
    rtg_emb = (returns_to_go @ params['embed_rtg_w'].T
               + params['embed_rtg_b']) + time_emb

    # interleave (r_t, s_t, a_t) -> (B, 3T, H)
    h = jnp.stack([rtg_emb, state_emb, action_emb], axis=1)   # (B, 3, T, H)
    h = jnp.transpose(h, (0, 2, 1, 3)).reshape(B, 3 * T, H)

    S = 3 * T
    S_pad = ((S + 7) // 8) * 8                                # 63 -> 64
    h_pad = jnp.pad(h, ((0, 0), (0, S_pad - S), (0, 0)))

    out, attn = run_transformer(h_pad, params['blocks'],
                                params['embed_ln_g'], params['embed_ln_b'],
                                n_blocks, n_heads)
    hT = out[:, :S, :]
    attention_weights = [attn[l, :, :, :S, :S] for l in range(n_blocks)]

    hT = hT.reshape(B, T, 3, H).transpose(0, 2, 1, 3)          # (B, 3, T, H)
    h_state_pos = hT[:, 1]                                     # from state tokens
    h_action_pos = hT[:, 2]                                    # from action tokens

    return_preds = h_action_pos @ params['predict_rtg_w'].T + params['predict_rtg_b']
    state_preds = h_action_pos @ params['predict_state_w'].T + params['predict_state_b']
    action_logits = h_state_pos @ params['predict_action_w'].T + params['predict_action_b']
    action_preds = jax.nn.softmax(action_logits / temperature, axis=2)

    return state_preds, action_preds, return_preds, attention_weights


# ---------------------------------------------------------------------------
if __name__ == "__main__":
    B, T = 2, 21                      # max_timestep = input_seq_len = 3*21 = 63
    state_dim, act_dim = 8, 6
    n_blocks, h_dim, n_heads = 2, 32, 2

    key = jax.random.PRNGKey(0)
    kp, k1, k2, k3, k4 = jax.random.split(key, 5)
    params = init_params(kp, state_dim, act_dim, n_blocks, h_dim, n_heads)

    timesteps = jax.random.randint(k1, (B, T), 0, 3 * 21)
    states = jax.random.normal(k2, (B, T, 4, state_dim), jnp.float32)
    actions = jax.random.randint(k3, (B, T), 0, act_dim)
    returns_to_go = jax.random.normal(k4, (B, T, 1), jnp.float32)

    state_preds, action_preds, return_preds, attn_w = decision_transformer_forward(
        params, timesteps, states, actions, returns_to_go,
        n_blocks=n_blocks, n_heads=n_heads, temperature=1.0)

    jax.block_until_ready((state_preds, action_preds, return_preds, attn_w))

    assert state_preds.shape == (B, T, state_dim)
    assert action_preds.shape == (B, T, act_dim)
    assert return_preds.shape == (B, T, 1)
    assert len(attn_w) == n_blocks and attn_w[0].shape == (B, n_heads, 3 * T, 3 * T)

    print("KERNEL_OK")
</pallas_src>

<mosaic_0001>
module attributes {stable_mosaic.version = 11 : i64} {
  func.func @transformer_kernel(%arg0: memref<128x32xf32, #tpu.memory_space<vmem>>, %arg1: memref<1x32xf32, #tpu.memory_space<vmem>>, %arg2: memref<1x32xf32, #tpu.memory_space<vmem>>, %arg3: memref<2x2x32x16xf32, #tpu.memory_space<vmem>>, %arg4: memref<2x2x1x16xf32, #tpu.memory_space<vmem>>, %arg5: memref<2x2x32x16xf32, #tpu.memory_space<vmem>>, %arg6: memref<2x2x1x16xf32, #tpu.memory_space<vmem>>, %arg7: memref<2x2x32x16xf32, #tpu.memory_space<vmem>>, %arg8: memref<2x2x1x16xf32, #tpu.memory_space<vmem>>, %arg9: memref<2x2x16x32xf32, #tpu.memory_space<vmem>>, %arg10: memref<2x1x32xf32, #tpu.memory_space<vmem>>, %arg11: memref<2x1x32xf32, #tpu.memory_space<vmem>>, %arg12: memref<2x1x32xf32, #tpu.memory_space<vmem>>, %arg13: memref<2x32x128xf32, #tpu.memory_space<vmem>>, %arg14: memref<2x1x128xf32, #tpu.memory_space<vmem>>, %arg15: memref<2x128x32xf32, #tpu.memory_space<vmem>>, %arg16: memref<2x1x32xf32, #tpu.memory_space<vmem>>, %arg17: memref<2x1x32xf32, #tpu.memory_space<vmem>>, %arg18: memref<2x1x32xf32, #tpu.memory_space<vmem>>, %arg19: memref<128x32xf32, #tpu.memory_space<vmem>>, %arg20: memref<2x2x2x64x64xf32, #tpu.memory_space<vmem>>) attributes {dimension_semantics = [], scalar_prefetch = 0 : i64, scratch_operands = 0 : i64, tpu.core_type = #tpu.core_type<tc>} {
    %c0 = arith.constant 0 : index
    %c0_0 = arith.constant 0 : index
    %0 = vector.load %arg0[%c0, %c0_0] : memref<128x32xf32, #tpu.memory_space<vmem>>, vector<128x32xf32>
    %c0_1 = arith.constant 0 : index
    %c0_2 = arith.constant 0 : index
    %1 = vector.load %arg1[%c0_1, %c0_2] : memref<1x32xf32, #tpu.memory_space<vmem>>, vector<1x32xf32>
    %c0_3 = arith.constant 0 : index
    %c0_4 = arith.constant 0 : index
    %2 = vector.load %arg2[%c0_3, %c0_4] : memref<1x32xf32, #tpu.memory_space<vmem>>, vector<1x32xf32>
    %cst = arith.constant dense<0.000000e+00> : vector<128xf32>
    %3 = vector.multi_reduction <add>, %0, %cst [1] : vector<128x32xf32> to vector<128xf32>
    %4 = vector.shape_cast %3 : vector<128xf32> to vector<128x1xf32>
    %cst_5 = arith.constant 3.200000e+01 : f32
    %5 = vector.broadcast %cst_5 : f32 to vector<128x1xf32>
    %6 = arith.divf %4, %5 : vector<128x1xf32>
    %7 = arith.mulf %0, %0 : vector<128x32xf32>
    %cst_6 = arith.constant dense<0.000000e+00> : vector<128xf32>
    %8 = vector.multi_reduction <add>, %7, %cst_6 [1] : vector<128x32xf32> to vector<128xf32>
    %9 = vector.shape_cast %8 : vector<128xf32> to vector<128x1xf32>
    %cst_7 = arith.constant 3.200000e+01 : f32
    %10 = vector.broadcast %cst_7 : f32 to vector<128x1xf32>
    %11 = arith.divf %9, %10 : vector<128x1xf32>
    %12 = arith.mulf %6, %6 : vector<128x1xf32>
    %13 = arith.subf %11, %12 : vector<128x1xf32>
    %cst_8 = arith.constant 0.000000e+00 : f32
    %14 = vector.broadcast %cst_8 : f32 to vector<128x1xf32>
    %15 = arith.maximumf %13, %14 : vector<128x1xf32>
    %16 = vector.broadcast %6 : vector<128x1xf32> to vector<128x32xf32>
    %17 = arith.subf %0, %16 : vector<128x32xf32>
    %cst_9 = arith.constant 9.99999974E-6 : f32
    %18 = vector.broadcast %cst_9 : f32 to vector<128x1xf32>
    %19 = arith.addf %15, %18 : vector<128x1xf32>
    %20 = math.rsqrt %19 : vector<128x1xf32>
    %21 = vector.broadcast %20 : vector<128x1xf32> to vector<128x32xf32>
    %22 = arith.mulf %17, %21 : vector<128x32xf32>
    %23 = vector.broadcast %1 : vector<1x32xf32> to vector<128x32xf32>
    %24 = arith.mulf %22, %23 : vector<128x32xf32>
    %25 = vector.broadcast %2 : vector<1x32xf32> to vector<128x32xf32>
    %26 = arith.addf %24, %25 : vector<128x32xf32>
    %27 = tpu.iota {dimensions = array<i32: 0>} : vector<64x64xi32>
    %28 = tpu.iota {dimensions = array<i32: 1>} : vector<64x64xi32>
    %29 = arith.cmpi sgt, %28, %27 : vector<64x64xi32>
    %cst_10 = arith.constant -1.000000e+30 : f32
    %cst_11 = arith.constant 0.000000e+00 : f32
    %30 = vector.broadcast %cst_10 : f32 to vector<64x64xf32>
    %31 = vector.broadcast %cst_11 : f32 to vector<64x64xf32>
    %32 = arith.select %29, %30, %31 : vector<64x64xi1>, vector<64x64xf32>
    %cst_12 = arith.constant 0.000000e+00 : f32
    %33 = vector.broadcast %cst_12 : f32 to vector<128x32xf32>
    %c0_13 = arith.constant 0 : index
    %c0_14 = arith.constant 0 : index
    %c0_15 = arith.constant 0 : index
    %c0_16 = arith.constant 0 : index
    %34 = vector.load %arg3[%c0_13, %c0_14, %c0_15, %c0_16] : memref<2x2x32x16xf32, #tpu.memory_space<vmem>>, vector<1x1x32x16xf32>
    %35 = vector.shape_cast %34 : vector<1x1x32x16xf32> to vector<32x16xf32>
    %cst_17 = arith.constant dense<0.000000e+00> : vector<128x16xf32>
    %36 = tpu.matmul %26, %35, %cst_17 {dimension_numbers = #tpu.dot_dimension_numbers<[1], [0], [0], [1], [0, 0, 1, 1], [], []>} : vector<128x32xf32>, vector<32x16xf32>, vector<128x16xf32> -> vector<128x16xf32>
    %c0_18 = arith.constant 0 : index
    %c0_19 = arith.constant 0 : index
    %c0_20 = arith.constant 0 : index
    %c0_21 = arith.constant 0 : index
    %37 = vector.load %arg4[%c0_18, %c0_19, %c0_20, %c0_21] : memref<2x2x1x16xf32, #tpu.memory_space<vmem>>, vector<1x1x1x16xf32>
    %38 = vector.shape_cast %37 : vector<1x1x1x16xf32> to vector<1x16xf32>
    %39 = vector.broadcast %38 : vector<1x16xf32> to vector<128x16xf32>
    %40 = arith.addf %36, %39 : vector<128x16xf32>
    %41 = vector.shape_cast %40 : vector<128x16xf32> to vector<2x64x16xf32>
    %c0_22 = arith.constant 0 : index
    %c0_23 = arith.constant 0 : index
    %c0_24 = arith.constant 0 : index
    %c0_25 = arith.constant 0 : index
    %42 = vector.load %arg5[%c0_22, %c0_23, %c0_24, %c0_25] : memref<2x2x32x16xf32, #tpu.memory_space<vmem>>, vector<1x1x32x16xf32>
    %43 = vector.shape_cast %42 : vector<1x1x32x16xf32> to vector<32x16xf32>
    %cst_26 = arith.constant dense<0.000000e+00> : vector<128x16xf32>
    %44 = tpu.matmul %26, %43, %cst_26 {dimension_numbers = #tpu.dot_dimension_numbers<[1], [0], [0], [1], [0, 0, 1, 1], [], []>} : vector<128x32xf32>, vector<32x16xf32>, vector<128x16xf32> -> vector<128x16xf32>
    %c0_27 = arith.constant 0 : index
    %c0_28 = arith.constant 0 : index
    %c0_29 = arith.constant 0 : index
    %c0_30 = arith.constant 0 : index
    %45 = vector.load %arg6[%c0_27, %c0_28, %c0_29, %c0_30] : memref<2x2x1x16xf32, #tpu.memory_space<vmem>>, vector<1x1x1x16xf32>
    %46 = vector.shape_cast %45 : vector<1x1x1x16xf32> to vector<1x16xf32>
    %47 = vector.broadcast %46 : vector<1x16xf32> to vector<128x16xf32>
    %48 = arith.addf %44, %47 : vector<128x16xf32>
    %49 = vector.shape_cast %48 : vector<128x16xf32> to vector<2x64x16xf32>
    %c0_31 = arith.constant 0 : index
    %c0_32 = arith.constant 0 : index
    %c0_33 = arith.constant 0 : index
    %c0_34 = arith.constant 0 : index
    %50 = vector.load %arg7[%c0_31, %c0_32, %c0_33, %c0_34] : memref<2x2x32x16xf32, #tpu.memory_space<vmem>>, vector<1x1x32x16xf32>
    %51 = vector.shape_cast %50 : vector<1x1x32x16xf32> to vector<32x16xf32>
    %cst_35 = arith.constant dense<0.000000e+00> : vector<128x16xf32>
    %52 = tpu.matmul %26, %51, %cst_35 {dimension_numbers = #tpu.dot_dimension_numbers<[1], [0], [0], [1], [0, 0, 1, 1], [], []>} : vector<128x32xf32>, vector<32x16xf32>, vector<128x16xf32> -> vector<128x16xf32>
    %c0_36 = arith.constant 0 : index
    %c0_37 = arith.constant 0 : index
    %c0_38 = arith.constant 0 : index
    %c0_39 = arith.constant 0 : index
    %53 = vector.load %arg8[%c0_36, %c0_37, %c0_38, %c0_39] : memref<2x2x1x16xf32, #tpu.memory_space<vmem>>, vector<1x1x1x16xf32>
    %54 = vector.shape_cast %53 : vector<1x1x1x16xf32> to vector<1x16xf32>
    %55 = vector.broadcast %54 : vector<1x16xf32> to vector<128x16xf32>
    %56 = arith.addf %52, %55 : vector<128x16xf32>
    %57 = vector.shape_cast %56 : vector<128x16xf32> to vector<2x64x16xf32>
    "tpu.trace_start"() <{level = 10 : i32, message = "bqd,bkd->bqk"}> : () -> ()
    %cst_40 = arith.constant dense<0.000000e+00> : vector<2x64x64xf32>
    %58 = tpu.matmul %41, %49, %cst_40 {dimension_numbers = #tpu.dot_dimension_numbers<[2], [2], [1], [1], [0, 0, 0, 1, 1, 1], [0], [0]>} : vector<2x64x16xf32>, vector<2x64x16xf32>, vector<2x64x64xf32> -> vector<2x64x64xf32>
    "tpu.trace_stop"() : () -> ()
    %cst_41 = arith.constant 2.500000e-01 : f32
    %59 = vector.broadcast %cst_41 : f32 to vector<2x64x64xf32>
    %60 = arith.mulf %58, %59 : vector<2x64x64xf32>
    %61 = vector.shape_cast %32 : vector<64x64xf32> to vector<1x64x64xf32>
    %62 = vector.broadcast %61 : vector<1x64x64xf32> to vector<2x64x64xf32>
    %63 = arith.addf %60, %62 : vector<2x64x64xf32>
    %cst_42 = arith.constant dense<0xFF800000> : vector<2x64xf32>
    %64 = vector.multi_reduction <maximumf>, %63, %cst_42 [2] : vector<2x64x64xf32> to vector<2x64xf32>
    %65 = vector.shape_cast %64 : vector<2x64xf32> to vector<2x64x1xf32>
    %66 = vector.broadcast %65 : vector<2x64x1xf32> to vector<2x64x64xf32>
    %67 = arith.subf %63, %66 : vector<2x64x64xf32>
    %68 = math.exp %67 : vector<2x64x64xf32>
    %cst_43 = arith.constant dense<0.000000e+00> : vector<2x64xf32>
    %69 = vector.multi_reduction <add>, %68, %cst_43 [2] : vector<2x64x64xf32> to vector<2x64xf32>
    %70 = vector.shape_cast %69 : vector<2x64xf32> to vector<2x64x1xf32>
    %71 = tpu.reciprocal %70 {approx = true} : vector<2x64x1xf32> -> vector<2x64x1xf32>
    %72 = vector.broadcast %71 : vector<2x64x1xf32> to vector<2x64x64xf32>
    %73 = arith.mulf %68, %72 : vector<2x64x64xf32>
    %c0_44 = arith.constant 0 : index
    %c0_45 = arith.constant 0 : index
    %c0_46 = arith.constant 0 : index
    %c0_47 = arith.constant 0 : index
    %c0_48 = arith.constant 0 : index
    %74 = vector.load %arg20[%c0_44, %c0_45, %c0_46, %c0_47, %c0_48] : memref<2x2x2x64x64xf32, #tpu.memory_space<vmem>>, vector<1x1x2x64x64xf32>
    %75 = vector.shape_cast %74 : vector<1x1x2x64x64xf32> to vector<2x64x64xf32>
    %76 = vector.shape_cast %73 : vector<2x64x64xf32> to vector<1x1x2x64x64xf32>
    tpu.vector_store %arg20[%c0_44, %c0_45, %c0_46, %c0_47, %c0_48], %76 {strides = array<i32>} : memref<2x2x2x64x64xf32, #tpu.memory_space<vmem>>, vector<1x1x2x64x64xf32>,
    "tpu.trace_start"() <{level = 10 : i32, message = "bqk,bkd->bqd"}> : () -> ()
    %cst_49 = arith.constant dense<0.000000e+00> : vector<2x64x16xf32>
    %77 = tpu.matmul %73, %57, %cst_49 {dimension_numbers = #tpu.dot_dimension_numbers<[2], [1], [1], [2], [0, 0, 0, 1, 1, 2], [0], [0]>} : vector<2x64x64xf32>, vector<2x64x16xf32>, vector<2x64x16xf32> -> vector<2x64x16xf32>
    "tpu.trace_stop"() : () -> ()
    %78 = vector.shape_cast %77 : vector<2x64x16xf32> to vector<128x16xf32>
    %c0_50 = arith.constant 0 : index
    %c0_51 = arith.constant 0 : index
    %c0_52 = arith.constant 0 : index
    %c0_53 = arith.constant 0 : index
    %79 = vector.load %arg9[%c0_50, %c0_51, %c0_52, %c0_53] : memref<2x2x16x32xf32, #tpu.memory_space<vmem>>, vector<1x1x16x32xf32>
    %80 = vector.shape_cast %79 : vector<1x1x16x32xf32> to vector<16x32xf32>
    %cst_54 = arith.constant dense<0.000000e+00> : vector<128x32xf32>
    %81 = tpu.matmul %78, %80, %cst_54 {dimension_numbers = #tpu.dot_dimension_numbers<[1], [0], [0], [1], [0, 0, 1, 1], [], []>} : vector<128x16xf32>, vector<16x32xf32>, vector<128x32xf32> -> vector<128x32xf32>
    %82 = arith.addf %33, %81 : vector<128x32xf32>
    %c0_55 = arith.constant 0 : index
    %c1 = arith.constant 1 : index
    %c0_56 = arith.constant 0 : index
    %c0_57 = arith.constant 0 : index
    %83 = vector.load %arg3[%c0_55, %c1, %c0_56, %c0_57] : memref<2x2x32x16xf32, #tpu.memory_space<vmem>>, vector<1x1x32x16xf32>
    %84 = vector.shape_cast %83 : vector<1x1x32x16xf32> to vector<32x16xf32>
    %cst_58 = arith.constant dense<0.000000e+00> : vector<128x16xf32>
    %85 = tpu.matmul %26, %84, %cst_58 {dimension_numbers = #tpu.dot_dimension_numbers<[1], [0], [0], [1], [0, 0, 1, 1], [], []>} : vector<128x32xf32>, vector<32x16xf32>, vector<128x16xf32> -> vector<128x16xf32>
    %c0_59 = arith.constant 0 : index
    %c1_60 = arith.constant 1 : index
    %c0_61 = arith.constant 0 : index
    %c0_62 = arith.constant 0 : index
    %86 = vector.load %arg4[%c0_59, %c1_60, %c0_61, %c0_62] : memref<2x2x1x16xf32, #tpu.memory_space<vmem>>, vector<1x1x1x16xf32>
    %87 = vector.shape_cast %86 : vector<1x1x1x16xf32> to vector<1x16xf32>
    %88 = vector.broadcast %87 : vector<1x16xf32> to vector<128x16xf32>
    %89 = arith.addf %85, %88 : vector<128x16xf32>
    %90 = vector.shape_cast %89 : vector<128x16xf32> to vector<2x64x16xf32>
    %c0_63 = arith.constant 0 : index
    %c1_64 = arith.constant 1 : index
    %c0_65 = arith.constant 0 : index
    %c0_66 = arith.constant 0 : index
    %91 = vector.load %arg5[%c0_63, %c1_64, %c0_65, %c0_66] : memref<2x2x32x16xf32, #tpu.memory_space<vmem>>, vector<1x1x32x16xf32>
    %92 = vector.shape_cast %91 : vector<1x1x32x16xf32> to vector<32x16xf32>
    %cst_67 = arith.constant dense<0.000000e+00> : vector<128x16xf32>
    %93 = tpu.matmul %26, %92, %cst_67 {dimension_numbers = #tpu.dot_dimension_numbers<[1], [0], [0], [1], [0, 0, 1, 1], [], []>} : vector<128x32xf32>, vector<32x16xf32>, vector<128x16xf32> -> vector<128x16xf32>
    %c0_68 = arith.constant 0 : index
    %c1_69 = arith.constant 1 : index
    %c0_70 = arith.constant 0 : index
    %c0_71 = arith.constant 0 : index
    %94 = vector.load %arg6[%c0_68, %c1_69, %c0_70, %c0_71] : memref<2x2x1x16xf32, #tpu.memory_space<vmem>>, vector<1x1x1x16xf32>
    %95 = vector.shape_cast %94 : vector<1x1x1x16xf32> to vector<1x16xf32>
    %96 = vector.broadcast %95 : vector<1x16xf32> to vector<128x16xf32>
    %97 = arith.addf %93, %96 : vector<128x16xf32>
    %98 = vector.shape_cast %97 : vector<128x16xf32> to vector<2x64x16xf32>
    %c0_72 = arith.constant 0 : index
    %c1_73 = arith.constant 1 : index
    %c0_74 = arith.constant 0 : index
    %c0_75 = arith.constant 0 : index
    %99 = vector.load %arg7[%c0_72, %c1_73, %c0_74, %c0_75] : memref<2x2x32x16xf32, #tpu.memory_space<vmem>>, vector<1x1x32x16xf32>
    %100 = vector.shape_cast %99 : vector<1x1x32x16xf32> to vector<32x16xf32>
    %cst_76 = arith.constant dense<0.000000e+00> : vector<128x16xf32>
    %101 = tpu.matmul %26, %100, %cst_76 {dimension_numbers = #tpu.dot_dimension_numbers<[1], [0], [0], [1], [0, 0, 1, 1], [], []>} : vector<128x32xf32>, vector<32x16xf32>, vector<128x16xf32> -> vector<128x16xf32>
    %c0_77 = arith.constant 0 : index
    %c1_78 = arith.constant 1 : index
    %c0_79 = arith.constant 0 : index
    %c0_80 = arith.constant 0 : index
    %102 = vector.load %arg8[%c0_77, %c1_78, %c0_79, %c0_80] : memref<2x2x1x16xf32, #tpu.memory_space<vmem>>, vector<1x1x1x16xf32>
    %103 = vector.shape_cast %102 : vector<1x1x1x16xf32> to vector<1x16xf32>
    %104 = vector.broadcast %103 : vector<1x16xf32> to vector<128x16xf32>
    %105 = arith.addf %101, %104 : vector<128x16xf32>
    %106 = vector.shape_cast %105 : vector<128x16xf32> to vector<2x64x16xf32>
    "tpu.trace_start"() <{level = 10 : i32, message = "bqd,bkd->bqk"}> : () -> ()
    %cst_81 = arith.constant dense<0.000000e+00> : vector<2x64x64xf32>
    %107 = tpu.matmul %90, %98, %cst_81 {dimension_numbers = #tpu.dot_dimension_numbers<[2], [2], [1], [1], [0, 0, 0, 1, 1, 1], [0], [0]>} : vector<2x64x16xf32>, vector<2x64x16xf32>, vector<2x64x64xf32> -> vector<2x64x64xf32>
    "tpu.trace_stop"() : () -> ()
    %cst_82 = arith.constant 2.500000e-01 : f32
    %108 = vector.broadcast %cst_82 : f32 to vector<2x64x64xf32>
    %109 = arith.mulf %107, %108 : vector<2x64x64xf32>
    %110 = vector.shape_cast %32 : vector<64x64xf32> to vector<1x64x64xf32>
    %111 = vector.broadcast %110 : vector<1x64x64xf32> to vector<2x64x64xf32>
    %112 = arith.addf %109, %111 : vector<2x64x64xf32>
    %cst_83 = arith.constant dense<0xFF800000> : vector<2x64xf32>
    %113 = vector.multi_reduction <maximumf>, %112, %cst_83 [2] : vector<2x64x64xf32> to vector<2x64xf32>
    %114 = vector.shape_cast %113 : vector<2x64xf32> to vector<2x64x1xf32>
    %115 = vector.broadcast %114 : vector<2x64x1xf32> to vector<2x64x64xf32>
    %116 = arith.subf %112, %115 : vector<2x64x64xf32>
    %117 = math.exp %116 : vector<2x64x64xf32>
    %cst_84 = arith.constant dense<0.000000e+00> : vector<2x64xf32>
    %118 = vector.multi_reduction <add>, %117, %cst_84 [2] : vector<2x64x64xf32> to vector<2x64xf32>
    %119 = vector.shape_cast %118 : vector<2x64xf32> to vector<2x64x1xf32>
    %120 = tpu.reciprocal %119 {approx = true} : vector<2x64x1xf32> -> vector<2x64x1xf32>
    %121 = vector.broadcast %120 : vector<2x64x1xf32> to vector<2x64x64xf32>
    %122 = arith.mulf %117, %121 : vector<2x64x64xf32>
    %c0_85 = arith.constant 0 : index
    %c1_86 = arith.constant 1 : index
    %c0_87 = arith.constant 0 : index
    %c0_88 = arith.constant 0 : index
    %c0_89 = arith.constant 0 : index
    %123 = vector.load %arg20[%c0_85, %c1_86, %c0_87, %c0_88, %c0_89] : memref<2x2x2x64x64xf32, #tpu.memory_space<vmem>>, vector<1x1x2x64x64xf32>
    %124 = vector.shape_cast %123 : vector<1x1x2x64x64xf32> to vector<2x64x64xf32>
    %125 = vector.shape_cast %122 : vector<2x64x64xf32> to vector<1x1x2x64x64xf32>
    tpu.vector_store %arg20[%c0_85, %c1_86, %c0_87, %c0_88, %c0_89], %125 {strides = array<i32>} : memref<2x2x2x64x64xf32, #tpu.memory_space<vmem>>, vector<1x1x2x64x64xf32>,
    "tpu.trace_start"() <{level = 10 : i32, message = "bqk,bkd->bqd"}> : () -> ()
    %cst_90 = arith.constant dense<0.000000e+00> : vector<2x64x16xf32>
    %126 = tpu.matmul %122, %106, %cst_90 {dimension_numbers = #tpu.dot_dimension_numbers<[2], [1], [1], [2], [0, 0, 0, 1, 1, 2], [0], [0]>} : vector<2x64x64xf32>, vector<2x64x16xf32>, vector<2x64x16xf32> -> vector<2x64x16xf32>
    "tpu.trace_stop"() : () -> ()
    %127 = vector.shape_cast %126 : vector<2x64x16xf32> to vector<128x16xf32>
    %c0_91 = arith.constant 0 : index
    %c1_92 = arith.constant 1 : index
    %c0_93 = arith.constant 0 : index
    %c0_94 = arith.constant 0 : index
    %128 = vector.load %arg9[%c0_91, %c1_92, %c0_93, %c0_94] : memref<2x2x16x32xf32, #tpu.memory_space<vmem>>, vector<1x1x16x32xf32>
    %129 = vector.shape_cast %128 : vector<1x1x16x32xf32> to vector<16x32xf32>
    %cst_95 = arith.constant dense<0.000000e+00> : vector<128x32xf32>
    %130 = tpu.matmul %127, %129, %cst_95 {dimension_numbers = #tpu.dot_dimension_numbers<[1], [0], [0], [1], [0, 0, 1, 1], [], []>} : vector<128x16xf32>, vector<16x32xf32>, vector<128x32xf32> -> vector<128x32xf32>
    %131 = arith.addf %82, %130 : vector<128x32xf32>
    %c0_96 = arith.constant 0 : index
    %c0_97 = arith.constant 0 : index
    %c0_98 = arith.constant 0 : index
    %132 = vector.load %arg10[%c0_96, %c0_97, %c0_98] : memref<2x1x32xf32, #tpu.memory_space<vmem>>, vector<1x1x32xf32>
    %133 = vector.shape_cast %132 : vector<1x1x32xf32> to vector<1x32xf32>
    %134 = vector.broadcast %133 : vector<1x32xf32> to vector<128x32xf32>
    %135 = arith.addf %131, %134 : vector<128x32xf32>
    %136 = arith.addf %26, %135 : vector<128x32xf32>
    %c0_99 = arith.constant 0 : index
    %c0_100 = arith.constant 0 : index
    %c0_101 = arith.constant 0 : index
    %137 = vector.load %arg11[%c0_99, %c0_100, %c0_101] : memref<2x1x32xf32, #tpu.memory_space<vmem>>, vector<1x1x32xf32>
    %138 = vector.shape_cast %137 : vector<1x1x32xf32> to vector<1x32xf32>
    %c0_102 = arith.constant 0 : index
    %c0_103 = arith.constant 0 : index
    %c0_104 = arith.constant 0 : index
    %139 = vector.load %arg12[%c0_102, %c0_103, %c0_104] : memref<2x1x32xf32, #tpu.memory_space<vmem>>, vector<1x1x32xf32>
    %140 = vector.shape_cast %139 : vector<1x1x32xf32> to vector<1x32xf32>
    %cst_105 = arith.constant dense<0.000000e+00> : vector<128xf32>
    %141 = vector.multi_reduction <add>, %136, %cst_105 [1] : vector<128x32xf32> to vector<128xf32>
    %142 = vector.shape_cast %141 : vector<128xf32> to vector<128x1xf32>
    %cst_106 = arith.constant 3.200000e+01 : f32
    %143 = vector.broadcast %cst_106 : f32 to vector<128x1xf32>
    %144 = arith.divf %142, %143 : vector<128x1xf32>
    %145 = arith.mulf %136, %136 : vector<128x32xf32>
    %cst_107 = arith.constant dense<0.000000e+00> : vector<128xf32>
    %146 = vector.multi_reduction <add>, %145, %cst_107 [1] : vector<128x32xf32> to vector<128xf32>
    %147 = vector.shape_cast %146 : vector<128xf32> to vector<128x1xf32>
    %cst_108 = arith.constant 3.200000e+01 : f32
    %148 = vector.broadcast %cst_108 : f32 to vector<128x1xf32>
    %149 = arith.divf %147, %148 : vector<128x1xf32>
    %150 = arith.mulf %144, %144 : vector<128x1xf32>
    %151 = arith.subf %149, %150 : vector<128x1xf32>
    %cst_109 = arith.constant 0.000000e+00 : f32
    %152 = vector.broadcast %cst_109 : f32 to vector<128x1xf32>
    %153 = arith.maximumf %151, %152 : vector<128x1xf32>
    %154 = vector.broadcast %144 : vector<128x1xf32> to vector<128x32xf32>
    %155 = arith.subf %136, %154 : vector<128x32xf32>
    %cst_110 = arith.constant 9.99999974E-6 : f32
    %156 = vector.broadcast %cst_110 : f32 to vector<128x1xf32>
    %157 = arith.addf %153, %156 : vector<128x1xf32>
    %158 = math.rsqrt %157 : vector<128x1xf32>
    %159 = vector.broadcast %158 : vector<128x1xf32> to vector<128x32xf32>
    %160 = arith.mulf %155, %159 : vector<128x32xf32>
    %161 = vector.broadcast %138 : vector<1x32xf32> to vector<128x32xf32>
    %162 = arith.mulf %160, %161 : vector<128x32xf32>
    %163 = vector.broadcast %140 : vector<1x32xf32> to vector<128x32xf32>
    %164 = arith.addf %162, %163 : vector<128x32xf32>
    %c0_111 = arith.constant 0 : index
    %c0_112 = arith.constant 0 : index
    %c0_113 = arith.constant 0 : index
    %165 = vector.load %arg13[%c0_111, %c0_112, %c0_113] : memref<2x32x128xf32, #tpu.memory_space<vmem>>, vector<1x32x128xf32>
    %166 = vector.shape_cast %165 : vector<1x32x128xf32> to vector<32x128xf32>
    %cst_114 = arith.constant dense<0.000000e+00> : vector<128x128xf32>
    %167 = tpu.matmul %164, %166, %cst_114 {dimension_numbers = #tpu.dot_dimension_numbers<[1], [0], [0], [1], [0, 0, 1, 1], [], []>} : vector<128x32xf32>, vector<32x128xf32>, vector<128x128xf32> -> vector<128x128xf32>
    %c0_115 = arith.constant 0 : index
    %c0_116 = arith.constant 0 : index
    %c0_117 = arith.constant 0 : index
    %168 = vector.load %arg14[%c0_115, %c0_116, %c0_117] : memref<2x1x128xf32, #tpu.memory_space<vmem>>, vector<1x1x128xf32>
    %169 = vector.shape_cast %168 : vector<1x1x128xf32> to vector<1x128xf32>
    %170 = vector.broadcast %169 : vector<1x128xf32> to vector<128x128xf32>
    %171 = arith.addf %167, %170 : vector<128x128xf32>
    %cst_118 = arith.constant 5.000000e-01 : f32
    %172 = vector.broadcast %cst_118 : f32 to vector<128x128xf32>
    %173 = arith.mulf %172, %171 : vector<128x128xf32>
    %cst_119 = arith.constant 0.707106769 : f32
    %174 = vector.broadcast %cst_119 : f32 to vector<128x128xf32>
    %175 = arith.mulf %171, %174 : vector<128x128xf32>
    %cst_120 = arith.constant 0.000000e+00 : f32
    %176 = vector.broadcast %cst_120 : f32 to vector<128x128xf32>
    %177 = arith.cmpf oge, %175, %176 : vector<128x128xf32>
    %cst_121 = arith.constant 1.000000e+00 : f32
    %cst_122 = arith.constant -1.000000e+00 : f32
    %178 = vector.broadcast %cst_121 : f32 to vector<128x128xf32>
    %179 = vector.broadcast %cst_122 : f32 to vector<128x128xf32>
    %180 = arith.select %177, %178, %179 : vector<128x128xi1>, vector<128x128xf32>
    %181 = math.absf %175 : vector<128x128xf32>
    %cst_123 = arith.constant 0.327591091 : f32
    %182 = vector.broadcast %cst_123 : f32 to vector<128x128xf32>
    %183 = arith.mulf %182, %181 : vector<128x128xf32>
    %cst_124 = arith.constant 1.000000e+00 : f32
    %184 = vector.broadcast %cst_124 : f32 to vector<128x128xf32>
    %185 = arith.addf %184, %183 : vector<128x128xf32>
    %186 = tpu.reciprocal %185 {approx = true} : vector<128x128xf32> -> vector<128x128xf32>
    %cst_125 = arith.constant 1.06140542 : f32
    %187 = vector.broadcast %cst_125 : f32 to vector<128x128xf32>
    %188 = arith.mulf %187, %186 : vector<128x128xf32>
    %cst_126 = arith.constant -1.45315206 : f32
    %189 = vector.broadcast %cst_126 : f32 to vector<128x128xf32>
    %190 = arith.addf %188, %189 : vector<128x128xf32>
    %191 = arith.mulf %190, %186 : vector<128x128xf32>
    %cst_127 = arith.constant 1.42141378 : f32
    %192 = vector.broadcast %cst_127 : f32 to vector<128x128xf32>
    %193 = arith.addf %191, %192 : vector<128x128xf32>
    %194 = arith.mulf %193, %186 : vector<128x128xf32>
    %cst_128 = arith.constant -0.284496725 : f32
    %195 = vector.broadcast %cst_128 : f32 to vector<128x128xf32>
    %196 = arith.addf %194, %195 : vector<128x128xf32>
    %197 = arith.mulf %196, %186 : vector<128x128xf32>
    %cst_129 = arith.constant 0.254829586 : f32
    %198 = vector.broadcast %cst_129 : f32 to vector<128x128xf32>
    %199 = arith.addf %197, %198 : vector<128x128xf32>
    %200 = arith.mulf %199, %186 : vector<128x128xf32>
    %cst_130 = arith.constant 0.000000e+00 : f32
    %201 = vector.broadcast %cst_130 : f32 to vector<128x128xf32>
    %202 = arith.subf %201, %181 : vector<128x128xf32>
    %203 = arith.mulf %202, %181 : vector<128x128xf32>
    %204 = math.exp %203 : vector<128x128xf32>
    %205 = arith.mulf %200, %204 : vector<128x128xf32>
    %cst_131 = arith.constant 1.000000e+00 : f32
    %206 = vector.broadcast %cst_131 : f32 to vector<128x128xf32>
    %207 = arith.subf %206, %205 : vector<128x128xf32>
    %208 = arith.mulf %180, %207 : vector<128x128xf32>
    %cst_132 = arith.constant 1.000000e+00 : f32
    %209 = vector.broadcast %cst_132 : f32 to vector<128x128xf32>
    %210 = arith.addf %209, %208 : vector<128x128xf32>
    %211 = arith.mulf %173, %210 : vector<128x128xf32>
    %c0_133 = arith.constant 0 : index
    %c0_134 = arith.constant 0 : index
    %c0_135 = arith.constant 0 : index
    %212 = vector.load %arg15[%c0_133, %c0_134, %c0_135] : memref<2x128x32xf32, #tpu.memory_space<vmem>>, vector<1x128x32xf32>
    %213 = vector.shape_cast %212 : vector<1x128x32xf32> to vector<128x32xf32>
    %cst_136 = arith.constant dense<0.000000e+00> : vector<128x32xf32>
    %214 = tpu.matmul %211, %213, %cst_136 {dimension_numbers = #tpu.dot_dimension_numbers<[1], [0], [0], [1], [0, 0, 1, 1], [], []>} : vector<128x128xf32>, vector<128x32xf32>, vector<128x32xf32> -> vector<128x32xf32>
    %c0_137 = arith.constant 0 : index
    %c0_138 = arith.constant 0 : index
    %c0_139 = arith.constant 0 : index
    %215 = vector.load %arg16[%c0_137, %c0_138, %c0_139] : memref<2x1x32xf32, #tpu.memory_space<vmem>>, vector<1x1x32xf32>
    %216 = vector.shape_cast %215 : vector<1x1x32xf32> to vector<1x32xf32>
    %217 = vector.broadcast %216 : vector<1x32xf32> to vector<128x32xf32>
    %218 = arith.addf %214, %217 : vector<128x32xf32>
    %219 = arith.addf %164, %218 : vector<128x32xf32>
    %c0_140 = arith.constant 0 : index
    %c0_141 = arith.constant 0 : index
    %c0_142 = arith.constant 0 : index
    %220 = vector.load %arg17[%c0_140, %c0_141, %c0_142] : memref<2x1x32xf32, #tpu.memory_space<vmem>>, vector<1x1x32xf32>
    %221 = vector.shape_cast %220 : vector<1x1x32xf32> to vector<1x32xf32>
    %c0_143 = arith.constant 0 : index
    %c0_144 = arith.constant 0 : index
    %c0_145 = arith.constant 0 : index
    %222 = vector.load %arg18[%c0_143, %c0_144, %c0_145] : memref<2x1x32xf32, #tpu.memory_space<vmem>>, vector<1x1x32xf32>
    %223 = vector.shape_cast %222 : vector<1x1x32xf32> to vector<1x32xf32>
    %cst_146 = arith.constant dense<0.000000e+00> : vector<128xf32>
    %224 = vector.multi_reduction <add>, %219, %cst_146 [1] : vector<128x32xf32> to vector<128xf32>
    %225 = vector.shape_cast %224 : vector<128xf32> to vector<128x1xf32>
    %cst_147 = arith.constant 3.200000e+01 : f32
    %226 = vector.broadcast %cst_147 : f32 to vector<128x1xf32>
    %227 = arith.divf %225, %226 : vector<128x1xf32>
    %228 = arith.mulf %219, %219 : vector<128x32xf32>
    %cst_148 = arith.constant dense<0.000000e+00> : vector<128xf32>
    %229 = vector.multi_reduction <add>, %228, %cst_148 [1] : vector<128x32xf32> to vector<128xf32>
    %230 = vector.shape_cast %229 : vector<128xf32> to vector<128x1xf32>
    %cst_149 = arith.constant 3.200000e+01 : f32
    %231 = vector.broadcast %cst_149 : f32 to vector<128x1xf32>
    %232 = arith.divf %230, %231 : vector<128x1xf32>
    %233 = arith.mulf %227, %227 : vector<128x1xf32>
    %234 = arith.subf %232, %233 : vector<128x1xf32>
    %cst_150 = arith.constant 0.000000e+00 : f32
    %235 = vector.broadcast %cst_150 : f32 to vector<128x1xf32>
    %236 = arith.maximumf %234, %235 : vector<128x1xf32>
    %237 = vector.broadcast %227 : vector<128x1xf32> to vector<128x32xf32>
    %238 = arith.subf %219, %237 : vector<128x32xf32>
    %cst_151 = arith.constant 9.99999974E-6 : f32
    %239 = vector.broadcast %cst_151 : f32 to vector<128x1xf32>
    %240 = arith.addf %236, %239 : vector<128x1xf32>
    %241 = math.rsqrt %240 : vector<128x1xf32>
    %242 = vector.broadcast %241 : vector<128x1xf32> to vector<128x32xf32>
    %243 = arith.mulf %238, %242 : vector<128x32xf32>
    %244 = vector.broadcast %221 : vector<1x32xf32> to vector<128x32xf32>
    %245 = arith.mulf %243, %244 : vector<128x32xf32>
    %246 = vector.broadcast %223 : vector<1x32xf32> to vector<128x32xf32>
    %247 = arith.addf %245, %246 : vector<128x32xf32>
    %cst_152 = arith.constant 0.000000e+00 : f32
    %248 = vector.broadcast %cst_152 : f32 to vector<128x32xf32>
    %c1_153 = arith.constant 1 : index
    %c0_154 = arith.constant 0 : index
    %c0_155 = arith.constant 0 : index
    %c0_156 = arith.constant 0 : index
    %249 = vector.load %arg3[%c1_153, %c0_154, %c0_155, %c0_156] : memref<2x2x32x16xf32, #tpu.memory_space<vmem>>, vector<1x1x32x16xf32>
    %250 = vector.shape_cast %249 : vector<1x1x32x16xf32> to vector<32x16xf32>
    %cst_157 = arith.constant dense<0.000000e+00> : vector<128x16xf32>
    %251 = tpu.matmul %247, %250, %cst_157 {dimension_numbers = #tpu.dot_dimension_numbers<[1], [0], [0], [1], [0, 0, 1, 1], [], []>} : vector<128x32xf32>, vector<32x16xf32>, vector<128x16xf32> -> vector<128x16xf32>
    %c1_158 = arith.constant 1 : index
    %c0_159 = arith.constant 0 : index
    %c0_160 = arith.constant 0 : index
    %c0_161 = arith.constant 0 : index
    %252 = vector.load %arg4[%c1_158, %c0_159, %c0_160, %c0_161] : memref<2x2x1x16xf32, #tpu.memory_space<vmem>>, vector<1x1x1x16xf32>
    %253 = vector.shape_cast %252 : vector<1x1x1x16xf32> to vector<1x16xf32>
    %254 = vector.broadcast %253 : vector<1x16xf32> to vector<128x16xf32>
    %255 = arith.addf %251, %254 : vector<128x16xf32>
    %256 = vector.shape_cast %255 : vector<128x16xf32> to vector<2x64x16xf32>
    %c1_162 = arith.constant 1 : index
    %c0_163 = arith.constant 0 : index
    %c0_164 = arith.constant 0 : index
    %c0_165 = arith.constant 0 : index
    %257 = vector.load %arg5[%c1_162, %c0_163, %c0_164, %c0_165] : memref<2x2x32x16xf32, #tpu.memory_space<vmem>>, vector<1x1x32x16xf32>
    %258 = vector.shape_cast %257 : vector<1x1x32x16xf32> to vector<32x16xf32>
    %cst_166 = arith.constant dense<0.000000e+00> : vector<128x16xf32>
    %259 = tpu.matmul %247, %258, %cst_166 {dimension_numbers = #tpu.dot_dimension_numbers<[1], [0], [0], [1], [0, 0, 1, 1], [], []>} : vector<128x32xf32>, vector<32x16xf32>, vector<128x16xf32> -> vector<128x16xf32>
    %c1_167 = arith.constant 1 : index
    %c0_168 = arith.constant 0 : index
    %c0_169 = arith.constant 0 : index
    %c0_170 = arith.constant 0 : index
    %260 = vector.load %arg6[%c1_167, %c0_168, %c0_169, %c0_170] : memref<2x2x1x16xf32, #tpu.memory_space<vmem>>, vector<1x1x1x16xf32>
    %261 = vector.shape_cast %260 : vector<1x1x1x16xf32> to vector<1x16xf32>
    %262 = vector.broadcast %261 : vector<1x16xf32> to vector<128x16xf32>
    %263 = arith.addf %259, %262 : vector<128x16xf32>
    %264 = vector.shape_cast %263 : vector<128x16xf32> to vector<2x64x16xf32>
    %c1_171 = arith.constant 1 : index
    %c0_172 = arith.constant 0 : index
    %c0_173 = arith.constant 0 : index
    %c0_174 = arith.constant 0 : index
    %265 = vector.load %arg7[%c1_171, %c0_172, %c0_173, %c0_174] : memref<2x2x32x16xf32, #tpu.memory_space<vmem>>, vector<1x1x32x16xf32>
    %266 = vector.shape_cast %265 : vector<1x1x32x16xf32> to vector<32x16xf32>
    %cst_175 = arith.constant dense<0.000000e+00> : vector<128x16xf32>
    %267 = tpu.matmul %247, %266, %cst_175 {dimension_numbers = #tpu.dot_dimension_numbers<[1], [0], [0], [1], [0, 0, 1, 1], [], []>} : vector<128x32xf32>, vector<32x16xf32>, vector<128x16xf32> -> vector<128x16xf32>
    %c1_176 = arith.constant 1 : index
    %c0_177 = arith.constant 0 : index
    %c0_178 = arith.constant 0 : index
    %c0_179 = arith.constant 0 : index
    %268 = vector.load %arg8[%c1_176, %c0_177, %c0_178, %c0_179] : memref<2x2x1x16xf32, #tpu.memory_space<vmem>>, vector<1x1x1x16xf32>
    %269 = vector.shape_cast %268 : vector<1x1x1x16xf32> to vector<1x16xf32>
    %270 = vector.broadcast %269 : vector<1x16xf32> to vector<128x16xf32>
    %271 = arith.addf %267, %270 : vector<128x16xf32>
    %272 = vector.shape_cast %271 : vector<128x16xf32> to vector<2x64x16xf32>
    "tpu.trace_start"() <{level = 10 : i32, message = "bqd,bkd->bqk"}> : () -> ()
    %cst_180 = arith.constant dense<0.000000e+00> : vector<2x64x64xf32>
    %273 = tpu.matmul %256, %264, %cst_180 {dimension_numbers = #tpu.dot_dimension_numbers<[2], [2], [1], [1], [0, 0, 0, 1, 1, 1], [0], [0]>} : vector<2x64x16xf32>, vector<2x64x16xf32>, vector<2x64x64xf32> -> vector<2x64x64xf32>
    "tpu.trace_stop"() : () -> ()
    %cst_181 = arith.constant 2.500000e-01 : f32
    %274 = vector.broadcast %cst_181 : f32 to vector<2x64x64xf32>
    %275 = arith.mulf %273, %274 : vector<2x64x64xf32>
    %276 = vector.shape_cast %32 : vector<64x64xf32> to vector<1x64x64xf32>
    %277 = vector.broadcast %276 : vector<1x64x64xf32> to vector<2x64x64xf32>
    %278 = arith.addf %275, %277 : vector<2x64x64xf32>
    %cst_182 = arith.constant dense<0xFF800000> : vector<2x64xf32>
    %279 = vector.multi_reduction <maximumf>, %278, %cst_182 [2] : vector<2x64x64xf32> to vector<2x64xf32>
    %280 = vector.shape_cast %279 : vector<2x64xf32> to vector<2x64x1xf32>
    %281 = vector.broadcast %280 : vector<2x64x1xf32> to vector<2x64x64xf32>
    %282 = arith.subf %278, %281 : vector<2x64x64xf32>
    %283 = math.exp %282 : vector<2x64x64xf32>
    %cst_183 = arith.constant dense<0.000000e+00> : vector<2x64xf32>
    %284 = vector.multi_reduction <add>, %283, %cst_183 [2] : vector<2x64x64xf32> to vector<2x64xf32>
    %285 = vector.shape_cast %284 : vector<2x64xf32> to vector<2x64x1xf32>
    %286 = tpu.reciprocal %285 {approx = true} : vector<2x64x1xf32> -> vector<2x64x1xf32>
    %287 = vector.broadcast %286 : vector<2x64x1xf32> to vector<2x64x64xf32>
    %288 = arith.mulf %283, %287 : vector<2x64x64xf32>
    %c1_184 = arith.constant 1 : index
    %c0_185 = arith.constant 0 : index
    %c0_186 = arith.constant 0 : index
    %c0_187 = arith.constant 0 : index
    %c0_188 = arith.constant 0 : index
    %289 = vector.load %arg20[%c1_184, %c0_185, %c0_186, %c0_187, %c0_188] : memref<2x2x2x64x64xf32, #tpu.memory_space<vmem>>, vector<1x1x2x64x64xf32>
    %290 = vector.shape_cast %289 : vector<1x1x2x64x64xf32> to vector<2x64x64xf32>
    %291 = vector.shape_cast %288 : vector<2x64x64xf32> to vector<1x1x2x64x64xf32>
    tpu.vector_store %arg20[%c1_184, %c0_185, %c0_186, %c0_187, %c0_188], %291 {strides = array<i32>} : memref<2x2x2x64x64xf32, #tpu.memory_space<vmem>>, vector<1x1x2x64x64xf32>,
    "tpu.trace_start"() <{level = 10 : i32, message = "bqk,bkd->bqd"}> : () -> ()
    %cst_189 = arith.constant dense<0.000000e+00> : vector<2x64x16xf32>
    %292 = tpu.matmul %288, %272, %cst_189 {dimension_numbers = #tpu.dot_dimension_numbers<[2], [1], [1], [2], [0, 0, 0, 1, 1, 2], [0], [0]>} : vector<2x64x64xf32>, vector<2x64x16xf32>, vector<2x64x16xf32> -> vector<2x64x16xf32>
    "tpu.trace_stop"() : () -> ()
    %293 = vector.shape_cast %292 : vector<2x64x16xf32> to vector<128x16xf32>
    %c1_190 = arith.constant 1 : index
    %c0_191 = arith.constant 0 : index
    %c0_192 = arith.constant 0 : index
    %c0_193 = arith.constant 0 : index
    %294 = vector.load %arg9[%c1_190, %c0_191, %c0_192, %c0_193] : memref<2x2x16x32xf32, #tpu.memory_space<vmem>>, vector<1x1x16x32xf32>
    %295 = vector.shape_cast %294 : vector<1x1x16x32xf32> to vector<16x32xf32>
    %cst_194 = arith.constant dense<0.000000e+00> : vector<128x32xf32>
    %296 = tpu.matmul %293, %295, %cst_194 {dimension_numbers = #tpu.dot_dimension_numbers<[1], [0], [0], [1], [0, 0, 1, 1], [], []>} : vector<128x16xf32>, vector<16x32xf32>, vector<128x32xf32> -> vector<128x32xf32>
    %297 = arith.addf %248, %296 : vector<128x32xf32>
    %c1_195 = arith.constant 1 : index
    %c1_196 = arith.constant 1 : index
    %c0_197 = arith.constant 0 : index
    %c0_198 = arith.constant 0 : index
    %298 = vector.load %arg3[%c1_195, %c1_196, %c0_197, %c0_198] : memref<2x2x32x16xf32, #tpu.memory_space<vmem>>, vector<1x1x32x16xf32>
    %299 = vector.shape_cast %298 : vector<1x1x32x16xf32> to vector<32x16xf32>
    %cst_199 = arith.constant dense<0.000000e+00> : vector<128x16xf32>
    %300 = tpu.matmul %247, %299, %cst_199 {dimension_numbers = #tpu.dot_dimension_numbers<[1], [0], [0], [1], [0, 0, 1, 1], [], []>} : vector<128x32xf32>, vector<32x16xf32>, vector<128x16xf32> -> vector<128x16xf32>
    %c1_200 = arith.constant 1 : index
    %c1_201 = arith.constant 1 : index
    %c0_202 = arith.constant 0 : index
    %c0_203 = arith.constant 0 : index
    %301 = vector.load %arg4[%c1_200, %c1_201, %c0_202, %c0_203] : memref<2x2x1x16xf32, #tpu.memory_space<vmem>>, vector<1x1x1x16xf32>
    %302 = vector.shape_cast %301 : vector<1x1x1x16xf32> to vector<1x16xf32>
    %303 = vector.broadcast %302 : vector<1x16xf32> to vector<128x16xf32>
    %304 = arith.addf %300, %303 : vector<128x16xf32>
    %305 = vector.shape_cast %304 : vector<128x16xf32> to vector<2x64x16xf32>
    %c1_204 = arith.constant 1 : index
    %c1_205 = arith.constant 1 : index
    %c0_206 = arith.constant 0 : index
    %c0_207 = arith.constant 0 : index
    %306 = vector.load %arg5[%c1_204, %c1_205, %c0_206, %c0_207] : memref<2x2x32x16xf32, #tpu.memory_space<vmem>>, vector<1x1x32x16xf32>
    %307 = vector.shape_cast %306 : vector<1x1x32x16xf32> to vector<32x16xf32>
    %cst_208 = arith.constant dense<0.000000e+00> : vector<128x16xf32>
    %308 = tpu.matmul %247, %307, %cst_208 {dimension_numbers = #tpu.dot_dimension_numbers<[1], [0], [0], [1], [0, 0, 1, 1], [], []>} : vector<128x32xf32>, vector<32x16xf32>, vector<128x16xf32> -> vector<128x16xf32>
    %c1_209 = arith.constant 1 : index
    %c1_210 = arith.constant 1 : index
    %c0_211 = arith.constant 0 : index
    %c0_212 = arith.constant 0 : index
    %309 = vector.load %arg6[%c1_209, %c1_210, %c0_211, %c0_212] : memref<2x2x1x16xf32, #tpu.memory_space<vmem>>, vector<1x1x1x16xf32>
    %310 = vector.shape_cast %309 : vector<1x1x1x16xf32> to vector<1x16xf32>
    %311 = vector.broadcast %310 : vector<1x16xf32> to vector<128x16xf32>
    %312 = arith.addf %308, %311 : vector<128x16xf32>
    %313 = vector.shape_cast %312 : vector<128x16xf32> to vector<2x64x16xf32>
    %c1_213 = arith.constant 1 : index
    %c1_214 = arith.constant 1 : index
    %c0_215 = arith.constant 0 : index
    %c0_216 = arith.constant 0 : index
    %314 = vector.load %arg7[%c1_213, %c1_214, %c0_215, %c0_216] : memref<2x2x32x16xf32, #tpu.memory_space<vmem>>, vector<1x1x32x16xf32>
    %315 = vector.shape_cast %314 : vector<1x1x32x16xf32> to vector<32x16xf32>
    %cst_217 = arith.constant dense<0.000000e+00> : vector<128x16xf32>
    %316 = tpu.matmul %247, %315, %cst_217 {dimension_numbers = #tpu.dot_dimension_numbers<[1], [0], [0], [1], [0, 0, 1, 1], [], []>} : vector<128x32xf32>, vector<32x16xf32>, vector<128x16xf32> -> vector<128x16xf32>
    %c1_218 = arith.constant 1 : index
    %c1_219 = arith.constant 1 : index
    %c0_220 = arith.constant 0 : index
    %c0_221 = arith.constant 0 : index
    %317 = vector.load %arg8[%c1_218, %c1_219, %c0_220, %c0_221] : memref<2x2x1x16xf32, #tpu.memory_space<vmem>>, vector<1x1x1x16xf32>
    %318 = vector.shape_cast %317 : vector<1x1x1x16xf32> to vector<1x16xf32>
    %319 = vector.broadcast %318 : vector<1x16xf32> to vector<128x16xf32>
    %320 = arith.addf %316, %319 : vector<128x16xf32>
    %321 = vector.shape_cast %320 : vector<128x16xf32> to vector<2x64x16xf32>
    "tpu.trace_start"() <{level = 10 : i32, message = "bqd,bkd->bqk"}> : () -> ()
    %cst_222 = arith.constant dense<0.000000e+00> : vector<2x64x64xf32>
    %322 = tpu.matmul %305, %313, %cst_222 {dimension_numbers = #tpu.dot_dimension_numbers<[2], [2], [1], [1], [0, 0, 0, 1, 1, 1], [0], [0]>} : vector<2x64x16xf32>, vector<2x64x16xf32>, vector<2x64x64xf32> -> vector<2x64x64xf32>
    "tpu.trace_stop"() : () -> ()
    %cst_223 = arith.constant 2.500000e-01 : f32
    %323 = vector.broadcast %cst_223 : f32 to vector<2x64x64xf32>
    %324 = arith.mulf %322, %323 : vector<2x64x64xf32>
    %325 = vector.shape_cast %32 : vector<64x64xf32> to vector<1x64x64xf32>
    %326 = vector.broadcast %325 : vector<1x64x64xf32> to vector<2x64x64xf32>
    %327 = arith.addf %324, %326 : vector<2x64x64xf32>
    %cst_224 = arith.constant dense<0xFF800000> : vector<2x64xf32>
    %328 = vector.multi_reduction <maximumf>, %327, %cst_224 [2] : vector<2x64x64xf32> to vector<2x64xf32>
    %329 = vector.shape_cast %328 : vector<2x64xf32> to vector<2x64x1xf32>
    %330 = vector.broadcast %329 : vector<2x64x1xf32> to vector<2x64x64xf32>
    %331 = arith.subf %327, %330 : vector<2x64x64xf32>
    %332 = math.exp %331 : vector<2x64x64xf32>
    %cst_225 = arith.constant dense<0.000000e+00> : vector<2x64xf32>
    %333 = vector.multi_reduction <add>, %332, %cst_225 [2] : vector<2x64x64xf32> to vector<2x64xf32>
    %334 = vector.shape_cast %333 : vector<2x64xf32> to vector<2x64x1xf32>
    %335 = tpu.reciprocal %334 {approx = true} : vector<2x64x1xf32> -> vector<2x64x1xf32>
    %336 = vector.broadcast %335 : vector<2x64x1xf32> to vector<2x64x64xf32>
    %337 = arith.mulf %332, %336 : vector<2x64x64xf32>
    %c1_226 = arith.constant 1 : index
    %c1_227 = arith.constant 1 : index
    %c0_228 = arith.constant 0 : index
    %c0_229 = arith.constant 0 : index
    %c0_230 = arith.constant 0 : index
    %338 = vector.load %arg20[%c1_226, %c1_227, %c0_228, %c0_229, %c0_230] : memref<2x2x2x64x64xf32, #tpu.memory_space<vmem>>, vector<1x1x2x64x64xf32>
    %339 = vector.shape_cast %338 : vector<1x1x2x64x64xf32> to vector<2x64x64xf32>
    %340 = vector.shape_cast %337 : vector<2x64x64xf32> to vector<1x1x2x64x64xf32>
    tpu.vector_store %arg20[%c1_226, %c1_227, %c0_228, %c0_229, %c0_230], %340 {strides = array<i32>} : memref<2x2x2x64x64xf32, #tpu.memory_space<vmem>>, vector<1x1x2x64x64xf32>,
    "tpu.trace_start"() <{level = 10 : i32, message = "bqk,bkd->bqd"}> : () -> ()
    %cst_231 = arith.constant dense<0.000000e+00> : vector<2x64x16xf32>
    %341 = tpu.matmul %337, %321, %cst_231 {dimension_numbers = #tpu.dot_dimension_numbers<[2], [1], [1], [2], [0, 0, 0, 1, 1, 2], [0], [0]>} : vector<2x64x64xf32>, vector<2x64x16xf32>, vector<2x64x16xf32> -> vector<2x64x16xf32>
    "tpu.trace_stop"() : () -> ()
    %342 = vector.shape_cast %341 : vector<2x64x16xf32> to vector<128x16xf32>
    %c1_232 = arith.constant 1 : index
    %c1_233 = arith.constant 1 : index
    %c0_234 = arith.constant 0 : index
    %c0_235 = arith.constant 0 : index
    %343 = vector.load %arg9[%c1_232, %c1_233, %c0_234, %c0_235] : memref<2x2x16x32xf32, #tpu.memory_space<vmem>>, vector<1x1x16x32xf32>
    %344 = vector.shape_cast %343 : vector<1x1x16x32xf32> to vector<16x32xf32>
    %cst_236 = arith.constant dense<0.000000e+00> : vector<128x32xf32>
    %345 = tpu.matmul %342, %344, %cst_236 {dimension_numbers = #tpu.dot_dimension_numbers<[1], [0], [0], [1], [0, 0, 1, 1], [], []>} : vector<128x16xf32>, vector<16x32xf32>, vector<128x32xf32> -> vector<128x32xf32>
    %346 = arith.addf %297, %345 : vector<128x32xf32>
    %c1_237 = arith.constant 1 : index
    %c0_238 = arith.constant 0 : index
    %c0_239 = arith.constant 0 : index
    %347 = vector.load %arg10[%c1_237, %c0_238, %c0_239] : memref<2x1x32xf32, #tpu.memory_space<vmem>>, vector<1x1x32xf32>
    %348 = vector.shape_cast %347 : vector<1x1x32xf32> to vector<1x32xf32>
    %349 = vector.broadcast %348 : vector<1x32xf32> to vector<128x32xf32>
    %350 = arith.addf %346, %349 : vector<128x32xf32>
    %351 = arith.addf %247, %350 : vector<128x32xf32>
    %c1_240 = arith.constant 1 : index
    %c0_241 = arith.constant 0 : index
    %c0_242 = arith.constant 0 : index
    %352 = vector.load %arg11[%c1_240, %c0_241, %c0_242] : memref<2x1x32xf32, #tpu.memory_space<vmem>>, vector<1x1x32xf32>
    %353 = vector.shape_cast %352 : vector<1x1x32xf32> to vector<1x32xf32>
    %c1_243 = arith.constant 1 : index
    %c0_244 = arith.constant 0 : index
    %c0_245 = arith.constant 0 : index
    %354 = vector.load %arg12[%c1_243, %c0_244, %c0_245] : memref<2x1x32xf32, #tpu.memory_space<vmem>>, vector<1x1x32xf32>
    %355 = vector.shape_cast %354 : vector<1x1x32xf32> to vector<1x32xf32>
    %cst_246 = arith.constant dense<0.000000e+00> : vector<128xf32>
    %356 = vector.multi_reduction <add>, %351, %cst_246 [1] : vector<128x32xf32> to vector<128xf32>
    %357 = vector.shape_cast %356 : vector<128xf32> to vector<128x1xf32>
    %cst_247 = arith.constant 3.200000e+01 : f32
    %358 = vector.broadcast %cst_247 : f32 to vector<128x1xf32>
    %359 = arith.divf %357, %358 : vector<128x1xf32>
    %360 = arith.mulf %351, %351 : vector<128x32xf32>
    %cst_248 = arith.constant dense<0.000000e+00> : vector<128xf32>
    %361 = vector.multi_reduction <add>, %360, %cst_248 [1] : vector<128x32xf32> to vector<128xf32>
    %362 = vector.shape_cast %361 : vector<128xf32> to vector<128x1xf32>
    %cst_249 = arith.constant 3.200000e+01 : f32
    %363 = vector.broadcast %cst_249 : f32 to vector<128x1xf32>
    %364 = arith.divf %362, %363 : vector<128x1xf32>
    %365 = arith.mulf %359, %359 : vector<128x1xf32>
    %366 = arith.subf %364, %365 : vector<128x1xf32>
    %cst_250 = arith.constant 0.000000e+00 : f32
    %367 = vector.broadcast %cst_250 : f32 to vector<128x1xf32>
    %368 = arith.maximumf %366, %367 : vector<128x1xf32>
    %369 = vector.broadcast %359 : vector<128x1xf32> to vector<128x32xf32>
    %370 = arith.subf %351, %369 : vector<128x32xf32>
    %cst_251 = arith.constant 9.99999974E-6 : f32
    %371 = vector.broadcast %cst_251 : f32 to vector<128x1xf32>
    %372 = arith.addf %368, %371 : vector<128x1xf32>
    %373 = math.rsqrt %372 : vector<128x1xf32>
    %374 = vector.broadcast %373 : vector<128x1xf32> to vector<128x32xf32>
    %375 = arith.mulf %370, %374 : vector<128x32xf32>
    %376 = vector.broadcast %353 : vector<1x32xf32> to vector<128x32xf32>
    %377 = arith.mulf %375, %376 : vector<128x32xf32>
    %378 = vector.broadcast %355 : vector<1x32xf32> to vector<128x32xf32>
    %379 = arith.addf %377, %378 : vector<128x32xf32>
    %c1_252 = arith.constant 1 : index
    %c0_253 = arith.constant 0 : index
    %c0_254 = arith.constant 0 : index
    %380 = vector.load %arg13[%c1_252, %c0_253, %c0_254] : memref<2x32x128xf32, #tpu.memory_space<vmem>>, vector<1x32x128xf32>
    %381 = vector.shape_cast %380 : vector<1x32x128xf32> to vector<32x128xf32>
    %cst_255 = arith.constant dense<0.000000e+00> : vector<128x128xf32>
    %382 = tpu.matmul %379, %381, %cst_255 {dimension_numbers = #tpu.dot_dimension_numbers<[1], [0], [0], [1], [0, 0, 1, 1], [], []>} : vector<128x32xf32>, vector<32x128xf32>, vector<128x128xf32> -> vector<128x128xf32>
    %c1_256 = arith.constant 1 : index
    %c0_257 = arith.constant 0 : index
    %c0_258 = arith.constant 0 : index
    %383 = vector.load %arg14[%c1_256, %c0_257, %c0_258] : memref<2x1x128xf32, #tpu.memory_space<vmem>>, vector<1x1x128xf32>
    %384 = vector.shape_cast %383 : vector<1x1x128xf32> to vector<1x128xf32>
    %385 = vector.broadcast %384 : vector<1x128xf32> to vector<128x128xf32>
    %386 = arith.addf %382, %385 : vector<128x128xf32>
    %cst_259 = arith.constant 5.000000e-01 : f32
    %387 = vector.broadcast %cst_259 : f32 to vector<128x128xf32>
    %388 = arith.mulf %387, %386 : vector<128x128xf32>
    %cst_260 = arith.constant 0.707106769 : f32
    %389 = vector.broadcast %cst_260 : f32 to vector<128x128xf32>
    %390 = arith.mulf %386, %389 : vector<128x128xf32>
    %cst_261 = arith.constant 0.000000e+00 : f32
    %391 = vector.broadcast %cst_261 : f32 to vector<128x128xf32>
    %392 = arith.cmpf oge, %390, %391 : vector<128x128xf32>
    %cst_262 = arith.constant 1.000000e+00 : f32
    %cst_263 = arith.constant -1.000000e+00 : f32
    %393 = vector.broadcast %cst_262 : f32 to vector<128x128xf32>
    %394 = vector.broadcast %cst_263 : f32 to vector<128x128xf32>
    %395 = arith.select %392, %393, %394 : vector<128x128xi1>, vector<128x128xf32>
    %396 = math.absf %390 : vector<128x128xf32>
    %cst_264 = arith.constant 0.327591091 : f32
    %397 = vector.broadcast %cst_264 : f32 to vector<128x128xf32>
    %398 = arith.mulf %397, %396 : vector<128x128xf32>
    %cst_265 = arith.constant 1.000000e+00 : f32
    %399 = vector.broadcast %cst_265 : f32 to vector<128x128xf32>
    %400 = arith.addf %399, %398 : vector<128x128xf32>
    %401 = tpu.reciprocal %400 {approx = true} : vector<128x128xf32> -> vector<128x128xf32>
    %cst_266 = arith.constant 1.06140542 : f32
    %402 = vector.broadcast %cst_266 : f32 to vector<128x128xf32>
    %403 = arith.mulf %402, %401 : vector<128x128xf32>
    %cst_267 = arith.constant -1.45315206 : f32
    %404 = vector.broadcast %cst_267 : f32 to vector<128x128xf32>
    %405 = arith.addf %403, %404 : vector<128x128xf32>
    %406 = arith.mulf %405, %401 : vector<128x128xf32>
    %cst_268 = arith.constant 1.42141378 : f32
    %407 = vector.broadcast %cst_268 : f32 to vector<128x128xf32>
    %408 = arith.addf %406, %407 : vector<128x128xf32>
    %409 = arith.mulf %408, %401 : vector<128x128xf32>
    %cst_269 = arith.constant -0.284496725 : f32
    %410 = vector.broadcast %cst_269 : f32 to vector<128x128xf32>
    %411 = arith.addf %409, %410 : vector<128x128xf32>
    %412 = arith.mulf %411, %401 : vector<128x128xf32>
    %cst_270 = arith.constant 0.254829586 : f32
    %413 = vector.broadcast %cst_270 : f32 to vector<128x128xf32>
    %414 = arith.addf %412, %413 : vector<128x128xf32>
    %415 = arith.mulf %414, %401 : vector<128x128xf32>
    %cst_271 = arith.constant 0.000000e+00 : f32
    %416 = vector.broadcast %cst_271 : f32 to vector<128x128xf32>
    %417 = arith.subf %416, %396 : vector<128x128xf32>
    %418 = arith.mulf %417, %396 : vector<128x128xf32>
    %419 = math.exp %418 : vector<128x128xf32>
    %420 = arith.mulf %415, %419 : vector<128x128xf32>
    %cst_272 = arith.constant 1.000000e+00 : f32
    %421 = vector.broadcast %cst_272 : f32 to vector<128x128xf32>
    %422 = arith.subf %421, %420 : vector<128x128xf32>
    %423 = arith.mulf %395, %422 : vector<128x128xf32>
    %cst_273 = arith.constant 1.000000e+00 : f32
    %424 = vector.broadcast %cst_273 : f32 to vector<128x128xf32>
    %425 = arith.addf %424, %423 : vector<128x128xf32>
    %426 = arith.mulf %388, %425 : vector<128x128xf32>
    %c1_274 = arith.constant 1 : index
    %c0_275 = arith.constant 0 : index
    %c0_276 = arith.constant 0 : index
    %427 = vector.load %arg15[%c1_274, %c0_275, %c0_276] : memref<2x128x32xf32, #tpu.memory_space<vmem>>, vector<1x128x32xf32>
    %428 = vector.shape_cast %427 : vector<1x128x32xf32> to vector<128x32xf32>
    %cst_277 = arith.constant dense<0.000000e+00> : vector<128x32xf32>
    %429 = tpu.matmul %426, %428, %cst_277 {dimension_numbers = #tpu.dot_dimension_numbers<[1], [0], [0], [1], [0, 0, 1, 1], [], []>} : vector<128x128xf32>, vector<128x32xf32>, vector<128x32xf32> -> vector<128x32xf32>
    %c1_278 = arith.constant 1 : index
    %c0_279 = arith.constant 0 : index
    %c0_280 = arith.constant 0 : index
    %430 = vector.load %arg16[%c1_278, %c0_279, %c0_280] : memref<2x1x32xf32, #tpu.memory_space<vmem>>, vector<1x1x32xf32>
    %431 = vector.shape_cast %430 : vector<1x1x32xf32> to vector<1x32xf32>
    %432 = vector.broadcast %431 : vector<1x32xf32> to vector<128x32xf32>
    %433 = arith.addf %429, %432 : vector<128x32xf32>
    %434 = arith.addf %379, %433 : vector<128x32xf32>
    %c1_281 = arith.constant 1 : index
    %c0_282 = arith.constant 0 : index
    %c0_283 = arith.constant 0 : index
    %435 = vector.load %arg17[%c1_281, %c0_282, %c0_283] : memref<2x1x32xf32, #tpu.memory_space<vmem>>, vector<1x1x32xf32>
    %436 = vector.shape_cast %435 : vector<1x1x32xf32> to vector<1x32xf32>
    %c1_284 = arith.constant 1 : index
    %c0_285 = arith.constant 0 : index
    %c0_286 = arith.constant 0 : index
    %437 = vector.load %arg18[%c1_284, %c0_285, %c0_286] : memref<2x1x32xf32, #tpu.memory_space<vmem>>, vector<1x1x32xf32>
    %438 = vector.shape_cast %437 : vector<1x1x32xf32> to vector<1x32xf32>
    %cst_287 = arith.constant dense<0.000000e+00> : vector<128xf32>
    %439 = vector.multi_reduction <add>, %434, %cst_287 [1] : vector<128x32xf32> to vector<128xf32>
    %440 = vector.shape_cast %439 : vector<128xf32> to vector<128x1xf32>
    %cst_288 = arith.constant 3.200000e+01 : f32
    %441 = vector.broadcast %cst_288 : f32 to vector<128x1xf32>
    %442 = arith.divf %440, %441 : vector<128x1xf32>
    %443 = arith.mulf %434, %434 : vector<128x32xf32>
    %cst_289 = arith.constant dense<0.000000e+00> : vector<128xf32>
    %444 = vector.multi_reduction <add>, %443, %cst_289 [1] : vector<128x32xf32> to vector<128xf32>
    %445 = vector.shape_cast %444 : vector<128xf32> to vector<128x1xf32>
    %cst_290 = arith.constant 3.200000e+01 : f32
    %446 = vector.broadcast %cst_290 : f32 to vector<128x1xf32>
    %447 = arith.divf %445, %446 : vector<128x1xf32>
    %448 = arith.mulf %442, %442 : vector<128x1xf32>
    %449 = arith.subf %447, %448 : vector<128x1xf32>
    %cst_291 = arith.constant 0.000000e+00 : f32
    %450 = vector.broadcast %cst_291 : f32 to vector<128x1xf32>
    %451 = arith.maximumf %449, %450 : vector<128x1xf32>
    %452 = vector.broadcast %442 : vector<128x1xf32> to vector<128x32xf32>
    %453 = arith.subf %434, %452 : vector<128x32xf32>
    %cst_292 = arith.constant 9.99999974E-6 : f32
    %454 = vector.broadcast %cst_292 : f32 to vector<128x1xf32>
    %455 = arith.addf %451, %454 : vector<128x1xf32>
    %456 = math.rsqrt %455 : vector<128x1xf32>
    %457 = vector.broadcast %456 : vector<128x1xf32> to vector<128x32xf32>
    %458 = arith.mulf %453, %457 : vector<128x32xf32>
    %459 = vector.broadcast %436 : vector<1x32xf32> to vector<128x32xf32>
    %460 = arith.mulf %458, %459 : vector<128x32xf32>
    %461 = vector.broadcast %438 : vector<1x32xf32> to vector<128x32xf32>
    %462 = arith.addf %460, %461 : vector<128x32xf32>
    %c0_293 = arith.constant 0 : index
    %c0_294 = arith.constant 0 : index
    %463 = vector.load %arg19[%c0_293, %c0_294] : memref<128x32xf32, #tpu.memory_space<vmem>>, vector<128x32xf32>
    tpu.vector_store %arg19[%c0_293, %c0_294], %462 {strides = array<i32>} : memref<128x32xf32, #tpu.memory_space<vmem>>, vector<128x32xf32>,
    return
  }
}

</mosaic_0001>

<llo_original>
// kernel: decision_transformer_forward.1
$region0: #{decision_transformer_forward.1}
  #allocation0 [shape = 'u32[]', space=smem, size = 0x4, offset = 0x4, fixed_abs, tag = 'smem constant byte address 0x4 - core index']
  #allocation1 [shape = 'u32[144,128]{1,0:T(1,128)}', space=vmem, size = 0x12000, scoped, tag = 'internal scratch']
  %s0 = inlined_call_operand.vmem [shape: f32[128,32], index: 0, kind: input, shape index: {}]
  %s1 = inlined_call_operand.vmem [shape: f32[1,32], index: 1, kind: input, shape index: {}]
  %s2 = inlined_call_operand.vmem [shape: f32[1,32], index: 2, kind: input, shape index: {}]
  %s3 = inlined_call_operand.vmem [shape: f32[2,2,32,16], index: 3, kind: input, shape index: {}]
  %s4 = inlined_call_operand.vmem [shape: f32[2,2,1,16], index: 4, kind: input, shape index: {}]
  %s5 = inlined_call_operand.vmem [shape: f32[2,2,32,16], index: 5, kind: input, shape index: {}]
  %s6 = inlined_call_operand.vmem [shape: f32[2,2,1,16], index: 6, kind: input, shape index: {}]
  %s7 = inlined_call_operand.vmem [shape: f32[2,2,32,16], index: 7, kind: input, shape index: {}]
  %s8 = inlined_call_operand.vmem [shape: f32[2,2,1,16], index: 8, kind: input, shape index: {}]
  %s9 = inlined_call_operand.vmem [shape: f32[2,2,16,32], index: 9, kind: input, shape index: {}]
  %s10 = inlined_call_operand.vmem [shape: f32[2,1,32], index: 10, kind: input, shape index: {}]
  %s11 = inlined_call_operand.vmem [shape: f32[2,1,32], index: 11, kind: input, shape index: {}]
  %s12 = inlined_call_operand.vmem [shape: f32[2,1,32], index: 12, kind: input, shape index: {}]
  %s13 = inlined_call_operand.vmem [shape: f32[2,32,128], index: 13, kind: input, shape index: {}]
  %s14 = inlined_call_operand.vmem [shape: f32[2,1,128], index: 14, kind: input, shape index: {}]
  %s15 = inlined_call_operand.vmem [shape: f32[2,128,32], index: 15, kind: input, shape index: {}]
  %s16 = inlined_call_operand.vmem [shape: f32[2,1,32], index: 16, kind: input, shape index: {}]
  %s17 = inlined_call_operand.vmem [shape: f32[2,1,32], index: 17, kind: input, shape index: {}]
  %s18 = inlined_call_operand.vmem [shape: f32[2,1,32], index: 18, kind: input, shape index: {}]
  %s19 = inlined_call_operand.vmem [shape: f32[128,32], index: 19, kind: output, shape index: {0}]
  %s20 = inlined_call_operand.vmem [shape: f32[2,2,2,64,64], index: 20, kind: output, shape index: {1}]
  %21 = xla_tuple %s19, %s20
  %s22 = sld [smem:[#allocation0]]
  $region94: #{decision_transformer_forward.1} parent=0
    _
  %s24 = ssub.s32 1, %s22
  %s25 = scalar_select 0, %s24, %s22
  // Predicated region
  $region2: #{decision_transformer_forward.1} parent=0 // pred_check
    _
  $region3: #{decision_transformer_forward.1} parent=0 // pred_check_branch
    %27 = sbr.rel (0) target = $region5
  $region4: #{decision_transformer_forward.1} parent=0 // pred_region
    _
  $region5: #{decision_transformer_forward.1} parent=0 // pred_fallthru
    _
  // Predicated region
  $region6: #{decision_transformer_forward.1} parent=0 // pred_check
    _
  $region7: #{decision_transformer_forward.1} parent=0 // pred_check_branch
    %29 = sbr.rel (0) target = $region9
  $region8: #{decision_transformer_forward.1} parent=0 // pred_region
    _
  $region9: #{decision_transformer_forward.1} parent=0 // pred_fallthru
    _
  // Predicated region
  $region10: #{decision_transformer_forward.1} parent=0 // pred_check
    _
  $region11: #{decision_transformer_forward.1} parent=0 // pred_check_branch
    %31 = sbr.rel (0) target = $region13
  $region12: #{decision_transformer_forward.1} parent=0 // pred_region
    _
  $region13: #{decision_transformer_forward.1} parent=0 // pred_fallthru
    _
  // Predicated region
  $region14: #{decision_transformer_forward.1} parent=0 // pred_check
    _
  $region15: #{decision_transformer_forward.1} parent=0 // pred_check_branch
    %33 = sbr.rel (0) target = $region17
  $region16: #{decision_transformer_forward.1} parent=0 // pred_region
    _
  $region17: #{decision_transformer_forward.1} parent=0 // pred_fallthru
    _
  // Predicated region
  $region18: #{decision_transformer_forward.1} parent=0 // pred_check
    _
  $region19: #{decision_transformer_forward.1} parent=0 // pred_check_branch
    %35 = sbr.rel (0) target = $region21
  $region20: #{decision_transformer_forward.1} parent=0 // pred_region
    _
  $region21: #{decision_transformer_forward.1} parent=0 // pred_fallthru
    _
  // Predicated region
  $region22: #{decision_transformer_forward.1} parent=0 // pred_check
    _
  $region23: #{decision_transformer_forward.1} parent=0 // pred_check_branch
    %37 = sbr.rel (0) target = $region25
  $region24: #{decision_transformer_forward.1} parent=0 // pred_region
    _
  $region25: #{decision_transformer_forward.1} parent=0 // pred_fallthru
    _
  // Predicated region
  $region26: #{decision_transformer_forward.1} parent=0 // pred_check
    _
  $region27: #{decision_transformer_forward.1} parent=0 // pred_check_branch
    %39 = sbr.rel (0) target = $region29
  $region28: #{decision_transformer_forward.1} parent=0 // pred_region
    _
  $region29: #{decision_transformer_forward.1} parent=0 // pred_fallthru
    _
  // Predicated region
  $region30: #{decision_transformer_forward.1} parent=0 // pred_check
    _
  $region31: #{decision_transformer_forward.1} parent=0 // pred_check_branch
    %41 = sbr.rel (0) target = $region33
  $region32: #{decision_transformer_forward.1} parent=0 // pred_region
    _
  $region33: #{decision_transformer_forward.1} parent=0 // pred_fallthru
    _
  // Predicated region
  $region34: #{decision_transformer_forward.1} parent=0 // pred_check
    _
  $region35: #{decision_transformer_forward.1} parent=0 // pred_check_branch
    %43 = sbr.rel (0) target = $region37
  $region36: #{decision_transformer_forward.1} parent=0 // pred_region
    _
  $region37: #{decision_transformer_forward.1} parent=0 // pred_fallthru
    _
  // Predicated region
  $region38: #{decision_transformer_forward.1} parent=0 // pred_check
    _
  $region39: #{decision_transformer_forward.1} parent=0 // pred_check_branch
    %45 = sbr.rel (0) target = $region41
  $region40: #{decision_transformer_forward.1} parent=0 // pred_region
    _
  $region41: #{decision_transformer_forward.1} parent=0 // pred_fallthru
    _
  // Predicated region
  $region42: #{decision_transformer_forward.1} parent=0 // pred_check
    _
  $region43: #{decision_transformer_forward.1} parent=0 // pred_check_branch
    %47 = sbr.rel (0) target = $region45
  $region44: #{decision_transformer_forward.1} parent=0 // pred_region
    _
  $region45: #{decision_transformer_forward.1} parent=0 // pred_fallthru
    _
  // Predicated region
  $region46: #{decision_transformer_forward.1} parent=0 // pred_check
    _
  $region47: #{decision_transformer_forward.1} parent=0 // pred_check_branch
    %49 = sbr.rel (0) target = $region49
  $region48: #{decision_transformer_forward.1} parent=0 // pred_region
    _
  $region49: #{decision_transformer_forward.1} parent=0 // pred_fallthru
    _
  // Predicated region
  $region50: #{decision_transformer_forward.1} parent=0 // pred_check
    _
  $region51: #{decision_transformer_forward.1} parent=0 // pred_check_branch
    %51 = sbr.rel (0) target = $region53
  $region52: #{decision_transformer_forward.1} parent=0 // pred_region
    _
  $region53: #{decision_transformer_forward.1} parent=0 // pred_fallthru
    _
  // Predicated region
  $region54: #{decision_transformer_forward.1} parent=0 // pred_check
    _
  $region55: #{decision_transformer_forward.1} parent=0 // pred_check_branch
    %53 = sbr.rel (0) target = $region57
  $region56: #{decision_transformer_forward.1} parent=0 // pred_region
    _
  $region57: #{decision_transformer_forward.1} parent=0 // pred_fallthru
    _
  // Predicated region
  $region58: #{decision_transformer_forward.1} parent=0 // pred_check
    _
  $region59: #{decision_transformer_forward.1} parent=0 // pred_check_branch
    %55 = sbr.rel (0) target = $region61
  $region60: #{decision_transformer_forward.1} parent=0 // pred_region
    _
  $region61: #{decision_transformer_forward.1} parent=0 // pred_fallthru
    _
  // Predicated region
  $region62: #{decision_transformer_forward.1} parent=0 // pred_check
    _
  $region63: #{decision_transformer_forward.1} parent=0 // pred_check_branch
    %57 = sbr.rel (0) target = $region65
  $region64: #{decision_transformer_forward.1} parent=0 // pred_region
    _
  $region65: #{decision_transformer_forward.1} parent=0 // pred_fallthru
    _
  // Predicated region
  $region66: #{decision_transformer_forward.1} parent=0 // pred_check
    _
  $region67: #{decision_transformer_forward.1} parent=0 // pred_check_branch
    %59 = sbr.rel (0) target = $region69
  $region68: #{decision_transformer_forward.1} parent=0 // pred_region
    _
  $region69: #{decision_transformer_forward.1} parent=0 // pred_fallthru
    _
  // Predicated region
  $region70: #{decision_transformer_forward.1} parent=0 // pred_check
    _
  $region71: #{decision_transformer_forward.1} parent=0 // pred_check_branch
    %61 = sbr.rel (0) target = $region73
  $region72: #{decision_transformer_forward.1} parent=0 // pred_region
    _
  $region73: #{decision_transformer_forward.1} parent=0 // pred_fallthru
    _
  // Predicated region
  $region74: #{decision_transformer_forward.1} parent=0 // pred_check
    _
  $region75: #{decision_transformer_forward.1} parent=0 // pred_check_branch
    %63 = sbr.rel (0) target = $region77
  $region76: #{decision_transformer_forward.1} parent=0 // pred_region
    _
  $region77: #{decision_transformer_forward.1} parent=0 // pred_fallthru
    _
  %v64 = vld [vmem:[%s0] sm:$0xff]
  %v65 = vld [vmem:[%s0 + $0x8] sm:$0xff]
  %v66 = vld [vmem:[%s0 + $0x10] sm:$0xff]
  %v67 = vld [vmem:[%s0 + $0x18] sm:$0xff]
  %v68 = vld [vmem:[%s0 + $0x20] sm:$0xff]
  %v69 = vld [vmem:[%s0 + $0x28] sm:$0xff]
  %v70 = vld [vmem:[%s0 + $0x30] sm:$0xff]
  %v71 = vld [vmem:[%s0 + $0x38] sm:$0xff]
  %v72 = vld [vmem:[%s0 + $0x40] sm:$0xff]
  %v73 = vld [vmem:[%s0 + $0x48] sm:$0xff]
  %v74 = vld [vmem:[%s0 + $0x50] sm:$0xff]
  %v75 = vld [vmem:[%s0 + $0x58] sm:$0xff]
  %v76 = vld [vmem:[%s0 + $0x60] sm:$0xff]
  %v77 = vld [vmem:[%s0 + $0x68] sm:$0xff]
  %v78 = vld [vmem:[%s0 + $0x70] sm:$0xff]
  %v79 = vld [vmem:[%s0 + $0x78] sm:$0xff]
  %v80 = vld [vmem:[%s1] sm:$0x1]
  %v81 = vld [vmem:[%s2] sm:$0x1]
  %vm82 = vcmask 261120
  %v83 = vsel %vm82, %v64, 0.0
  %84 = vadd.xlane.f32.xlu0 %v83
  %v85 = vpop.xlane.xlu0 %84
  %v86 = vsel %vm82, %v65, 0.0
  %87 = vadd.xlane.f32.xlu0 %v86
  %v88 = vpop.xlane.xlu0 %87
  %v89 = vsel %vm82, %v66, 0.0
  %90 = vadd.xlane.f32.xlu0 %v89
  %v91 = vpop.xlane.xlu0 %90
  %v92 = vsel %vm82, %v67, 0.0
  %93 = vadd.xlane.f32.xlu0 %v92
  %v94 = vpop.xlane.xlu0 %93
  %v95 = vsel %vm82, %v68, 0.0
  %96 = vadd.xlane.f32.xlu0 %v95
  %v97 = vpop.xlane.xlu0 %96
  %v98 = vsel %vm82, %v69, 0.0
  %99 = vadd.xlane.f32.xlu0 %v98
  %v100 = vpop.xlane.xlu0 %99
  %v101 = vsel %vm82, %v70, 0.0
  %102 = vadd.xlane.f32.xlu0 %v101
  %v103 = vpop.xlane.xlu0 %102
  %v104 = vsel %vm82, %v71, 0.0
  %105 = vadd.xlane.f32.xlu0 %v104
  %v106 = vpop.xlane.xlu0 %105
  %v107 = vsel %vm82, %v72, 0.0
  %108 = vadd.xlane.f32.xlu0 %v107
  %v109 = vpop.xlane.xlu0 %108
  %v110 = vsel %vm82, %v73, 0.0
  %111 = vadd.xlane.f32.xlu0 %v110
  %v112 = vpop.xlane.xlu0 %111
  %v113 = vsel %vm82, %v74, 0.0
  %114 = vadd.xlane.f32.xlu0 %v113
  %v115 = vpop.xlane.xlu0 %114
  %v116 = vsel %vm82, %v75, 0.0
  %117 = vadd.xlane.f32.xlu0 %v116
  %v118 = vpop.xlane.xlu0 %117
  %v119 = vsel %vm82, %v76, 0.0
  %120 = vadd.xlane.f32.xlu0 %v119
  %v121 = vpop.xlane.xlu0 %120
  %v122 = vsel %vm82, %v77, 0.0
  %123 = vadd.xlane.f32.xlu0 %v122
  %v124 = vpop.xlane.xlu0 %123
  %v125 = vsel %vm82, %v78, 0.0
  %126 = vadd.xlane.f32.xlu0 %v125
  %v127 = vpop.xlane.xlu0 %126
  %v128 = vsel %vm82, %v79, 0.0
  %129 = vadd.xlane.f32.xlu0 %v128
  %v130 = vpop.xlane.xlu0 %129
  %v131 = vrcp.pop 32.0
  %v132 = vmul.f32 %v85, %v131
  %v133 = vmul.f32 %v88, %v131
  %v134 = vmul.f32 %v91, %v131
  %v135 = vmul.f32 %v94, %v131
  %v136 = vmul.f32 %v97, %v131
  %v137 = vmul.f32 %v100, %v131
  %v138 = vmul.f32 %v103, %v131
  %v139 = vmul.f32 %v106, %v131
  %v140 = vmul.f32 %v109, %v131
  %v141 = vmul.f32 %v112, %v131
  %v142 = vmul.f32 %v115, %v131
  %v143 = vmul.f32 %v118, %v131
  %v144 = vmul.f32 %v121, %v131
  %v145 = vmul.f32 %v124, %v131
  %v146 = vmul.f32 %v127, %v131
  %v147 = vmul.f32 %v130, %v131
  %v148 = vmul.f32 %v64, %v64
  %v149 = vmul.f32 %v65, %v65
  %v150 = vmul.f32 %v66, %v66
  %v151 = vmul.f32 %v67, %v67
  %v152 = vmul.f32 %v68, %v68
  %v153 = vmul.f32 %v69, %v69
  %v154 = vmul.f32 %v70, %v70
  %v155 = vmul.f32 %v71, %v71
  %v156 = vmul.f32 %v72, %v72
  %v157 = vmul.f32 %v73, %v73
  %v158 = vmul.f32 %v74, %v74
  %v159 = vmul.f32 %v75, %v75
  %v160 = vmul.f32 %v76, %v76
  %v161 = vmul.f32 %v77, %v77
  %v162 = vmul.f32 %v78, %v78
  %v163 = vmul.f32 %v79, %v79
  %v164 = vsel %vm82, %v148, 0.0
  %165 = vadd.xlane.f32.xlu0 %v164
  %v166 = vpop.xlane.xlu0 %165
  %v167 = vsel %vm82, %v149, 0.0
  %168 = vadd.xlane.f32.xlu0 %v167
  %v169 = vpop.xlane.xlu0 %168
  %v170 = vsel %vm82, %v150, 0.0
  %171 = vadd.xlane.f32.xlu0 %v170
  %v172 = vpop.xlane.xlu0 %171
  %v173 = vsel %vm82, %v151, 0.0
  %174 = vadd.xlane.f32.xlu0 %v173
  %v175 = vpop.xlane.xlu0 %174
  %v176 = vsel %vm82, %v152, 0.0
  %177 = vadd.xlane.f32.xlu0 %v176
  %v178 = vpop.xlane.xlu0 %177
  %v179 = vsel %vm82, %v153, 0.0
  %180 = vadd.xlane.f32.xlu0 %v179
  %v181 = vpop.xlane.xlu0 %180
  %v182 = vsel %vm82, %v154, 0.0
  %183 = vadd.xlane.f32.xlu0 %v182
  %v184 = vpop.xlane.xlu0 %183
  %v185 = vsel %vm82, %v155, 0.0
  %186 = vadd.xlane.f32.xlu0 %v185
  %v187 = vpop.xlane.xlu0 %186
  %v188 = vsel %vm82, %v156, 0.0
  %189 = vadd.xlane.f32.xlu0 %v188
  %v190 = vpop.xlane.xlu0 %189
  %v191 = vsel %vm82, %v157, 0.0
  %192 = vadd.xlane.f32.xlu0 %v191
  %v193 = vpop.xlane.xlu0 %192
  %v194 = vsel %vm82, %v158, 0.0
  %195 = vadd.xlane.f32.xlu0 %v194
  %v196 = vpop.xlane.xlu0 %195
  %v197 = vsel %vm82, %v159, 0.0
  %198 = vadd.xlane.f32.xlu0 %v197
  %v199 = vpop.xlane.xlu0 %198
  %v200 = vsel %vm82, %v160, 0.0
  %201 = vadd.xlane.f32.xlu0 %v200
  %v202 = vpop.xlane.xlu0 %201
  %v203 = vsel %vm82, %v161, 0.0
  %204 = vadd.xlane.f32.xlu0 %v203
  %v205 = vpop.xlane.xlu0 %204
  %v206 = vsel %vm82, %v162, 0.0
  %207 = vadd.xlane.f32.xlu0 %v206
  %v208 = vpop.xlane.xlu0 %207
  %v209 = vsel %vm82, %v163, 0.0
  %210 = vadd.xlane.f32.xlu0 %v209
  %v211 = vpop.xlane.xlu0 %210
  %v212 = vmul.f32 %v166, %v131
  %v213 = vmul.f32 %v169, %v131
  %v214 = vmul.f32 %v172, %v131
  %v215 = vmul.f32 %v175, %v131
  %v216 = vmul.f32 %v178, %v131
  %v217 = vmul.f32 %v181, %v131
  %v218 = vmul.f32 %v184, %v131
  %v219 = vmul.f32 %v187, %v131
  %v220 = vmul.f32 %v190, %v131
  %v221 = vmul.f32 %v193, %v131
  %v222 = vmul.f32 %v196, %v131
  %v223 = vmul.f32 %v199, %v131
  %v224 = vmul.f32 %v202, %v131
  %v225 = vmul.f32 %v205, %v131
  %v226 = vmul.f32 %v208, %v131
  %v227 = vmul.f32 %v211, %v131
  %v228 = vmul.f32 %v132, %v132
  %v229 = vmul.f32 %v133, %v133
  %v230 = vmul.f32 %v134, %v134
  %v231 = vmul.f32 %v135, %v135
  %v232 = vmul.f32 %v136, %v136
  %v233 = vmul.f32 %v137, %v137
  %v234 = vmul.f32 %v138, %v138
  %v235 = vmul.f32 %v139, %v139
  %v236 = vmul.f32 %v140, %v140
  %v237 = vmul.f32 %v141, %v141
  %v238 = vmul.f32 %v142, %v142
  %v239 = vmul.f32 %v143, %v143
  %v240 = vmul.f32 %v144, %v144
  %v241 = vmul.f32 %v145, %v145
  %v242 = vmul.f32 %v146, %v146
  %v243 = vmul.f32 %v147, %v147
  %v244 = vsub.f32 %v212, %v228
  %v245 = vsub.f32 %v213, %v229
  %v246 = vsub.f32 %v214, %v230
  %v247 = vsub.f32 %v215, %v231
  %v248 = vsub.f32 %v216, %v232
  %v249 = vsub.f32 %v217, %v233
  %v250 = vsub.f32 %v218, %v234
  %v251 = vsub.f32 %v219, %v235
  %v252 = vsub.f32 %v220, %v236
  %v253 = vsub.f32 %v221, %v237
  %v254 = vsub.f32 %v222, %v238
  %v255 = vsub.f32 %v223, %v239
  %v256 = vsub.f32 %v224, %v240
  %v257 = vsub.f32 %v225, %v241
  %v258 = vsub.f32 %v226, %v242
  %v259 = vsub.f32 %v227, %v243
  %v260 = vmax.f32 %v244, 0.0
  %v261 = vmax.f32 %v245, 0.0
  %v262 = vmax.f32 %v246, 0.0
  %v263 = vmax.f32 %v247, 0.0
  %v264 = vmax.f32 %v248, 0.0
  %v265 = vmax.f32 %v249, 0.0
  %v266 = vmax.f32 %v250, 0.0
  %v267 = vmax.f32 %v251, 0.0
  %v268 = vmax.f32 %v252, 0.0
  %v269 = vmax.f32 %v253, 0.0
  %v270 = vmax.f32 %v254, 0.0
  %v271 = vmax.f32 %v255, 0.0
  %v272 = vmax.f32 %v256, 0.0
  %v273 = vmax.f32 %v257, 0.0
  %v274 = vmax.f32 %v258, 0.0
  %v275 = vmax.f32 %v259, 0.0
  %v276 = vsub.f32 %v64, %v132
  %v277 = vsub.f32 %v65, %v133
  %v278 = vsub.f32 %v66, %v134
  %v279 = vsub.f32 %v67, %v135
  %v280 = vsub.f32 %v68, %v136
  %v281 = vsub.f32 %v69, %v137
  %v282 = vsub.f32 %v70, %v138
  %v283 = vsub.f32 %v71, %v139
  %v284 = vsub.f32 %v72, %v140
  %v285 = vsub.f32 %v73, %v141
  %v286 = vsub.f32 %v74, %v142
  %v287 = vsub.f32 %v75, %v143
  %v288 = vsub.f32 %v76, %v144
  %v289 = vsub.f32 %v77, %v145
  %v290 = vsub.f32 %v78, %v146
  %v291 = vsub.f32 %v79, %v147
  %v292 = vadd.f32 %v260, 1e-05
  %v293 = vadd.f32 %v261, 1e-05
  %v294 = vadd.f32 %v262, 1e-05
  %v295 = vadd.f32 %v263, 1e-05
  %v296 = vadd.f32 %v264, 1e-05
  %v297 = vadd.f32 %v265, 1e-05
  %v298 = vadd.f32 %v266, 1e-05
  %v299 = vadd.f32 %v267, 1e-05
  %v300 = vadd.f32 %v268, 1e-05
  %v301 = vadd.f32 %v269, 1e-05
  %v302 = vadd.f32 %v270, 1e-05
  %v303 = vadd.f32 %v271, 1e-05
  %v304 = vadd.f32 %v272, 1e-05
  %v305 = vadd.f32 %v273, 1e-05
  %v306 = vadd.f32 %v274, 1e-05
  %v307 = vadd.f32 %v275, 1e-05
  %v308 = vrsqrt.pop %v292
  %v309 = vrsqrt.pop %v293
  %v310 = vrsqrt.pop %v294
  %v311 = vrsqrt.pop %v295
  %v312 = vrsqrt.pop %v296
  %v313 = vrsqrt.pop %v297
  %v314 = vrsqrt.pop %v298
  %v315 = vrsqrt.pop %v299
  %v316 = vrsqrt.pop %v300
  %v317 = vrsqrt.pop %v301
  %v318 = vrsqrt.pop %v302
  %v319 = vrsqrt.pop %v303
  %v320 = vrsqrt.pop %v304
  %v321 = vrsqrt.pop %v305
  %v322 = vrsqrt.pop %v306
  %v323 = vrsqrt.pop %v307
  %v324 = vmul.f32 %v276, %v308
  %v325 = vmul.f32 %v277, %v309
  %v326 = vmul.f32 %v278, %v310
  %v327 = vmul.f32 %v279, %v311
  %v328 = vmul.f32 %v280, %v312
  %v329 = vmul.f32 %v281, %v313
  %v330 = vmul.f32 %v282, %v314
  %v331 = vmul.f32 %v283, %v315
  %v332 = vmul.f32 %v284, %v316
  %v333 = vmul.f32 %v285, %v317
  %v334 = vmul.f32 %v286, %v318
  %v335 = vmul.f32 %v287, %v319
  %v336 = vmul.f32 %v288, %v320
  %v337 = vmul.f32 %v289, %v321
  %v338 = vmul.f32 %v290, %v322
  %v339 = vmul.f32 %v291, %v323
  %v341 = vlaneseq
  %v342 = vshrl.u32 %v341, 7
  %v343 = vsub.s32 0, %v342
  %v344 = vrot.slane %v80, %v343
  %v346 = vmul.f32 %v324, %v344
  %v347 = vmul.f32 %v325, %v344
  %v348 = vmul.f32 %v326, %v344
  %v349 = vmul.f32 %v327, %v344
  %v350 = vmul.f32 %v328, %v344
  %v351 = vmul.f32 %v329, %v344
  %v352 = vmul.f32 %v330, %v344
  %v353 = vmul.f32 %v331, %v344
  %v354 = vmul.f32 %v332, %v344
  %v355 = vmul.f32 %v333, %v344
  %v356 = vmul.f32 %v334, %v344
  %v357 = vmul.f32 %v335, %v344
  %v358 = vmul.f32 %v336, %v344
  %v359 = vmul.f32 %v337, %v344
  %v360 = vmul.f32 %v338, %v344
  %v361 = vmul.f32 %v339, %v344
  %v363 = vlaneseq
  %v364 = vshrl.u32 %v363, 7
  %v365 = vsub.s32 0, %v364
  %v366 = vrot.slane %v81, %v365
  %v368 = vadd.f32 %v346, %v366
  %v369 = vadd.f32 %v347, %v366
  %v370 = vadd.f32 %v348, %v366
  %v371 = vadd.f32 %v349, %v366
  %v372 = vadd.f32 %v350, %v366
  %v373 = vadd.f32 %v351, %v366
  %v374 = vadd.f32 %v352, %v366
  %v375 = vadd.f32 %v353, %v366
  %v376 = vadd.f32 %v354, %v366
  %v377 = vadd.f32 %v355, %v366
  %v378 = vadd.f32 %v356, %v366
  %v379 = vadd.f32 %v357, %v366
  %v380 = vadd.f32 %v358, %v366
  %v381 = vadd.f32 %v359, %v366
  %v382 = vadd.f32 %v360, %v366
  %v383 = vadd.f32 %v361, %v366
  %v384 = vlaneseq
  %v385 = vshrl.u32 %v384, 7
  %v386 = vadd.s32 %v385, 8
  %v387 = vadd.s32 %v385, 16
  %v388 = vadd.s32 %v385, 24
  %v389 = vadd.s32 %v385, 32
  %v390 = vadd.s32 %v385, 40
  %v391 = vadd.s32 %v385, 48
  %v392 = vadd.s32 %v385, 56
  %v393 = vlaneseq
  %v394 = vand.u32 %v393, 127
  %vm395 = vcmp.gt.s32.totalorder %v394, %v385
  %vm396 = vcmp.gt.s32.totalorder %v394, %v386
  %vm397 = vcmp.gt.s32.totalorder %v394, %v387
  %vm398 = vcmp.gt.s32.totalorder %v394, %v388
  %vm399 = vcmp.gt.s32.totalorder %v394, %v389
  %vm400 = vcmp.gt.s32.totalorder %v394, %v390
  %vm401 = vcmp.gt.s32.totalorder %v394, %v391
  %vm402 = vcmp.gt.s32.totalorder %v394, %v392
  %v403 = vsel %vm395, -1e+30, 0.0
  %v404 = vsel %vm396, -1e+30, 0.0
  %v405 = vsel %vm397, -1e+30, 0.0
  %v406 = vsel %vm398, -1e+30, 0.0
  %v407 = vsel %vm399, -1e+30, 0.0
  %v408 = vsel %vm400, -1e+30, 0.0
  %v409 = vsel %vm401, -1e+30, 0.0
  %v410 = vsel %vm402, -1e+30, 0.0
  %v411 = vld [vmem:[%s3] sm:$0xff]
  %v412 = vld [vmem:[%s3 + $0x8] sm:$0xff]
  %v413 = vld [vmem:[%s3 + $0x10] sm:$0xff]
  %v414 = vld [vmem:[%s3 + $0x18] sm:$0xff]
  %v415 = vld [vmem:[%s4] sm:$0x1]
  %v417 = vlaneseq
  %v418 = vshrl.u32 %v417, 7
  %v419 = vsub.s32 0, %v418
  %v420 = vrot.slane %v415, %v419
  %v423 = vsel %vm82, %v368, 0
  %v426 = vsel %vm82, %v369, 0
  %v429 = vsel %vm82, %v370, 0
  %v432 = vsel %vm82, %v371, 0
  %v435 = vsel %vm82, %v372, 0
  %v438 = vsel %vm82, %v373, 0
  %v441 = vsel %vm82, %v374, 0
  %v444 = vsel %vm82, %v375, 0
  %v447 = vsel %vm82, %v376, 0
  %v450 = vsel %vm82, %v377, 0
  %v453 = vsel %vm82, %v378, 0
  %v456 = vsel %vm82, %v379, 0
  %v459 = vsel %vm82, %v380, 0
  %v462 = vsel %vm82, %v381, 0
  %v465 = vsel %vm82, %v382, 0
  %v468 = vsel %vm82, %v383, 0
  %470 = vmatprep.subr.mxu0 0.0
  %471 = vmatpush1.msra.mxu0 0.0
  %472 = vmatprep.subr.mxu0 0.0
  %473 = vmatpush1.msra.mxu0 0.0
  %474 = vmatprep.subr.mxu0 0.0
  %475 = vmatpush1.msra.mxu0 0.0
  %476 = vmatprep.subr.mxu0 0.0
  %477 = vmatpush1.msra.mxu0 0.0
  %478 = vmatprep.subr.mxu0 0.0
  %479 = vmatpush1.msra.mxu0 0.0
  %480 = vmatprep.subr.mxu0 0.0
  %481 = vmatpush1.msra.mxu0 0.0
  %482 = vmatprep.subr.mxu0 0.0
  %483 = vmatpush1.msra.mxu0 0.0
  %484 = vmatprep.subr.mxu0 0.0
  %485 = vmatpush1.msra.mxu0 0.0
  %486 = vmatprep.subr.mxu0 0.0
  %487 = vmatpush1.msra.mxu0 0.0
  %488 = vmatprep.subr.mxu0 0.0
  %489 = vmatpush1.msra.mxu0 0.0
  %490 = vmatprep.subr.mxu0 0.0
  %491 = vmatpush1.msra.mxu0 0.0
  %492 = vmatprep.subr.mxu0 0.0
  %493 = vmatpush1.msra.mxu0 0.0
  %494 = vmatprep.subr.mxu0 0.0
  %495 = vmatpush1.msra.mxu0 %v414
  %496 = vmatprep.subr.mxu0 0.0
  %497 = vmatpush1.msra.mxu0 %v413
  %498 = vmatprep.subr.mxu0 0.0
  %499 = vmatpush1.msra.mxu0 %v412
  %500 = vmatprep.subr.mxu0 0.0
  %501 = vmatpush1.msra.mxu0 %v411
  %502 = vmatprep.subr.mxu0 0.0
  %503 = vmatpush2.msra.mxu0 0.0
  %504 = vmatprep.subr.mxu0 0.0
  %505 = vmatpush2.msra.mxu0 0.0
  %506 = vmatprep.subr.mxu0 0.0
  %507 = vmatpush2.msra.mxu0 0.0
  %508 = vmatprep.subr.mxu0 0.0
  %509 = vmatpush2.msra.mxu0 0.0
  %510 = vmatprep.subr.mxu0 0.0
  %511 = vmatpush2.msra.mxu0 0.0
  %512 = vmatprep.subr.mxu0 0.0
  %513 = vmatpush2.msra.mxu0 0.0
  %514 = vmatprep.subr.mxu0 0.0
  %515 = vmatpush2.msra.mxu0 0.0
  %516 = vmatprep.subr.mxu0 0.0
  %517 = vmatpush2.msra.mxu0 0.0
  %518 = vmatprep.subr.mxu0 0.0
  %519 = vmatpush2.msra.mxu0 0.0
  %520 = vmatprep.subr.mxu0 0.0
  %521 = vmatpush2.msra.mxu0 0.0
  %522 = vmatprep.subr.mxu0 0.0
  %523 = vmatpush2.msra.mxu0 0.0
  %524 = vmatprep.subr.mxu0 0.0
  %525 = vmatpush2.msra.mxu0 0.0
  %526 = vmatprep.subr.mxu0 0.0
  %527 = vmatpush2.msra.mxu0 0.0
  %528 = vmatprep.subr.mxu0 0.0
  %529 = vmatpush2.msra.mxu0 0.0
  %530 = vmatprep.subr.mxu0 0.0
  %531 = vmatpush2.msra.mxu0 0.0
  %532 = vmatprep.subr.mxu0 0.0
  %533 = vmatpush2.msra.mxu0 0.0
  %534 = vmatprep.mubr.f32.mxu0 0.0
  %535 = vmatmul.mubr.f32.gmra.mxu0 %v423
  %v536 = vpop.f32.mrf.mxu0
  %v537 = vadd.f32 %v420, %v536
  %v538 = vpop.f32.mrf.mxu0
  %539 = vmatprep.mubr.f32.mxu0 0.0
  %540 = vmatmul.mubr.f32.gmra.mxu0 %v426
  %v541 = vpop.f32.mrf.mxu0
  %v542 = vadd.f32 %v420, %v541
  %v543 = vpop.f32.mrf.mxu0
  %544 = vmatprep.mubr.f32.mxu0 0.0
  %545 = vmatmul.mubr.f32.gmra.mxu0 %v429
  %v546 = vpop.f32.mrf.mxu0
  %v547 = vadd.f32 %v420, %v546
  %v548 = vpop.f32.mrf.mxu0
  %549 = vmatprep.mubr.f32.mxu0 0.0
  %550 = vmatmul.mubr.f32.gmra.mxu0 %v432
  %v551 = vpop.f32.mrf.mxu0
  %v552 = vadd.f32 %v420, %v551
  %v553 = vpop.f32.mrf.mxu0
  %554 = vmatprep.mubr.f32.mxu0 0.0
  %555 = vmatmul.mubr.f32.gmra.mxu0 %v435
  %v556 = vpop.f32.mrf.mxu0
  %v557 = vadd.f32 %v420, %v556
  %v558 = vpop.f32.mrf.mxu0
  %559 = vmatprep.mubr.f32.mxu0 0.0
  %560 = vmatmul.mubr.f32.gmra.mxu0 %v438
  %v561 = vpop.f32.mrf.mxu0
  %v562 = vadd.f32 %v420, %v561
  %v563 = vpop.f32.mrf.mxu0
  %564 = vmatprep.mubr.f32.mxu0 0.0
  %565 = vmatmul.mubr.f32.gmra.mxu0 %v441
  %v566 = vpop.f32.mrf.mxu0
  %v567 = vadd.f32 %v420, %v566
  %v568 = vpop.f32.mrf.mxu0
  %569 = vmatprep.mubr.f32.mxu0 0.0
  %570 = vmatmul.mubr.f32.gmra.mxu0 %v444
  %v571 = vpop.f32.mrf.mxu0
  %v572 = vadd.f32 %v420, %v571
  %v573 = vpop.f32.mrf.mxu0
  %574 = vmatprep.mubr.f32.mxu0 0.0
  %575 = vmatmul.mubr.f32.gmra.mxu0 %v447
  %v576 = vpop.f32.mrf.mxu0
  %v577 = vadd.f32 %v420, %v576
  %v578 = vpop.f32.mrf.mxu0
  %579 = vmatprep.mubr.f32.mxu0 0.0
  %580 = vmatmul.mubr.f32.gmra.mxu0 %v450
  %v581 = vpop.f32.mrf.mxu0
  %v582 = vadd.f32 %v420, %v581
  %v583 = vpop.f32.mrf.mxu0
  %584 = vmatprep.mubr.f32.mxu0 0.0
  %585 = vmatmul.mubr.f32.gmra.mxu0 %v453
  %v586 = vpop.f32.mrf.mxu0
  %v587 = vadd.f32 %v420, %v586
  %v588 = vpop.f32.mrf.mxu0
  %589 = vmatprep.mubr.f32.mxu0 0.0
  %590 = vmatmul.mubr.f32.gmra.mxu0 %v456
  %v591 = vpop.f32.mrf.mxu0
  %v592 = vadd.f32 %v420, %v591
  %v593 = vpop.f32.mrf.mxu0
  %594 = vmatprep.mubr.f32.mxu0 0.0
  %595 = vmatmul.mubr.f32.gmra.mxu0 %v459
  %v596 = vpop.f32.mrf.mxu0
  %v597 = vadd.f32 %v420, %v596
  %v598 = vpop.f32.mrf.mxu0
  %599 = vmatprep.mubr.f32.mxu0 0.0
  %600 = vmatmul.mubr.f32.gmra.mxu0 %v462
  %v601 = vpop.f32.mrf.mxu0
  %v602 = vadd.f32 %v420, %v601
  %v603 = vpop.f32.mrf.mxu0
  %604 = vmatprep.mubr.f32.mxu0 0.0
  %605 = vmatmul.mubr.f32.gmra.mxu0 %v465
  %v606 = vpop.f32.mrf.mxu0
  %v607 = vadd.f32 %v420, %v606
  %v608 = vpop.f32.mrf.mxu0
  %609 = vmatprep.mubr.f32.mxu0 0.0
  %610 = vmatmul.mubr.f32.gmra.mxu0 %v468
  %v611 = vpop.f32.mrf.mxu0
  %v612 = vadd.f32 %v420, %v611
  %v613 = vpop.f32.mrf.mxu0
  %614 = vdwg.mxu0
  %v615 = vld [vmem:[%s5] sm:$0xff]
  %v616 = vld [vmem:[%s5 + $0x8] sm:$0xff]
  %v617 = vld [vmem:[%s5 + $0x10] sm:$0xff]
  %v618 = vld [vmem:[%s5 + $0x18] sm:$0xff]
  %v619 = vld [vmem:[%s6] sm:$0x1]
  %v621 = vlaneseq
  %v622 = vshrl.u32 %v621, 7
  %v623 = vsub.s32 0, %v622
  %v624 = vrot.slane %v619, %v623
  %626 = vmatprep.subr.mxu0 0.0
  %627 = vmatpush1.msra.mxu0 0.0
  %628 = vmatprep.subr.mxu0 0.0
  %629 = vmatpush1.msra.mxu0 0.0
  %630 = vmatprep.subr.mxu0 0.0
  %631 = vmatpush1.msra.mxu0 0.0
  %632 = vmatprep.subr.mxu0 0.0
  %633 = vmatpush1.msra.mxu0 0.0
  %634 = vmatprep.subr.mxu0 0.0
  %635 = vmatpush1.msra.mxu0 0.0
  %636 = vmatprep.subr.mxu0 0.0
  %637 = vmatpush1.msra.mxu0 0.0
  %638 = vmatprep.subr.mxu0 0.0
  %639 = vmatpush1.msra.mxu0 0.0
  %640 = vmatprep.subr.mxu0 0.0
  %641 = vmatpush1.msra.mxu0 0.0
  %642 = vmatprep.subr.mxu0 0.0
  %643 = vmatpush1.msra.mxu0 0.0
  %644 = vmatprep.subr.mxu0 0.0
  %645 = vmatpush1.msra.mxu0 0.0
  %646 = vmatprep.subr.mxu0 0.0
  %647 = vmatpush1.msra.mxu0 0.0
  %648 = vmatprep.subr.mxu0 0.0
  %649 = vmatpush1.msra.mxu0 0.0
  %650 = vmatprep.subr.mxu0 0.0
  %651 = vmatpush1.msra.mxu0 %v618
  %652 = vmatprep.subr.mxu0 0.0
  %653 = vmatpush1.msra.mxu0 %v617
  %654 = vmatprep.subr.mxu0 0.0
  %655 = vmatpush1.msra.mxu0 %v616
  %656 = vmatprep.subr.mxu0 0.0
  %657 = vmatpush1.msra.mxu0 %v615
  %658 = vmatprep.subr.mxu0 0.0
  %659 = vmatpush2.msra.mxu0 0.0
  %660 = vmatprep.subr.mxu0 0.0
  %661 = vmatpush2.msra.mxu0 0.0
  %662 = vmatprep.subr.mxu0 0.0
  %663 = vmatpush2.msra.mxu0 0.0
  %664 = vmatprep.subr.mxu0 0.0
  %665 = vmatpush2.msra.mxu0 0.0
  %666 = vmatprep.subr.mxu0 0.0
  %667 = vmatpush2.msra.mxu0 0.0
  %668 = vmatprep.subr.mxu0 0.0
  %669 = vmatpush2.msra.mxu0 0.0
  %670 = vmatprep.subr.mxu0 0.0
  %671 = vmatpush2.msra.mxu0 0.0
  %672 = vmatprep.subr.mxu0 0.0
  %673 = vmatpush2.msra.mxu0 0.0
  %674 = vmatprep.subr.mxu0 0.0
  %675 = vmatpush2.msra.mxu0 0.0
  %676 = vmatprep.subr.mxu0 0.0
  %677 = vmatpush2.msra.mxu0 0.0
  %678 = vmatprep.subr.mxu0 0.0
  %679 = vmatpush2.msra.mxu0 0.0
  %680 = vmatprep.subr.mxu0 0.0
  %681 = vmatpush2.msra.mxu0 0.0
  %682 = vmatprep.subr.mxu0 0.0
  %683 = vmatpush2.msra.mxu0 0.0
  %684 = vmatprep.subr.mxu0 0.0
  %685 = vmatpush2.msra.mxu0 0.0
  %686 = vmatprep.subr.mxu0 0.0
  %687 = vmatpush2.msra.mxu0 0.0
  %688 = vmatprep.subr.mxu0 0.0
  %689 = vmatpush2.msra.mxu0 0.0
  %690 = vmatprep.mubr.f32.mxu0 0.0
  %691 = vmatmul.mubr.f32.gmra.mxu0 %v423
  %v692 = vpop.f32.mrf.mxu0
  %v693 = vadd.f32 %v624, %v692
  %v694 = vpop.f32.mrf.mxu0
  %695 = vmatprep.mubr.f32.mxu0 0.0
  %696 = vmatmul.mubr.f32.gmra.mxu0 %v426
  %v697 = vpop.f32.mrf.mxu0
  %v698 = vadd.f32 %v624, %v697
  %v699 = vpop.f32.mrf.mxu0
  %700 = vmatprep.mubr.f32.mxu0 0.0
  %701 = vmatmul.mubr.f32.gmra.mxu0 %v429
  %v702 = vpop.f32.mrf.mxu0
  %v703 = vadd.f32 %v624, %v702
  %v704 = vpop.f32.mrf.mxu0
  %705 = vmatprep.mubr.f32.mxu0 0.0
  %706 = vmatmul.mubr.f32.gmra.mxu0 %v432
  %v707 = vpop.f32.mrf.mxu0
  %v708 = vadd.f32 %v624, %v707
  %v709 = vpop.f32.mrf.mxu0
  %710 = vmatprep.mubr.f32.mxu0 0.0
  %711 = vmatmul.mubr.f32.gmra.mxu0 %v435
  %v712 = vpop.f32.mrf.mxu0
  %v713 = vadd.f32 %v624, %v712
  %v714 = vpop.f32.mrf.mxu0
  %715 = vmatprep.mubr.f32.mxu0 0.0
  %716 = vmatmul.mubr.f32.gmra.mxu0 %v438
  %v717 = vpop.f32.mrf.mxu0
  %v718 = vadd.f32 %v624, %v717
  %v719 = vpop.f32.mrf.mxu0
  %720 = vmatprep.mubr.f32.mxu0 0.0
  %721 = vmatmul.mubr.f32.gmra.mxu0 %v441
  %v722 = vpop.f32.mrf.mxu0
  %v723 = vadd.f32 %v624, %v722
  %v724 = vpop.f32.mrf.mxu0
  %725 = vmatprep.mubr.f32.mxu0 0.0
  %726 = vmatmul.mubr.f32.gmra.mxu0 %v444
  %v727 = vpop.f32.mrf.mxu0
  %v728 = vadd.f32 %v624, %v727
  %v729 = vpop.f32.mrf.mxu0
  %730 = vmatprep.mubr.f32.mxu0 0.0
  %731 = vmatmul.mubr.f32.gmra.mxu0 %v447
  %v732 = vpop.f32.mrf.mxu0
  %v733 = vadd.f32 %v624, %v732
  %v734 = vpop.f32.mrf.mxu0
  %735 = vmatprep.mubr.f32.mxu0 0.0
  %736 = vmatmul.mubr.f32.gmra.mxu0 %v450
  %v737 = vpop.f32.mrf.mxu0
  %v738 = vadd.f32 %v624, %v737
  %v739 = vpop.f32.mrf.mxu0
  %740 = vmatprep.mubr.f32.mxu0 0.0
  %741 = vmatmul.mubr.f32.gmra.mxu0 %v453
  %v742 = vpop.f32.mrf.mxu0
  %v743 = vadd.f32 %v624, %v742
  %v744 = vpop.f32.mrf.mxu0
  %745 = vmatprep.mubr.f32.mxu0 0.0
  %746 = vmatmul.mubr.f32.gmra.mxu0 %v456
  %v747 = vpop.f32.mrf.mxu0
  %v748 = vadd.f32 %v624, %v747
  %v749 = vpop.f32.mrf.mxu0
  %750 = vmatprep.mubr.f32.mxu0 0.0
  %751 = vmatmul.mubr.f32.gmra.mxu0 %v459
  %v752 = vpop.f32.mrf.mxu0
  %v753 = vadd.f32 %v624, %v752
  %v754 = vpop.f32.mrf.mxu0
  %755 = vmatprep.mubr.f32.mxu0 0.0
  %756 = vmatmul.mubr.f32.gmra.mxu0 %v462
  %v757 = vpop.f32.mrf.mxu0
  %v758 = vadd.f32 %v624, %v757
  %v759 = vpop.f32.mrf.mxu0
  %760 = vmatprep.mubr.f32.mxu0 0.0
  %761 = vmatmul.mubr.f32.gmra.mxu0 %v465
  %v762 = vpop.f32.mrf.mxu0
  %v763 = vadd.f32 %v624, %v762
  %v764 = vpop.f32.mrf.mxu0
  %765 = vmatprep.mubr.f32.mxu0 0.0
  %766 = vmatmul.mubr.f32.gmra.mxu0 %v468
  %v767 = vpop.f32.mrf.mxu0
  %v768 = vadd.f32 %v624, %v767
  %v769 = vpop.f32.mrf.mxu0
  %770 = vdwg.mxu0
  %v771 = vld [vmem:[%s7] sm:$0xff]
  %v772 = vld [vmem:[%s7 + $0x8] sm:$0xff]
  %v773 = vld [vmem:[%s7 + $0x10] sm:$0xff]
  %v774 = vld [vmem:[%s7 + $0x18] sm:$0xff]
  %v775 = vld [vmem:[%s8] sm:$0x1]
  %v777 = vlaneseq
  %v778 = vshrl.u32 %v777, 7
  %v779 = vsub.s32 0, %v778
  %v780 = vrot.slane %v775, %v779
  %782 = vmatprep.subr.mxu0 0.0
  %783 = vmatpush1.msra.mxu0 0.0
  %784 = vmatprep.subr.mxu0 0.0
  %785 = vmatpush1.msra.mxu0 0.0
  %786 = vmatprep.subr.mxu0 0.0
  %787 = vmatpush1.msra.mxu0 0.0
  %788 = vmatprep.subr.mxu0 0.0
  %789 = vmatpush1.msra.mxu0 0.0
  %790 = vmatprep.subr.mxu0 0.0
  %791 = vmatpush1.msra.mxu0 0.0
  %792 = vmatprep.subr.mxu0 0.0
  %793 = vmatpush1.msra.mxu0 0.0
  %794 = vmatprep.subr.mxu0 0.0
  %795 = vmatpush1.msra.mxu0 0.0
  %796 = vmatprep.subr.mxu0 0.0
  %797 = vmatpush1.msra.mxu0 0.0
  %798 = vmatprep.subr.mxu0 0.0
  %799 = vmatpush1.msra.mxu0 0.0
  %800 = vmatprep.subr.mxu0 0.0
  %801 = vmatpush1.msra.mxu0 0.0
  %802 = vmatprep.subr.mxu0 0.0
  %803 = vmatpush1.msra.mxu0 0.0
  %804 = vmatprep.subr.mxu0 0.0
  %805 = vmatpush1.msra.mxu0 0.0
  %806 = vmatprep.subr.mxu0 0.0
  %807 = vmatpush1.msra.mxu0 %v774
  %808 = vmatprep.subr.mxu0 0.0
  %809 = vmatpush1.msra.mxu0 %v773
  %810 = vmatprep.subr.mxu0 0.0
  %811 = vmatpush1.msra.mxu0 %v772
  %812 = vmatprep.subr.mxu0 0.0
  %813 = vmatpush1.msra.mxu0 %v771
  %814 = vmatprep.subr.mxu0 0.0
  %815 = vmatpush2.msra.mxu0 0.0
  %816 = vmatprep.subr.mxu0 0.0
  %817 = vmatpush2.msra.mxu0 0.0
  %818 = vmatprep.subr.mxu0 0.0
  %819 = vmatpush2.msra.mxu0 0.0
  %820 = vmatprep.subr.mxu0 0.0
  %821 = vmatpush2.msra.mxu0 0.0
  %822 = vmatprep.subr.mxu0 0.0
  %823 = vmatpush2.msra.mxu0 0.0
  %824 = vmatprep.subr.mxu0 0.0
  %825 = vmatpush2.msra.mxu0 0.0
  %826 = vmatprep.subr.mxu0 0.0
  %827 = vmatpush2.msra.mxu0 0.0
  %828 = vmatprep.subr.mxu0 0.0
  %829 = vmatpush2.msra.mxu0 0.0
  %830 = vmatprep.subr.mxu0 0.0
  %831 = vmatpush2.msra.mxu0 0.0
  %832 = vmatprep.subr.mxu0 0.0
  %833 = vmatpush2.msra.mxu0 0.0
  %834 = vmatprep.subr.mxu0 0.0
  %835 = vmatpush2.msra.mxu0 0.0
  %836 = vmatprep.subr.mxu0 0.0
  %837 = vmatpush2.msra.mxu0 0.0
  %838 = vmatprep.subr.mxu0 0.0
  %839 = vmatpush2.msra.mxu0 0.0
  %840 = vmatprep.subr.mxu0 0.0
  %841 = vmatpush2.msra.mxu0 0.0
  %842 = vmatprep.subr.mxu0 0.0
  %843 = vmatpush2.msra.mxu0 0.0
  %844 = vmatprep.subr.mxu0 0.0
  %845 = vmatpush2.msra.mxu0 0.0
  %846 = vmatprep.mubr.f32.mxu0 0.0
  %847 = vmatmul.mubr.f32.gmra.mxu0 %v423
  %v848 = vpop.f32.mrf.mxu0
  %v849 = vadd.f32 %v780, %v848
  %v850 = vpop.f32.mrf.mxu0
  %851 = vmatprep.mubr.f32.mxu0 0.0
  %852 = vmatmul.mubr.f32.gmra.mxu0 %v426
  %v853 = vpop.f32.mrf.mxu0
  %v854 = vadd.f32 %v780, %v853
  %v855 = vpop.f32.mrf.mxu0
  %856 = vmatprep.mubr.f32.mxu0 0.0
  %857 = vmatmul.mubr.f32.gmra.mxu0 %v429
  %v858 = vpop.f32.mrf.mxu0
  %v859 = vadd.f32 %v780, %v858
  %v860 = vpop.f32.mrf.mxu0
  %861 = vmatprep.mubr.f32.mxu0 0.0
  %862 = vmatmul.mubr.f32.gmra.mxu0 %v432
  %v863 = vpop.f32.mrf.mxu0
  %v864 = vadd.f32 %v780, %v863
  %v865 = vpop.f32.mrf.mxu0
  %866 = vmatprep.mubr.f32.mxu0 0.0
  %867 = vmatmul.mubr.f32.gmra.mxu0 %v435
  %v868 = vpop.f32.mrf.mxu0
  %v869 = vadd.f32 %v780, %v868
  %v870 = vpop.f32.mrf.mxu0
  %871 = vmatprep.mubr.f32.mxu0 0.0
  %872 = vmatmul.mubr.f32.gmra.mxu0 %v438
  %v873 = vpop.f32.mrf.mxu0
  %v874 = vadd.f32 %v780, %v873
  %v875 = vpop.f32.mrf.mxu0
  %876 = vmatprep.mubr.f32.mxu0 0.0
  %877 = vmatmul.mubr.f32.gmra.mxu0 %v441
  %v878 = vpop.f32.mrf.mxu0
  %v879 = vadd.f32 %v780, %v878
  %v880 = vpop.f32.mrf.mxu0
  %881 = vmatprep.mubr.f32.mxu0 0.0
  %882 = vmatmul.mubr.f32.gmra.mxu0 %v444
  %v883 = vpop.f32.mrf.mxu0
  %v884 = vadd.f32 %v780, %v883
  %v885 = vpop.f32.mrf.mxu0
  %886 = vmatprep.mubr.f32.mxu0 0.0
  %887 = vmatmul.mubr.f32.gmra.mxu0 %v447
  %v888 = vpop.f32.mrf.mxu0
  %v889 = vadd.f32 %v780, %v888
  %v890 = vpop.f32.mrf.mxu0
  %891 = vmatprep.mubr.f32.mxu0 0.0
  %892 = vmatmul.mubr.f32.gmra.mxu0 %v450
  %v893 = vpop.f32.mrf.mxu0
  %v894 = vadd.f32 %v780, %v893
  %v895 = vpop.f32.mrf.mxu0
  %896 = vmatprep.mubr.f32.mxu0 0.0
  %897 = vmatmul.mubr.f32.gmra.mxu0 %v453
  %v898 = vpop.f32.mrf.mxu0
  %v899 = vadd.f32 %v780, %v898
  %v900 = vpop.f32.mrf.mxu0
  %901 = vmatprep.mubr.f32.mxu0 0.0
  %902 = vmatmul.mubr.f32.gmra.mxu0 %v456
  %v903 = vpop.f32.mrf.mxu0
  %v904 = vadd.f32 %v780, %v903
  %v905 = vpop.f32.mrf.mxu0
  %906 = vmatprep.mubr.f32.mxu0 0.0
  %907 = vmatmul.mubr.f32.gmra.mxu0 %v459
  %v908 = vpop.f32.mrf.mxu0
  %v909 = vadd.f32 %v780, %v908
  %v910 = vpop.f32.mrf.mxu0
  %911 = vmatprep.mubr.f32.mxu0 0.0
  %912 = vmatmul.mubr.f32.gmra.mxu0 %v462
  %v913 = vpop.f32.mrf.mxu0
  %v914 = vadd.f32 %v780, %v913
  %v915 = vpop.f32.mrf.mxu0
  %916 = vmatprep.mubr.f32.mxu0 0.0
  %917 = vmatmul.mubr.f32.gmra.mxu0 %v465
  %v918 = vpop.f32.mrf.mxu0
  %v919 = vadd.f32 %v780, %v918
  %v920 = vpop.f32.mrf.mxu0
  %921 = vmatprep.mubr.f32.mxu0 0.0
  %922 = vmatmul.mubr.f32.gmra.mxu0 %v468
  %v923 = vpop.f32.mrf.mxu0
  %v924 = vadd.f32 %v780, %v923
  %v925 = vpop.f32.mrf.mxu0
  %926 = vdwg.mxu0
  %vm927 = vcmask 130048
  %v929 = vsel %vm927, %v537, 0
  %v932 = vsel %vm927, %v542, 0
  %v935 = vsel %vm927, %v547, 0
  %v938 = vsel %vm927, %v552, 0
  %v941 = vsel %vm927, %v557, 0
  %v944 = vsel %vm927, %v562, 0
  %v947 = vsel %vm927, %v567, 0
  %v950 = vsel %vm927, %v572, 0
  %v953 = vsel %vm927, %v693, 0
  %v956 = vsel %vm927, %v698, 0
  %v959 = vsel %vm927, %v703, 0
  %v962 = vsel %vm927, %v708, 0
  %v965 = vsel %vm927, %v713, 0
  %v968 = vsel %vm927, %v718, 0
  %v971 = vsel %vm927, %v723, 0
  %v974 = vsel %vm927, %v728, 0
  %976 = vmatprep.subr.mxu0 0.0
  %977 = vmatpush1.xpose.msra.mxu0 0.0
  %978 = vmatprep.subr.mxu0 0.0
  %979 = vmatpush1.xpose.msra.mxu0 0.0
  %980 = vmatprep.subr.mxu0 0.0
  %981 = vmatpush1.xpose.msra.mxu0 0.0
  %982 = vmatprep.subr.mxu0 0.0
  %983 = vmatpush1.xpose.msra.mxu0 0.0
  %984 = vmatprep.subr.mxu0 0.0
  %985 = vmatpush1.xpose.msra.mxu0 0.0
  %986 = vmatprep.subr.mxu0 0.0
  %987 = vmatpush1.xpose.msra.mxu0 0.0
  %988 = vmatprep.subr.mxu0 0.0
  %989 = vmatpush1.xpose.msra.mxu0 0.0
  %990 = vmatprep.subr.mxu0 0.0
  %991 = vmatpush1.xpose.msra.mxu0 0.0
  %992 = vmatprep.subr.mxu0 0.0
  %993 = vmatpush1.xpose.msra.mxu0 %v974
  %994 = vmatprep.subr.mxu0 0.0
  %995 = vmatpush1.xpose.msra.mxu0 %v971
  %996 = vmatprep.subr.mxu0 0.0
  %997 = vmatpush1.xpose.msra.mxu0 %v968
  %998 = vmatprep.subr.mxu0 0.0
  %999 = vmatpush1.xpose.msra.mxu0 %v965
  %1000 = vmatprep.subr.mxu0 0.0
  %1001 = vmatpush1.xpose.msra.mxu0 %v962
  %1002 = vmatprep.subr.mxu0 0.0
  %1003 = vmatpush1.xpose.msra.mxu0 %v959
  %1004 = vmatprep.subr.mxu0 0.0
  %1005 = vmatpush1.xpose.msra.mxu0 %v956
  %1006 = vmatprep.subr.mxu0 0.0
  %1007 = vmatpush1.xpose.msra.mxu0 %v953
  %1008 = vmatprep.subr.mxu0 0.0
  %1009 = vmatpush2.xpose.msra.mxu0 0.0
  %1010 = vmatprep.subr.mxu0 0.0
  %1011 = vmatpush2.xpose.msra.mxu0 0.0
  %1012 = vmatprep.subr.mxu0 0.0
  %1013 = vmatpush2.xpose.msra.mxu0 0.0
  %1014 = vmatprep.subr.mxu0 0.0
  %1015 = vmatpush2.xpose.msra.mxu0 0.0
  %1016 = vmatprep.subr.mxu0 0.0
  %1017 = vmatpush2.xpose.msra.mxu0 0.0
  %1018 = vmatprep.subr.mxu0 0.0
  %1019 = vmatpush2.xpose.msra.mxu0 0.0
  %1020 = vmatprep.subr.mxu0 0.0
  %1021 = vmatpush2.xpose.msra.mxu0 0.0
  %1022 = vmatprep.subr.mxu0 0.0
  %1023 = vmatpush2.xpose.msra.mxu0 0.0
  %1024 = vmatprep.subr.mxu0 0.0
  %1025 = vmatpush2.xpose.msra.mxu0 0.0
  %1026 = vmatprep.subr.mxu0 0.0
  %1027 = vmatpush2.xpose.msra.mxu0 0.0
  %1028 = vmatprep.subr.mxu0 0.0
  %1029 = vmatpush2.xpose.msra.mxu0 0.0
  %1030 = vmatprep.subr.mxu0 0.0
  %1031 = vmatpush2.xpose.msra.mxu0 0.0
  %1032 = vmatprep.subr.mxu0 0.0
  %1033 = vmatpush2.xpose.msra.mxu0 0.0
  %1034 = vmatprep.subr.mxu0 0.0
  %1035 = vmatpush2.xpose.msra.mxu0 0.0
  %1036 = vmatprep.subr.mxu0 0.0
  %1037 = vmatpush2.xpose.msra.mxu0 0.0
  %1038 = vmatprep.subr.mxu0 0.0
  %1039 = vmatpush2.xpose.msra.mxu0 0.0
  %1040 = vmatprep.mubr.f32.mxu0 0.0
  %1041 = vmatmul.mubr.f32.gmra.mxu0 %v929
  %v1042 = vpop.f32.mrf.mxu0
  %v1043 = vadd.f32 0.0, %v1042
  %v1044 = vpop.f32.mrf.mxu0
  %1045 = vmatprep.mubr.f32.mxu0 0.0
  %1046 = vmatmul.mubr.f32.gmra.mxu0 %v932
  %v1047 = vpop.f32.mrf.mxu0
  %v1048 = vadd.f32 0.0, %v1047
  %v1049 = vpop.f32.mrf.mxu0
  %1050 = vmatprep.mubr.f32.mxu0 0.0
  %1051 = vmatmul.mubr.f32.gmra.mxu0 %v935
  %v1052 = vpop.f32.mrf.mxu0
  %v1053 = vadd.f32 0.0, %v1052
  %v1054 = vpop.f32.mrf.mxu0
  %1055 = vmatprep.mubr.f32.mxu0 0.0
  %1056 = vmatmul.mubr.f32.gmra.mxu0 %v938
  %v1057 = vpop.f32.mrf.mxu0
  %v1058 = vadd.f32 0.0, %v1057
  %v1059 = vpop.f32.mrf.mxu0
  %1060 = vmatprep.mubr.f32.mxu0 0.0
  %1061 = vmatmul.mubr.f32.gmra.mxu0 %v941
  %v1062 = vpop.f32.mrf.mxu0
  %v1063 = vadd.f32 0.0, %v1062
  %v1064 = vpop.f32.mrf.mxu0
  %1065 = vmatprep.mubr.f32.mxu0 0.0
  %1066 = vmatmul.mubr.f32.gmra.mxu0 %v944
  %v1067 = vpop.f32.mrf.mxu0
  %v1068 = vadd.f32 0.0, %v1067
  %v1069 = vpop.f32.mrf.mxu0
  %1070 = vmatprep.mubr.f32.mxu0 0.0
  %1071 = vmatmul.mubr.f32.gmra.mxu0 %v947
  %v1072 = vpop.f32.mrf.mxu0
  %v1073 = vadd.f32 0.0, %v1072
  %v1074 = vpop.f32.mrf.mxu0
  %1075 = vmatprep.mubr.f32.mxu0 0.0
  %1076 = vmatmul.mubr.f32.gmra.mxu0 %v950
  %v1077 = vpop.f32.mrf.mxu0
  %v1078 = vadd.f32 0.0, %v1077
  %v1079 = vpop.f32.mrf.mxu0
  %1080 = vdwg.mxu0
  %v1082 = vsel %vm927, %v577, 0
  %v1085 = vsel %vm927, %v582, 0
  %v1088 = vsel %vm927, %v587, 0
  %v1091 = vsel %vm927, %v592, 0
  %v1094 = vsel %vm927, %v597, 0
  %v1097 = vsel %vm927, %v602, 0
  %v1100 = vsel %vm927, %v607, 0
  %v1103 = vsel %vm927, %v612, 0
  %v1106 = vsel %vm927, %v733, 0
  %v1109 = vsel %vm927, %v738, 0
  %v1112 = vsel %vm927, %v743, 0
  %v1115 = vsel %vm927, %v748, 0
  %v1118 = vsel %vm927, %v753, 0
  %v1121 = vsel %vm927, %v758, 0
  %v1124 = vsel %vm927, %v763, 0
  %v1127 = vsel %vm927, %v768, 0
  %1129 = vmatprep.subr.mxu0 0.0
  %1130 = vmatpush1.xpose.msra.mxu0 0.0
  %1131 = vmatprep.subr.mxu0 0.0
  %1132 = vmatpush1.xpose.msra.mxu0 0.0
  %1133 = vmatprep.subr.mxu0 0.0
  %1134 = vmatpush1.xpose.msra.mxu0 0.0
  %1135 = vmatprep.subr.mxu0 0.0
  %1136 = vmatpush1.xpose.msra.mxu0 0.0
  %1137 = vmatprep.subr.mxu0 0.0
  %1138 = vmatpush1.xpose.msra.mxu0 0.0
  %1139 = vmatprep.subr.mxu0 0.0
  %1140 = vmatpush1.xpose.msra.mxu0 0.0
  %1141 = vmatprep.subr.mxu0 0.0
  %1142 = vmatpush1.xpose.msra.mxu0 0.0
  %1143 = vmatprep.subr.mxu0 0.0
  %1144 = vmatpush1.xpose.msra.mxu0 0.0
  %1145 = vmatprep.subr.mxu0 0.0
  %1146 = vmatpush1.xpose.msra.mxu0 %v1127
  %1147 = vmatprep.subr.mxu0 0.0
  %1148 = vmatpush1.xpose.msra.mxu0 %v1124
  %1149 = vmatprep.subr.mxu0 0.0
  %1150 = vmatpush1.xpose.msra.mxu0 %v1121
  %1151 = vmatprep.subr.mxu0 0.0
  %1152 = vmatpush1.xpose.msra.mxu0 %v1118
  %1153 = vmatprep.subr.mxu0 0.0
  %1154 = vmatpush1.xpose.msra.mxu0 %v1115
  %1155 = vmatprep.subr.mxu0 0.0
  %1156 = vmatpush1.xpose.msra.mxu0 %v1112
  %1157 = vmatprep.subr.mxu0 0.0
  %1158 = vmatpush1.xpose.msra.mxu0 %v1109
  %1159 = vmatprep.subr.mxu0 0.0
  %1160 = vmatpush1.xpose.msra.mxu0 %v1106
  %1161 = vmatprep.subr.mxu0 0.0
  %1162 = vmatpush2.xpose.msra.mxu0 0.0
  %1163 = vmatprep.subr.mxu0 0.0
  %1164 = vmatpush2.xpose.msra.mxu0 0.0
  %1165 = vmatprep.subr.mxu0 0.0
  %1166 = vmatpush2.xpose.msra.mxu0 0.0
  %1167 = vmatprep.subr.mxu0 0.0
  %1168 = vmatpush2.xpose.msra.mxu0 0.0
  %1169 = vmatprep.subr.mxu0 0.0
  %1170 = vmatpush2.xpose.msra.mxu0 0.0
  %1171 = vmatprep.subr.mxu0 0.0
  %1172 = vmatpush2.xpose.msra.mxu0 0.0
  %1173 = vmatprep.subr.mxu0 0.0
  %1174 = vmatpush2.xpose.msra.mxu0 0.0
  %1175 = vmatprep.subr.mxu0 0.0
  %1176 = vmatpush2.xpose.msra.mxu0 0.0
  %1177 = vmatprep.subr.mxu0 0.0
  %1178 = vmatpush2.xpose.msra.mxu0 0.0
  %1179 = vmatprep.subr.mxu0 0.0
  %1180 = vmatpush2.xpose.msra.mxu0 0.0
  %1181 = vmatprep.subr.mxu0 0.0
  %1182 = vmatpush2.xpose.msra.mxu0 0.0
  %1183 = vmatprep.subr.mxu0 0.0
  %1184 = vmatpush2.xpose.msra.mxu0 0.0
  %1185 = vmatprep.subr.mxu0 0.0
  %1186 = vmatpush2.xpose.msra.mxu0 0.0
  %1187 = vmatprep.subr.mxu0 0.0
  %1188 = vmatpush2.xpose.msra.mxu0 0.0
  %1189 = vmatprep.subr.mxu0 0.0
  %1190 = vmatpush2.xpose.msra.mxu0 0.0
  %1191 = vmatprep.subr.mxu0 0.0
  %1192 = vmatpush2.xpose.msra.mxu0 0.0
  %1193 = vmatprep.mubr.f32.mxu0 0.0
  %1194 = vmatmul.mubr.f32.gmra.mxu0 %v1082
  %v1195 = vpop.f32.mrf.mxu0
  %v1196 = vadd.f32 0.0, %v1195
  %v1197 = vpop.f32.mrf.mxu0
  %1198 = vmatprep.mubr.f32.mxu0 0.0
  %1199 = vmatmul.mubr.f32.gmra.mxu0 %v1085
  %v1200 = vpop.f32.mrf.mxu0
  %v1201 = vadd.f32 0.0, %v1200
  %v1202 = vpop.f32.mrf.mxu0
  %1203 = vmatprep.mubr.f32.mxu0 0.0
  %1204 = vmatmul.mubr.f32.gmra.mxu0 %v1088
  %v1205 = vpop.f32.mrf.mxu0
  %v1206 = vadd.f32 0.0, %v1205
  %v1207 = vpop.f32.mrf.mxu0
  %1208 = vmatprep.mubr.f32.mxu0 0.0
  %1209 = vmatmul.mubr.f32.gmra.mxu0 %v1091
  %v1210 = vpop.f32.mrf.mxu0
  %v1211 = vadd.f32 0.0, %v1210
  %v1212 = vpop.f32.mrf.mxu0
  %1213 = vmatprep.mubr.f32.mxu0 0.0
  %1214 = vmatmul.mubr.f32.gmra.mxu0 %v1094
  %v1215 = vpop.f32.mrf.mxu0
  %v1216 = vadd.f32 0.0, %v1215
  %v1217 = vpop.f32.mrf.mxu0
  %1218 = vmatprep.mubr.f32.mxu0 0.0
  %1219 = vmatmul.mubr.f32.gmra.mxu0 %v1097
  %v1220 = vpop.f32.mrf.mxu0
  %v1221 = vadd.f32 0.0, %v1220
  %v1222 = vpop.f32.mrf.mxu0
  %1223 = vmatprep.mubr.f32.mxu0 0.0
  %1224 = vmatmul.mubr.f32.gmra.mxu0 %v1100
  %v1225 = vpop.f32.mrf.mxu0
  %v1226 = vadd.f32 0.0, %v1225
  %v1227 = vpop.f32.mrf.mxu0
  %1228 = vmatprep.mubr.f32.mxu0 0.0
  %1229 = vmatmul.mubr.f32.gmra.mxu0 %v1103
  %v1230 = vpop.f32.mrf.mxu0
  %v1231 = vadd.f32 0.0, %v1230
  %v1232 = vpop.f32.mrf.mxu0
  %1233 = vdwg.mxu0
  %v1234 = vmul.f32 %v1043, 0.25
  %v1235 = vmul.f32 %v1048, 0.25
  %v1236 = vmul.f32 %v1053, 0.25
  %v1237 = vmul.f32 %v1058, 0.25
  %v1238 = vmul.f32 %v1063, 0.25
  %v1239 = vmul.f32 %v1068, 0.25
  %v1240 = vmul.f32 %v1073, 0.25
  %v1241 = vmul.f32 %v1078, 0.25
  %v1242 = vmul.f32 %v1196, 0.25
  %v1243 = vmul.f32 %v1201, 0.25
  %v1244 = vmul.f32 %v1206, 0.25
  %v1245 = vmul.f32 %v1211, 0.25
  %v1246 = vmul.f32 %v1216, 0.25
  %v1247 = vmul.f32 %v1221, 0.25
  %v1248 = vmul.f32 %v1226, 0.25
  %v1249 = vmul.f32 %v1231, 0.25
  %v1250 = vadd.f32 %v1234, %v403
  %v1251 = vadd.f32 %v1235, %v404
  %v1252 = vadd.f32 %v1236, %v405
  %v1253 = vadd.f32 %v1237, %v406
  %v1254 = vadd.f32 %v1238, %v407
  %v1255 = vadd.f32 %v1239, %v408
  %v1256 = vadd.f32 %v1240, %v409
  %v1257 = vadd.f32 %v1241, %v410
  %v1258 = vadd.f32 %v1242, %v403
  %v1259 = vadd.f32 %v1243, %v404
  %v1260 = vadd.f32 %v1244, %v405
  %v1261 = vadd.f32 %v1245, %v406
  %v1262 = vadd.f32 %v1246, %v407
  %v1263 = vadd.f32 %v1247, %v408
  %v1264 = vadd.f32 %v1248, %v409
  %v1265 = vadd.f32 %v1249, %v410
  %vm1266 = vcmask 523264
  %v1267 = vsel %vm1266, %v1250, -inf
  %1268 = vmax.xlane.f32.xlu0 %v1267
  %v1269 = vpop.xlane.xlu0 %1268
  %v1270 = vsel %vm1266, %v1251, -inf
  %1271 = vmax.xlane.f32.xlu0 %v1270
  %v1272 = vpop.xlane.xlu0 %1271
  %v1273 = vsel %vm1266, %v1252, -inf
  %1274 = vmax.xlane.f32.xlu0 %v1273
  %v1275 = vpop.xlane.xlu0 %1274
  %v1276 = vsel %vm1266, %v1253, -inf
  %1277 = vmax.xlane.f32.xlu0 %v1276
  %v1278 = vpop.xlane.xlu0 %1277
  %v1279 = vsel %vm1266, %v1254, -inf
  %1280 = vmax.xlane.f32.xlu0 %v1279
  %v1281 = vpop.xlane.xlu0 %1280
  %v1282 = vsel %vm1266, %v1255, -inf
  %1283 = vmax.xlane.f32.xlu0 %v1282
  %v1284 = vpop.xlane.xlu0 %1283
  %v1285 = vsel %vm1266, %v1256, -inf
  %1286 = vmax.xlane.f32.xlu0 %v1285
  %v1287 = vpop.xlane.xlu0 %1286
  %v1288 = vsel %vm1266, %v1257, -inf
  %1289 = vmax.xlane.f32.xlu0 %v1288
  %v1290 = vpop.xlane.xlu0 %1289
  %v1291 = vsel %vm1266, %v1258, -inf
  %1292 = vmax.xlane.f32.xlu0 %v1291
  %v1293 = vpop.xlane.xlu0 %1292
  %v1294 = vsel %vm1266, %v1259, -inf
  %1295 = vmax.xlane.f32.xlu0 %v1294
  %v1296 = vpop.xlane.xlu0 %1295
  %v1297 = vsel %vm1266, %v1260, -inf
  %1298 = vmax.xlane.f32.xlu0 %v1297
  %v1299 = vpop.xlane.xlu0 %1298
  %v1300 = vsel %vm1266, %v1261, -inf
  %1301 = vmax.xlane.f32.xlu0 %v1300
  %v1302 = vpop.xlane.xlu0 %1301
  %v1303 = vsel %vm1266, %v1262, -inf
  %1304 = vmax.xlane.f32.xlu0 %v1303
  %v1305 = vpop.xlane.xlu0 %1304
  %v1306 = vsel %vm1266, %v1263, -inf
  %1307 = vmax.xlane.f32.xlu0 %v1306
  %v1308 = vpop.xlane.xlu0 %1307
  %v1309 = vsel %vm1266, %v1264, -inf
  %1310 = vmax.xlane.f32.xlu0 %v1309
  %v1311 = vpop.xlane.xlu0 %1310
  %v1312 = vsel %vm1266, %v1265, -inf
  %1313 = vmax.xlane.f32.xlu0 %v1312
  %v1314 = vpop.xlane.xlu0 %1313
  %v1315 = vsub.f32 %v1250, %v1269
  %v1316 = vsub.f32 %v1251, %v1272
  %v1317 = vsub.f32 %v1252, %v1275
  %v1318 = vsub.f32 %v1253, %v1278
  %v1319 = vsub.f32 %v1254, %v1281
  %v1320 = vsub.f32 %v1255, %v1284
  %v1321 = vsub.f32 %v1256, %v1287
  %v1322 = vsub.f32 %v1257, %v1290
  %v1323 = vsub.f32 %v1258, %v1293
  %v1324 = vsub.f32 %v1259, %v1296
  %v1325 = vsub.f32 %v1260, %v1299
  %v1326 = vsub.f32 %v1261, %v1302
  %v1327 = vsub.f32 %v1262, %v1305
  %v1328 = vsub.f32 %v1263, %v1308
  %v1329 = vsub.f32 %v1264, %v1311
  %v1330 = vsub.f32 %v1265, %v1314
  %v1331 = vmul.f32 %v1315, 1.442695
  %v1332 = vpow.pop %v1331
  %v1333 = vmul.f32 %v1316, 1.442695
  %v1334 = vpow.pop %v1333
  %v1335 = vmul.f32 %v1317, 1.442695
  %v1336 = vpow.pop %v1335
  %v1337 = vmul.f32 %v1318, 1.442695
  %v1338 = vpow.pop %v1337
  %v1339 = vmul.f32 %v1319, 1.442695
  %v1340 = vpow.pop %v1339
  %v1341 = vmul.f32 %v1320, 1.442695
  %v1342 = vpow.pop %v1341
  %v1343 = vmul.f32 %v1321, 1.442695
  %v1344 = vpow.pop %v1343
  %v1345 = vmul.f32 %v1322, 1.442695
  %v1346 = vpow.pop %v1345
  %v1347 = vmul.f32 %v1323, 1.442695
  %v1348 = vpow.pop %v1347
  %v1349 = vmul.f32 %v1324, 1.442695
  %v1350 = vpow.pop %v1349
  %v1351 = vmul.f32 %v1325, 1.442695
  %v1352 = vpow.pop %v1351
  %v1353 = vmul.f32 %v1326, 1.442695
  %v1354 = vpow.pop %v1353
  %v1355 = vmul.f32 %v1327, 1.442695
  %v1356 = vpow.pop %v1355
  %v1357 = vmul.f32 %v1328, 1.442695
  %v1358 = vpow.pop %v1357
  %v1359 = vmul.f32 %v1329, 1.442695
  %v1360 = vpow.pop %v1359
  %v1361 = vmul.f32 %v1330, 1.442695
  %v1362 = vpow.pop %v1361
  %v1363 = vsel %vm1266, %v1332, 0.0
  %1364 = vadd.xlane.f32.xlu0 %v1363
  %v1365 = vpop.xlane.xlu0 %1364
  %v1366 = vsel %vm1266, %v1334, 0.0
  %1367 = vadd.xlane.f32.xlu0 %v1366
  %v1368 = vpop.xlane.xlu0 %1367
  %v1369 = vsel %vm1266, %v1336, 0.0
  %1370 = vadd.xlane.f32.xlu0 %v1369
  %v1371 = vpop.xlane.xlu0 %1370
  %v1372 = vsel %vm1266, %v1338, 0.0
  %1373 = vadd.xlane.f32.xlu0 %v1372
  %v1374 = vpop.xlane.xlu0 %1373
  %v1375 = vsel %vm1266, %v1340, 0.0
  %1376 = vadd.xlane.f32.xlu0 %v1375
  %v1377 = vpop.xlane.xlu0 %1376
  %v1378 = vsel %vm1266, %v1342, 0.0
  %1379 = vadd.xlane.f32.xlu0 %v1378
  %v1380 = vpop.xlane.xlu0 %1379
  %v1381 = vsel %vm1266, %v1344, 0.0
  %1382 = vadd.xlane.f32.xlu0 %v1381
  %v1383 = vpop.xlane.xlu0 %1382
  %v1384 = vsel %vm1266, %v1346, 0.0
  %1385 = vadd.xlane.f32.xlu0 %v1384
  %v1386 = vpop.xlane.xlu0 %1385
  %v1387 = vsel %vm1266, %v1348, 0.0
  %1388 = vadd.xlane.f32.xlu0 %v1387
  %v1389 = vpop.xlane.xlu0 %1388
  %v1390 = vsel %vm1266, %v1350, 0.0
  %1391 = vadd.xlane.f32.xlu0 %v1390
  %v1392 = vpop.xlane.xlu0 %1391
  %v1393 = vsel %vm1266, %v1352, 0.0
  %1394 = vadd.xlane.f32.xlu0 %v1393
  %v1395 = vpop.xlane.xlu0 %1394
  %v1396 = vsel %vm1266, %v1354, 0.0
  %1397 = vadd.xlane.f32.xlu0 %v1396
  %v1398 = vpop.xlane.xlu0 %1397
  %v1399 = vsel %vm1266, %v1356, 0.0
  %1400 = vadd.xlane.f32.xlu0 %v1399
  %v1401 = vpop.xlane.xlu0 %1400
  %v1402 = vsel %vm1266, %v1358, 0.0
  %1403 = vadd.xlane.f32.xlu0 %v1402
  %v1404 = vpop.xlane.xlu0 %1403
  %v1405 = vsel %vm1266, %v1360, 0.0
  %1406 = vadd.xlane.f32.xlu0 %v1405
  %v1407 = vpop.xlane.xlu0 %1406
  %v1408 = vsel %vm1266, %v1362, 0.0
  %1409 = vadd.xlane.f32.xlu0 %v1408
  %v1410 = vpop.xlane.xlu0 %1409
  %v1411 = vrcp.pop %v1365
  %v1412 = vrcp.pop %v1368
  %v1413 = vrcp.pop %v1371
  %v1414 = vrcp.pop %v1374
  %v1415 = vrcp.pop %v1377
  %v1416 = vrcp.pop %v1380
  %v1417 = vrcp.pop %v1383
  %v1418 = vrcp.pop %v1386
  %v1419 = vrcp.pop %v1389
  %v1420 = vrcp.pop %v1392
  %v1421 = vrcp.pop %v1395
  %v1422 = vrcp.pop %v1398
  %v1423 = vrcp.pop %v1401
  %v1424 = vrcp.pop %v1404
  %v1425 = vrcp.pop %v1407
  %v1426 = vrcp.pop %v1410
  %v1427 = vmul.f32 %v1332, %v1411
  %v1428 = vmul.f32 %v1334, %v1412
  %v1429 = vmul.f32 %v1336, %v1413
  %v1430 = vmul.f32 %v1338, %v1414
  %v1431 = vmul.f32 %v1340, %v1415
  %v1432 = vmul.f32 %v1342, %v1416
  %v1433 = vmul.f32 %v1344, %v1417
  %v1434 = vmul.f32 %v1346, %v1418
  %v1435 = vmul.f32 %v1348, %v1419
  %v1436 = vmul.f32 %v1350, %v1420
  %v1437 = vmul.f32 %v1352, %v1421
  %v1438 = vmul.f32 %v1354, %v1422
  %v1439 = vmul.f32 %v1356, %v1423
  %v1440 = vmul.f32 %v1358, %v1424
  %v1441 = vmul.f32 %v1360, %v1425
  %v1442 = vmul.f32 %v1362, %v1426
  %1443 = vst.msk [vmem:[%s20] sm:$0xff] %vm1266, %v1427
  %1444 = vst.msk [vmem:[%s20 + $0x8] sm:$0xff] %vm1266, %v1428
  %1445 = vst.msk [vmem:[%s20 + $0x10] sm:$0xff] %vm1266, %v1429
  %1446 = vst.msk [vmem:[%s20 + $0x18] sm:$0xff] %vm1266, %v1430
  %1447 = vst.msk [vmem:[%s20 + $0x20] sm:$0xff] %vm1266, %v1431
  %1448 = vst.msk [vmem:[%s20 + $0x28] sm:$0xff] %vm1266, %v1432
  %1449 = vst.msk [vmem:[%s20 + $0x30] sm:$0xff] %vm1266, %v1433
  %1450 = vst.msk [vmem:[%s20 + $0x38] sm:$0xff] %vm1266, %v1434
  %1451 = vst.msk [vmem:[%s20 + $0x40] sm:$0xff] %vm1266, %v1435
  %1452 = vst.msk [vmem:[%s20 + $0x48] sm:$0xff] %vm1266, %v1436
  %1453 = vst.msk [vmem:[%s20 + $0x50] sm:$0xff] %vm1266, %v1437
  %1454 = vst.msk [vmem:[%s20 + $0x58] sm:$0xff] %vm1266, %v1438
  %1455 = vst.msk [vmem:[%s20 + $0x60] sm:$0xff] %vm1266, %v1439
  %1456 = vst.msk [vmem:[%s20 + $0x68] sm:$0xff] %vm1266, %v1440
  %1457 = vst.msk [vmem:[%s20 + $0x70] sm:$0xff] %vm1266, %v1441
  %1458 = vst.msk [vmem:[%s20 + $0x78] sm:$0xff] %vm1266, %v1442
  %v1460 = vsel %vm1266, %v1427, 0
  %v1463 = vsel %vm1266, %v1428, 0
  %v1466 = vsel %vm1266, %v1429, 0
  %v1469 = vsel %vm1266, %v1430, 0
  %v1472 = vsel %vm1266, %v1431, 0
  %v1475 = vsel %vm1266, %v1432, 0
  %v1478 = vsel %vm1266, %v1433, 0
  %v1481 = vsel %vm1266, %v1434, 0
  %1483 = vmatprep.subr.mxu0 0.0
  %1484 = vmatpush1.msra.mxu0 0.0
  %1485 = vmatprep.subr.mxu0 0.0
  %1486 = vmatpush1.msra.mxu0 0.0
  %1487 = vmatprep.subr.mxu0 0.0
  %1488 = vmatpush1.msra.mxu0 0.0
  %1489 = vmatprep.subr.mxu0 0.0
  %1490 = vmatpush1.msra.mxu0 0.0
  %1491 = vmatprep.subr.mxu0 0.0
  %1492 = vmatpush1.msra.mxu0 0.0
  %1493 = vmatprep.subr.mxu0 0.0
  %1494 = vmatpush1.msra.mxu0 0.0
  %1495 = vmatprep.subr.mxu0 0.0
  %1496 = vmatpush1.msra.mxu0 0.0
  %1497 = vmatprep.subr.mxu0 0.0
  %1498 = vmatpush1.msra.mxu0 0.0
  %1499 = vmatprep.subr.mxu0 0.0
  %1500 = vmatpush1.msra.mxu0 %v884
  %1501 = vmatprep.subr.mxu0 0.0
  %1502 = vmatpush1.msra.mxu0 %v879
  %1503 = vmatprep.subr.mxu0 0.0
  %1504 = vmatpush1.msra.mxu0 %v874
  %1505 = vmatprep.subr.mxu0 0.0
  %1506 = vmatpush1.msra.mxu0 %v869
  %1507 = vmatprep.subr.mxu0 0.0
  %1508 = vmatpush1.msra.mxu0 %v864
  %1509 = vmatprep.subr.mxu0 0.0
  %1510 = vmatpush1.msra.mxu0 %v859
  %1511 = vmatprep.subr.mxu0 0.0
  %1512 = vmatpush1.msra.mxu0 %v854
  %1513 = vmatprep.subr.mxu0 0.0
  %1514 = vmatpush1.msra.mxu0 %v849
  %1515 = vmatprep.subr.mxu0 0.0
  %1516 = vmatpush2.msra.mxu0 0.0
  %1517 = vmatprep.subr.mxu0 0.0
  %1518 = vmatpush2.msra.mxu0 0.0
  %1519 = vmatprep.subr.mxu0 0.0
  %1520 = vmatpush2.msra.mxu0 0.0
  %1521 = vmatprep.subr.mxu0 0.0
  %1522 = vmatpush2.msra.mxu0 0.0
  %1523 = vmatprep.subr.mxu0 0.0
  %1524 = vmatpush2.msra.mxu0 0.0
  %1525 = vmatprep.subr.mxu0 0.0
  %1526 = vmatpush2.msra.mxu0 0.0
  %1527 = vmatprep.subr.mxu0 0.0
  %1528 = vmatpush2.msra.mxu0 0.0
  %1529 = vmatprep.subr.mxu0 0.0
  %1530 = vmatpush2.msra.mxu0 0.0
  %1531 = vmatprep.subr.mxu0 0.0
  %1532 = vmatpush2.msra.mxu0 0.0
  %1533 = vmatprep.subr.mxu0 0.0
  %1534 = vmatpush2.msra.mxu0 0.0
  %1535 = vmatprep.subr.mxu0 0.0
  %1536 = vmatpush2.msra.mxu0 0.0
  %1537 = vmatprep.subr.mxu0 0.0
  %1538 = vmatpush2.msra.mxu0 0.0
  %1539 = vmatprep.subr.mxu0 0.0
  %1540 = vmatpush2.msra.mxu0 0.0
  %1541 = vmatprep.subr.mxu0 0.0
  %1542 = vmatpush2.msra.mxu0 0.0
  %1543 = vmatprep.subr.mxu0 0.0
  %1544 = vmatpush2.msra.mxu0 0.0
  %1545 = vmatprep.subr.mxu0 0.0
  %1546 = vmatpush2.msra.mxu0 0.0
  %1547 = vmatprep.mubr.f32.mxu0 0.0
  %1548 = vmatmul.mubr.f32.gmra.mxu0 %v1460
  %v1549 = vpop.f32.mrf.mxu0
  %v1550 = vadd.f32 0.0, %v1549
  %v1551 = vpop.f32.mrf.mxu0
  %1552 = vmatprep.mubr.f32.mxu0 0.0
  %1553 = vmatmul.mubr.f32.gmra.mxu0 %v1463
  %v1554 = vpop.f32.mrf.mxu0
  %v1555 = vadd.f32 0.0, %v1554
  %v1556 = vpop.f32.mrf.mxu0
  %1557 = vmatprep.mubr.f32.mxu0 0.0
  %1558 = vmatmul.mubr.f32.gmra.mxu0 %v1466
  %v1559 = vpop.f32.mrf.mxu0
  %v1560 = vadd.f32 0.0, %v1559
  %v1561 = vpop.f32.mrf.mxu0
  %1562 = vmatprep.mubr.f32.mxu0 0.0
  %1563 = vmatmul.mubr.f32.gmra.mxu0 %v1469
  %v1564 = vpop.f32.mrf.mxu0
  %v1565 = vadd.f32 0.0, %v1564
  %v1566 = vpop.f32.mrf.mxu0
  %1567 = vmatprep.mubr.f32.mxu0 0.0
  %1568 = vmatmul.mubr.f32.gmra.mxu0 %v1472
  %v1569 = vpop.f32.mrf.mxu0
  %v1570 = vadd.f32 0.0, %v1569
  %v1571 = vpop.f32.mrf.mxu0
  %1572 = vmatprep.mubr.f32.mxu0 0.0
  %1573 = vmatmul.mubr.f32.gmra.mxu0 %v1475
  %v1574 = vpop.f32.mrf.mxu0
  %v1575 = vadd.f32 0.0, %v1574
  %v1576 = vpop.f32.mrf.mxu0
  %1577 = vmatprep.mubr.f32.mxu0 0.0
  %1578 = vmatmul.mubr.f32.gmra.mxu0 %v1478
  %v1579 = vpop.f32.mrf.mxu0
  %v1580 = vadd.f32 0.0, %v1579
  %v1581 = vpop.f32.mrf.mxu0
  %1582 = vmatprep.mubr.f32.mxu0 0.0
  %1583 = vmatmul.mubr.f32.gmra.mxu0 %v1481
  %v1584 = vpop.f32.mrf.mxu0
  %v1585 = vadd.f32 0.0, %v1584
  %v1586 = vpop.f32.mrf.mxu0
  %1587 = vdwg.mxu0
  %v1589 = vsel %vm1266, %v1435, 0
  %v1592 = vsel %vm1266, %v1436, 0
  %v1595 = vsel %vm1266, %v1437, 0
  %v1598 = vsel %vm1266, %v1438, 0
  %v1601 = vsel %vm1266, %v1439, 0
  %v1604 = vsel %vm1266, %v1440, 0
  %v1607 = vsel %vm1266, %v1441, 0
  %v1610 = vsel %vm1266, %v1442, 0
  %1612 = vmatprep.subr.mxu0 0.0
  %1613 = vmatpush1.msra.mxu0 0.0
  %1614 = vmatprep.subr.mxu0 0.0
  %1615 = vmatpush1.msra.mxu0 0.0
  %1616 = vmatprep.subr.mxu0 0.0
  %1617 = vmatpush1.msra.mxu0 0.0
  %1618 = vmatprep.subr.mxu0 0.0
  %1619 = vmatpush1.msra.mxu0 0.0
  %1620 = vmatprep.subr.mxu0 0.0
  %1621 = vmatpush1.msra.mxu0 0.0
  %1622 = vmatprep.subr.mxu0 0.0
  %1623 = vmatpush1.msra.mxu0 0.0
  %1624 = vmatprep.subr.mxu0 0.0
  %1625 = vmatpush1.msra.mxu0 0.0
  %1626 = vmatprep.subr.mxu0 0.0
  %1627 = vmatpush1.msra.mxu0 0.0
  %1628 = vmatprep.subr.mxu0 0.0
  %1629 = vmatpush1.msra.mxu0 %v924
  %1630 = vmatprep.subr.mxu0 0.0
  %1631 = vmatpush1.msra.mxu0 %v919
  %1632 = vmatprep.subr.mxu0 0.0
  %1633 = vmatpush1.msra.mxu0 %v914
  %1634 = vmatprep.subr.mxu0 0.0
  %1635 = vmatpush1.msra.mxu0 %v909
  %1636 = vmatprep.subr.mxu0 0.0
  %1637 = vmatpush1.msra.mxu0 %v904
  %1638 = vmatprep.subr.mxu0 0.0
  %1639 = vmatpush1.msra.mxu0 %v899
  %1640 = vmatprep.subr.mxu0 0.0
  %1641 = vmatpush1.msra.mxu0 %v894
  %1642 = vmatprep.subr.mxu0 0.0
  %1643 = vmatpush1.msra.mxu0 %v889
  %1644 = vmatprep.subr.mxu0 0.0
  %1645 = vmatpush2.msra.mxu0 0.0
  %1646 = vmatprep.subr.mxu0 0.0
  %1647 = vmatpush2.msra.mxu0 0.0
  %1648 = vmatprep.subr.mxu0 0.0
  %1649 = vmatpush2.msra.mxu0 0.0
  %1650 = vmatprep.subr.mxu0 0.0
  %1651 = vmatpush2.msra.mxu0 0.0
  %1652 = vmatprep.subr.mxu0 0.0
  %1653 = vmatpush2.msra.mxu0 0.0
  %1654 = vmatprep.subr.mxu0 0.0
  %1655 = vmatpush2.msra.mxu0 0.0
  %1656 = vmatprep.subr.mxu0 0.0
  %1657 = vmatpush2.msra.mxu0 0.0
  %1658 = vmatprep.subr.mxu0 0.0
  %1659 = vmatpush2.msra.mxu0 0.0
  %1660 = vmatprep.subr.mxu0 0.0
  %1661 = vmatpush2.msra.mxu0 0.0
  %1662 = vmatprep.subr.mxu0 0.0
  %1663 = vmatpush2.msra.mxu0 0.0
  %1664 = vmatprep.subr.mxu0 0.0
  %1665 = vmatpush2.msra.mxu0 0.0
  %1666 = vmatprep.subr.mxu0 0.0
  %1667 = vmatpush2.msra.mxu0 0.0
  %1668 = vmatprep.subr.mxu0 0.0
  %1669 = vmatpush2.msra.mxu0 0.0
  %1670 = vmatprep.subr.mxu0 0.0
  %1671 = vmatpush2.msra.mxu0 0.0
  %1672 = vmatprep.subr.mxu0 0.0
  %1673 = vmatpush2.msra.mxu0 0.0
  %1674 = vmatprep.subr.mxu0 0.0
  %1675 = vmatpush2.msra.mxu0 0.0
  %1676 = vmatprep.mubr.f32.mxu0 0.0
  %1677 = vmatmul.mubr.f32.gmra.mxu0 %v1589
  %v1678 = vpop.f32.mrf.mxu0
  %v1679 = vadd.f32 0.0, %v1678
  %v1680 = vpop.f32.mrf.mxu0
  %1681 = vmatprep.mubr.f32.mxu0 0.0
  %1682 = vmatmul.mubr.f32.gmra.mxu0 %v1592
  %v1683 = vpop.f32.mrf.mxu0
  %v1684 = vadd.f32 0.0, %v1683
  %v1685 = vpop.f32.mrf.mxu0
  %1686 = vmatprep.mubr.f32.mxu0 0.0
  %1687 = vmatmul.mubr.f32.gmra.mxu0 %v1595
  %v1688 = vpop.f32.mrf.mxu0
  %v1689 = vadd.f32 0.0, %v1688
  %v1690 = vpop.f32.mrf.mxu0
  %1691 = vmatprep.mubr.f32.mxu0 0.0
  %1692 = vmatmul.mubr.f32.gmra.mxu0 %v1598
  %v1693 = vpop.f32.mrf.mxu0
  %v1694 = vadd.f32 0.0, %v1693
  %v1695 = vpop.f32.mrf.mxu0
  %1696 = vmatprep.mubr.f32.mxu0 0.0
  %1697 = vmatmul.mubr.f32.gmra.mxu0 %v1601
  %v1698 = vpop.f32.mrf.mxu0
  %v1699 = vadd.f32 0.0, %v1698
  %v1700 = vpop.f32.mrf.mxu0
  %1701 = vmatprep.mubr.f32.mxu0 0.0
  %1702 = vmatmul.mubr.f32.gmra.mxu0 %v1604
  %v1703 = vpop.f32.mrf.mxu0
  %v1704 = vadd.f32 0.0, %v1703
  %v1705 = vpop.f32.mrf.mxu0
  %1706 = vmatprep.mubr.f32.mxu0 0.0
  %1707 = vmatmul.mubr.f32.gmra.mxu0 %v1607
  %v1708 = vpop.f32.mrf.mxu0
  %v1709 = vadd.f32 0.0, %v1708
  %v1710 = vpop.f32.mrf.mxu0
  %1711 = vmatprep.mubr.f32.mxu0 0.0
  %1712 = vmatmul.mubr.f32.gmra.mxu0 %v1610
  %v1713 = vpop.f32.mrf.mxu0
  %v1714 = vadd.f32 0.0, %v1713
  %v1715 = vpop.f32.mrf.mxu0
  %1716 = vdwg.mxu0
  %v1717 = vld [vmem:[%s9] sm:$0xff]
  %v1718 = vld [vmem:[%s9 + $0x8] sm:$0xff]
  %s1719 = scalar_lea.vmem %s3, 32
  %v1720 = vld [vmem:[%s1719] sm:$0xff]
  %v1721 = vld [vmem:[%s1719 + $0x8] sm:$0xff]
  %v1722 = vld [vmem:[%s1719 + $0x10] sm:$0xff]
  %v1723 = vld [vmem:[%s1719 + $0x18] sm:$0xff]
  %s1724 = scalar_lea.vmem %s4, 1
  %v1725 = vld [vmem:[%s1724] sm:$0x1]
  %v1727 = vlaneseq
  %v1728 = vshrl.u32 %v1727, 7
  %v1729 = vsub.s32 0, %v1728
  %v1730 = vrot.slane %v1725, %v1729
  %1732 = vmatprep.subr.mxu0 0.0
  %1733 = vmatpush1.msra.mxu0 0.0
  %1734 = vmatprep.subr.mxu0 0.0
  %1735 = vmatpush1.msra.mxu0 0.0
  %1736 = vmatprep.subr.mxu0 0.0
  %1737 = vmatpush1.msra.mxu0 0.0
  %1738 = vmatprep.subr.mxu0 0.0
  %1739 = vmatpush1.msra.mxu0 0.0
  %1740 = vmatprep.subr.mxu0 0.0
  %1741 = vmatpush1.msra.mxu0 0.0
  %1742 = vmatprep.subr.mxu0 0.0
  %1743 = vmatpush1.msra.mxu0 0.0
  %1744 = vmatprep.subr.mxu0 0.0
  %1745 = vmatpush1.msra.mxu0 0.0
  %1746 = vmatprep.subr.mxu0 0.0
  %1747 = vmatpush1.msra.mxu0 0.0
  %1748 = vmatprep.subr.mxu0 0.0
  %1749 = vmatpush1.msra.mxu0 0.0
  %1750 = vmatprep.subr.mxu0 0.0
  %1751 = vmatpush1.msra.mxu0 0.0
  %1752 = vmatprep.subr.mxu0 0.0
  %1753 = vmatpush1.msra.mxu0 0.0
  %1754 = vmatprep.subr.mxu0 0.0
  %1755 = vmatpush1.msra.mxu0 0.0
  %1756 = vmatprep.subr.mxu0 0.0
  %1757 = vmatpush1.msra.mxu0 %v1723
  %1758 = vmatprep.subr.mxu0 0.0
  %1759 = vmatpush1.msra.mxu0 %v1722
  %1760 = vmatprep.subr.mxu0 0.0
  %1761 = vmatpush1.msra.mxu0 %v1721
  %1762 = vmatprep.subr.mxu0 0.0
  %1763 = vmatpush1.msra.mxu0 %v1720
  %1764 = vmatprep.subr.mxu0 0.0
  %1765 = vmatpush2.msra.mxu0 0.0
  %1766 = vmatprep.subr.mxu0 0.0
  %1767 = vmatpush2.msra.mxu0 0.0
  %1768 = vmatprep.subr.mxu0 0.0
  %1769 = vmatpush2.msra.mxu0 0.0
  %1770 = vmatprep.subr.mxu0 0.0
  %1771 = vmatpush2.msra.mxu0 0.0
  %1772 = vmatprep.subr.mxu0 0.0
  %1773 = vmatpush2.msra.mxu0 0.0
  %1774 = vmatprep.subr.mxu0 0.0
  %1775 = vmatpush2.msra.mxu0 0.0
  %1776 = vmatprep.subr.mxu0 0.0
  %1777 = vmatpush2.msra.mxu0 0.0
  %1778 = vmatprep.subr.mxu0 0.0
  %1779 = vmatpush2.msra.mxu0 0.0
  %1780 = vmatprep.subr.mxu0 0.0
  %1781 = vmatpush2.msra.mxu0 0.0
  %1782 = vmatprep.subr.mxu0 0.0
  %1783 = vmatpush2.msra.mxu0 0.0
  %1784 = vmatprep.subr.mxu0 0.0
  %1785 = vmatpush2.msra.mxu0 0.0
  %1786 = vmatprep.subr.mxu0 0.0
  %1787 = vmatpush2.msra.mxu0 0.0
  %1788 = vmatprep.subr.mxu0 0.0
  %1789 = vmatpush2.msra.mxu0 0.0
  %1790 = vmatprep.subr.mxu0 0.0
  %1791 = vmatpush2.msra.mxu0 0.0
  %1792 = vmatprep.subr.mxu0 0.0
  %1793 = vmatpush2.msra.mxu0 0.0
  %1794 = vmatprep.subr.mxu0 0.0
  %1795 = vmatpush2.msra.mxu0 0.0
  %1796 = vmatprep.mubr.f32.mxu0 0.0
  %1797 = vmatmul.mubr.f32.gmra.mxu0 %v423
  %v1798 = vpop.f32.mrf.mxu0
  %v1799 = vadd.f32 %v1730, %v1798
  %v1800 = vpop.f32.mrf.mxu0
  %1801 = vmatprep.mubr.f32.mxu0 0.0
  %1802 = vmatmul.mubr.f32.gmra.mxu0 %v426
  %v1803 = vpop.f32.mrf.mxu0
  %v1804 = vadd.f32 %v1730, %v1803
  %v1805 = vpop.f32.mrf.mxu0
  %1806 = vmatprep.mubr.f32.mxu0 0.0
  %1807 = vmatmul.mubr.f32.gmra.mxu0 %v429
  %v1808 = vpop.f32.mrf.mxu0
  %v1809 = vadd.f32 %v1730, %v1808
  %v1810 = vpop.f32.mrf.mxu0
  %1811 = vmatprep.mubr.f32.mxu0 0.0
  %1812 = vmatmul.mubr.f32.gmra.mxu0 %v432
  %v1813 = vpop.f32.mrf.mxu0
  %v1814 = vadd.f32 %v1730, %v1813
  %v1815 = vpop.f32.mrf.mxu0
  %1816 = vmatprep.mubr.f32.mxu0 0.0
  %1817 = vmatmul.mubr.f32.gmra.mxu0 %v435
  %v1818 = vpop.f32.mrf.mxu0
  %v1819 = vadd.f32 %v1730, %v1818
  %v1820 = vpop.f32.mrf.mxu0
  %1821 = vmatprep.mubr.f32.mxu0 0.0
  %1822 = vmatmul.mubr.f32.gmra.mxu0 %v438
  %v1823 = vpop.f32.mrf.mxu0
  %v1824 = vadd.f32 %v1730, %v1823
  %v1825 = vpop.f32.mrf.mxu0
  %1826 = vmatprep.mubr.f32.mxu0 0.0
  %1827 = vmatmul.mubr.f32.gmra.mxu0 %v441
  %v1828 = vpop.f32.mrf.mxu0
  %v1829 = vadd.f32 %v1730, %v1828
  %v1830 = vpop.f32.mrf.mxu0
  %1831 = vmatprep.mubr.f32.mxu0 0.0
  %1832 = vmatmul.mubr.f32.gmra.mxu0 %v444
  %v1833 = vpop.f32.mrf.mxu0
  %v1834 = vadd.f32 %v1730, %v1833
  %v1835 = vpop.f32.mrf.mxu0
  %1836 = vmatprep.mubr.f32.mxu0 0.0
  %1837 = vmatmul.mubr.f32.gmra.mxu0 %v447
  %v1838 = vpop.f32.mrf.mxu0
  %v1839 = vadd.f32 %v1730, %v1838
  %v1840 = vpop.f32.mrf.mxu0
  %1841 = vmatprep.mubr.f32.mxu0 0.0
  %1842 = vmatmul.mubr.f32.gmra.mxu0 %v450
  %v1843 = vpop.f32.mrf.mxu0
  %v1844 = vadd.f32 %v1730, %v1843
  %v1845 = vpop.f32.mrf.mxu0
  %1846 = vmatprep.mubr.f32.mxu0 0.0
  %1847 = vmatmul.mubr.f32.gmra.mxu0 %v453
  %v1848 = vpop.f32.mrf.mxu0
  %v1849 = vadd.f32 %v1730, %v1848
  %v1850 = vpop.f32.mrf.mxu0
  %1851 = vmatprep.mubr.f32.mxu0 0.0
  %1852 = vmatmul.mubr.f32.gmra.mxu0 %v456
  %v1853 = vpop.f32.mrf.mxu0
  %v1854 = vadd.f32 %v1730, %v1853
  %v1855 = vpop.f32.mrf.mxu0
  %1856 = vmatprep.mubr.f32.mxu0 0.0
  %1857 = vmatmul.mubr.f32.gmra.mxu0 %v459
  %v1858 = vpop.f32.mrf.mxu0
  %v1859 = vadd.f32 %v1730, %v1858
  %v1860 = vpop.f32.mrf.mxu0
  %1861 = vmatprep.mubr.f32.mxu0 0.0
  %1862 = vmatmul.mubr.f32.gmra.mxu0 %v462
  %v1863 = vpop.f32.mrf.mxu0
  %v1864 = vadd.f32 %v1730, %v1863
  %v1865 = vpop.f32.mrf.mxu0
  %1866 = vmatprep.mubr.f32.mxu0 0.0
  %1867 = vmatmul.mubr.f32.gmra.mxu0 %v465
  %v1868 = vpop.f32.mrf.mxu0
  %v1869 = vadd.f32 %v1730, %v1868
  %v1870 = vpop.f32.mrf.mxu0
  %1871 = vmatprep.mubr.f32.mxu0 0.0
  %1872 = vmatmul.mubr.f32.gmra.mxu0 %v468
  %v1873 = vpop.f32.mrf.mxu0
  %v1874 = vadd.f32 %v1730, %v1873
  %v1875 = vpop.f32.mrf.mxu0
  %1876 = vdwg.mxu0
  %s1877 = scalar_lea.vmem %s5, 32
  %v1878 = vld [vmem:[%s1877] sm:$0xff]
  %v1879 = vld [vmem:[%s1877 + $0x8] sm:$0xff]
  %v1880 = vld [vmem:[%s1877 + $0x10] sm:$0xff]
  %v1881 = vld [vmem:[%s1877 + $0x18] sm:$0xff]
  %s1882 = scalar_lea.vmem %s6, 1
  %v1883 = vld [vmem:[%s1882] sm:$0x1]
  %v1885 = vlaneseq
  %v1886 = vshrl.u32 %v1885, 7
  %v1887 = vsub.s32 0, %v1886
  %v1888 = vrot.slane %v1883, %v1887
  %1890 = vmatprep.subr.mxu0 0.0
  %1891 = vmatpush1.msra.mxu0 0.0
  %1892 = vmatprep.subr.mxu0 0.0
  %1893 = vmatpush1.msra.mxu0 0.0
  %1894 = vmatprep.subr.mxu0 0.0
  %1895 = vmatpush1.msra.mxu0 0.0
  %1896 = vmatprep.subr.mxu0 0.0
  %1897 = vmatpush1.msra.mxu0 0.0
  %1898 = vmatprep.subr.mxu0 0.0
  %1899 = vmatpush1.msra.mxu0 0.0
  %1900 = vmatprep.subr.mxu0 0.0
  %1901 = vmatpush1.msra.mxu0 0.0
  %1902 = vmatprep.subr.mxu0 0.0
  %1903 = vmatpush1.msra.mxu0 0.0
  %1904 = vmatprep.subr.mxu0 0.0
  %1905 = vmatpush1.msra.mxu0 0.0
  %1906 = vmatprep.subr.mxu0 0.0
  %1907 = vmatpush1.msra.mxu0 0.0
  %1908 = vmatprep.subr.mxu0 0.0
  %1909 = vmatpush1.msra.mxu0 0.0
  %1910 = vmatprep.subr.mxu0 0.0
  %1911 = vmatpush1.msra.mxu0 0.0
  %1912 = vmatprep.subr.mxu0 0.0
  %1913 = vmatpush1.msra.mxu0 0.0
  %1914 = vmatprep.subr.mxu0 0.0
  %1915 = vmatpush1.msra.mxu0 %v1881
  %1916 = vmatprep.subr.mxu0 0.0
  %1917 = vmatpush1.msra.mxu0 %v1880
  %1918 = vmatprep.subr.mxu0 0.0
  %1919 = vmatpush1.msra.mxu0 %v1879
  %1920 = vmatprep.subr.mxu0 0.0
  %1921 = vmatpush1.msra.mxu0 %v1878
  %1922 = vmatprep.subr.mxu0 0.0
  %1923 = vmatpush2.msra.mxu0 0.0
  %1924 = vmatprep.subr.mxu0 0.0
  %1925 = vmatpush2.msra.mxu0 0.0
  %1926 = vmatprep.subr.mxu0 0.0
  %1927 = vmatpush2.msra.mxu0 0.0
  %1928 = vmatprep.subr.mxu0 0.0
  %1929 = vmatpush2.msra.mxu0 0.0
  %1930 = vmatprep.subr.mxu0 0.0
  %1931 = vmatpush2.msra.mxu0 0.0
  %1932 = vmatprep.subr.mxu0 0.0
  %1933 = vmatpush2.msra.mxu0 0.0
  %1934 = vmatprep.subr.mxu0 0.0
  %1935 = vmatpush2.msra.mxu0 0.0
  %1936 = vmatprep.subr.mxu0 0.0
  %1937 = vmatpush2.msra.mxu0 0.0
  %1938 = vmatprep.subr.mxu0 0.0
  %1939 = vmatpush2.msra.mxu0 0.0
  %1940 = vmatprep.subr.mxu0 0.0
  %1941 = vmatpush2.msra.mxu0 0.0
  %1942 = vmatprep.subr.mxu0 0.0
  %1943 = vmatpush2.msra.mxu0 0.0
  %1944 = vmatprep.subr.mxu0 0.0
  %1945 = vmatpush2.msra.mxu0 0.0
  %1946 = vmatprep.subr.mxu0 0.0
  %1947 = vmatpush2.msra.mxu0 0.0
  %1948 = vmatprep.subr.mxu0 0.0
  %1949 = vmatpush2.msra.mxu0 0.0
  %1950 = vmatprep.subr.mxu0 0.0
  %1951 = vmatpush2.msra.mxu0 0.0
  %1952 = vmatprep.subr.mxu0 0.0
  %1953 = vmatpush2.msra.mxu0 0.0
  %1954 = vmatprep.mubr.f32.mxu0 0.0
  %1955 = vmatmul.mubr.f32.gmra.mxu0 %v423
  %v1956 = vpop.f32.mrf.mxu0
  %v1957 = vadd.f32 %v1888, %v1956
  %v1958 = vpop.f32.mrf.mxu0
  %1959 = vmatprep.mubr.f32.mxu0 0.0
  %1960 = vmatmul.mubr.f32.gmra.mxu0 %v426
  %v1961 = vpop.f32.mrf.mxu0
  %v1962 = vadd.f32 %v1888, %v1961
  %v1963 = vpop.f32.mrf.mxu0
  %1964 = vmatprep.mubr.f32.mxu0 0.0
  %1965 = vmatmul.mubr.f32.gmra.mxu0 %v429
  %v1966 = vpop.f32.mrf.mxu0
  %v1967 = vadd.f32 %v1888, %v1966
  %v1968 = vpop.f32.mrf.mxu0
  %1969 = vmatprep.mubr.f32.mxu0 0.0
  %1970 = vmatmul.mubr.f32.gmra.mxu0 %v432
  %v1971 = vpop.f32.mrf.mxu0
  %v1972 = vadd.f32 %v1888, %v1971
  %v1973 = vpop.f32.mrf.mxu0
  %1974 = vmatprep.mubr.f32.mxu0 0.0
  %1975 = vmatmul.mubr.f32.gmra.mxu0 %v435
  %v1976 = vpop.f32.mrf.mxu0
  %v1977 = vadd.f32 %v1888, %v1976
  %v1978 = vpop.f32.mrf.mxu0
  %1979 = vmatprep.mubr.f32.mxu0 0.0
  %1980 = vmatmul.mubr.f32.gmra.mxu0 %v438
  %v1981 = vpop.f32.mrf.mxu0
  %v1982 = vadd.f32 %v1888, %v1981
  %v1983 = vpop.f32.mrf.mxu0
  %1984 = vmatprep.mubr.f32.mxu0 0.0
  %1985 = vmatmul.mubr.f32.gmra.mxu0 %v441
  %v1986 = vpop.f32.mrf.mxu0
  %v1987 = vadd.f32 %v1888, %v1986
  %v1988 = vpop.f32.mrf.mxu0
  %1989 = vmatprep.mubr.f32.mxu0 0.0
  %1990 = vmatmul.mubr.f32.gmra.mxu0 %v444
  %v1991 = vpop.f32.mrf.mxu0
  %v1992 = vadd.f32 %v1888, %v1991
  %v1993 = vpop.f32.mrf.mxu0
  %1994 = vmatprep.mubr.f32.mxu0 0.0
  %1995 = vmatmul.mubr.f32.gmra.mxu0 %v447
  %v1996 = vpop.f32.mrf.mxu0
  %v1997 = vadd.f32 %v1888, %v1996
  %v1998 = vpop.f32.mrf.mxu0
  %1999 = vmatprep.mubr.f32.mxu0 0.0
  %2000 = vmatmul.mubr.f32.gmra.mxu0 %v450
  %v2001 = vpop.f32.mrf.mxu0
  %v2002 = vadd.f32 %v1888, %v2001
  %v2003 = vpop.f32.mrf.mxu0
  %2004 = vmatprep.mubr.f32.mxu0 0.0
  %2005 = vmatmul.mubr.f32.gmra.mxu0 %v453
  %v2006 = vpop.f32.mrf.mxu0
  %v2007 = vadd.f32 %v1888, %v2006
  %v2008 = vpop.f32.mrf.mxu0
  %2009 = vmatprep.mubr.f32.mxu0 0.0
  %2010 = vmatmul.mubr.f32.gmra.mxu0 %v456
  %v2011 = vpop.f32.mrf.mxu0
  %v2012 = vadd.f32 %v1888, %v2011
  %v2013 = vpop.f32.mrf.mxu0
  %2014 = vmatprep.mubr.f32.mxu0 0.0
  %2015 = vmatmul.mubr.f32.gmra.mxu0 %v459
  %v2016 = vpop.f32.mrf.mxu0
  %v2017 = vadd.f32 %v1888, %v2016
  %v2018 = vpop.f32.mrf.mxu0
  %2019 = vmatprep.mubr.f32.mxu0 0.0
  %2020 = vmatmul.mubr.f32.gmra.mxu0 %v462
  %v2021 = vpop.f32.mrf.mxu0
  %v2022 = vadd.f32 %v1888, %v2021
  %v2023 = vpop.f32.mrf.mxu0
  %2024 = vmatprep.mubr.f32.mxu0 0.0
  %2025 = vmatmul.mubr.f32.gmra.mxu0 %v465
  %v2026 = vpop.f32.mrf.mxu0
  %v2027 = vadd.f32 %v1888, %v2026
  %v2028 = vpop.f32.mrf.mxu0
  %2029 = vmatprep.mubr.f32.mxu0 0.0
  %2030 = vmatmul.mubr.f32.gmra.mxu0 %v468
  %v2031 = vpop.f32.mrf.mxu0
  %v2032 = vadd.f32 %v1888, %v2031
  %v2033 = vpop.f32.mrf.mxu0
  %2034 = vdwg.mxu0
  %s2035 = scalar_lea.vmem %s7, 32
  %v2036 = vld [vmem:[%s2035] sm:$0xff]
  %v2037 = vld [vmem:[%s2035 + $0x8] sm:$0xff]
  %v2038 = vld [vmem:[%s2035 + $0x10] sm:$0xff]
  %v2039 = vld [vmem:[%s2035 + $0x18] sm:$0xff]
  %s2040 = scalar_lea.vmem %s8, 1
  %v2041 = vld [vmem:[%s2040] sm:$0x1]
  %v2043 = vlaneseq
  %v2044 = vshrl.u32 %v2043, 7
  %v2045 = vsub.s32 0, %v2044
  %v2046 = vrot.slane %v2041, %v2045
  %2048 = vmatprep.subr.mxu0 0.0
  %2049 = vmatpush1.msra.mxu0 0.0
  %2050 = vmatprep.subr.mxu0 0.0
  %2051 = vmatpush1.msra.mxu0 0.0
  %2052 = vmatprep.subr.mxu0 0.0
  %2053 = vmatpush1.msra.mxu0 0.0
  %2054 = vmatprep.subr.mxu0 0.0
  %2055 = vmatpush1.msra.mxu0 0.0
  %2056 = vmatprep.subr.mxu0 0.0
  %2057 = vmatpush1.msra.mxu0 0.0
  %2058 = vmatprep.subr.mxu0 0.0
  %2059 = vmatpush1.msra.mxu0 0.0
  %2060 = vmatprep.subr.mxu0 0.0
  %2061 = vmatpush1.msra.mxu0 0.0
  %2062 = vmatprep.subr.mxu0 0.0
  %2063 = vmatpush1.msra.mxu0 0.0
  %2064 = vmatprep.subr.mxu0 0.0
  %2065 = vmatpush1.msra.mxu0 0.0
  %2066 = vmatprep.subr.mxu0 0.0
  %2067 = vmatpush1.msra.mxu0 0.0
  %2068 = vmatprep.subr.mxu0 0.0
  %2069 = vmatpush1.msra.mxu0 0.0
  %2070 = vmatprep.subr.mxu0 0.0
  %2071 = vmatpush1.msra.mxu0 0.0
  %2072 = vmatprep.subr.mxu0 0.0
  %2073 = vmatpush1.msra.mxu0 %v2039
  %2074 = vmatprep.subr.mxu0 0.0
  %2075 = vmatpush1.msra.mxu0 %v2038
  %2076 = vmatprep.subr.mxu0 0.0
  %2077 = vmatpush1.msra.mxu0 %v2037
  %2078 = vmatprep.subr.mxu0 0.0
  %2079 = vmatpush1.msra.mxu0 %v2036
  %2080 = vmatprep.subr.mxu0 0.0
  %2081 = vmatpush2.msra.mxu0 0.0
  %2082 = vmatprep.subr.mxu0 0.0
  %2083 = vmatpush2.msra.mxu0 0.0
  %2084 = vmatprep.subr.mxu0 0.0
  %2085 = vmatpush2.msra.mxu0 0.0
  %2086 = vmatprep.subr.mxu0 0.0
  %2087 = vmatpush2.msra.mxu0 0.0
  %2088 = vmatprep.subr.mxu0 0.0
  %2089 = vmatpush2.msra.mxu0 0.0
  %2090 = vmatprep.subr.mxu0 0.0
  %2091 = vmatpush2.msra.mxu0 0.0
  %2092 = vmatprep.subr.mxu0 0.0
  %2093 = vmatpush2.msra.mxu0 0.0
  %2094 = vmatprep.subr.mxu0 0.0
  %2095 = vmatpush2.msra.mxu0 0.0
  %2096 = vmatprep.subr.mxu0 0.0
  %2097 = vmatpush2.msra.mxu0 0.0
  %2098 = vmatprep.subr.mxu0 0.0
  %2099 = vmatpush2.msra.mxu0 0.0
  %2100 = vmatprep.subr.mxu0 0.0
  %2101 = vmatpush2.msra.mxu0 0.0
  %2102 = vmatprep.subr.mxu0 0.0
  %2103 = vmatpush2.msra.mxu0 0.0
  %2104 = vmatprep.subr.mxu0 0.0
  %2105 = vmatpush2.msra.mxu0 0.0
  %2106 = vmatprep.subr.mxu0 0.0
  %2107 = vmatpush2.msra.mxu0 0.0
  %2108 = vmatprep.subr.mxu0 0.0
  %2109 = vmatpush2.msra.mxu0 0.0
  %2110 = vmatprep.subr.mxu0 0.0
  %2111 = vmatpush2.msra.mxu0 0.0
  %2112 = vmatprep.mubr.f32.mxu0 0.0
  %2113 = vmatmul.mubr.f32.gmra.mxu0 %v423
  %v2114 = vpop.f32.mrf.mxu0
  %v2115 = vadd.f32 %v2046, %v2114
  %v2116 = vpop.f32.mrf.mxu0
  %2117 = vmatprep.mubr.f32.mxu0 0.0
  %2118 = vmatmul.mubr.f32.gmra.mxu0 %v426
  %v2119 = vpop.f32.mrf.mxu0
  %v2120 = vadd.f32 %v2046, %v2119
  %v2121 = vpop.f32.mrf.mxu0
  %2122 = vmatprep.mubr.f32.mxu0 0.0
  %2123 = vmatmul.mubr.f32.gmra.mxu0 %v429
  %v2124 = vpop.f32.mrf.mxu0
  %v2125 = vadd.f32 %v2046, %v2124
  %v2126 = vpop.f32.mrf.mxu0
  %2127 = vmatprep.mubr.f32.mxu0 0.0
  %2128 = vmatmul.mubr.f32.gmra.mxu0 %v432
  %v2129 = vpop.f32.mrf.mxu0
  %v2130 = vadd.f32 %v2046, %v2129
  %v2131 = vpop.f32.mrf.mxu0
  %2132 = vmatprep.mubr.f32.mxu0 0.0
  %2133 = vmatmul.mubr.f32.gmra.mxu0 %v435
  %v2134 = vpop.f32.mrf.mxu0
  %v2135 = vadd.f32 %v2046, %v2134
  %v2136 = vpop.f32.mrf.mxu0
  %2137 = vmatprep.mubr.f32.mxu0 0.0
  %2138 = vmatmul.mubr.f32.gmra.mxu0 %v438
  %v2139 = vpop.f32.mrf.mxu0
  %v2140 = vadd.f32 %v2046, %v2139
  %v2141 = vpop.f32.mrf.mxu0
  %2142 = vmatprep.mubr.f32.mxu0 0.0
  %2143 = vmatmul.mubr.f32.gmra.mxu0 %v441
  %v2144 = vpop.f32.mrf.mxu0
  %v2145 = vadd.f32 %v2046, %v2144
  %v2146 = vpop.f32.mrf.mxu0
  %2147 = vmatprep.mubr.f32.mxu0 0.0
  %2148 = vmatmul.mubr.f32.gmra.mxu0 %v444
  %v2149 = vpop.f32.mrf.mxu0
  %v2150 = vadd.f32 %v2046, %v2149
  %v2151 = vpop.f32.mrf.mxu0
  %2152 = vmatprep.mubr.f32.mxu0 0.0
  %2153 = vmatmul.mubr.f32.gmra.mxu0 %v447
  %v2154 = vpop.f32.mrf.mxu0
  %v2155 = vadd.f32 %v2046, %v2154
  %v2156 = vpop.f32.mrf.mxu0
  %2157 = vmatprep.mubr.f32.mxu0 0.0
  %2158 = vmatmul.mubr.f32.gmra.mxu0 %v450
  %v2159 = vpop.f32.mrf.mxu0
  %v2160 = vadd.f32 %v2046, %v2159
  %v2161 = vpop.f32.mrf.mxu0
  %2162 = vmatprep.mubr.f32.mxu0 0.0
  %2163 = vmatmul.mubr.f32.gmra.mxu0 %v453
  %v2164 = vpop.f32.mrf.mxu0
  %v2165 = vadd.f32 %v2046, %v2164
  %v2166 = vpop.f32.mrf.mxu0
  %2167 = vmatprep.mubr.f32.mxu0 0.0
  %2168 = vmatmul.mubr.f32.gmra.mxu0 %v456
  %v2169 = vpop.f32.mrf.mxu0
  %v2170 = vadd.f32 %v2046, %v2169
  %v2171 = vpop.f32.mrf.mxu0
  %2172 = vmatprep.mubr.f32.mxu0 0.0
  %2173 = vmatmul.mubr.f32.gmra.mxu0 %v459
  %v2174 = vpop.f32.mrf.mxu0
  %v2175 = vadd.f32 %v2046, %v2174
  %v2176 = vpop.f32.mrf.mxu0
  %2177 = vmatprep.mubr.f32.mxu0 0.0
  %2178 = vmatmul.mubr.f32.gmra.mxu0 %v462
  %v2179 = vpop.f32.mrf.mxu0
  %v2180 = vadd.f32 %v2046, %v2179
  %v2181 = vpop.f32.mrf.mxu0
  %2182 = vmatprep.mubr.f32.mxu0 0.0
  %2183 = vmatmul.mubr.f32.gmra.mxu0 %v465
  %v2184 = vpop.f32.mrf.mxu0
  %v2185 = vadd.f32 %v2046, %v2184
  %v2186 = vpop.f32.mrf.mxu0
  %2187 = vmatprep.mubr.f32.mxu0 0.0
  %2188 = vmatmul.mubr.f32.gmra.mxu0 %v468
  %v2189 = vpop.f32.mrf.mxu0
  %v2190 = vadd.f32 %v2046, %v2189
  %v2191 = vpop.f32.mrf.mxu0
  %2192 = vdwg.mxu0
  %v2194 = vsel %vm927, %v1799, 0
  %v2197 = vsel %vm927, %v1804, 0
  %v2200 = vsel %vm927, %v1809, 0
  %v2203 = vsel %vm927, %v1814, 0
  %v2206 = vsel %vm927, %v1819, 0
  %v2209 = vsel %vm927, %v1824, 0
  %v2212 = vsel %vm927, %v1829, 0
  %v2215 = vsel %vm927, %v1834, 0
  %v2218 = vsel %vm927, %v1957, 0
  %v2221 = vsel %vm927, %v1962, 0
  %v2224 = vsel %vm927, %v1967, 0
  %v2227 = vsel %vm927, %v1972, 0
  %v2230 = vsel %vm927, %v1977, 0
  %v2233 = vsel %vm927, %v1982, 0
  %v2236 = vsel %vm927, %v1987, 0
  %v2239 = vsel %vm927, %v1992, 0
  %2241 = vmatprep.subr.mxu0 0.0
  %2242 = vmatpush1.xpose.msra.mxu0 0.0
  %2243 = vmatprep.subr.mxu0 0.0
  %2244 = vmatpush1.xpose.msra.mxu0 0.0
  %2245 = vmatprep.subr.mxu0 0.0
  %2246 = vmatpush1.xpose.msra.mxu0 0.0
  %2247 = vmatprep.subr.mxu0 0.0
  %2248 = vmatpush1.xpose.msra.mxu0 0.0
  %2249 = vmatprep.subr.mxu0 0.0
  %2250 = vmatpush1.xpose.msra.mxu0 0.0
  %2251 = vmatprep.subr.mxu0 0.0
  %2252 = vmatpush1.xpose.msra.mxu0 0.0
  %2253 = vmatprep.subr.mxu0 0.0
  %2254 = vmatpush1.xpose.msra.mxu0 0.0
  %2255 = vmatprep.subr.mxu0 0.0
  %2256 = vmatpush1.xpose.msra.mxu0 0.0
  %2257 = vmatprep.subr.mxu0 0.0
  %2258 = vmatpush1.xpose.msra.mxu0 %v2239
  %2259 = vmatprep.subr.mxu0 0.0
  %2260 = vmatpush1.xpose.msra.mxu0 %v2236
  %2261 = vmatprep.subr.mxu0 0.0
  %2262 = vmatpush1.xpose.msra.mxu0 %v2233
  %2263 = vmatprep.subr.mxu0 0.0
  %2264 = vmatpush1.xpose.msra.mxu0 %v2230
  %2265 = vmatprep.subr.mxu0 0.0
  %2266 = vmatpush1.xpose.msra.mxu0 %v2227
  %2267 = vmatprep.subr.mxu0 0.0
  %2268 = vmatpush1.xpose.msra.mxu0 %v2224
  %2269 = vmatprep.subr.mxu0 0.0
  %2270 = vmatpush1.xpose.msra.mxu0 %v2221
  %2271 = vmatprep.subr.mxu0 0.0
  %2272 = vmatpush1.xpose.msra.mxu0 %v2218
  %2273 = vmatprep.subr.mxu0 0.0
  %2274 = vmatpush2.xpose.msra.mxu0 0.0
  %2275 = vmatprep.subr.mxu0 0.0
  %2276 = vmatpush2.xpose.msra.mxu0 0.0
  %2277 = vmatprep.subr.mxu0 0.0
  %2278 = vmatpush2.xpose.msra.mxu0 0.0
  %2279 = vmatprep.subr.mxu0 0.0
  %2280 = vmatpush2.xpose.msra.mxu0 0.0
  %2281 = vmatprep.subr.mxu0 0.0
  %2282 = vmatpush2.xpose.msra.mxu0 0.0
  %2283 = vmatprep.subr.mxu0 0.0
  %2284 = vmatpush2.xpose.msra.mxu0 0.0
  %2285 = vmatprep.subr.mxu0 0.0
  %2286 = vmatpush2.xpose.msra.mxu0 0.0
  %2287 = vmatprep.subr.mxu0 0.0
  %2288 = vmatpush2.xpose.msra.mxu0 0.0
  %2289 = vmatprep.subr.mxu0 0.0
  %2290 = vmatpush2.xpose.msra.mxu0 0.0
  %2291 = vmatprep.subr.mxu0 0.0
  %2292 = vmatpush2.xpose.msra.mxu0 0.0
  %2293 = vmatprep.subr.mxu0 0.0
  %2294 = vmatpush2.xpose.msra.mxu0 0.0
  %2295 = vmatprep.subr.mxu0 0.0
  %2296 = vmatpush2.xpose.msra.mxu0 0.0
  %2297 = vmatprep.subr.mxu0 0.0
  %2298 = vmatpush2.xpose.msra.mxu0 0.0
  %2299 = vmatprep.subr.mxu0 0.0
  %2300 = vmatpush2.xpose.msra.mxu0 0.0
  %2301 = vmatprep.subr.mxu0 0.0
  %2302 = vmatpush2.xpose.msra.mxu0 0.0
  %2303 = vmatprep.subr.mxu0 0.0
  %2304 = vmatpush2.xpose.msra.mxu0 0.0
  %2305 = vmatprep.mubr.f32.mxu0 0.0
  %2306 = vmatmul.mubr.f32.gmra.mxu0 %v2194
  %v2307 = vpop.f32.mrf.mxu0
  %v2308 = vadd.f32 0.0, %v2307
  %v2309 = vpop.f32.mrf.mxu0
  %2310 = vmatprep.mubr.f32.mxu0 0.0
  %2311 = vmatmul.mubr.f32.gmra.mxu0 %v2197
  %v2312 = vpop.f32.mrf.mxu0
  %v2313 = vadd.f32 0.0, %v2312
  %v2314 = vpop.f32.mrf.mxu0
  %2315 = vmatprep.mubr.f32.mxu0 0.0
  %2316 = vmatmul.mubr.f32.gmra.mxu0 %v2200
  %v2317 = vpop.f32.mrf.mxu0
  %v2318 = vadd.f32 0.0, %v2317
  %v2319 = vpop.f32.mrf.mxu0
  %2320 = vmatprep.mubr.f32.mxu0 0.0
  %2321 = vmatmul.mubr.f32.gmra.mxu0 %v2203
  %v2322 = vpop.f32.mrf.mxu0
  %v2323 = vadd.f32 0.0, %v2322
  %v2324 = vpop.f32.mrf.mxu0
  %2325 = vmatprep.mubr.f32.mxu0 0.0
  %2326 = vmatmul.mubr.f32.gmra.mxu0 %v2206
  %v2327 = vpop.f32.mrf.mxu0
  %v2328 = vadd.f32 0.0, %v2327
  %v2329 = vpop.f32.mrf.mxu0
  %2330 = vmatprep.mubr.f32.mxu0 0.0
  %2331 = vmatmul.mubr.f32.gmra.mxu0 %v2209
  %v2332 = vpop.f32.mrf.mxu0
  %v2333 = vadd.f32 0.0, %v2332
  %v2334 = vpop.f32.mrf.mxu0
  %2335 = vmatprep.mubr.f32.mxu0 0.0
  %2336 = vmatmul.mubr.f32.gmra.mxu0 %v2212
  %v2337 = vpop.f32.mrf.mxu0
  %v2338 = vadd.f32 0.0, %v2337
  %v2339 = vpop.f32.mrf.mxu0
  %2340 = vmatprep.mubr.f32.mxu0 0.0
  %2341 = vmatmul.mubr.f32.gmra.mxu0 %v2215
  %v2342 = vpop.f32.mrf.mxu0
  %v2343 = vadd.f32 0.0, %v2342
  %v2344 = vpop.f32.mrf.mxu0
  %2345 = vdwg.mxu0
  %v2347 = vsel %vm927, %v1839, 0
  %v2350 = vsel %vm927, %v1844, 0
  %v2353 = vsel %vm927, %v1849, 0
  %v2356 = vsel %vm927, %v1854, 0
  %v2359 = vsel %vm927, %v1859, 0
  %v2362 = vsel %vm927, %v1864, 0
  %v2365 = vsel %vm927, %v1869, 0
  %v2368 = vsel %vm927, %v1874, 0
  %v2371 = vsel %vm927, %v1997, 0
  %v2374 = vsel %vm927, %v2002, 0
  %v2377 = vsel %vm927, %v2007, 0
  %v2380 = vsel %vm927, %v2012, 0
  %v2383 = vsel %vm927, %v2017, 0
  %v2386 = vsel %vm927, %v2022, 0
  %v2389 = vsel %vm927, %v2027, 0
  %v2392 = vsel %vm927, %v2032, 0
  %2394 = vmatprep.subr.mxu0 0.0
  %2395 = vmatpush1.xpose.msra.mxu0 0.0
  %2396 = vmatprep.subr.mxu0 0.0
  %2397 = vmatpush1.xpose.msra.mxu0 0.0
  %2398 = vmatprep.subr.mxu0 0.0
  %2399 = vmatpush1.xpose.msra.mxu0 0.0
  %2400 = vmatprep.subr.mxu0 0.0
  %2401 = vmatpush1.xpose.msra.mxu0 0.0
  %2402 = vmatprep.subr.mxu0 0.0
  %2403 = vmatpush1.xpose.msra.mxu0 0.0
  %2404 = vmatprep.subr.mxu0 0.0
  %2405 = vmatpush1.xpose.msra.mxu0 0.0
  %2406 = vmatprep.subr.mxu0 0.0
  %2407 = vmatpush1.xpose.msra.mxu0 0.0
  %2408 = vmatprep.subr.mxu0 0.0
  %2409 = vmatpush1.xpose.msra.mxu0 0.0
  %2410 = vmatprep.subr.mxu0 0.0
  %2411 = vmatpush1.xpose.msra.mxu0 %v2392
  %2412 = vmatprep.subr.mxu0 0.0
  %2413 = vmatpush1.xpose.msra.mxu0 %v2389
  %2414 = vmatprep.subr.mxu0 0.0
  %2415 = vmatpush1.xpose.msra.mxu0 %v2386
  %2416 = vmatprep.subr.mxu0 0.0
  %2417 = vmatpush1.xpose.msra.mxu0 %v2383
  %2418 = vmatprep.subr.mxu0 0.0
  %2419 = vmatpush1.xpose.msra.mxu0 %v2380
  %2420 = vmatprep.subr.mxu0 0.0
  %2421 = vmatpush1.xpose.msra.mxu0 %v2377
  %2422 = vmatprep.subr.mxu0 0.0
  %2423 = vmatpush1.xpose.msra.mxu0 %v2374
  %2424 = vmatprep.subr.mxu0 0.0
  %2425 = vmatpush1.xpose.msra.mxu0 %v2371
  %2426 = vmatprep.subr.mxu0 0.0
  %2427 = vmatpush2.xpose.msra.mxu0 0.0
  %2428 = vmatprep.subr.mxu0 0.0
  %2429 = vmatpush2.xpose.msra.mxu0 0.0
  %2430 = vmatprep.subr.mxu0 0.0
  %2431 = vmatpush2.xpose.msra.mxu0 0.0
  %2432 = vmatprep.subr.mxu0 0.0
  %2433 = vmatpush2.xpose.msra.mxu0 0.0
  %2434 = vmatprep.subr.mxu0 0.0
  %2435 = vmatpush2.xpose.msra.mxu0 0.0
  %2436 = vmatprep.subr.mxu0 0.0
  %2437 = vmatpush2.xpose.msra.mxu0 0.0
  %2438 = vmatprep.subr.mxu0 0.0
  %2439 = vmatpush2.xpose.msra.mxu0 0.0
  %2440 = vmatprep.subr.mxu0 0.0
  %2441 = vmatpush2.xpose.msra.mxu0 0.0
  %2442 = vmatprep.subr.mxu0 0.0
  %2443 = vmatpush2.xpose.msra.mxu0 0.0
  %2444 = vmatprep.subr.mxu0 0.0
  %2445 = vmatpush2.xpose.msra.mxu0 0.0
  %2446 = vmatprep.subr.mxu0 0.0
  %2447 = vmatpush2.xpose.msra.mxu0 0.0
  %2448 = vmatprep.subr.mxu0 0.0
  %2449 = vmatpush2.xpose.msra.mxu0 0.0
  %2450 = vmatprep.subr.mxu0 0.0
  %2451 = vmatpush2.xpose.msra.mxu0 0.0
  %2452 = vmatprep.subr.mxu0 0.0
  %2453 = vmatpush2.xpose.msra.mxu0 0.0
  %2454 = vmatprep.subr.mxu0 0.0
  %2455 = vmatpush2.xpose.msra.mxu0 0.0
  %2456 = vmatprep.subr.mxu0 0.0
  %2457 = vmatpush2.xpose.msra.mxu0 0.0
  %2458 = vmatprep.mubr.f32.mxu0 0.0
  %2459 = vmatmul.mubr.f32.gmra.mxu0 %v2347
  %v2460 = vpop.f32.mrf.mxu0
  %v2461 = vadd.f32 0.0, %v2460
  %v2462 = vpop.f32.mrf.mxu0
  %2463 = vmatprep.mubr.f32.mxu0 0.0
  %2464 = vmatmul.mubr.f32.gmra.mxu0 %v2350
  %v2465 = vpop.f32.mrf.mxu0
  %v2466 = vadd.f32 0.0, %v2465
  %v2467 = vpop.f32.mrf.mxu0
  %2468 = vmatprep.mubr.f32.mxu0 0.0
  %2469 = vmatmul.mubr.f32.gmra.mxu0 %v2353
  %v2470 = vpop.f32.mrf.mxu0
  %v2471 = vadd.f32 0.0, %v2470
  %v2472 = vpop.f32.mrf.mxu0
  %2473 = vmatprep.mubr.f32.mxu0 0.0
  %2474 = vmatmul.mubr.f32.gmra.mxu0 %v2356
  %v2475 = vpop.f32.mrf.mxu0
  %v2476 = vadd.f32 0.0, %v2475
  %v2477 = vpop.f32.mrf.mxu0
  %2478 = vmatprep.mubr.f32.mxu0 0.0
  %2479 = vmatmul.mubr.f32.gmra.mxu0 %v2359
  %v2480 = vpop.f32.mrf.mxu0
  %v2481 = vadd.f32 0.0, %v2480
  %v2482 = vpop.f32.mrf.mxu0
  %2483 = vmatprep.mubr.f32.mxu0 0.0
  %2484 = vmatmul.mubr.f32.gmra.mxu0 %v2362
  %v2485 = vpop.f32.mrf.mxu0
  %v2486 = vadd.f32 0.0, %v2485
  %v2487 = vpop.f32.mrf.mxu0
  %2488 = vmatprep.mubr.f32.mxu0 0.0
  %2489 = vmatmul.mubr.f32.gmra.mxu0 %v2365
  %v2490 = vpop.f32.mrf.mxu0
  %v2491 = vadd.f32 0.0, %v2490
  %v2492 = vpop.f32.mrf.mxu0
  %2493 = vmatprep.mubr.f32.mxu0 0.0
  %2494 = vmatmul.mubr.f32.gmra.mxu0 %v2368
  %v2495 = vpop.f32.mrf.mxu0
  %v2496 = vadd.f32 0.0, %v2495
  %v2497 = vpop.f32.mrf.mxu0
  %2498 = vdwg.mxu0
  %v2499 = vmul.f32 %v2308, 0.25
  %v2500 = vmul.f32 %v2313, 0.25
  %v2501 = vmul.f32 %v2318, 0.25
  %v2502 = vmul.f32 %v2323, 0.25
  %v2503 = vmul.f32 %v2328, 0.25
  %v2504 = vmul.f32 %v2333, 0.25
  %v2505 = vmul.f32 %v2338, 0.25
  %v2506 = vmul.f32 %v2343, 0.25
  %v2507 = vmul.f32 %v2461, 0.25
  %v2508 = vmul.f32 %v2466, 0.25
  %v2509 = vmul.f32 %v2471, 0.25
  %v2510 = vmul.f32 %v2476, 0.25
  %v2511 = vmul.f32 %v2481, 0.25
  %v2512 = vmul.f32 %v2486, 0.25
  %v2513 = vmul.f32 %v2491, 0.25
  %v2514 = vmul.f32 %v2496, 0.25
  %v2515 = vadd.f32 %v2499, %v403
  %v2516 = vadd.f32 %v2500, %v404
  %v2517 = vadd.f32 %v2501, %v405
  %v2518 = vadd.f32 %v2502, %v406
  %v2519 = vadd.f32 %v2503, %v407
  %v2520 = vadd.f32 %v2504, %v408
  %v2521 = vadd.f32 %v2505, %v409
  %v2522 = vadd.f32 %v2506, %v410
  %v2523 = vadd.f32 %v2507, %v403
  %v2524 = vadd.f32 %v2508, %v404
  %v2525 = vadd.f32 %v2509, %v405
  %v2526 = vadd.f32 %v2510, %v406
  %v2527 = vadd.f32 %v2511, %v407
  %v2528 = vadd.f32 %v2512, %v408
  %v2529 = vadd.f32 %v2513, %v409
  %v2530 = vadd.f32 %v2514, %v410
  %v2531 = vsel %vm1266, %v2515, -inf
  %2532 = vmax.xlane.f32.xlu0 %v2531
  %v2533 = vpop.xlane.xlu0 %2532
  %v2534 = vsel %vm1266, %v2516, -inf
  %2535 = vmax.xlane.f32.xlu0 %v2534
  %v2536 = vpop.xlane.xlu0 %2535
  %v2537 = vsel %vm1266, %v2517, -inf
  %2538 = vmax.xlane.f32.xlu0 %v2537
  %v2539 = vpop.xlane.xlu0 %2538
  %v2540 = vsel %vm1266, %v2518, -inf
  %2541 = vmax.xlane.f32.xlu0 %v2540
  %v2542 = vpop.xlane.xlu0 %2541
  %v2543 = vsel %vm1266, %v2519, -inf
  %2544 = vmax.xlane.f32.xlu0 %v2543
  %v2545 = vpop.xlane.xlu0 %2544
  %v2546 = vsel %vm1266, %v2520, -inf
  %2547 = vmax.xlane.f32.xlu0 %v2546
  %v2548 = vpop.xlane.xlu0 %2547
  %v2549 = vsel %vm1266, %v2521, -inf
  %2550 = vmax.xlane.f32.xlu0 %v2549
  %v2551 = vpop.xlane.xlu0 %2550
  %v2552 = vsel %vm1266, %v2522, -inf
  %2553 = vmax.xlane.f32.xlu0 %v2552
  %v2554 = vpop.xlane.xlu0 %2553
  %v2555 = vsel %vm1266, %v2523, -inf
  %2556 = vmax.xlane.f32.xlu0 %v2555
  %v2557 = vpop.xlane.xlu0 %2556
  %v2558 = vsel %vm1266, %v2524, -inf
  %2559 = vmax.xlane.f32.xlu0 %v2558
  %v2560 = vpop.xlane.xlu0 %2559
  %v2561 = vsel %vm1266, %v2525, -inf
  %2562 = vmax.xlane.f32.xlu0 %v2561
  %v2563 = vpop.xlane.xlu0 %2562
  %v2564 = vsel %vm1266, %v2526, -inf
  %2565 = vmax.xlane.f32.xlu0 %v2564
  %v2566 = vpop.xlane.xlu0 %2565
  %v2567 = vsel %vm1266, %v2527, -inf
  %2568 = vmax.xlane.f32.xlu0 %v2567
  %v2569 = vpop.xlane.xlu0 %2568
  %v2570 = vsel %vm1266, %v2528, -inf
  %2571 = vmax.xlane.f32.xlu0 %v2570
  %v2572 = vpop.xlane.xlu0 %2571
  %v2573 = vsel %vm1266, %v2529, -inf
  %2574 = vmax.xlane.f32.xlu0 %v2573
  %v2575 = vpop.xlane.xlu0 %2574
  %v2576 = vsel %vm1266, %v2530, -inf
  %2577 = vmax.xlane.f32.xlu0 %v2576
  %v2578 = vpop.xlane.xlu0 %2577
  %v2579 = vsub.f32 %v2515, %v2533
  %v2580 = vsub.f32 %v2516, %v2536
  %v2581 = vsub.f32 %v2517, %v2539
  %v2582 = vsub.f32 %v2518, %v2542
  %v2583 = vsub.f32 %v2519, %v2545
  %v2584 = vsub.f32 %v2520, %v2548
  %v2585 = vsub.f32 %v2521, %v2551
  %v2586 = vsub.f32 %v2522, %v2554
  %v2587 = vsub.f32 %v2523, %v2557
  %v2588 = vsub.f32 %v2524, %v2560
  %v2589 = vsub.f32 %v2525, %v2563
  %v2590 = vsub.f32 %v2526, %v2566
  %v2591 = vsub.f32 %v2527, %v2569
  %v2592 = vsub.f32 %v2528, %v2572
  %v2593 = vsub.f32 %v2529, %v2575
  %v2594 = vsub.f32 %v2530, %v2578
  %v2595 = vmul.f32 %v2579, 1.442695
  %v2596 = vpow.pop %v2595
  %v2597 = vmul.f32 %v2580, 1.442695
  %v2598 = vpow.pop %v2597
  %v2599 = vmul.f32 %v2581, 1.442695
  %v2600 = vpow.pop %v2599
  %v2601 = vmul.f32 %v2582, 1.442695
  %v2602 = vpow.pop %v2601
  %v2603 = vmul.f32 %v2583, 1.442695
  %v2604 = vpow.pop %v2603
  %v2605 = vmul.f32 %v2584, 1.442695
  %v2606 = vpow.pop %v2605
  %v2607 = vmul.f32 %v2585, 1.442695
  %v2608 = vpow.pop %v2607
  %v2609 = vmul.f32 %v2586, 1.442695
  %v2610 = vpow.pop %v2609
  %v2611 = vmul.f32 %v2587, 1.442695
  %v2612 = vpow.pop %v2611
  %v2613 = vmul.f32 %v2588, 1.442695
  %v2614 = vpow.pop %v2613
  %v2615 = vmul.f32 %v2589, 1.442695
  %v2616 = vpow.pop %v2615
  %v2617 = vmul.f32 %v2590, 1.442695
  %v2618 = vpow.pop %v2617
  %v2619 = vmul.f32 %v2591, 1.442695
  %v2620 = vpow.pop %v2619
  %v2621 = vmul.f32 %v2592, 1.442695
  %v2622 = vpow.pop %v2621
  %v2623 = vmul.f32 %v2593, 1.442695
  %v2624 = vpow.pop %v2623
  %v2625 = vmul.f32 %v2594, 1.442695
  %v2626 = vpow.pop %v2625
  %v2627 = vsel %vm1266, %v2596, 0.0
  %2628 = vadd.xlane.f32.xlu0 %v2627
  %v2629 = vpop.xlane.xlu0 %2628
  %v2630 = vsel %vm1266, %v2598, 0.0
  %2631 = vadd.xlane.f32.xlu0 %v2630
  %v2632 = vpop.xlane.xlu0 %2631
  %v2633 = vsel %vm1266, %v2600, 0.0
  %2634 = vadd.xlane.f32.xlu0 %v2633
  %v2635 = vpop.xlane.xlu0 %2634
  %v2636 = vsel %vm1266, %v2602, 0.0
  %2637 = vadd.xlane.f32.xlu0 %v2636
  %v2638 = vpop.xlane.xlu0 %2637
  %v2639 = vsel %vm1266, %v2604, 0.0
  %2640 = vadd.xlane.f32.xlu0 %v2639
  %v2641 = vpop.xlane.xlu0 %2640
  %v2642 = vsel %vm1266, %v2606, 0.0
  %2643 = vadd.xlane.f32.xlu0 %v2642
  %v2644 = vpop.xlane.xlu0 %2643
  %v2645 = vsel %vm1266, %v2608, 0.0
  %2646 = vadd.xlane.f32.xlu0 %v2645
  %v2647 = vpop.xlane.xlu0 %2646
  %v2648 = vsel %vm1266, %v2610, 0.0
  %2649 = vadd.xlane.f32.xlu0 %v2648
  %v2650 = vpop.xlane.xlu0 %2649
  %v2651 = vsel %vm1266, %v2612, 0.0
  %2652 = vadd.xlane.f32.xlu0 %v2651
  %v2653 = vpop.xlane.xlu0 %2652
  %v2654 = vsel %vm1266, %v2614, 0.0
  %2655 = vadd.xlane.f32.xlu0 %v2654
  %v2656 = vpop.xlane.xlu0 %2655
  %v2657 = vsel %vm1266, %v2616, 0.0
  %2658 = vadd.xlane.f32.xlu0 %v2657
  %v2659 = vpop.xlane.xlu0 %2658
  %v2660 = vsel %vm1266, %v2618, 0.0
  %2661 = vadd.xlane.f32.xlu0 %v2660
  %v2662 = vpop.xlane.xlu0 %2661
  %v2663 = vsel %vm1266, %v2620, 0.0
  %2664 = vadd.xlane.f32.xlu0 %v2663
  %v2665 = vpop.xlane.xlu0 %2664
  %v2666 = vsel %vm1266, %v2622, 0.0
  %2667 = vadd.xlane.f32.xlu0 %v2666
  %v2668 = vpop.xlane.xlu0 %2667
  %v2669 = vsel %vm1266, %v2624, 0.0
  %2670 = vadd.xlane.f32.xlu0 %v2669
  %v2671 = vpop.xlane.xlu0 %2670
  %v2672 = vsel %vm1266, %v2626, 0.0
  %2673 = vadd.xlane.f32.xlu0 %v2672
  %v2674 = vpop.xlane.xlu0 %2673
  %v2675 = vrcp.pop %v2629
  %v2676 = vrcp.pop %v2632
  %v2677 = vrcp.pop %v2635
  %v2678 = vrcp.pop %v2638
  %v2679 = vrcp.pop %v2641
  %v2680 = vrcp.pop %v2644
  %v2681 = vrcp.pop %v2647
  %v2682 = vrcp.pop %v2650
  %v2683 = vrcp.pop %v2653
  %v2684 = vrcp.pop %v2656
  %v2685 = vrcp.pop %v2659
  %v2686 = vrcp.pop %v2662
  %v2687 = vrcp.pop %v2665
  %v2688 = vrcp.pop %v2668
  %v2689 = vrcp.pop %v2671
  %v2690 = vrcp.pop %v2674
  %v2691 = vmul.f32 %v2596, %v2675
  %v2692 = vmul.f32 %v2598, %v2676
  %v2693 = vmul.f32 %v2600, %v2677
  %v2694 = vmul.f32 %v2602, %v2678
  %v2695 = vmul.f32 %v2604, %v2679
  %v2696 = vmul.f32 %v2606, %v2680
  %v2697 = vmul.f32 %v2608, %v2681
  %v2698 = vmul.f32 %v2610, %v2682
  %v2699 = vmul.f32 %v2612, %v2683
  %v2700 = vmul.f32 %v2614, %v2684
  %v2701 = vmul.f32 %v2616, %v2685
  %v2702 = vmul.f32 %v2618, %v2686
  %v2703 = vmul.f32 %v2620, %v2687
  %v2704 = vmul.f32 %v2622, %v2688
  %v2705 = vmul.f32 %v2624, %v2689
  %v2706 = vmul.f32 %v2626, %v2690
  %s2707 = scalar_lea.vmem %s20, 128
  %2708 = vst.msk [vmem:[%s2707] sm:$0xff] %vm1266, %v2691
  %2709 = vst.msk [vmem:[%s2707 + $0x8] sm:$0xff] %vm1266, %v2692
  %2710 = vst.msk [vmem:[%s2707 + $0x10] sm:$0xff] %vm1266, %v2693
  %2711 = vst.msk [vmem:[%s2707 + $0x18] sm:$0xff] %vm1266, %v2694
  %2712 = vst.msk [vmem:[%s2707 + $0x20] sm:$0xff] %vm1266, %v2695
  %2713 = vst.msk [vmem:[%s2707 + $0x28] sm:$0xff] %vm1266, %v2696
  %2714 = vst.msk [vmem:[%s2707 + $0x30] sm:$0xff] %vm1266, %v2697
  %2715 = vst.msk [vmem:[%s2707 + $0x38] sm:$0xff] %vm1266, %v2698
  %2716 = vst.msk [vmem:[%s2707 + $0x40] sm:$0xff] %vm1266, %v2699
  %2717 = vst.msk [vmem:[%s2707 + $0x48] sm:$0xff] %vm1266, %v2700
  %2718 = vst.msk [vmem:[%s2707 + $0x50] sm:$0xff] %vm1266, %v2701
  %2719 = vst.msk [vmem:[%s2707 + $0x58] sm:$0xff] %vm1266, %v2702
  %2720 = vst.msk [vmem:[%s2707 + $0x60] sm:$0xff] %vm1266, %v2703
  %2721 = vst.msk [vmem:[%s2707 + $0x68] sm:$0xff] %vm1266, %v2704
  %2722 = vst.msk [vmem:[%s2707 + $0x70] sm:$0xff] %vm1266, %v2705
  %2723 = vst.msk [vmem:[%s2707 + $0x78] sm:$0xff] %vm1266, %v2706
  %v2725 = vsel %vm1266, %v2691, 0
  %v2728 = vsel %vm1266, %v2692, 0
  %v2731 = vsel %vm1266, %v2693, 0
  %v2734 = vsel %vm1266, %v2694, 0
  %v2737 = vsel %vm1266, %v2695, 0
  %v2740 = vsel %vm1266, %v2696, 0
  %v2743 = vsel %vm1266, %v2697, 0
  %v2746 = vsel %vm1266, %v2698, 0
  %2748 = vmatprep.subr.mxu0 0.0
  %2749 = vmatpush1.msra.mxu0 0.0
  %2750 = vmatprep.subr.mxu0 0.0
  %2751 = vmatpush1.msra.mxu0 0.0
  %2752 = vmatprep.subr.mxu0 0.0
  %2753 = vmatpush1.msra.mxu0 0.0
  %2754 = vmatprep.subr.mxu0 0.0
  %2755 = vmatpush1.msra.mxu0 0.0
  %2756 = vmatprep.subr.mxu0 0.0
  %2757 = vmatpush1.msra.mxu0 0.0
  %2758 = vmatprep.subr.mxu0 0.0
  %2759 = vmatpush1.msra.mxu0 0.0
  %2760 = vmatprep.subr.mxu0 0.0
  %2761 = vmatpush1.msra.mxu0 0.0
  %2762 = vmatprep.subr.mxu0 0.0
  %2763 = vmatpush1.msra.mxu0 0.0
  %2764 = vmatprep.subr.mxu0 0.0
  %2765 = vmatpush1.msra.mxu0 %v2150
  %2766 = vmatprep.subr.mxu0 0.0
  %2767 = vmatpush1.msra.mxu0 %v2145
  %2768 = vmatprep.subr.mxu0 0.0
  %2769 = vmatpush1.msra.mxu0 %v2140
  %2770 = vmatprep.subr.mxu0 0.0
  %2771 = vmatpush1.msra.mxu0 %v2135
  %2772 = vmatprep.subr.mxu0 0.0
  %2773 = vmatpush1.msra.mxu0 %v2130
  %2774 = vmatprep.subr.mxu0 0.0
  %2775 = vmatpush1.msra.mxu0 %v2125
  %2776 = vmatprep.subr.mxu0 0.0
  %2777 = vmatpush1.msra.mxu0 %v2120
  %2778 = vmatprep.subr.mxu0 0.0
  %2779 = vmatpush1.msra.mxu0 %v2115
  %2780 = vmatprep.subr.mxu0 0.0
  %2781 = vmatpush2.msra.mxu0 0.0
  %2782 = vmatprep.subr.mxu0 0.0
  %2783 = vmatpush2.msra.mxu0 0.0
  %2784 = vmatprep.subr.mxu0 0.0
  %2785 = vmatpush2.msra.mxu0 0.0
  %2786 = vmatprep.subr.mxu0 0.0
  %2787 = vmatpush2.msra.mxu0 0.0
  %2788 = vmatprep.subr.mxu0 0.0
  %2789 = vmatpush2.msra.mxu0 0.0
  %2790 = vmatprep.subr.mxu0 0.0
  %2791 = vmatpush2.msra.mxu0 0.0
  %2792 = vmatprep.subr.mxu0 0.0
  %2793 = vmatpush2.msra.mxu0 0.0
  %2794 = vmatprep.subr.mxu0 0.0
  %2795 = vmatpush2.msra.mxu0 0.0
  %2796 = vmatprep.subr.mxu0 0.0
  %2797 = vmatpush2.msra.mxu0 0.0
  %2798 = vmatprep.subr.mxu0 0.0
  %2799 = vmatpush2.msra.mxu0 0.0
  %2800 = vmatprep.subr.mxu0 0.0
  %2801 = vmatpush2.msra.mxu0 0.0
  %2802 = vmatprep.subr.mxu0 0.0
  %2803 = vmatpush2.msra.mxu0 0.0
  %2804 = vmatprep.subr.mxu0 0.0
  %2805 = vmatpush2.msra.mxu0 0.0
  %2806 = vmatprep.subr.mxu0 0.0
  %2807 = vmatpush2.msra.mxu0 0.0
  %2808 = vmatprep.subr.mxu0 0.0
  %2809 = vmatpush2.msra.mxu0 0.0
  %2810 = vmatprep.subr.mxu0 0.0
  %2811 = vmatpush2.msra.mxu0 0.0
  %2812 = vmatprep.mubr.f32.mxu0 0.0
  %2813 = vmatmul.mubr.f32.gmra.mxu0 %v2725
  %v2814 = vpop.f32.mrf.mxu0
  %v2815 = vadd.f32 0.0, %v2814
  %v2816 = vpop.f32.mrf.mxu0
  %2817 = vmatprep.mubr.f32.mxu0 0.0
  %2818 = vmatmul.mubr.f32.gmra.mxu0 %v2728
  %v2819 = vpop.f32.mrf.mxu0
  %v2820 = vadd.f32 0.0, %v2819
  %v2821 = vpop.f32.mrf.mxu0
  %2822 = vmatprep.mubr.f32.mxu0 0.0
  %2823 = vmatmul.mubr.f32.gmra.mxu0 %v2731
  %v2824 = vpop.f32.mrf.mxu0
  %v2825 = vadd.f32 0.0, %v2824
  %v2826 = vpop.f32.mrf.mxu0
  %2827 = vmatprep.mubr.f32.mxu0 0.0
  %2828 = vmatmul.mubr.f32.gmra.mxu0 %v2734
  %v2829 = vpop.f32.mrf.mxu0
  %v2830 = vadd.f32 0.0, %v2829
  %v2831 = vpop.f32.mrf.mxu0
  %2832 = vmatprep.mubr.f32.mxu0 0.0
  %2833 = vmatmul.mubr.f32.gmra.mxu0 %v2737
  %v2834 = vpop.f32.mrf.mxu0
  %v2835 = vadd.f32 0.0, %v2834
  %v2836 = vpop.f32.mrf.mxu0
  %2837 = vmatprep.mubr.f32.mxu0 0.0
  %2838 = vmatmul.mubr.f32.gmra.mxu0 %v2740
  %v2839 = vpop.f32.mrf.mxu0
  %v2840 = vadd.f32 0.0, %v2839
  %v2841 = vpop.f32.mrf.mxu0
  %2842 = vmatprep.mubr.f32.mxu0 0.0
  %2843 = vmatmul.mubr.f32.gmra.mxu0 %v2743
  %v2844 = vpop.f32.mrf.mxu0
  %v2845 = vadd.f32 0.0, %v2844
  %v2846 = vpop.f32.mrf.mxu0
  %2847 = vmatprep.mubr.f32.mxu0 0.0
  %2848 = vmatmul.mubr.f32.gmra.mxu0 %v2746
  %v2849 = vpop.f32.mrf.mxu0
  %v2850 = vadd.f32 0.0, %v2849
  %v2851 = vpop.f32.mrf.mxu0
  %2852 = vdwg.mxu0
  %v2854 = vsel %vm1266, %v2699, 0
  %v2857 = vsel %vm1266, %v2700, 0
  %v2860 = vsel %vm1266, %v2701, 0
  %v2863 = vsel %vm1266, %v2702, 0
  %v2866 = vsel %vm1266, %v2703, 0
  %v2869 = vsel %vm1266, %v2704, 0
  %v2872 = vsel %vm1266, %v2705, 0
  %v2875 = vsel %vm1266, %v2706, 0
  %2877 = vmatprep.subr.mxu0 0.0
  %2878 = vmatpush1.msra.mxu0 0.0
  %2879 = vmatprep.subr.mxu0 0.0
  %2880 = vmatpush1.msra.mxu0 0.0
  %2881 = vmatprep.subr.mxu0 0.0
  %2882 = vmatpush1.msra.mxu0 0.0
  %2883 = vmatprep.subr.mxu0 0.0
  %2884 = vmatpush1.msra.mxu0 0.0
  %2885 = vmatprep.subr.mxu0 0.0
  %2886 = vmatpush1.msra.mxu0 0.0
  %2887 = vmatprep.subr.mxu0 0.0
  %2888 = vmatpush1.msra.mxu0 0.0
  %2889 = vmatprep.subr.mxu0 0.0
  %2890 = vmatpush1.msra.mxu0 0.0
  %2891 = vmatprep.subr.mxu0 0.0
  %2892 = vmatpush1.msra.mxu0 0.0
  %2893 = vmatprep.subr.mxu0 0.0
  %2894 = vmatpush1.msra.mxu0 %v2190
  %2895 = vmatprep.subr.mxu0 0.0
  %2896 = vmatpush1.msra.mxu0 %v2185
  %2897 = vmatprep.subr.mxu0 0.0
  %2898 = vmatpush1.msra.mxu0 %v2180
  %2899 = vmatprep.subr.mxu0 0.0
  %2900 = vmatpush1.msra.mxu0 %v2175
  %2901 = vmatprep.subr.mxu0 0.0
  %2902 = vmatpush1.msra.mxu0 %v2170
  %2903 = vmatprep.subr.mxu0 0.0
  %2904 = vmatpush1.msra.mxu0 %v2165
  %2905 = vmatprep.subr.mxu0 0.0
  %2906 = vmatpush1.msra.mxu0 %v2160
  %2907 = vmatprep.subr.mxu0 0.0
  %2908 = vmatpush1.msra.mxu0 %v2155
  %2909 = vmatprep.subr.mxu0 0.0
  %2910 = vmatpush2.msra.mxu0 0.0
  %2911 = vmatprep.subr.mxu0 0.0
  %2912 = vmatpush2.msra.mxu0 0.0
  %2913 = vmatprep.subr.mxu0 0.0
  %2914 = vmatpush2.msra.mxu0 0.0
  %2915 = vmatprep.subr.mxu0 0.0
  %2916 = vmatpush2.msra.mxu0 0.0
  %2917 = vmatprep.subr.mxu0 0.0
  %2918 = vmatpush2.msra.mxu0 0.0
  %2919 = vmatprep.subr.mxu0 0.0
  %2920 = vmatpush2.msra.mxu0 0.0
  %2921 = vmatprep.subr.mxu0 0.0
  %2922 = vmatpush2.msra.mxu0 0.0
  %2923 = vmatprep.subr.mxu0 0.0
  %2924 = vmatpush2.msra.mxu0 0.0
  %2925 = vmatprep.subr.mxu0 0.0
  %2926 = vmatpush2.msra.mxu0 0.0
  %2927 = vmatprep.subr.mxu0 0.0
  %2928 = vmatpush2.msra.mxu0 0.0
  %2929 = vmatprep.subr.mxu0 0.0
  %2930 = vmatpush2.msra.mxu0 0.0
  %2931 = vmatprep.subr.mxu0 0.0
  %2932 = vmatpush2.msra.mxu0 0.0
  %2933 = vmatprep.subr.mxu0 0.0
  %2934 = vmatpush2.msra.mxu0 0.0
  %2935 = vmatprep.subr.mxu0 0.0
  %2936 = vmatpush2.msra.mxu0 0.0
  %2937 = vmatprep.subr.mxu0 0.0
  %2938 = vmatpush2.msra.mxu0 0.0
  %2939 = vmatprep.subr.mxu0 0.0
  %2940 = vmatpush2.msra.mxu0 0.0
  %2941 = vmatprep.mubr.f32.mxu0 0.0
  %2942 = vmatmul.mubr.f32.gmra.mxu0 %v2854
  %v2943 = vpop.f32.mrf.mxu0
  %v2944 = vadd.f32 0.0, %v2943
  %v2945 = vpop.f32.mrf.mxu0
  %2946 = vmatprep.mubr.f32.mxu0 0.0
  %2947 = vmatmul.mubr.f32.gmra.mxu0 %v2857
  %v2948 = vpop.f32.mrf.mxu0
  %v2949 = vadd.f32 0.0, %v2948
  %v2950 = vpop.f32.mrf.mxu0
  %2951 = vmatprep.mubr.f32.mxu0 0.0
  %2952 = vmatmul.mubr.f32.gmra.mxu0 %v2860
  %v2953 = vpop.f32.mrf.mxu0
  %v2954 = vadd.f32 0.0, %v2953
  %v2955 = vpop.f32.mrf.mxu0
  %2956 = vmatprep.mubr.f32.mxu0 0.0
  %2957 = vmatmul.mubr.f32.gmra.mxu0 %v2863
  %v2958 = vpop.f32.mrf.mxu0
  %v2959 = vadd.f32 0.0, %v2958
  %v2960 = vpop.f32.mrf.mxu0
  %2961 = vmatprep.mubr.f32.mxu0 0.0
  %2962 = vmatmul.mubr.f32.gmra.mxu0 %v2866
  %v2963 = vpop.f32.mrf.mxu0
  %v2964 = vadd.f32 0.0, %v2963
  %v2965 = vpop.f32.mrf.mxu0
  %2966 = vmatprep.mubr.f32.mxu0 0.0
  %2967 = vmatmul.mubr.f32.gmra.mxu0 %v2869
  %v2968 = vpop.f32.mrf.mxu0
  %v2969 = vadd.f32 0.0, %v2968
  %v2970 = vpop.f32.mrf.mxu0
  %2971 = vmatprep.mubr.f32.mxu0 0.0
  %2972 = vmatmul.mubr.f32.gmra.mxu0 %v2872
  %v2973 = vpop.f32.mrf.mxu0
  %v2974 = vadd.f32 0.0, %v2973
  %v2975 = vpop.f32.mrf.mxu0
  %2976 = vmatprep.mubr.f32.mxu0 0.0
  %2977 = vmatmul.mubr.f32.gmra.mxu0 %v2875
  %v2978 = vpop.f32.mrf.mxu0
  %v2979 = vadd.f32 0.0, %v2978
  %v2980 = vpop.f32.mrf.mxu0
  %2981 = vdwg.mxu0
  %s2982 = scalar_lea.vmem %s9, 16
  %v2983 = vld [vmem:[%s2982] sm:$0xff]
  %v2984 = vld [vmem:[%s2982 + $0x8] sm:$0xff]
  %v2986 = vsel %vm927, %v2815, 0
  %v2989 = vsel %vm927, %v2820, 0
  %v2992 = vsel %vm927, %v2825, 0
  %v2995 = vsel %vm927, %v2830, 0
  %v2998 = vsel %vm927, %v2835, 0
  %v3001 = vsel %vm927, %v2840, 0
  %v3004 = vsel %vm927, %v2845, 0
  %v3007 = vsel %vm927, %v2850, 0
  %v3010 = vsel %vm927, %v2944, 0
  %v3013 = vsel %vm927, %v2949, 0
  %v3016 = vsel %vm927, %v2954, 0
  %v3019 = vsel %vm927, %v2959, 0
  %v3022 = vsel %vm927, %v2964, 0
  %v3025 = vsel %vm927, %v2969, 0
  %v3028 = vsel %vm927, %v2974, 0
  %v3031 = vsel %vm927, %v2979, 0
  %3033 = vmatprep.subr.mxu0 0.0
  %3034 = vmatpush1.msra.mxu0 0.0
  %3035 = vmatprep.subr.mxu0 0.0
  %3036 = vmatpush1.msra.mxu0 0.0
  %3037 = vmatprep.subr.mxu0 0.0
  %3038 = vmatpush1.msra.mxu0 0.0
  %3039 = vmatprep.subr.mxu0 0.0
  %3040 = vmatpush1.msra.mxu0 0.0
  %3041 = vmatprep.subr.mxu0 0.0
  %3042 = vmatpush1.msra.mxu0 0.0
  %3043 = vmatprep.subr.mxu0 0.0
  %3044 = vmatpush1.msra.mxu0 0.0
  %3045 = vmatprep.subr.mxu0 0.0
  %3046 = vmatpush1.msra.mxu0 0.0
  %3047 = vmatprep.subr.mxu0 0.0
  %3048 = vmatpush1.msra.mxu0 0.0
  %3049 = vmatprep.subr.mxu0 0.0
  %3050 = vmatpush1.msra.mxu0 0.0
  %3051 = vmatprep.subr.mxu0 0.0
  %3052 = vmatpush1.msra.mxu0 0.0
  %3053 = vmatprep.subr.mxu0 0.0
  %3054 = vmatpush1.msra.mxu0 0.0
  %3055 = vmatprep.subr.mxu0 0.0
  %3056 = vmatpush1.msra.mxu0 0.0
  %3057 = vmatprep.subr.mxu0 0.0
  %3058 = vmatpush1.msra.mxu0 0.0
  %3059 = vmatprep.subr.mxu0 0.0
  %3060 = vmatpush1.msra.mxu0 0.0
  %3061 = vmatprep.subr.mxu0 0.0
  %3062 = vmatpush1.msra.mxu0 %v2984
  %3063 = vmatprep.subr.mxu0 0.0
  %3064 = vmatpush1.msra.mxu0 %v2983
  %3065 = vmatprep.subr.mxu0 0.0
  %3066 = vmatpush2.msra.mxu0 0.0
  %3067 = vmatprep.subr.mxu0 0.0
  %3068 = vmatpush2.msra.mxu0 0.0
  %3069 = vmatprep.subr.mxu0 0.0
  %3070 = vmatpush2.msra.mxu0 0.0
  %3071 = vmatprep.subr.mxu0 0.0
  %3072 = vmatpush2.msra.mxu0 0.0
  %3073 = vmatprep.subr.mxu0 0.0
  %3074 = vmatpush2.msra.mxu0 0.0
  %3075 = vmatprep.subr.mxu0 0.0
  %3076 = vmatpush2.msra.mxu0 0.0
  %3077 = vmatprep.subr.mxu0 0.0
  %3078 = vmatpush2.msra.mxu0 0.0
  %3079 = vmatprep.subr.mxu0 0.0
  %3080 = vmatpush2.msra.mxu0 0.0
  %3081 = vmatprep.subr.mxu0 0.0
  %3082 = vmatpush2.msra.mxu0 0.0
  %3083 = vmatprep.subr.mxu0 0.0
  %3084 = vmatpush2.msra.mxu0 0.0
  %3085 = vmatprep.subr.mxu0 0.0
  %3086 = vmatpush2.msra.mxu0 0.0
  %3087 = vmatprep.subr.mxu0 0.0
  %3088 = vmatpush2.msra.mxu0 0.0
  %3089 = vmatprep.subr.mxu0 0.0
  %3090 = vmatpush2.msra.mxu0 0.0
  %3091 = vmatprep.subr.mxu0 0.0
  %3092 = vmatpush2.msra.mxu0 0.0
  %3093 = vmatprep.subr.mxu0 0.0
  %3094 = vmatpush2.msra.mxu0 0.0
  %3095 = vmatprep.subr.mxu0 0.0
  %3096 = vmatpush2.msra.mxu0 0.0
  %3097 = vmatprep.mubr.f32.mxu0 0.0
  %3098 = vmatmul.mubr.f32.gmra.mxu0 %v2986
  %v3099 = vpop.f32.mrf.mxu0
  %v3100 = vadd.f32 0.0, %v3099
  %v3101 = vpop.f32.mrf.mxu0
  %3102 = vmatprep.mubr.f32.mxu0 0.0
  %3103 = vmatmul.mubr.f32.gmra.mxu0 %v2989
  %v3104 = vpop.f32.mrf.mxu0
  %v3105 = vadd.f32 0.0, %v3104
  %v3106 = vpop.f32.mrf.mxu0
  %3107 = vmatprep.mubr.f32.mxu0 0.0
  %3108 = vmatmul.mubr.f32.gmra.mxu0 %v2992
  %v3109 = vpop.f32.mrf.mxu0
  %v3110 = vadd.f32 0.0, %v3109
  %v3111 = vpop.f32.mrf.mxu0
  %3112 = vmatprep.mubr.f32.mxu0 0.0
  %3113 = vmatmul.mubr.f32.gmra.mxu0 %v2995
  %v3114 = vpop.f32.mrf.mxu0
  %v3115 = vadd.f32 0.0, %v3114
  %v3116 = vpop.f32.mrf.mxu0
  %3117 = vmatprep.mubr.f32.mxu0 0.0
  %3118 = vmatmul.mubr.f32.gmra.mxu0 %v2998
  %v3119 = vpop.f32.mrf.mxu0
  %v3120 = vadd.f32 0.0, %v3119
  %v3121 = vpop.f32.mrf.mxu0
  %3122 = vmatprep.mubr.f32.mxu0 0.0
  %3123 = vmatmul.mubr.f32.gmra.mxu0 %v3001
  %v3124 = vpop.f32.mrf.mxu0
  %v3125 = vadd.f32 0.0, %v3124
  %v3126 = vpop.f32.mrf.mxu0
  %3127 = vmatprep.mubr.f32.mxu0 0.0
  %3128 = vmatmul.mubr.f32.gmra.mxu0 %v3004
  %v3129 = vpop.f32.mrf.mxu0
  %v3130 = vadd.f32 0.0, %v3129
  %v3131 = vpop.f32.mrf.mxu0
  %3132 = vmatprep.mubr.f32.mxu0 0.0
  %3133 = vmatmul.mubr.f32.gmra.mxu0 %v3007
  %v3134 = vpop.f32.mrf.mxu0
  %v3135 = vadd.f32 0.0, %v3134
  %v3136 = vpop.f32.mrf.mxu0
  %3137 = vmatprep.mubr.f32.mxu0 0.0
  %3138 = vmatmul.mubr.f32.gmra.mxu0 %v3010
  %v3139 = vpop.f32.mrf.mxu0
  %v3140 = vadd.f32 0.0, %v3139
  %v3141 = vpop.f32.mrf.mxu0
  %3142 = vmatprep.mubr.f32.mxu0 0.0
  %3143 = vmatmul.mubr.f32.gmra.mxu0 %v3013
  %v3144 = vpop.f32.mrf.mxu0
  %v3145 = vadd.f32 0.0, %v3144
  %v3146 = vpop.f32.mrf.mxu0
  %3147 = vmatprep.mubr.f32.mxu0 0.0
  %3148 = vmatmul.mubr.f32.gmra.mxu0 %v3016
  %v3149 = vpop.f32.mrf.mxu0
  %v3150 = vadd.f32 0.0, %v3149
  %v3151 = vpop.f32.mrf.mxu0
  %3152 = vmatprep.mubr.f32.mxu0 0.0
  %3153 = vmatmul.mubr.f32.gmra.mxu0 %v3019
  %v3154 = vpop.f32.mrf.mxu0
  %v3155 = vadd.f32 0.0, %v3154
  %v3156 = vpop.f32.mrf.mxu0
  %3157 = vmatprep.mubr.f32.mxu0 0.0
  %3158 = vmatmul.mubr.f32.gmra.mxu0 %v3022
  %v3159 = vpop.f32.mrf.mxu0
  %v3160 = vadd.f32 0.0, %v3159
  %v3161 = vpop.f32.mrf.mxu0
  %3162 = vmatprep.mubr.f32.mxu0 0.0
  %3163 = vmatmul.mubr.f32.gmra.mxu0 %v3025
  %v3164 = vpop.f32.mrf.mxu0
  %v3165 = vadd.f32 0.0, %v3164
  %v3166 = vpop.f32.mrf.mxu0
  %3167 = vmatprep.mubr.f32.mxu0 0.0
  %3168 = vmatmul.mubr.f32.gmra.mxu0 %v3028
  %v3169 = vpop.f32.mrf.mxu0
  %v3170 = vadd.f32 0.0, %v3169
  %v3171 = vpop.f32.mrf.mxu0
  %3172 = vmatprep.mubr.f32.mxu0 0.0
  %3173 = vmatmul.mubr.f32.gmra.mxu0 %v3031
  %v3174 = vpop.f32.mrf.mxu0
  %v3175 = vadd.f32 0.0, %v3174
  %v3176 = vpop.f32.mrf.mxu0
  %3177 = vdwg.mxu0
  %v3179 = vsel %vm927, %v1550, 0
  %v3182 = vsel %vm927, %v1555, 0
  %v3185 = vsel %vm927, %v1560, 0
  %v3188 = vsel %vm927, %v1565, 0
  %v3191 = vsel %vm927, %v1570, 0
  %v3194 = vsel %vm927, %v1575, 0
  %v3197 = vsel %vm927, %v1580, 0
  %v3200 = vsel %vm927, %v1585, 0
  %v3203 = vsel %vm927, %v1679, 0
  %v3206 = vsel %vm927, %v1684, 0
  %v3209 = vsel %vm927, %v1689, 0
  %v3212 = vsel %vm927, %v1694, 0
  %v3215 = vsel %vm927, %v1699, 0
  %v3218 = vsel %vm927, %v1704, 0
  %v3221 = vsel %vm927, %v1709, 0
  %v3224 = vsel %vm927, %v1714, 0
  %3226 = vmatprep.subr.mxu0 0.0
  %3227 = vmatpush1.msra.mxu0 0.0
  %3228 = vmatprep.subr.mxu0 0.0
  %3229 = vmatpush1.msra.mxu0 0.0
  %3230 = vmatprep.subr.mxu0 0.0
  %3231 = vmatpush1.msra.mxu0 0.0
  %3232 = vmatprep.subr.mxu0 0.0
  %3233 = vmatpush1.msra.mxu0 0.0
  %3234 = vmatprep.subr.mxu0 0.0
  %3235 = vmatpush1.msra.mxu0 0.0
  %3236 = vmatprep.subr.mxu0 0.0
  %3237 = vmatpush1.msra.mxu0 0.0
  %3238 = vmatprep.subr.mxu0 0.0
  %3239 = vmatpush1.msra.mxu0 0.0
  %3240 = vmatprep.subr.mxu0 0.0
  %3241 = vmatpush1.msra.mxu0 0.0
  %3242 = vmatprep.subr.mxu0 0.0
  %3243 = vmatpush1.msra.mxu0 0.0
  %3244 = vmatprep.subr.mxu0 0.0
  %3245 = vmatpush1.msra.mxu0 0.0
  %3246 = vmatprep.subr.mxu0 0.0
  %3247 = vmatpush1.msra.mxu0 0.0
  %3248 = vmatprep.subr.mxu0 0.0
  %3249 = vmatpush1.msra.mxu0 0.0
  %3250 = vmatprep.subr.mxu0 0.0
  %3251 = vmatpush1.msra.mxu0 0.0
  %3252 = vmatprep.subr.mxu0 0.0
  %3253 = vmatpush1.msra.mxu0 0.0
  %3254 = vmatprep.subr.mxu0 0.0
  %3255 = vmatpush1.msra.mxu0 %v1718
  %3256 = vmatprep.subr.mxu0 0.0
  %3257 = vmatpush1.msra.mxu0 %v1717
  %3258 = vmatprep.subr.mxu0 0.0
  %3259 = vmatpush2.msra.mxu0 0.0
  %3260 = vmatprep.subr.mxu0 0.0
  %3261 = vmatpush2.msra.mxu0 0.0
  %3262 = vmatprep.subr.mxu0 0.0
  %3263 = vmatpush2.msra.mxu0 0.0
  %3264 = vmatprep.subr.mxu0 0.0
  %3265 = vmatpush2.msra.mxu0 0.0
  %3266 = vmatprep.subr.mxu0 0.0
  %3267 = vmatpush2.msra.mxu0 0.0
  %3268 = vmatprep.subr.mxu0 0.0
  %3269 = vmatpush2.msra.mxu0 0.0
  %3270 = vmatprep.subr.mxu0 0.0
  %3271 = vmatpush2.msra.mxu0 0.0
  %3272 = vmatprep.subr.mxu0 0.0
  %3273 = vmatpush2.msra.mxu0 0.0
  %3274 = vmatprep.subr.mxu0 0.0
  %3275 = vmatpush2.msra.mxu0 0.0
  %3276 = vmatprep.subr.mxu0 0.0
  %3277 = vmatpush2.msra.mxu0 0.0
  %3278 = vmatprep.subr.mxu0 0.0
  %3279 = vmatpush2.msra.mxu0 0.0
  %3280 = vmatprep.subr.mxu0 0.0
  %3281 = vmatpush2.msra.mxu0 0.0
  %3282 = vmatprep.subr.mxu0 0.0
  %3283 = vmatpush2.msra.mxu0 0.0
  %3284 = vmatprep.subr.mxu0 0.0
  %3285 = vmatpush2.msra.mxu0 0.0
  %3286 = vmatprep.subr.mxu0 0.0
  %3287 = vmatpush2.msra.mxu0 0.0
  %3288 = vmatprep.subr.mxu0 0.0
  %3289 = vmatpush2.msra.mxu0 0.0
  %3290 = vmatprep.mubr.f32.mxu0 0.0
  %3291 = vmatmul.mubr.f32.gmra.mxu0 %v3179
  %v3292 = vpop.f32.mrf.mxu0
  %v3293 = vadd.f32 %v3100, %v3292
  %v3294 = vpop.f32.mrf.mxu0
  %3295 = vmatprep.mubr.f32.mxu0 0.0
  %3296 = vmatmul.mubr.f32.gmra.mxu0 %v3182
  %v3297 = vpop.f32.mrf.mxu0
  %v3298 = vadd.f32 %v3105, %v3297
  %v3299 = vpop.f32.mrf.mxu0
  %3300 = vmatprep.mubr.f32.mxu0 0.0
  %3301 = vmatmul.mubr.f32.gmra.mxu0 %v3185
  %v3302 = vpop.f32.mrf.mxu0
  %v3303 = vadd.f32 %v3110, %v3302
  %v3304 = vpop.f32.mrf.mxu0
  %3305 = vmatprep.mubr.f32.mxu0 0.0
  %3306 = vmatmul.mubr.f32.gmra.mxu0 %v3188
  %v3307 = vpop.f32.mrf.mxu0
  %v3308 = vadd.f32 %v3115, %v3307
  %v3309 = vpop.f32.mrf.mxu0
  %3310 = vmatprep.mubr.f32.mxu0 0.0
  %3311 = vmatmul.mubr.f32.gmra.mxu0 %v3191
  %v3312 = vpop.f32.mrf.mxu0
  %v3313 = vadd.f32 %v3120, %v3312
  %v3314 = vpop.f32.mrf.mxu0
  %3315 = vmatprep.mubr.f32.mxu0 0.0
  %3316 = vmatmul.mubr.f32.gmra.mxu0 %v3194
  %v3317 = vpop.f32.mrf.mxu0
  %v3318 = vadd.f32 %v3125, %v3317
  %v3319 = vpop.f32.mrf.mxu0
  %3320 = vmatprep.mubr.f32.mxu0 0.0
  %3321 = vmatmul.mubr.f32.gmra.mxu0 %v3197
  %v3322 = vpop.f32.mrf.mxu0
  %v3323 = vadd.f32 %v3130, %v3322
  %v3324 = vpop.f32.mrf.mxu0
  %3325 = vmatprep.mubr.f32.mxu0 0.0
  %3326 = vmatmul.mubr.f32.gmra.mxu0 %v3200
  %v3327 = vpop.f32.mrf.mxu0
  %v3328 = vadd.f32 %v3135, %v3327
  %v3329 = vpop.f32.mrf.mxu0
  %3330 = vmatprep.mubr.f32.mxu0 0.0
  %3331 = vmatmul.mubr.f32.gmra.mxu0 %v3203
  %v3332 = vpop.f32.mrf.mxu0
  %v3333 = vadd.f32 %v3140, %v3332
  %v3334 = vpop.f32.mrf.mxu0
  %3335 = vmatprep.mubr.f32.mxu0 0.0
  %3336 = vmatmul.mubr.f32.gmra.mxu0 %v3206
  %v3337 = vpop.f32.mrf.mxu0
  %v3338 = vadd.f32 %v3145, %v3337
  %v3339 = vpop.f32.mrf.mxu0
  %3340 = vmatprep.mubr.f32.mxu0 0.0
  %3341 = vmatmul.mubr.f32.gmra.mxu0 %v3209
  %v3342 = vpop.f32.mrf.mxu0
  %v3343 = vadd.f32 %v3150, %v3342
  %v3344 = vpop.f32.mrf.mxu0
  %3345 = vmatprep.mubr.f32.mxu0 0.0
  %3346 = vmatmul.mubr.f32.gmra.mxu0 %v3212
  %v3347 = vpop.f32.mrf.mxu0
  %v3348 = vadd.f32 %v3155, %v3347
  %v3349 = vpop.f32.mrf.mxu0
  %3350 = vmatprep.mubr.f32.mxu0 0.0
  %3351 = vmatmul.mubr.f32.gmra.mxu0 %v3215
  %v3352 = vpop.f32.mrf.mxu0
  %v3353 = vadd.f32 %v3160, %v3352
  %v3354 = vpop.f32.mrf.mxu0
  %3355 = vmatprep.mubr.f32.mxu0 0.0
  %3356 = vmatmul.mubr.f32.gmra.mxu0 %v3218
  %v3357 = vpop.f32.mrf.mxu0
  %v3358 = vadd.f32 %v3165, %v3357
  %v3359 = vpop.f32.mrf.mxu0
  %3360 = vmatprep.mubr.f32.mxu0 0.0
  %3361 = vmatmul.mubr.f32.gmra.mxu0 %v3221
  %v3362 = vpop.f32.mrf.mxu0
  %v3363 = vadd.f32 %v3170, %v3362
  %v3364 = vpop.f32.mrf.mxu0
  %3365 = vmatprep.mubr.f32.mxu0 0.0
  %3366 = vmatmul.mubr.f32.gmra.mxu0 %v3224
  %v3367 = vpop.f32.mrf.mxu0
  %v3368 = vadd.f32 %v3175, %v3367
  %v3369 = vpop.f32.mrf.mxu0
  %3370 = vdwg.mxu0
  %v3371 = vld [vmem:[%s10] sm:$0x1]
  %v3373 = vlaneseq
  %v3374 = vshrl.u32 %v3373, 7
  %v3375 = vsub.s32 0, %v3374
  %v3376 = vrot.slane %v3371, %v3375
  %v3378 = vadd.f32 %v3293, %v3376
  %v3379 = vadd.f32 %v3298, %v3376
  %v3380 = vadd.f32 %v3303, %v3376
  %v3381 = vadd.f32 %v3308, %v3376
  %v3382 = vadd.f32 %v3313, %v3376
  %v3383 = vadd.f32 %v3318, %v3376
  %v3384 = vadd.f32 %v3323, %v3376
  %v3385 = vadd.f32 %v3328, %v3376
  %v3386 = vadd.f32 %v3333, %v3376
  %v3387 = vadd.f32 %v3338, %v3376
  %v3388 = vadd.f32 %v3343, %v3376
  %v3389 = vadd.f32 %v3348, %v3376
  %v3390 = vadd.f32 %v3353, %v3376
  %v3391 = vadd.f32 %v3358, %v3376
  %v3392 = vadd.f32 %v3363, %v3376
  %v3393 = vadd.f32 %v3368, %v3376
  %v3394 = vadd.f32 %v368, %v3378
  %v3395 = vadd.f32 %v369, %v3379
  %v3396 = vadd.f32 %v370, %v3380
  %v3397 = vadd.f32 %v371, %v3381
  %v3398 = vadd.f32 %v372, %v3382
  %v3399 = vadd.f32 %v373, %v3383
  %v3400 = vadd.f32 %v374, %v3384
  %v3401 = vadd.f32 %v375, %v3385
  %v3402 = vadd.f32 %v376, %v3386
  %v3403 = vadd.f32 %v377, %v3387
  %v3404 = vadd.f32 %v378, %v3388
  %v3405 = vadd.f32 %v379, %v3389
  %v3406 = vadd.f32 %v380, %v3390
  %v3407 = vadd.f32 %v381, %v3391
  %v3408 = vadd.f32 %v382, %v3392
  %v3409 = vadd.f32 %v383, %v3393
  %v3410 = vld [vmem:[%s11] sm:$0x1]
  %v3411 = vld [vmem:[%s12] sm:$0x1]
  %v3412 = vsel %vm82, %v3394, 0.0
  %3413 = vadd.xlane.f32.xlu0 %v3412
  %v3414 = vpop.xlane.xlu0 %3413
  %v3415 = vsel %vm82, %v3395, 0.0
  %3416 = vadd.xlane.f32.xlu0 %v3415
  %v3417 = vpop.xlane.xlu0 %3416
  %v3418 = vsel %vm82, %v3396, 0.0
  %3419 = vadd.xlane.f32.xlu0 %v3418
  %v3420 = vpop.xlane.xlu0 %3419
  %v3421 = vsel %vm82, %v3397, 0.0
  %3422 = vadd.xlane.f32.xlu0 %v3421
  %v3423 = vpop.xlane.xlu0 %3422
  %v3424 = vsel %vm82, %v3398, 0.0
  %3425 = vadd.xlane.f32.xlu0 %v3424
  %v3426 = vpop.xlane.xlu0 %3425
  %v3427 = vsel %vm82, %v3399, 0.0
  %3428 = vadd.xlane.f32.xlu0 %v3427
  %v3429 = vpop.xlane.xlu0 %3428
  %v3430 = vsel %vm82, %v3400, 0.0
  %3431 = vadd.xlane.f32.xlu0 %v3430
  %v3432 = vpop.xlane.xlu0 %3431
  %v3433 = vsel %vm82, %v3401, 0.0
  %3434 = vadd.xlane.f32.xlu0 %v3433
  %v3435 = vpop.xlane.xlu0 %3434
  %v3436 = vsel %vm82, %v3402, 0.0
  %3437 = vadd.xlane.f32.xlu0 %v3436
  %v3438 = vpop.xlane.xlu0 %3437
  %v3439 = vsel %vm82, %v3403, 0.0
  %3440 = vadd.xlane.f32.xlu0 %v3439
  %v3441 = vpop.xlane.xlu0 %3440
  %v3442 = vsel %vm82, %v3404, 0.0
  %3443 = vadd.xlane.f32.xlu0 %v3442
  %v3444 = vpop.xlane.xlu0 %3443
  %v3445 = vsel %vm82, %v3405, 0.0
  %3446 = vadd.xlane.f32.xlu0 %v3445
  %v3447 = vpop.xlane.xlu0 %3446
  %v3448 = vsel %vm82, %v3406, 0.0
  %3449 = vadd.xlane.f32.xlu0 %v3448
  %v3450 = vpop.xlane.xlu0 %3449
  %v3451 = vsel %vm82, %v3407, 0.0
  %3452 = vadd.xlane.f32.xlu0 %v3451
  %v3453 = vpop.xlane.xlu0 %3452
  %v3454 = vsel %vm82, %v3408, 0.0
  %3455 = vadd.xlane.f32.xlu0 %v3454
  %v3456 = vpop.xlane.xlu0 %3455
  %v3457 = vsel %vm82, %v3409, 0.0
  %3458 = vadd.xlane.f32.xlu0 %v3457
  %v3459 = vpop.xlane.xlu0 %3458
  %v3460 = vmul.f32 %v3414, %v131
  %v3461 = vmul.f32 %v3417, %v131
  %v3462 = vmul.f32 %v3420, %v131
  %v3463 = vmul.f32 %v3423, %v131
  %v3464 = vmul.f32 %v3426, %v131
  %v3465 = vmul.f32 %v3429, %v131
  %v3466 = vmul.f32 %v3432, %v131
  %v3467 = vmul.f32 %v3435, %v131
  %v3468 = vmul.f32 %v3438, %v131
  %v3469 = vmul.f32 %v3441, %v131
  %v3470 = vmul.f32 %v3444, %v131
  %v3471 = vmul.f32 %v3447, %v131
  %v3472 = vmul.f32 %v3450, %v131
  %v3473 = vmul.f32 %v3453, %v131
  %v3474 = vmul.f32 %v3456, %v131
  %v3475 = vmul.f32 %v3459, %v131
  %v3476 = vmul.f32 %v3394, %v3394
  %v3477 = vmul.f32 %v3395, %v3395
  %v3478 = vmul.f32 %v3396, %v3396
  %v3479 = vmul.f32 %v3397, %v3397
  %v3480 = vmul.f32 %v3398, %v3398
  %v3481 = vmul.f32 %v3399, %v3399
  %v3482 = vmul.f32 %v3400, %v3400
  %v3483 = vmul.f32 %v3401, %v3401
  %v3484 = vmul.f32 %v3402, %v3402
  %v3485 = vmul.f32 %v3403, %v3403
  %v3486 = vmul.f32 %v3404, %v3404
  %v3487 = vmul.f32 %v3405, %v3405
  %v3488 = vmul.f32 %v3406, %v3406
  %v3489 = vmul.f32 %v3407, %v3407
  %v3490 = vmul.f32 %v3408, %v3408
  %v3491 = vmul.f32 %v3409, %v3409
  %v3492 = vsel %vm82, %v3476, 0.0
  %3493 = vadd.xlane.f32.xlu0 %v3492
  %v3494 = vpop.xlane.xlu0 %3493
  %v3495 = vsel %vm82, %v3477, 0.0
  %3496 = vadd.xlane.f32.xlu0 %v3495
  %v3497 = vpop.xlane.xlu0 %3496
  %v3498 = vsel %vm82, %v3478, 0.0
  %3499 = vadd.xlane.f32.xlu0 %v3498
  %v3500 = vpop.xlane.xlu0 %3499
  %v3501 = vsel %vm82, %v3479, 0.0
  %3502 = vadd.xlane.f32.xlu0 %v3501
  %v3503 = vpop.xlane.xlu0 %3502
  %v3504 = vsel %vm82, %v3480, 0.0
  %3505 = vadd.xlane.f32.xlu0 %v3504
  %v3506 = vpop.xlane.xlu0 %3505
  %v3507 = vsel %vm82, %v3481, 0.0
  %3508 = vadd.xlane.f32.xlu0 %v3507
  %v3509 = vpop.xlane.xlu0 %3508
  %v3510 = vsel %vm82, %v3482, 0.0
  %3511 = vadd.xlane.f32.xlu0 %v3510
  %v3512 = vpop.xlane.xlu0 %3511
  %v3513 = vsel %vm82, %v3483, 0.0
  %3514 = vadd.xlane.f32.xlu0 %v3513
  %v3515 = vpop.xlane.xlu0 %3514
  %v3516 = vsel %vm82, %v3484, 0.0
  %3517 = vadd.xlane.f32.xlu0 %v3516
  %v3518 = vpop.xlane.xlu0 %3517
  %v3519 = vsel %vm82, %v3485, 0.0
  %3520 = vadd.xlane.f32.xlu0 %v3519
  %v3521 = vpop.xlane.xlu0 %3520
  %v3522 = vsel %vm82, %v3486, 0.0
  %3523 = vadd.xlane.f32.xlu0 %v3522
  %v3524 = vpop.xlane.xlu0 %3523
  %v3525 = vsel %vm82, %v3487, 0.0
  %3526 = vadd.xlane.f32.xlu0 %v3525
  %v3527 = vpop.xlane.xlu0 %3526
  %v3528 = vsel %vm82, %v3488, 0.0
  %3529 = vadd.xlane.f32.xlu0 %v3528
  %v3530 = vpop.xlane.xlu0 %3529
  %v3531 = vsel %vm82, %v3489, 0.0
  %3532 = vadd.xlane.f32.xlu0 %v3531
  %v3533 = vpop.xlane.xlu0 %3532
  %v3534 = vsel %vm82, %v3490, 0.0
  %3535 = vadd.xlane.f32.xlu0 %v3534
  %v3536 = vpop.xlane.xlu0 %3535
  %v3537 = vsel %vm82, %v3491, 0.0
  %3538 = vadd.xlane.f32.xlu0 %v3537
  %v3539 = vpop.xlane.xlu0 %3538
  %v3540 = vmul.f32 %v3494, %v131
  %v3541 = vmul.f32 %v3497, %v131
  %v3542 = vmul.f32 %v3500, %v131
  %v3543 = vmul.f32 %v3503, %v131
  %v3544 = vmul.f32 %v3506, %v131
  %v3545 = vmul.f32 %v3509, %v131
  %v3546 = vmul.f32 %v3512, %v131
  %v3547 = vmul.f32 %v3515, %v131
  %v3548 = vmul.f32 %v3518, %v131
  %v3549 = vmul.f32 %v3521, %v131
  %v3550 = vmul.f32 %v3524, %v131
  %v3551 = vmul.f32 %v3527, %v131
  %v3552 = vmul.f32 %v3530, %v131
  %v3553 = vmul.f32 %v3533, %v131
  %v3554 = vmul.f32 %v3536, %v131
  %v3555 = vmul.f32 %v3539, %v131
  %v3556 = vmul.f32 %v3460, %v3460
  %v3557 = vmul.f32 %v3461, %v3461
  %v3558 = vmul.f32 %v3462, %v3462
  %v3559 = vmul.f32 %v3463, %v3463
  %v3560 = vmul.f32 %v3464, %v3464
  %v3561 = vmul.f32 %v3465, %v3465
  %v3562 = vmul.f32 %v3466, %v3466
  %v3563 = vmul.f32 %v3467, %v3467
  %v3564 = vmul.f32 %v3468, %v3468
  %v3565 = vmul.f32 %v3469, %v3469
  %v3566 = vmul.f32 %v3470, %v3470
  %v3567 = vmul.f32 %v3471, %v3471
  %v3568 = vmul.f32 %v3472, %v3472
  %v3569 = vmul.f32 %v3473, %v3473
  %v3570 = vmul.f32 %v3474, %v3474
  %v3571 = vmul.f32 %v3475, %v3475
  %v3572 = vsub.f32 %v3540, %v3556
  %v3573 = vsub.f32 %v3541, %v3557
  %v3574 = vsub.f32 %v3542, %v3558
  %v3575 = vsub.f32 %v3543, %v3559
  %v3576 = vsub.f32 %v3544, %v3560
  %v3577 = vsub.f32 %v3545, %v3561
  %v3578 = vsub.f32 %v3546, %v3562
  %v3579 = vsub.f32 %v3547, %v3563
  %v3580 = vsub.f32 %v3548, %v3564
  %v3581 = vsub.f32 %v3549, %v3565
  %v3582 = vsub.f32 %v3550, %v3566
  %v3583 = vsub.f32 %v3551, %v3567
  %v3584 = vsub.f32 %v3552, %v3568
  %v3585 = vsub.f32 %v3553, %v3569
  %v3586 = vsub.f32 %v3554, %v3570
  %v3587 = vsub.f32 %v3555, %v3571
  %v3588 = vmax.f32 %v3572, 0.0
  %v3589 = vmax.f32 %v3573, 0.0
  %v3590 = vmax.f32 %v3574, 0.0
  %v3591 = vmax.f32 %v3575, 0.0
  %v3592 = vmax.f32 %v3576, 0.0
  %v3593 = vmax.f32 %v3577, 0.0
  %v3594 = vmax.f32 %v3578, 0.0
  %v3595 = vmax.f32 %v3579, 0.0
  %v3596 = vmax.f32 %v3580, 0.0
  %v3597 = vmax.f32 %v3581, 0.0
  %v3598 = vmax.f32 %v3582, 0.0
  %v3599 = vmax.f32 %v3583, 0.0
  %v3600 = vmax.f32 %v3584, 0.0
  %v3601 = vmax.f32 %v3585, 0.0
  %v3602 = vmax.f32 %v3586, 0.0
  %v3603 = vmax.f32 %v3587, 0.0
  %v3604 = vsub.f32 %v3394, %v3460
  %v3605 = vsub.f32 %v3395, %v3461
  %v3606 = vsub.f32 %v3396, %v3462
  %v3607 = vsub.f32 %v3397, %v3463
  %v3608 = vsub.f32 %v3398, %v3464
  %v3609 = vsub.f32 %v3399, %v3465
  %v3610 = vsub.f32 %v3400, %v3466
  %v3611 = vsub.f32 %v3401, %v3467
  %v3612 = vsub.f32 %v3402, %v3468
  %v3613 = vsub.f32 %v3403, %v3469
  %v3614 = vsub.f32 %v3404, %v3470
  %v3615 = vsub.f32 %v3405, %v3471
  %v3616 = vsub.f32 %v3406, %v3472
  %v3617 = vsub.f32 %v3407, %v3473
  %v3618 = vsub.f32 %v3408, %v3474
  %v3619 = vsub.f32 %v3409, %v3475
  %v3620 = vadd.f32 %v3588, 1e-05
  %v3621 = vadd.f32 %v3589, 1e-05
  %v3622 = vadd.f32 %v3590, 1e-05
  %v3623 = vadd.f32 %v3591, 1e-05
  %v3624 = vadd.f32 %v3592, 1e-05
  %v3625 = vadd.f32 %v3593, 1e-05
  %v3626 = vadd.f32 %v3594, 1e-05
  %v3627 = vadd.f32 %v3595, 1e-05
  %v3628 = vadd.f32 %v3596, 1e-05
  %v3629 = vadd.f32 %v3597, 1e-05
  %v3630 = vadd.f32 %v3598, 1e-05
  %v3631 = vadd.f32 %v3599, 1e-05
  %v3632 = vadd.f32 %v3600, 1e-05
  %v3633 = vadd.f32 %v3601, 1e-05
  %v3634 = vadd.f32 %v3602, 1e-05
  %v3635 = vadd.f32 %v3603, 1e-05
  %v3636 = vrsqrt.pop %v3620
  %v3637 = vrsqrt.pop %v3621
  %v3638 = vrsqrt.pop %v3622
  %v3639 = vrsqrt.pop %v3623
  %v3640 = vrsqrt.pop %v3624
  %v3641 = vrsqrt.pop %v3625
  %v3642 = vrsqrt.pop %v3626
  %v3643 = vrsqrt.pop %v3627
  %v3644 = vrsqrt.pop %v3628
  %v3645 = vrsqrt.pop %v3629
  %v3646 = vrsqrt.pop %v3630
  %v3647 = vrsqrt.pop %v3631
  %v3648 = vrsqrt.pop %v3632
  %v3649 = vrsqrt.pop %v3633
  %v3650 = vrsqrt.pop %v3634
  %v3651 = vrsqrt.pop %v3635
  %v3652 = vmul.f32 %v3604, %v3636
  %v3653 = vmul.f32 %v3605, %v3637
  %v3654 = vmul.f32 %v3606, %v3638
  %v3655 = vmul.f32 %v3607, %v3639
  %v3656 = vmul.f32 %v3608, %v3640
  %v3657 = vmul.f32 %v3609, %v3641
  %v3658 = vmul.f32 %v3610, %v3642
  %v3659 = vmul.f32 %v3611, %v3643
  %v3660 = vmul.f32 %v3612, %v3644
  %v3661 = vmul.f32 %v3613, %v3645
  %v3662 = vmul.f32 %v3614, %v3646
  %v3663 = vmul.f32 %v3615, %v3647
  %v3664 = vmul.f32 %v3616, %v3648
  %v3665 = vmul.f32 %v3617, %v3649
  %v3666 = vmul.f32 %v3618, %v3650
  %v3667 = vmul.f32 %v3619, %v3651
  %v3669 = vlaneseq
  %v3670 = vshrl.u32 %v3669, 7
  %v3671 = vsub.s32 0, %v3670
  %v3672 = vrot.slane %v3410, %v3671
  %v3674 = vmul.f32 %v3652, %v3672
  %v3675 = vmul.f32 %v3653, %v3672
  %v3676 = vmul.f32 %v3654, %v3672
  %v3677 = vmul.f32 %v3655, %v3672
  %v3678 = vmul.f32 %v3656, %v3672
  %v3679 = vmul.f32 %v3657, %v3672
  %v3680 = vmul.f32 %v3658, %v3672
  %v3681 = vmul.f32 %v3659, %v3672
  %v3682 = vmul.f32 %v3660, %v3672
  %v3683 = vmul.f32 %v3661, %v3672
  %v3684 = vmul.f32 %v3662, %v3672
  %v3685 = vmul.f32 %v3663, %v3672
  %v3686 = vmul.f32 %v3664, %v3672
  %v3687 = vmul.f32 %v3665, %v3672
  %v3688 = vmul.f32 %v3666, %v3672
  %v3689 = vmul.f32 %v3667, %v3672
  %v3691 = vlaneseq
  %v3692 = vshrl.u32 %v3691, 7
  %v3693 = vsub.s32 0, %v3692
  %v3694 = vrot.slane %v3411, %v3693
  %v3696 = vadd.f32 %v3674, %v3694
  %v3697 = vadd.f32 %v3675, %v3694
  %v3698 = vadd.f32 %v3676, %v3694
  %v3699 = vadd.f32 %v3677, %v3694
  %v3700 = vadd.f32 %v3678, %v3694
  %v3701 = vadd.f32 %v3679, %v3694
  %v3702 = vadd.f32 %v3680, %v3694
  %v3703 = vadd.f32 %v3681, %v3694
  %v3704 = vadd.f32 %v3682, %v3694
  %v3705 = vadd.f32 %v3683, %v3694
  %v3706 = vadd.f32 %v3684, %v3694
  %v3707 = vadd.f32 %v3685, %v3694
  %v3708 = vadd.f32 %v3686, %v3694
  %v3709 = vadd.f32 %v3687, %v3694
  %v3710 = vadd.f32 %v3688, %v3694
  %v3711 = vadd.f32 %v3689, %v3694
  %v3712 = vld [vmem:[%s13] sm:$0xff]
  %v3713 = vld [vmem:[%s13 + $0x8] sm:$0xff]
  %v3714 = vld [vmem:[%s13 + $0x10] sm:$0xff]
  %v3715 = vld [vmem:[%s13 + $0x18] sm:$0xff]
  %v3716 = vld [vmem:[%s14] sm:$0x1]
  %v3718 = vlaneseq
  %v3719 = vshrl.u32 %v3718, 7
  %v3720 = vsub.s32 0, %v3719
  %v3721 = vrot.slane %v3716, %v3720
  %v3724 = vsel %vm82, %v3696, 0
  %v3727 = vsel %vm82, %v3697, 0
  %v3730 = vsel %vm82, %v3698, 0
  %v3733 = vsel %vm82, %v3699, 0
  %v3736 = vsel %vm82, %v3700, 0
  %v3739 = vsel %vm82, %v3701, 0
  %v3742 = vsel %vm82, %v3702, 0
  %v3745 = vsel %vm82, %v3703, 0
  %v3748 = vsel %vm82, %v3704, 0
  %v3751 = vsel %vm82, %v3705, 0
  %v3754 = vsel %vm82, %v3706, 0
  %v3757 = vsel %vm82, %v3707, 0
  %v3760 = vsel %vm82, %v3708, 0
  %v3763 = vsel %vm82, %v3709, 0
  %v3766 = vsel %vm82, %v3710, 0
  %v3769 = vsel %vm82, %v3711, 0
  %3771 = vmatprep.subr.mxu0 0.0
  %3772 = vmatpush1.msra.mxu0 0.0
  %3773 = vmatprep.subr.mxu0 0.0
  %3774 = vmatpush1.msra.mxu0 0.0
  %3775 = vmatprep.subr.mxu0 0.0
  %3776 = vmatpush1.msra.mxu0 0.0
  %3777 = vmatprep.subr.mxu0 0.0
  %3778 = vmatpush1.msra.mxu0 0.0
  %3779 = vmatprep.subr.mxu0 0.0
  %3780 = vmatpush1.msra.mxu0 0.0
  %3781 = vmatprep.subr.mxu0 0.0
  %3782 = vmatpush1.msra.mxu0 0.0
  %3783 = vmatprep.subr.mxu0 0.0
  %3784 = vmatpush1.msra.mxu0 0.0
  %3785 = vmatprep.subr.mxu0 0.0
  %3786 = vmatpush1.msra.mxu0 0.0
  %3787 = vmatprep.subr.mxu0 0.0
  %3788 = vmatpush1.msra.mxu0 0.0
  %3789 = vmatprep.subr.mxu0 0.0
  %3790 = vmatpush1.msra.mxu0 0.0
  %3791 = vmatprep.subr.mxu0 0.0
  %3792 = vmatpush1.msra.mxu0 0.0
  %3793 = vmatprep.subr.mxu0 0.0
  %3794 = vmatpush1.msra.mxu0 0.0
  %3795 = vmatprep.subr.mxu0 0.0
  %3796 = vmatpush1.msra.mxu0 %v3715
  %3797 = vmatprep.subr.mxu0 0.0
  %3798 = vmatpush1.msra.mxu0 %v3714
  %3799 = vmatprep.subr.mxu0 0.0
  %3800 = vmatpush1.msra.mxu0 %v3713
  %3801 = vmatprep.subr.mxu0 0.0
  %3802 = vmatpush1.msra.mxu0 %v3712
  %3803 = vmatprep.subr.mxu0 0.0
  %3804 = vmatpush2.msra.mxu0 0.0
  %3805 = vmatprep.subr.mxu0 0.0
  %3806 = vmatpush2.msra.mxu0 0.0
  %3807 = vmatprep.subr.mxu0 0.0
  %3808 = vmatpush2.msra.mxu0 0.0
  %3809 = vmatprep.subr.mxu0 0.0
  %3810 = vmatpush2.msra.mxu0 0.0
  %3811 = vmatprep.subr.mxu0 0.0
  %3812 = vmatpush2.msra.mxu0 0.0
  %3813 = vmatprep.subr.mxu0 0.0
  %3814 = vmatpush2.msra.mxu0 0.0
  %3815 = vmatprep.subr.mxu0 0.0
  %3816 = vmatpush2.msra.mxu0 0.0
  %3817 = vmatprep.subr.mxu0 0.0
  %3818 = vmatpush2.msra.mxu0 0.0
  %3819 = vmatprep.subr.mxu0 0.0
  %3820 = vmatpush2.msra.mxu0 0.0
  %3821 = vmatprep.subr.mxu0 0.0
  %3822 = vmatpush2.msra.mxu0 0.0
  %3823 = vmatprep.subr.mxu0 0.0
  %3824 = vmatpush2.msra.mxu0 0.0
  %3825 = vmatprep.subr.mxu0 0.0
  %3826 = vmatpush2.msra.mxu0 0.0
  %3827 = vmatprep.subr.mxu0 0.0
  %3828 = vmatpush2.msra.mxu0 0.0
  %3829 = vmatprep.subr.mxu0 0.0
  %3830 = vmatpush2.msra.mxu0 0.0
  %3831 = vmatprep.subr.mxu0 0.0
  %3832 = vmatpush2.msra.mxu0 0.0
  %3833 = vmatprep.subr.mxu0 0.0
  %3834 = vmatpush2.msra.mxu0 0.0
  %3835 = vmatprep.mubr.f32.mxu0 0.0
  %3836 = vmatmul.mubr.f32.gmra.mxu0 %v3724
  %v3837 = vpop.f32.mrf.mxu0
  %v3838 = vadd.f32 %v3721, %v3837
  %v3839 = vpop.f32.mrf.mxu0
  %3840 = vmatprep.mubr.f32.mxu0 0.0
  %3841 = vmatmul.mubr.f32.gmra.mxu0 %v3727
  %v3842 = vpop.f32.mrf.mxu0
  %v3843 = vadd.f32 %v3721, %v3842
  %v3844 = vpop.f32.mrf.mxu0
  %3845 = vmatprep.mubr.f32.mxu0 0.0
  %3846 = vmatmul.mubr.f32.gmra.mxu0 %v3730
  %v3847 = vpop.f32.mrf.mxu0
  %v3848 = vadd.f32 %v3721, %v3847
  %v3849 = vpop.f32.mrf.mxu0
  %3850 = vmatprep.mubr.f32.mxu0 0.0
  %3851 = vmatmul.mubr.f32.gmra.mxu0 %v3733
  %v3852 = vpop.f32.mrf.mxu0
  %v3853 = vadd.f32 %v3721, %v3852
  %v3854 = vpop.f32.mrf.mxu0
  %3855 = vmatprep.mubr.f32.mxu0 0.0
  %3856 = vmatmul.mubr.f32.gmra.mxu0 %v3736
  %v3857 = vpop.f32.mrf.mxu0
  %v3858 = vadd.f32 %v3721, %v3857
  %v3859 = vpop.f32.mrf.mxu0
  %3860 = vmatprep.mubr.f32.mxu0 0.0
  %3861 = vmatmul.mubr.f32.gmra.mxu0 %v3739
  %v3862 = vpop.f32.mrf.mxu0
  %v3863 = vadd.f32 %v3721, %v3862
  %v3864 = vpop.f32.mrf.mxu0
  %3865 = vmatprep.mubr.f32.mxu0 0.0
  %3866 = vmatmul.mubr.f32.gmra.mxu0 %v3742
  %v3867 = vpop.f32.mrf.mxu0
  %v3868 = vadd.f32 %v3721, %v3867
  %v3869 = vpop.f32.mrf.mxu0
  %3870 = vmatprep.mubr.f32.mxu0 0.0
  %3871 = vmatmul.mubr.f32.gmra.mxu0 %v3745
  %v3872 = vpop.f32.mrf.mxu0
  %v3873 = vadd.f32 %v3721, %v3872
  %v3874 = vpop.f32.mrf.mxu0
  %3875 = vmatprep.mubr.f32.mxu0 0.0
  %3876 = vmatmul.mubr.f32.gmra.mxu0 %v3748
  %v3877 = vpop.f32.mrf.mxu0
  %v3878 = vadd.f32 %v3721, %v3877
  %v3879 = vpop.f32.mrf.mxu0
  %3880 = vmatprep.mubr.f32.mxu0 0.0
  %3881 = vmatmul.mubr.f32.gmra.mxu0 %v3751
  %v3882 = vpop.f32.mrf.mxu0
  %v3883 = vadd.f32 %v3721, %v3882
  %v3884 = vpop.f32.mrf.mxu0
  %3885 = vmatprep.mubr.f32.mxu0 0.0
  %3886 = vmatmul.mubr.f32.gmra.mxu0 %v3754
  %v3887 = vpop.f32.mrf.mxu0
  %v3888 = vadd.f32 %v3721, %v3887
  %v3889 = vpop.f32.mrf.mxu0
  %3890 = vmatprep.mubr.f32.mxu0 0.0
  %3891 = vmatmul.mubr.f32.gmra.mxu0 %v3757
  %v3892 = vpop.f32.mrf.mxu0
  %v3893 = vadd.f32 %v3721, %v3892
  %v3894 = vpop.f32.mrf.mxu0
  %3895 = vmatprep.mubr.f32.mxu0 0.0
  %3896 = vmatmul.mubr.f32.gmra.mxu0 %v3760
  %v3897 = vpop.f32.mrf.mxu0
  %v3898 = vadd.f32 %v3721, %v3897
  %v3899 = vpop.f32.mrf.mxu0
  %3900 = vmatprep.mubr.f32.mxu0 0.0
  %3901 = vmatmul.mubr.f32.gmra.mxu0 %v3763
  %v3902 = vpop.f32.mrf.mxu0
  %v3903 = vadd.f32 %v3721, %v3902
  %v3904 = vpop.f32.mrf.mxu0
  %3905 = vmatprep.mubr.f32.mxu0 0.0
  %3906 = vmatmul.mubr.f32.gmra.mxu0 %v3766
  %v3907 = vpop.f32.mrf.mxu0
  %v3908 = vadd.f32 %v3721, %v3907
  %v3909 = vpop.f32.mrf.mxu0
  %3910 = vmatprep.mubr.f32.mxu0 0.0
  %3911 = vmatmul.mubr.f32.gmra.mxu0 %v3769
  %v3912 = vpop.f32.mrf.mxu0
  %v3913 = vadd.f32 %v3721, %v3912
  %v3914 = vpop.f32.mrf.mxu0
  %3915 = vdwg.mxu0
  %v3916 = vmul.f32 %v3838, 0.5
  %v3917 = vmul.f32 %v3843, 0.5
  %v3918 = vmul.f32 %v3848, 0.5
  %v3919 = vmul.f32 %v3853, 0.5
  %v3920 = vmul.f32 %v3858, 0.5
  %v3921 = vmul.f32 %v3863, 0.5
  %v3922 = vmul.f32 %v3868, 0.5
  %v3923 = vmul.f32 %v3873, 0.5
  %v3924 = vmul.f32 %v3878, 0.5
  %v3925 = vmul.f32 %v3883, 0.5
  %v3926 = vmul.f32 %v3888, 0.5
  %v3927 = vmul.f32 %v3893, 0.5
  %v3928 = vmul.f32 %v3898, 0.5
  %v3929 = vmul.f32 %v3903, 0.5
  %v3930 = vmul.f32 %v3908, 0.5
  %v3931 = vmul.f32 %v3913, 0.5
  %v3932 = vmul.f32 %v3838, 0.70710677
  %v3933 = vmul.f32 %v3843, 0.70710677
  %v3934 = vmul.f32 %v3848, 0.70710677
  %v3935 = vmul.f32 %v3853, 0.70710677
  %v3936 = vmul.f32 %v3858, 0.70710677
  %v3937 = vmul.f32 %v3863, 0.70710677
  %v3938 = vmul.f32 %v3868, 0.70710677
  %v3939 = vmul.f32 %v3873, 0.70710677
  %v3940 = vmul.f32 %v3878, 0.70710677
  %v3941 = vmul.f32 %v3883, 0.70710677
  %v3942 = vmul.f32 %v3888, 0.70710677
  %v3943 = vmul.f32 %v3893, 0.70710677
  %v3944 = vmul.f32 %v3898, 0.70710677
  %v3945 = vmul.f32 %v3903, 0.70710677
  %v3946 = vmul.f32 %v3908, 0.70710677
  %v3947 = vmul.f32 %v3913, 0.70710677
  %vm3948 = vcmp.ge.f32.partialorder %v3932, 0.0
  %vm3949 = vcmp.ge.f32.partialorder %v3933, 0.0
  %vm3950 = vcmp.ge.f32.partialorder %v3934, 0.0
  %vm3951 = vcmp.ge.f32.partialorder %v3935, 0.0
  %vm3952 = vcmp.ge.f32.partialorder %v3936, 0.0
  %vm3953 = vcmp.ge.f32.partialorder %v3937, 0.0
  %vm3954 = vcmp.ge.f32.partialorder %v3938, 0.0
  %vm3955 = vcmp.ge.f32.partialorder %v3939, 0.0
  %vm3956 = vcmp.ge.f32.partialorder %v3940, 0.0
  %vm3957 = vcmp.ge.f32.partialorder %v3941, 0.0
  %vm3958 = vcmp.ge.f32.partialorder %v3942, 0.0
  %vm3959 = vcmp.ge.f32.partialorder %v3943, 0.0
  %vm3960 = vcmp.ge.f32.partialorder %v3944, 0.0
  %vm3961 = vcmp.ge.f32.partialorder %v3945, 0.0
  %vm3962 = vcmp.ge.f32.partialorder %v3946, 0.0
  %vm3963 = vcmp.ge.f32.partialorder %v3947, 0.0
  %v3964 = vsel %vm3948, 1.0, -1.0
  %v3965 = vsel %vm3949, 1.0, -1.0
  %v3966 = vsel %vm3950, 1.0, -1.0
  %v3967 = vsel %vm3951, 1.0, -1.0
  %v3968 = vsel %vm3952, 1.0, -1.0
  %v3969 = vsel %vm3953, 1.0, -1.0
  %v3970 = vsel %vm3954, 1.0, -1.0
  %v3971 = vsel %vm3955, 1.0, -1.0
  %v3972 = vsel %vm3956, 1.0, -1.0
  %v3973 = vsel %vm3957, 1.0, -1.0
  %v3974 = vsel %vm3958, 1.0, -1.0
  %v3975 = vsel %vm3959, 1.0, -1.0
  %v3976 = vsel %vm3960, 1.0, -1.0
  %v3977 = vsel %vm3961, 1.0, -1.0
  %v3978 = vsel %vm3962, 1.0, -1.0
  %v3979 = vsel %vm3963, 1.0, -1.0
  %v3980 = vand.u32 2147483647, %v3932
  %v3981 = vand.u32 2147483647, %v3933
  %v3982 = vand.u32 2147483647, %v3934
  %v3983 = vand.u32 2147483647, %v3935
  %v3984 = vand.u32 2147483647, %v3936
  %v3985 = vand.u32 2147483647, %v3937
  %v3986 = vand.u32 2147483647, %v3938
  %v3987 = vand.u32 2147483647, %v3939
  %v3988 = vand.u32 2147483647, %v3940
  %v3989 = vand.u32 2147483647, %v3941
  %v3990 = vand.u32 2147483647, %v3942
  %v3991 = vand.u32 2147483647, %v3943
  %v3992 = vand.u32 2147483647, %v3944
  %v3993 = vand.u32 2147483647, %v3945
  %v3994 = vand.u32 2147483647, %v3946
  %v3995 = vand.u32 2147483647, %v3947
  %v3996 = vmul.f32 %v3980, 0.3275911
  %v3997 = vmul.f32 %v3981, 0.3275911
  %v3998 = vmul.f32 %v3982, 0.3275911
  %v3999 = vmul.f32 %v3983, 0.3275911
  %v4000 = vmul.f32 %v3984, 0.3275911
  %v4001 = vmul.f32 %v3985, 0.3275911
  %v4002 = vmul.f32 %v3986, 0.3275911
  %v4003 = vmul.f32 %v3987, 0.3275911
  %v4004 = vmul.f32 %v3988, 0.3275911
  %v4005 = vmul.f32 %v3989, 0.3275911
  %v4006 = vmul.f32 %v3990, 0.3275911
  %v4007 = vmul.f32 %v3991, 0.3275911
  %v4008 = vmul.f32 %v3992, 0.3275911
  %v4009 = vmul.f32 %v3993, 0.3275911
  %v4010 = vmul.f32 %v3994, 0.3275911
  %v4011 = vmul.f32 %v3995, 0.3275911
  %v4012 = vadd.f32 %v3996, 1.0
  %v4013 = vadd.f32 %v3997, 1.0
  %v4014 = vadd.f32 %v3998, 1.0
  %v4015 = vadd.f32 %v3999, 1.0
  %v4016 = vadd.f32 %v4000, 1.0
  %v4017 = vadd.f32 %v4001, 1.0
  %v4018 = vadd.f32 %v4002, 1.0
  %v4019 = vadd.f32 %v4003, 1.0
  %v4020 = vadd.f32 %v4004, 1.0
  %v4021 = vadd.f32 %v4005, 1.0
  %v4022 = vadd.f32 %v4006, 1.0
  %v4023 = vadd.f32 %v4007, 1.0
  %v4024 = vadd.f32 %v4008, 1.0
  %v4025 = vadd.f32 %v4009, 1.0
  %v4026 = vadd.f32 %v4010, 1.0
  %v4027 = vadd.f32 %v4011, 1.0
  %v4028 = vrcp.pop %v4012
  %v4029 = vrcp.pop %v4013
  %v4030 = vrcp.pop %v4014
  %v4031 = vrcp.pop %v4015
  %v4032 = vrcp.pop %v4016
  %v4033 = vrcp.pop %v4017
  %v4034 = vrcp.pop %v4018
  %v4035 = vrcp.pop %v4019
  %v4036 = vrcp.pop %v4020
  %v4037 = vrcp.pop %v4021
  %v4038 = vrcp.pop %v4022
  %v4039 = vrcp.pop %v4023
  %v4040 = vrcp.pop %v4024
  %v4041 = vrcp.pop %v4025
  %v4042 = vrcp.pop %v4026
  %v4043 = vrcp.pop %v4027
  %v4044 = vmul.f32 %v4028, 1.0614054
  %v4045 = vmul.f32 %v4029, 1.0614054
  %v4046 = vmul.f32 %v4030, 1.0614054
  %v4047 = vmul.f32 %v4031, 1.0614054
  %v4048 = vmul.f32 %v4032, 1.0614054
  %v4049 = vmul.f32 %v4033, 1.0614054
  %v4050 = vmul.f32 %v4034, 1.0614054
  %v4051 = vmul.f32 %v4035, 1.0614054
  %v4052 = vmul.f32 %v4036, 1.0614054
  %v4053 = vmul.f32 %v4037, 1.0614054
  %v4054 = vmul.f32 %v4038, 1.0614054
  %v4055 = vmul.f32 %v4039, 1.0614054
  %v4056 = vmul.f32 %v4040, 1.0614054
  %v4057 = vmul.f32 %v4041, 1.0614054
  %v4058 = vmul.f32 %v4042, 1.0614054
  %v4059 = vmul.f32 %v4043, 1.0614054
  %v4060 = vadd.f32 %v4044, -1.4531521
  %v4061 = vadd.f32 %v4045, -1.4531521
  %v4062 = vadd.f32 %v4046, -1.4531521
  %v4063 = vadd.f32 %v4047, -1.4531521
  %v4064 = vadd.f32 %v4048, -1.4531521
  %v4065 = vadd.f32 %v4049, -1.4531521
  %v4066 = vadd.f32 %v4050, -1.4531521
  %v4067 = vadd.f32 %v4051, -1.4531521
  %v4068 = vadd.f32 %v4052, -1.4531521
  %v4069 = vadd.f32 %v4053, -1.4531521
  %v4070 = vadd.f32 %v4054, -1.4531521
  %v4071 = vadd.f32 %v4055, -1.4531521
  %v4072 = vadd.f32 %v4056, -1.4531521
  %v4073 = vadd.f32 %v4057, -1.4531521
  %v4074 = vadd.f32 %v4058, -1.4531521
  %v4075 = vadd.f32 %v4059, -1.4531521
  %v4076 = vmul.f32 %v4060, %v4028
  %v4077 = vmul.f32 %v4061, %v4029
  %v4078 = vmul.f32 %v4062, %v4030
  %v4079 = vmul.f32 %v4063, %v4031
  %v4080 = vmul.f32 %v4064, %v4032
  %v4081 = vmul.f32 %v4065, %v4033
  %v4082 = vmul.f32 %v4066, %v4034
  %v4083 = vmul.f32 %v4067, %v4035
  %v4084 = vmul.f32 %v4068, %v4036
  %v4085 = vmul.f32 %v4069, %v4037
  %v4086 = vmul.f32 %v4070, %v4038
  %v4087 = vmul.f32 %v4071, %v4039
  %v4088 = vmul.f32 %v4072, %v4040
  %v4089 = vmul.f32 %v4073, %v4041
  %v4090 = vmul.f32 %v4074, %v4042
  %v4091 = vmul.f32 %v4075, %v4043
  %v4092 = vadd.f32 %v4076, 1.4214138
  %v4093 = vadd.f32 %v4077, 1.4214138
  %v4094 = vadd.f32 %v4078, 1.4214138
  %v4095 = vadd.f32 %v4079, 1.4214138
  %v4096 = vadd.f32 %v4080, 1.4214138
  %v4097 = vadd.f32 %v4081, 1.4214138
  %v4098 = vadd.f32 %v4082, 1.4214138
  %v4099 = vadd.f32 %v4083, 1.4214138
  %v4100 = vadd.f32 %v4084, 1.4214138
  %v4101 = vadd.f32 %v4085, 1.4214138
  %v4102 = vadd.f32 %v4086, 1.4214138
  %v4103 = vadd.f32 %v4087, 1.4214138
  %v4104 = vadd.f32 %v4088, 1.4214138
  %v4105 = vadd.f32 %v4089, 1.4214138
  %v4106 = vadd.f32 %v4090, 1.4214138
  %v4107 = vadd.f32 %v4091, 1.4214138
  %v4108 = vmul.f32 %v4092, %v4028
  %v4109 = vmul.f32 %v4093, %v4029
  %v4110 = vmul.f32 %v4094, %v4030
  %v4111 = vmul.f32 %v4095, %v4031
  %v4112 = vmul.f32 %v4096, %v4032
  %v4113 = vmul.f32 %v4097, %v4033
  %v4114 = vmul.f32 %v4098, %v4034
  %v4115 = vmul.f32 %v4099, %v4035
  %v4116 = vmul.f32 %v4100, %v4036
  %v4117 = vmul.f32 %v4101, %v4037
  %v4118 = vmul.f32 %v4102, %v4038
  %v4119 = vmul.f32 %v4103, %v4039
  %v4120 = vmul.f32 %v4104, %v4040
  %v4121 = vmul.f32 %v4105, %v4041
  %v4122 = vmul.f32 %v4106, %v4042
  %v4123 = vmul.f32 %v4107, %v4043
  %v4124 = vadd.f32 %v4108, -0.28449672
  %v4125 = vadd.f32 %v4109, -0.28449672
  %v4126 = vadd.f32 %v4110, -0.28449672
  %v4127 = vadd.f32 %v4111, -0.28449672
  %v4128 = vadd.f32 %v4112, -0.28449672
  %v4129 = vadd.f32 %v4113, -0.28449672
  %v4130 = vadd.f32 %v4114, -0.28449672
  %v4131 = vadd.f32 %v4115, -0.28449672
  %v4132 = vadd.f32 %v4116, -0.28449672
  %v4133 = vadd.f32 %v4117, -0.28449672
  %v4134 = vadd.f32 %v4118, -0.28449672
  %v4135 = vadd.f32 %v4119, -0.28449672
  %v4136 = vadd.f32 %v4120, -0.28449672
  %v4137 = vadd.f32 %v4121, -0.28449672
  %v4138 = vadd.f32 %v4122, -0.28449672
  %v4139 = vadd.f32 %v4123, -0.28449672
  %v4140 = vmul.f32 %v4124, %v4028
  %v4141 = vmul.f32 %v4125, %v4029
  %v4142 = vmul.f32 %v4126, %v4030
  %v4143 = vmul.f32 %v4127, %v4031
  %v4144 = vmul.f32 %v4128, %v4032
  %v4145 = vmul.f32 %v4129, %v4033
  %v4146 = vmul.f32 %v4130, %v4034
  %v4147 = vmul.f32 %v4131, %v4035
  %v4148 = vmul.f32 %v4132, %v4036
  %v4149 = vmul.f32 %v4133, %v4037
  %v4150 = vmul.f32 %v4134, %v4038
  %v4151 = vmul.f32 %v4135, %v4039
  %v4152 = vmul.f32 %v4136, %v4040
  %v4153 = vmul.f32 %v4137, %v4041
  %v4154 = vmul.f32 %v4138, %v4042
  %v4155 = vmul.f32 %v4139, %v4043
  %v4156 = vadd.f32 %v4140, 0.2548296
  %v4157 = vadd.f32 %v4141, 0.2548296
  %v4158 = vadd.f32 %v4142, 0.2548296
  %v4159 = vadd.f32 %v4143, 0.2548296
  %v4160 = vadd.f32 %v4144, 0.2548296
  %v4161 = vadd.f32 %v4145, 0.2548296
  %v4162 = vadd.f32 %v4146, 0.2548296
  %v4163 = vadd.f32 %v4147, 0.2548296
  %v4164 = vadd.f32 %v4148, 0.2548296
  %v4165 = vadd.f32 %v4149, 0.2548296
  %v4166 = vadd.f32 %v4150, 0.2548296
  %v4167 = vadd.f32 %v4151, 0.2548296
  %v4168 = vadd.f32 %v4152, 0.2548296
  %v4169 = vadd.f32 %v4153, 0.2548296
  %v4170 = vadd.f32 %v4154, 0.2548296
  %v4171 = vadd.f32 %v4155, 0.2548296
  %v4172 = vmul.f32 %v4156, %v4028
  %v4173 = vmul.f32 %v4157, %v4029
  %v4174 = vmul.f32 %v4158, %v4030
  %v4175 = vmul.f32 %v4159, %v4031
  %v4176 = vmul.f32 %v4160, %v4032
  %v4177 = vmul.f32 %v4161, %v4033
  %v4178 = vmul.f32 %v4162, %v4034
  %v4179 = vmul.f32 %v4163, %v4035
  %v4180 = vmul.f32 %v4164, %v4036
  %v4181 = vmul.f32 %v4165, %v4037
  %v4182 = vmul.f32 %v4166, %v4038
  %v4183 = vmul.f32 %v4167, %v4039
  %v4184 = vmul.f32 %v4168, %v4040
  %v4185 = vmul.f32 %v4169, %v4041
  %v4186 = vmul.f32 %v4170, %v4042
  %v4187 = vmul.f32 %v4171, %v4043
  %v4188 = vsub.f32 0.0, %v3980
  %v4189 = vsub.f32 0.0, %v3981
  %v4190 = vsub.f32 0.0, %v3982
  %v4191 = vsub.f32 0.0, %v3983
  %v4192 = vsub.f32 0.0, %v3984
  %v4193 = vsub.f32 0.0, %v3985
  %v4194 = vsub.f32 0.0, %v3986
  %v4195 = vsub.f32 0.0, %v3987
  %v4196 = vsub.f32 0.0, %v3988
  %v4197 = vsub.f32 0.0, %v3989
  %v4198 = vsub.f32 0.0, %v3990
  %v4199 = vsub.f32 0.0, %v3991
  %v4200 = vsub.f32 0.0, %v3992
  %v4201 = vsub.f32 0.0, %v3993
  %v4202 = vsub.f32 0.0, %v3994
  %v4203 = vsub.f32 0.0, %v3995
  %v4204 = vmul.f32 %v4188, %v3980
  %v4205 = vmul.f32 %v4189, %v3981
  %v4206 = vmul.f32 %v4190, %v3982
  %v4207 = vmul.f32 %v4191, %v3983
  %v4208 = vmul.f32 %v4192, %v3984
  %v4209 = vmul.f32 %v4193, %v3985
  %v4210 = vmul.f32 %v4194, %v3986
  %v4211 = vmul.f32 %v4195, %v3987
  %v4212 = vmul.f32 %v4196, %v3988
  %v4213 = vmul.f32 %v4197, %v3989
  %v4214 = vmul.f32 %v4198, %v3990
  %v4215 = vmul.f32 %v4199, %v3991
  %v4216 = vmul.f32 %v4200, %v3992
  %v4217 = vmul.f32 %v4201, %v3993
  %v4218 = vmul.f32 %v4202, %v3994
  %v4219 = vmul.f32 %v4203, %v3995
  %v4220 = vmul.f32 %v4204, 1.442695
  %v4221 = vpow.pop %v4220
  %v4222 = vmul.f32 %v4205, 1.442695
  %v4223 = vpow.pop %v4222
  %v4224 = vmul.f32 %v4206, 1.442695
  %v4225 = vpow.pop %v4224
  %v4226 = vmul.f32 %v4207, 1.442695
  %v4227 = vpow.pop %v4226
  %v4228 = vmul.f32 %v4208, 1.442695
  %v4229 = vpow.pop %v4228
  %v4230 = vmul.f32 %v4209, 1.442695
  %v4231 = vpow.pop %v4230
  %v4232 = vmul.f32 %v4210, 1.442695
  %v4233 = vpow.pop %v4232
  %v4234 = vmul.f32 %v4211, 1.442695
  %v4235 = vpow.pop %v4234
  %v4236 = vmul.f32 %v4212, 1.442695
  %v4237 = vpow.pop %v4236
  %v4238 = vmul.f32 %v4213, 1.442695
  %v4239 = vpow.pop %v4238
  %v4240 = vmul.f32 %v4214, 1.442695
  %v4241 = vpow.pop %v4240
  %v4242 = vmul.f32 %v4215, 1.442695
  %v4243 = vpow.pop %v4242
  %v4244 = vmul.f32 %v4216, 1.442695
  %v4245 = vpow.pop %v4244
  %v4246 = vmul.f32 %v4217, 1.442695
  %v4247 = vpow.pop %v4246
  %v4248 = vmul.f32 %v4218, 1.442695
  %v4249 = vpow.pop %v4248
  %v4250 = vmul.f32 %v4219, 1.442695
  %v4251 = vpow.pop %v4250
  %v4252 = vmul.f32 %v4172, %v4221
  %v4253 = vmul.f32 %v4173, %v4223
  %v4254 = vmul.f32 %v4174, %v4225
  %v4255 = vmul.f32 %v4175, %v4227
  %v4256 = vmul.f32 %v4176, %v4229
  %v4257 = vmul.f32 %v4177, %v4231
  %v4258 = vmul.f32 %v4178, %v4233
  %v4259 = vmul.f32 %v4179, %v4235
  %v4260 = vmul.f32 %v4180, %v4237
  %v4261 = vmul.f32 %v4181, %v4239
  %v4262 = vmul.f32 %v4182, %v4241
  %v4263 = vmul.f32 %v4183, %v4243
  %v4264 = vmul.f32 %v4184, %v4245
  %v4265 = vmul.f32 %v4185, %v4247
  %v4266 = vmul.f32 %v4186, %v4249
  %v4267 = vmul.f32 %v4187, %v4251
  %v4268 = vsub.f32 1.0, %v4252
  %v4269 = vsub.f32 1.0, %v4253
  %v4270 = vsub.f32 1.0, %v4254
  %v4271 = vsub.f32 1.0, %v4255
  %v4272 = vsub.f32 1.0, %v4256
  %v4273 = vsub.f32 1.0, %v4257
  %v4274 = vsub.f32 1.0, %v4258
  %v4275 = vsub.f32 1.0, %v4259
  %v4276 = vsub.f32 1.0, %v4260
  %v4277 = vsub.f32 1.0, %v4261
  %v4278 = vsub.f32 1.0, %v4262
  %v4279 = vsub.f32 1.0, %v4263
  %v4280 = vsub.f32 1.0, %v4264
  %v4281 = vsub.f32 1.0, %v4265
  %v4282 = vsub.f32 1.0, %v4266
  %v4283 = vsub.f32 1.0, %v4267
  %v4284 = vmul.f32 %v3964, %v4268
  %v4285 = vmul.f32 %v3965, %v4269
  %v4286 = vmul.f32 %v3966, %v4270
  %v4287 = vmul.f32 %v3967, %v4271
  %v4288 = vmul.f32 %v3968, %v4272
  %v4289 = vmul.f32 %v3969, %v4273
  %v4290 = vmul.f32 %v3970, %v4274
  %v4291 = vmul.f32 %v3971, %v4275
  %v4292 = vmul.f32 %v3972, %v4276
  %v4293 = vmul.f32 %v3973, %v4277
  %v4294 = vmul.f32 %v3974, %v4278
  %v4295 = vmul.f32 %v3975, %v4279
  %v4296 = vmul.f32 %v3976, %v4280
  %v4297 = vmul.f32 %v3977, %v4281
  %v4298 = vmul.f32 %v3978, %v4282
  %v4299 = vmul.f32 %v3979, %v4283
  %v4300 = vadd.f32 %v4284, 1.0
  %v4301 = vadd.f32 %v4285, 1.0
  %v4302 = vadd.f32 %v4286, 1.0
  %v4303 = vadd.f32 %v4287, 1.0
  %v4304 = vadd.f32 %v4288, 1.0
  %v4305 = vadd.f32 %v4289, 1.0
  %v4306 = vadd.f32 %v4290, 1.0
  %v4307 = vadd.f32 %v4291, 1.0
  %v4308 = vadd.f32 %v4292, 1.0
  %v4309 = vadd.f32 %v4293, 1.0
  %v4310 = vadd.f32 %v4294, 1.0
  %v4311 = vadd.f32 %v4295, 1.0
  %v4312 = vadd.f32 %v4296, 1.0
  %v4313 = vadd.f32 %v4297, 1.0
  %v4314 = vadd.f32 %v4298, 1.0
  %v4315 = vadd.f32 %v4299, 1.0
  %v4316 = vmul.f32 %v3916, %v4300
  %v4317 = vmul.f32 %v3917, %v4301
  %v4318 = vmul.f32 %v3918, %v4302
  %v4319 = vmul.f32 %v3919, %v4303
  %v4320 = vmul.f32 %v3920, %v4304
  %v4321 = vmul.f32 %v3921, %v4305
  %v4322 = vmul.f32 %v3922, %v4306
  %v4323 = vmul.f32 %v3923, %v4307
  %v4324 = vmul.f32 %v3924, %v4308
  %v4325 = vmul.f32 %v3925, %v4309
  %v4326 = vmul.f32 %v3926, %v4310
  %v4327 = vmul.f32 %v3927, %v4311
  %v4328 = vmul.f32 %v3928, %v4312
  %v4329 = vmul.f32 %v3929, %v4313
  %v4330 = vmul.f32 %v3930, %v4314
  %v4331 = vmul.f32 %v3931, %v4315
  %v4332 = vld [vmem:[%s15] sm:$0xff]
  %v4333 = vld [vmem:[%s15 + $0x8] sm:$0xff]
  %v4334 = vld [vmem:[%s15 + $0x10] sm:$0xff]
  %v4335 = vld [vmem:[%s15 + $0x18] sm:$0xff]
  %v4336 = vld [vmem:[%s15 + $0x20] sm:$0xff]
  %v4337 = vld [vmem:[%s15 + $0x28] sm:$0xff]
  %v4338 = vld [vmem:[%s15 + $0x30] sm:$0xff]
  %v4339 = vld [vmem:[%s15 + $0x38] sm:$0xff]
  %v4340 = vld [vmem:[%s15 + $0x40] sm:$0xff]
  %v4341 = vld [vmem:[%s15 + $0x48] sm:$0xff]
  %v4342 = vld [vmem:[%s15 + $0x50] sm:$0xff]
  %v4343 = vld [vmem:[%s15 + $0x58] sm:$0xff]
  %v4344 = vld [vmem:[%s15 + $0x60] sm:$0xff]
  %v4345 = vld [vmem:[%s15 + $0x68] sm:$0xff]
  %v4346 = vld [vmem:[%s15 + $0x70] sm:$0xff]
  %v4347 = vld [vmem:[%s15 + $0x78] sm:$0xff]
  %v4348 = vld [vmem:[%s16] sm:$0x1]
  %v4350 = vlaneseq
  %v4351 = vshrl.u32 %v4350, 7
  %v4352 = vsub.s32 0, %v4351
  %v4353 = vrot.slane %v4348, %v4352
  %4355 = vmatprep.subr.mxu0 0.0
  %4356 = vmatpush1.msra.mxu0 %v4347
  %4357 = vmatprep.subr.mxu0 0.0
  %4358 = vmatpush1.msra.mxu0 %v4346
  %4359 = vmatprep.subr.mxu0 0.0
  %4360 = vmatpush1.msra.mxu0 %v4345
  %4361 = vmatprep.subr.mxu0 0.0
  %4362 = vmatpush1.msra.mxu0 %v4344
  %4363 = vmatprep.subr.mxu0 0.0
  %4364 = vmatpush1.msra.mxu0 %v4343
  %4365 = vmatprep.subr.mxu0 0.0
  %4366 = vmatpush1.msra.mxu0 %v4342
  %4367 = vmatprep.subr.mxu0 0.0
  %4368 = vmatpush1.msra.mxu0 %v4341
  %4369 = vmatprep.subr.mxu0 0.0
  %4370 = vmatpush1.msra.mxu0 %v4340
  %4371 = vmatprep.subr.mxu0 0.0
  %4372 = vmatpush1.msra.mxu0 %v4339
  %4373 = vmatprep.subr.mxu0 0.0
  %4374 = vmatpush1.msra.mxu0 %v4338
  %4375 = vmatprep.subr.mxu0 0.0
  %4376 = vmatpush1.msra.mxu0 %v4337
  %4377 = vmatprep.subr.mxu0 0.0
  %4378 = vmatpush1.msra.mxu0 %v4336
  %4379 = vmatprep.subr.mxu0 0.0
  %4380 = vmatpush1.msra.mxu0 %v4335
  %4381 = vmatprep.subr.mxu0 0.0
  %4382 = vmatpush1.msra.mxu0 %v4334
  %4383 = vmatprep.subr.mxu0 0.0
  %4384 = vmatpush1.msra.mxu0 %v4333
  %4385 = vmatprep.subr.mxu0 0.0
  %4386 = vmatpush1.msra.mxu0 %v4332
  %4387 = vmatprep.subr.mxu0 0.0
  %4388 = vmatpush2.msra.mxu0 0.0
  %4389 = vmatprep.subr.mxu0 0.0
  %4390 = vmatpush2.msra.mxu0 0.0
  %4391 = vmatprep.subr.mxu0 0.0
  %4392 = vmatpush2.msra.mxu0 0.0
  %4393 = vmatprep.subr.mxu0 0.0
  %4394 = vmatpush2.msra.mxu0 0.0
  %4395 = vmatprep.subr.mxu0 0.0
  %4396 = vmatpush2.msra.mxu0 0.0
  %4397 = vmatprep.subr.mxu0 0.0
  %4398 = vmatpush2.msra.mxu0 0.0
  %4399 = vmatprep.subr.mxu0 0.0
  %4400 = vmatpush2.msra.mxu0 0.0
  %4401 = vmatprep.subr.mxu0 0.0
  %4402 = vmatpush2.msra.mxu0 0.0
  %4403 = vmatprep.subr.mxu0 0.0
  %4404 = vmatpush2.msra.mxu0 0.0
  %4405 = vmatprep.subr.mxu0 0.0
  %4406 = vmatpush2.msra.mxu0 0.0
  %4407 = vmatprep.subr.mxu0 0.0
  %4408 = vmatpush2.msra.mxu0 0.0
  %4409 = vmatprep.subr.mxu0 0.0
  %4410 = vmatpush2.msra.mxu0 0.0
  %4411 = vmatprep.subr.mxu0 0.0
  %4412 = vmatpush2.msra.mxu0 0.0
  %4413 = vmatprep.subr.mxu0 0.0
  %4414 = vmatpush2.msra.mxu0 0.0
  %4415 = vmatprep.subr.mxu0 0.0
  %4416 = vmatpush2.msra.mxu0 0.0
  %4417 = vmatprep.subr.mxu0 0.0
  %4418 = vmatpush2.msra.mxu0 0.0
  %4419 = vmatprep.mubr.f32.mxu0 0.0
  %4420 = vmatmul.mubr.f32.gmra.mxu0 %v4316
  %v4421 = vpop.f32.mrf.mxu0
  %v4422 = vadd.f32 %v4353, %v4421
  %v4423 = vpop.f32.mrf.mxu0
  %4424 = vmatprep.mubr.f32.mxu0 0.0
  %4425 = vmatmul.mubr.f32.gmra.mxu0 %v4317
  %v4426 = vpop.f32.mrf.mxu0
  %v4427 = vadd.f32 %v4353, %v4426
  %v4428 = vpop.f32.mrf.mxu0
  %4429 = vmatprep.mubr.f32.mxu0 0.0
  %4430 = vmatmul.mubr.f32.gmra.mxu0 %v4318
  %v4431 = vpop.f32.mrf.mxu0
  %v4432 = vadd.f32 %v4353, %v4431
  %v4433 = vpop.f32.mrf.mxu0
  %4434 = vmatprep.mubr.f32.mxu0 0.0
  %4435 = vmatmul.mubr.f32.gmra.mxu0 %v4319
  %v4436 = vpop.f32.mrf.mxu0
  %v4437 = vadd.f32 %v4353, %v4436
  %v4438 = vpop.f32.mrf.mxu0
  %4439 = vmatprep.mubr.f32.mxu0 0.0
  %4440 = vmatmul.mubr.f32.gmra.mxu0 %v4320
  %v4441 = vpop.f32.mrf.mxu0
  %v4442 = vadd.f32 %v4353, %v4441
  %v4443 = vpop.f32.mrf.mxu0
  %4444 = vmatprep.mubr.f32.mxu0 0.0
  %4445 = vmatmul.mubr.f32.gmra.mxu0 %v4321
  %v4446 = vpop.f32.mrf.mxu0
  %v4447 = vadd.f32 %v4353, %v4446
  %v4448 = vpop.f32.mrf.mxu0
  %4449 = vmatprep.mubr.f32.mxu0 0.0
  %4450 = vmatmul.mubr.f32.gmra.mxu0 %v4322
  %v4451 = vpop.f32.mrf.mxu0
  %v4452 = vadd.f32 %v4353, %v4451
  %v4453 = vpop.f32.mrf.mxu0
  %4454 = vmatprep.mubr.f32.mxu0 0.0
  %4455 = vmatmul.mubr.f32.gmra.mxu0 %v4323
  %v4456 = vpop.f32.mrf.mxu0
  %v4457 = vadd.f32 %v4353, %v4456
  %v4458 = vpop.f32.mrf.mxu0
  %4459 = vmatprep.mubr.f32.mxu0 0.0
  %4460 = vmatmul.mubr.f32.gmra.mxu0 %v4324
  %v4461 = vpop.f32.mrf.mxu0
  %v4462 = vadd.f32 %v4353, %v4461
  %v4463 = vpop.f32.mrf.mxu0
  %4464 = vmatprep.mubr.f32.mxu0 0.0
  %4465 = vmatmul.mubr.f32.gmra.mxu0 %v4325
  %v4466 = vpop.f32.mrf.mxu0
  %v4467 = vadd.f32 %v4353, %v4466
  %v4468 = vpop.f32.mrf.mxu0
  %4469 = vmatprep.mubr.f32.mxu0 0.0
  %4470 = vmatmul.mubr.f32.gmra.mxu0 %v4326
  %v4471 = vpop.f32.mrf.mxu0
  %v4472 = vadd.f32 %v4353, %v4471
  %v4473 = vpop.f32.mrf.mxu0
  %4474 = vmatprep.mubr.f32.mxu0 0.0
  %4475 = vmatmul.mubr.f32.gmra.mxu0 %v4327
  %v4476 = vpop.f32.mrf.mxu0
  %v4477 = vadd.f32 %v4353, %v4476
  %v4478 = vpop.f32.mrf.mxu0
  %4479 = vmatprep.mubr.f32.mxu0 0.0
  %4480 = vmatmul.mubr.f32.gmra.mxu0 %v4328
  %v4481 = vpop.f32.mrf.mxu0
  %v4482 = vadd.f32 %v4353, %v4481
  %v4483 = vpop.f32.mrf.mxu0
  %4484 = vmatprep.mubr.f32.mxu0 0.0
  %4485 = vmatmul.mubr.f32.gmra.mxu0 %v4329
  %v4486 = vpop.f32.mrf.mxu0
  %v4487 = vadd.f32 %v4353, %v4486
  %v4488 = vpop.f32.mrf.mxu0
  %4489 = vmatprep.mubr.f32.mxu0 0.0
  %4490 = vmatmul.mubr.f32.gmra.mxu0 %v4330
  %v4491 = vpop.f32.mrf.mxu0
  %v4492 = vadd.f32 %v4353, %v4491
  %v4493 = vpop.f32.mrf.mxu0
  %4494 = vmatprep.mubr.f32.mxu0 0.0
  %4495 = vmatmul.mubr.f32.gmra.mxu0 %v4331
  %v4496 = vpop.f32.mrf.mxu0
  %v4497 = vadd.f32 %v4353, %v4496
  %v4498 = vpop.f32.mrf.mxu0
  %4499 = vdwg.mxu0
  %v4500 = vadd.f32 %v3696, %v4422
  %v4501 = vadd.f32 %v3697, %v4427
  %v4502 = vadd.f32 %v3698, %v4432
  %v4503 = vadd.f32 %v3699, %v4437
  %v4504 = vadd.f32 %v3700, %v4442
  %v4505 = vadd.f32 %v3701, %v4447
  %v4506 = vadd.f32 %v3702, %v4452
  %v4507 = vadd.f32 %v3703, %v4457
  %v4508 = vadd.f32 %v3704, %v4462
  %v4509 = vadd.f32 %v3705, %v4467
  %v4510 = vadd.f32 %v3706, %v4472
  %v4511 = vadd.f32 %v3707, %v4477
  %v4512 = vadd.f32 %v3708, %v4482
  %v4513 = vadd.f32 %v3709, %v4487
  %v4514 = vadd.f32 %v3710, %v4492
  %v4515 = vadd.f32 %v3711, %v4497
  %v4516 = vld [vmem:[%s17] sm:$0x1]
  %v4517 = vld [vmem:[%s18] sm:$0x1]
  %v4518 = vsel %vm82, %v4500, 0.0
  %4519 = vadd.xlane.f32.xlu0 %v4518
  %v4520 = vpop.xlane.xlu0 %4519
  %v4521 = vsel %vm82, %v4501, 0.0
  %4522 = vadd.xlane.f32.xlu0 %v4521
  %v4523 = vpop.xlane.xlu0 %4522
  %v4524 = vsel %vm82, %v4502, 0.0
  %4525 = vadd.xlane.f32.xlu0 %v4524
  %v4526 = vpop.xlane.xlu0 %4525
  %v4527 = vsel %vm82, %v4503, 0.0
  %4528 = vadd.xlane.f32.xlu0 %v4527
  %v4529 = vpop.xlane.xlu0 %4528
  %v4530 = vsel %vm82, %v4504, 0.0
  %4531 = vadd.xlane.f32.xlu0 %v4530
  %v4532 = vpop.xlane.xlu0 %4531
  %v4533 = vsel %vm82, %v4505, 0.0
  %4534 = vadd.xlane.f32.xlu0 %v4533
  %v4535 = vpop.xlane.xlu0 %4534
  %v4536 = vsel %vm82, %v4506, 0.0
  %4537 = vadd.xlane.f32.xlu0 %v4536
  %v4538 = vpop.xlane.xlu0 %4537
  %v4539 = vsel %vm82, %v4507, 0.0
  %4540 = vadd.xlane.f32.xlu0 %v4539
  %v4541 = vpop.xlane.xlu0 %4540
  %v4542 = vsel %vm82, %v4508, 0.0
  %4543 = vadd.xlane.f32.xlu0 %v4542
  %v4544 = vpop.xlane.xlu0 %4543
  %v4545 = vsel %vm82, %v4509, 0.0
  %4546 = vadd.xlane.f32.xlu0 %v4545
  %v4547 = vpop.xlane.xlu0 %4546
  %v4548 = vsel %vm82, %v4510, 0.0
  %4549 = vadd.xlane.f32.xlu0 %v4548
  %v4550 = vpop.xlane.xlu0 %4549
  %v4551 = vsel %vm82, %v4511, 0.0
  %4552 = vadd.xlane.f32.xlu0 %v4551
  %v4553 = vpop.xlane.xlu0 %4552
  %v4554 = vsel %vm82, %v4512, 0.0
  %4555 = vadd.xlane.f32.xlu0 %v4554
  %v4556 = vpop.xlane.xlu0 %4555
  %v4557 = vsel %vm82, %v4513, 0.0
  %4558 = vadd.xlane.f32.xlu0 %v4557
  %v4559 = vpop.xlane.xlu0 %4558
  %v4560 = vsel %vm82, %v4514, 0.0
  %4561 = vadd.xlane.f32.xlu0 %v4560
  %v4562 = vpop.xlane.xlu0 %4561
  %v4563 = vsel %vm82, %v4515, 0.0
  %4564 = vadd.xlane.f32.xlu0 %v4563
  %v4565 = vpop.xlane.xlu0 %4564
  %v4566 = vmul.f32 %v4520, %v131
  %v4567 = vmul.f32 %v4523, %v131
  %v4568 = vmul.f32 %v4526, %v131
  %v4569 = vmul.f32 %v4529, %v131
  %v4570 = vmul.f32 %v4532, %v131
  %v4571 = vmul.f32 %v4535, %v131
  %v4572 = vmul.f32 %v4538, %v131
  %v4573 = vmul.f32 %v4541, %v131
  %v4574 = vmul.f32 %v4544, %v131
  %v4575 = vmul.f32 %v4547, %v131
  %v4576 = vmul.f32 %v4550, %v131
  %v4577 = vmul.f32 %v4553, %v131
  %v4578 = vmul.f32 %v4556, %v131
  %v4579 = vmul.f32 %v4559, %v131
  %v4580 = vmul.f32 %v4562, %v131
  %v4581 = vmul.f32 %v4565, %v131
  %v4582 = vmul.f32 %v4500, %v4500
  %v4583 = vmul.f32 %v4501, %v4501
  %v4584 = vmul.f32 %v4502, %v4502
  %v4585 = vmul.f32 %v4503, %v4503
  %v4586 = vmul.f32 %v4504, %v4504
  %v4587 = vmul.f32 %v4505, %v4505
  %v4588 = vmul.f32 %v4506, %v4506
  %v4589 = vmul.f32 %v4507, %v4507
  %v4590 = vmul.f32 %v4508, %v4508
  %v4591 = vmul.f32 %v4509, %v4509
  %v4592 = vmul.f32 %v4510, %v4510
  %v4593 = vmul.f32 %v4511, %v4511
  %v4594 = vmul.f32 %v4512, %v4512
  %v4595 = vmul.f32 %v4513, %v4513
  %v4596 = vmul.f32 %v4514, %v4514
  %v4597 = vmul.f32 %v4515, %v4515
  %v4598 = vsel %vm82, %v4582, 0.0
  %4599 = vadd.xlane.f32.xlu0 %v4598
  %v4600 = vpop.xlane.xlu0 %4599
  %v4601 = vsel %vm82, %v4583, 0.0
  %4602 = vadd.xlane.f32.xlu0 %v4601
  %v4603 = vpop.xlane.xlu0 %4602
  %v4604 = vsel %vm82, %v4584, 0.0
  %4605 = vadd.xlane.f32.xlu0 %v4604
  %v4606 = vpop.xlane.xlu0 %4605
  %v4607 = vsel %vm82, %v4585, 0.0
  %4608 = vadd.xlane.f32.xlu0 %v4607
  %v4609 = vpop.xlane.xlu0 %4608
  %v4610 = vsel %vm82, %v4586, 0.0
  %4611 = vadd.xlane.f32.xlu0 %v4610
  %v4612 = vpop.xlane.xlu0 %4611
  %v4613 = vsel %vm82, %v4587, 0.0
  %4614 = vadd.xlane.f32.xlu0 %v4613
  %v4615 = vpop.xlane.xlu0 %4614
  %v4616 = vsel %vm82, %v4588, 0.0
  %4617 = vadd.xlane.f32.xlu0 %v4616
  %v4618 = vpop.xlane.xlu0 %4617
  %v4619 = vsel %vm82, %v4589, 0.0
  %4620 = vadd.xlane.f32.xlu0 %v4619
  %v4621 = vpop.xlane.xlu0 %4620
  %v4622 = vsel %vm82, %v4590, 0.0
  %4623 = vadd.xlane.f32.xlu0 %v4622
  %v4624 = vpop.xlane.xlu0 %4623
  %v4625 = vsel %vm82, %v4591, 0.0
  %4626 = vadd.xlane.f32.xlu0 %v4625
  %v4627 = vpop.xlane.xlu0 %4626
  %v4628 = vsel %vm82, %v4592, 0.0
  %4629 = vadd.xlane.f32.xlu0 %v4628
  %v4630 = vpop.xlane.xlu0 %4629
  %v4631 = vsel %vm82, %v4593, 0.0
  %4632 = vadd.xlane.f32.xlu0 %v4631
  %v4633 = vpop.xlane.xlu0 %4632
  %v4634 = vsel %vm82, %v4594, 0.0
  %4635 = vadd.xlane.f32.xlu0 %v4634
  %v4636 = vpop.xlane.xlu0 %4635
  %v4637 = vsel %vm82, %v4595, 0.0
  %4638 = vadd.xlane.f32.xlu0 %v4637
  %v4639 = vpop.xlane.xlu0 %4638
  %v4640 = vsel %vm82, %v4596, 0.0
  %4641 = vadd.xlane.f32.xlu0 %v4640
  %v4642 = vpop.xlane.xlu0 %4641
  %v4643 = vsel %vm82, %v4597, 0.0
  %4644 = vadd.xlane.f32.xlu0 %v4643
  %v4645 = vpop.xlane.xlu0 %4644
  %v4646 = vmul.f32 %v4600, %v131
  %v4647 = vmul.f32 %v4603, %v131
  %v4648 = vmul.f32 %v4606, %v131
  %v4649 = vmul.f32 %v4609, %v131
  %v4650 = vmul.f32 %v4612, %v131
  %v4651 = vmul.f32 %v4615, %v131
  %v4652 = vmul.f32 %v4618, %v131
  %v4653 = vmul.f32 %v4621, %v131
  %v4654 = vmul.f32 %v4624, %v131
  %v4655 = vmul.f32 %v4627, %v131
  %v4656 = vmul.f32 %v4630, %v131
  %v4657 = vmul.f32 %v4633, %v131
  %v4658 = vmul.f32 %v4636, %v131
  %v4659 = vmul.f32 %v4639, %v131
  %v4660 = vmul.f32 %v4642, %v131
  %v4661 = vmul.f32 %v4645, %v131
  %v4662 = vmul.f32 %v4566, %v4566
  %v4663 = vmul.f32 %v4567, %v4567
  %v4664 = vmul.f32 %v4568, %v4568
  %v4665 = vmul.f32 %v4569, %v4569
  %v4666 = vmul.f32 %v4570, %v4570
  %v4667 = vmul.f32 %v4571, %v4571
  %v4668 = vmul.f32 %v4572, %v4572
  %v4669 = vmul.f32 %v4573, %v4573
  %v4670 = vmul.f32 %v4574, %v4574
  %v4671 = vmul.f32 %v4575, %v4575
  %v4672 = vmul.f32 %v4576, %v4576
  %v4673 = vmul.f32 %v4577, %v4577
  %v4674 = vmul.f32 %v4578, %v4578
  %v4675 = vmul.f32 %v4579, %v4579
  %v4676 = vmul.f32 %v4580, %v4580
  %v4677 = vmul.f32 %v4581, %v4581
  %v4678 = vsub.f32 %v4646, %v4662
  %v4679 = vsub.f32 %v4647, %v4663
  %v4680 = vsub.f32 %v4648, %v4664
  %v4681 = vsub.f32 %v4649, %v4665
  %v4682 = vsub.f32 %v4650, %v4666
  %v4683 = vsub.f32 %v4651, %v4667
  %v4684 = vsub.f32 %v4652, %v4668
  %v4685 = vsub.f32 %v4653, %v4669
  %v4686 = vsub.f32 %v4654, %v4670
  %v4687 = vsub.f32 %v4655, %v4671
  %v4688 = vsub.f32 %v4656, %v4672
  %v4689 = vsub.f32 %v4657, %v4673
  %v4690 = vsub.f32 %v4658, %v4674
  %v4691 = vsub.f32 %v4659, %v4675
  %v4692 = vsub.f32 %v4660, %v4676
  %v4693 = vsub.f32 %v4661, %v4677
  %v4694 = vmax.f32 %v4678, 0.0
  %v4695 = vmax.f32 %v4679, 0.0
  %v4696 = vmax.f32 %v4680, 0.0
  %v4697 = vmax.f32 %v4681, 0.0
  %v4698 = vmax.f32 %v4682, 0.0
  %v4699 = vmax.f32 %v4683, 0.0
  %v4700 = vmax.f32 %v4684, 0.0
  %v4701 = vmax.f32 %v4685, 0.0
  %v4702 = vmax.f32 %v4686, 0.0
  %v4703 = vmax.f32 %v4687, 0.0
  %v4704 = vmax.f32 %v4688, 0.0
  %v4705 = vmax.f32 %v4689, 0.0
  %v4706 = vmax.f32 %v4690, 0.0
  %v4707 = vmax.f32 %v4691, 0.0
  %v4708 = vmax.f32 %v4692, 0.0
  %v4709 = vmax.f32 %v4693, 0.0
  %v4710 = vsub.f32 %v4500, %v4566
  %v4711 = vsub.f32 %v4501, %v4567
  %v4712 = vsub.f32 %v4502, %v4568
  %v4713 = vsub.f32 %v4503, %v4569
  %v4714 = vsub.f32 %v4504, %v4570
  %v4715 = vsub.f32 %v4505, %v4571
  %v4716 = vsub.f32 %v4506, %v4572
  %v4717 = vsub.f32 %v4507, %v4573
  %v4718 = vsub.f32 %v4508, %v4574
  %v4719 = vsub.f32 %v4509, %v4575
  %v4720 = vsub.f32 %v4510, %v4576
  %v4721 = vsub.f32 %v4511, %v4577
  %v4722 = vsub.f32 %v4512, %v4578
  %v4723 = vsub.f32 %v4513, %v4579
  %v4724 = vsub.f32 %v4514, %v4580
  %v4725 = vsub.f32 %v4515, %v4581
  %v4726 = vadd.f32 %v4694, 1e-05
  %v4727 = vadd.f32 %v4695, 1e-05
  %v4728 = vadd.f32 %v4696, 1e-05
  %v4729 = vadd.f32 %v4697, 1e-05
  %v4730 = vadd.f32 %v4698, 1e-05
  %v4731 = vadd.f32 %v4699, 1e-05
  %v4732 = vadd.f32 %v4700, 1e-05
  %v4733 = vadd.f32 %v4701, 1e-05
  %v4734 = vadd.f32 %v4702, 1e-05
  %v4735 = vadd.f32 %v4703, 1e-05
  %v4736 = vadd.f32 %v4704, 1e-05
  %v4737 = vadd.f32 %v4705, 1e-05
  %v4738 = vadd.f32 %v4706, 1e-05
  %v4739 = vadd.f32 %v4707, 1e-05
  %v4740 = vadd.f32 %v4708, 1e-05
  %v4741 = vadd.f32 %v4709, 1e-05
  %v4742 = vrsqrt.pop %v4726
  %v4743 = vrsqrt.pop %v4727
  %v4744 = vrsqrt.pop %v4728
  %v4745 = vrsqrt.pop %v4729
  %v4746 = vrsqrt.pop %v4730
  %v4747 = vrsqrt.pop %v4731
  %v4748 = vrsqrt.pop %v4732
  %v4749 = vrsqrt.pop %v4733
  %v4750 = vrsqrt.pop %v4734
  %v4751 = vrsqrt.pop %v4735
  %v4752 = vrsqrt.pop %v4736
  %v4753 = vrsqrt.pop %v4737
  %v4754 = vrsqrt.pop %v4738
  %v4755 = vrsqrt.pop %v4739
  %v4756 = vrsqrt.pop %v4740
  %v4757 = vrsqrt.pop %v4741
  %v4758 = vmul.f32 %v4710, %v4742
  %v4759 = vmul.f32 %v4711, %v4743
  %v4760 = vmul.f32 %v4712, %v4744
  %v4761 = vmul.f32 %v4713, %v4745
  %v4762 = vmul.f32 %v4714, %v4746
  %v4763 = vmul.f32 %v4715, %v4747
  %v4764 = vmul.f32 %v4716, %v4748
  %v4765 = vmul.f32 %v4717, %v4749
  %v4766 = vmul.f32 %v4718, %v4750
  %v4767 = vmul.f32 %v4719, %v4751
  %v4768 = vmul.f32 %v4720, %v4752
  %v4769 = vmul.f32 %v4721, %v4753
  %v4770 = vmul.f32 %v4722, %v4754
  %v4771 = vmul.f32 %v4723, %v4755
  %v4772 = vmul.f32 %v4724, %v4756
  %v4773 = vmul.f32 %v4725, %v4757
  %v4775 = vlaneseq
  %v4776 = vshrl.u32 %v4775, 7
  %v4777 = vsub.s32 0, %v4776
  %v4778 = vrot.slane %v4516, %v4777
  %v4780 = vmul.f32 %v4758, %v4778
  %v4781 = vmul.f32 %v4759, %v4778
  %v4782 = vmul.f32 %v4760, %v4778
  %v4783 = vmul.f32 %v4761, %v4778
  %v4784 = vmul.f32 %v4762, %v4778
  %v4785 = vmul.f32 %v4763, %v4778
  %v4786 = vmul.f32 %v4764, %v4778
  %v4787 = vmul.f32 %v4765, %v4778
  %v4788 = vmul.f32 %v4766, %v4778
  %v4789 = vmul.f32 %v4767, %v4778
  %v4790 = vmul.f32 %v4768, %v4778
  %v4791 = vmul.f32 %v4769, %v4778
  %v4792 = vmul.f32 %v4770, %v4778
  %v4793 = vmul.f32 %v4771, %v4778
  %v4794 = vmul.f32 %v4772, %v4778
  %v4795 = vmul.f32 %v4773, %v4778
  %v4797 = vlaneseq
  %v4798 = vshrl.u32 %v4797, 7
  %v4799 = vsub.s32 0, %v4798
  %v4800 = vrot.slane %v4517, %v4799
  %v4802 = vadd.f32 %v4780, %v4800
  %v4803 = vadd.f32 %v4781, %v4800
  %v4804 = vadd.f32 %v4782, %v4800
  %v4805 = vadd.f32 %v4783, %v4800
  %v4806 = vadd.f32 %v4784, %v4800
  %v4807 = vadd.f32 %v4785, %v4800
  %v4808 = vadd.f32 %v4786, %v4800
  %v4809 = vadd.f32 %v4787, %v4800
  %v4810 = vadd.f32 %v4788, %v4800
  %v4811 = vadd.f32 %v4789, %v4800
  %v4812 = vadd.f32 %v4790, %v4800
  %v4813 = vadd.f32 %v4791, %v4800
  %v4814 = vadd.f32 %v4792, %v4800
  %v4815 = vadd.f32 %v4793, %v4800
  %v4816 = vadd.f32 %v4794, %v4800
  %v4817 = vadd.f32 %v4795, %v4800
  %s4818 = scalar_lea.vmem %s3, 64
  %v4819 = vld [vmem:[%s4818] sm:$0xff]
  %v4820 = vld [vmem:[%s4818 + $0x8] sm:$0xff]
  %v4821 = vld [vmem:[%s4818 + $0x10] sm:$0xff]
  %v4822 = vld [vmem:[%s4818 + $0x18] sm:$0xff]
  %s4823 = scalar_lea.vmem %s4, 2
  %v4824 = vld [vmem:[%s4823] sm:$0x1]
  %v4826 = vlaneseq
  %v4827 = vshrl.u32 %v4826, 7
  %v4828 = vsub.s32 0, %v4827
  %v4829 = vrot.slane %v4824, %v4828
  %v4832 = vsel %vm82, %v4802, 0
  %v4835 = vsel %vm82, %v4803, 0
  %v4838 = vsel %vm82, %v4804, 0
  %v4841 = vsel %vm82, %v4805, 0
  %v4844 = vsel %vm82, %v4806, 0
  %v4847 = vsel %vm82, %v4807, 0
  %v4850 = vsel %vm82, %v4808, 0
  %v4853 = vsel %vm82, %v4809, 0
  %v4856 = vsel %vm82, %v4810, 0
  %v4859 = vsel %vm82, %v4811, 0
  %v4862 = vsel %vm82, %v4812, 0
  %v4865 = vsel %vm82, %v4813, 0
  %v4868 = vsel %vm82, %v4814, 0
  %v4871 = vsel %vm82, %v4815, 0
  %v4874 = vsel %vm82, %v4816, 0
  %v4877 = vsel %vm82, %v4817, 0
  %4879 = vmatprep.subr.mxu0 0.0
  %4880 = vmatpush1.msra.mxu0 0.0
  %4881 = vmatprep.subr.mxu0 0.0
  %4882 = vmatpush1.msra.mxu0 0.0
  %4883 = vmatprep.subr.mxu0 0.0
  %4884 = vmatpush1.msra.mxu0 0.0
  %4885 = vmatprep.subr.mxu0 0.0
  %4886 = vmatpush1.msra.mxu0 0.0
  %4887 = vmatprep.subr.mxu0 0.0
  %4888 = vmatpush1.msra.mxu0 0.0
  %4889 = vmatprep.subr.mxu0 0.0
  %4890 = vmatpush1.msra.mxu0 0.0
  %4891 = vmatprep.subr.mxu0 0.0
  %4892 = vmatpush1.msra.mxu0 0.0
  %4893 = vmatprep.subr.mxu0 0.0
  %4894 = vmatpush1.msra.mxu0 0.0
  %4895 = vmatprep.subr.mxu0 0.0
  %4896 = vmatpush1.msra.mxu0 0.0
  %4897 = vmatprep.subr.mxu0 0.0
  %4898 = vmatpush1.msra.mxu0 0.0
  %4899 = vmatprep.subr.mxu0 0.0
  %4900 = vmatpush1.msra.mxu0 0.0
  %4901 = vmatprep.subr.mxu0 0.0
  %4902 = vmatpush1.msra.mxu0 0.0
  %4903 = vmatprep.subr.mxu0 0.0
  %4904 = vmatpush1.msra.mxu0 %v4822
  %4905 = vmatprep.subr.mxu0 0.0
  %4906 = vmatpush1.msra.mxu0 %v4821
  %4907 = vmatprep.subr.mxu0 0.0
  %4908 = vmatpush1.msra.mxu0 %v4820
  %4909 = vmatprep.subr.mxu0 0.0
  %4910 = vmatpush1.msra.mxu0 %v4819
  %4911 = vmatprep.subr.mxu0 0.0
  %4912 = vmatpush2.msra.mxu0 0.0
  %4913 = vmatprep.subr.mxu0 0.0
  %4914 = vmatpush2.msra.mxu0 0.0
  %4915 = vmatprep.subr.mxu0 0.0
  %4916 = vmatpush2.msra.mxu0 0.0
  %4917 = vmatprep.subr.mxu0 0.0
  %4918 = vmatpush2.msra.mxu0 0.0
  %4919 = vmatprep.subr.mxu0 0.0
  %4920 = vmatpush2.msra.mxu0 0.0
  %4921 = vmatprep.subr.mxu0 0.0
  %4922 = vmatpush2.msra.mxu0 0.0
  %4923 = vmatprep.subr.mxu0 0.0
  %4924 = vmatpush2.msra.mxu0 0.0
  %4925 = vmatprep.subr.mxu0 0.0
  %4926 = vmatpush2.msra.mxu0 0.0
  %4927 = vmatprep.subr.mxu0 0.0
  %4928 = vmatpush2.msra.mxu0 0.0
  %4929 = vmatprep.subr.mxu0 0.0
  %4930 = vmatpush2.msra.mxu0 0.0
  %4931 = vmatprep.subr.mxu0 0.0
  %4932 = vmatpush2.msra.mxu0 0.0
  %4933 = vmatprep.subr.mxu0 0.0
  %4934 = vmatpush2.msra.mxu0 0.0
  %4935 = vmatprep.subr.mxu0 0.0
  %4936 = vmatpush2.msra.mxu0 0.0
  %4937 = vmatprep.subr.mxu0 0.0
  %4938 = vmatpush2.msra.mxu0 0.0
  %4939 = vmatprep.subr.mxu0 0.0
  %4940 = vmatpush2.msra.mxu0 0.0
  %4941 = vmatprep.subr.mxu0 0.0
  %4942 = vmatpush2.msra.mxu0 0.0
  %4943 = vmatprep.mubr.f32.mxu0 0.0
  %4944 = vmatmul.mubr.f32.gmra.mxu0 %v4832
  %v4945 = vpop.f32.mrf.mxu0
  %v4946 = vadd.f32 %v4829, %v4945
  %v4947 = vpop.f32.mrf.mxu0
  %4948 = vmatprep.mubr.f32.mxu0 0.0
  %4949 = vmatmul.mubr.f32.gmra.mxu0 %v4835
  %v4950 = vpop.f32.mrf.mxu0
  %v4951 = vadd.f32 %v4829, %v4950
  %v4952 = vpop.f32.mrf.mxu0
  %4953 = vmatprep.mubr.f32.mxu0 0.0
  %4954 = vmatmul.mubr.f32.gmra.mxu0 %v4838
  %v4955 = vpop.f32.mrf.mxu0
  %v4956 = vadd.f32 %v4829, %v4955
  %v4957 = vpop.f32.mrf.mxu0
  %4958 = vmatprep.mubr.f32.mxu0 0.0
  %4959 = vmatmul.mubr.f32.gmra.mxu0 %v4841
  %v4960 = vpop.f32.mrf.mxu0
  %v4961 = vadd.f32 %v4829, %v4960
  %v4962 = vpop.f32.mrf.mxu0
  %4963 = vmatprep.mubr.f32.mxu0 0.0
  %4964 = vmatmul.mubr.f32.gmra.mxu0 %v4844
  %v4965 = vpop.f32.mrf.mxu0
  %v4966 = vadd.f32 %v4829, %v4965
  %v4967 = vpop.f32.mrf.mxu0
  %4968 = vmatprep.mubr.f32.mxu0 0.0
  %4969 = vmatmul.mubr.f32.gmra.mxu0 %v4847
  %v4970 = vpop.f32.mrf.mxu0
  %v4971 = vadd.f32 %v4829, %v4970
  %v4972 = vpop.f32.mrf.mxu0
  %4973 = vmatprep.mubr.f32.mxu0 0.0
  %4974 = vmatmul.mubr.f32.gmra.mxu0 %v4850
  %v4975 = vpop.f32.mrf.mxu0
  %v4976 = vadd.f32 %v4829, %v4975
  %v4977 = vpop.f32.mrf.mxu0
  %4978 = vmatprep.mubr.f32.mxu0 0.0
  %4979 = vmatmul.mubr.f32.gmra.mxu0 %v4853
  %v4980 = vpop.f32.mrf.mxu0
  %v4981 = vadd.f32 %v4829, %v4980
  %v4982 = vpop.f32.mrf.mxu0
  %4983 = vmatprep.mubr.f32.mxu0 0.0
  %4984 = vmatmul.mubr.f32.gmra.mxu0 %v4856
  %v4985 = vpop.f32.mrf.mxu0
  %v4986 = vadd.f32 %v4829, %v4985
  %v4987 = vpop.f32.mrf.mxu0
  %4988 = vmatprep.mubr.f32.mxu0 0.0
  %4989 = vmatmul.mubr.f32.gmra.mxu0 %v4859
  %v4990 = vpop.f32.mrf.mxu0
  %v4991 = vadd.f32 %v4829, %v4990
  %v4992 = vpop.f32.mrf.mxu0
  %4993 = vmatprep.mubr.f32.mxu0 0.0
  %4994 = vmatmul.mubr.f32.gmra.mxu0 %v4862
  %v4995 = vpop.f32.mrf.mxu0
  %v4996 = vadd.f32 %v4829, %v4995
  %v4997 = vpop.f32.mrf.mxu0
  %4998 = vmatprep.mubr.f32.mxu0 0.0
  %4999 = vmatmul.mubr.f32.gmra.mxu0 %v4865
  %v5000 = vpop.f32.mrf.mxu0
  %v5001 = vadd.f32 %v4829, %v5000
  %v5002 = vpop.f32.mrf.mxu0
  %5003 = vmatprep.mubr.f32.mxu0 0.0
  %5004 = vmatmul.mubr.f32.gmra.mxu0 %v4868
  %v5005 = vpop.f32.mrf.mxu0
  %v5006 = vadd.f32 %v4829, %v5005
  %v5007 = vpop.f32.mrf.mxu0
  %5008 = vmatprep.mubr.f32.mxu0 0.0
  %5009 = vmatmul.mubr.f32.gmra.mxu0 %v4871
  %v5010 = vpop.f32.mrf.mxu0
  %v5011 = vadd.f32 %v4829, %v5010
  %v5012 = vpop.f32.mrf.mxu0
  %5013 = vmatprep.mubr.f32.mxu0 0.0
  %5014 = vmatmul.mubr.f32.gmra.mxu0 %v4874
  %v5015 = vpop.f32.mrf.mxu0
  %v5016 = vadd.f32 %v4829, %v5015
  %v5017 = vpop.f32.mrf.mxu0
  %5018 = vmatprep.mubr.f32.mxu0 0.0
  %5019 = vmatmul.mubr.f32.gmra.mxu0 %v4877
  %v5020 = vpop.f32.mrf.mxu0
  %v5021 = vadd.f32 %v4829, %v5020
  %v5022 = vpop.f32.mrf.mxu0
  %5023 = vdwg.mxu0
  %s5024 = scalar_lea.vmem %s5, 64
  %v5025 = vld [vmem:[%s5024] sm:$0xff]
  %v5026 = vld [vmem:[%s5024 + $0x8] sm:$0xff]
  %v5027 = vld [vmem:[%s5024 + $0x10] sm:$0xff]
  %v5028 = vld [vmem:[%s5024 + $0x18] sm:$0xff]
  %s5029 = scalar_lea.vmem %s6, 2
  %v5030 = vld [vmem:[%s5029] sm:$0x1]
  %v5032 = vlaneseq
  %v5033 = vshrl.u32 %v5032, 7
  %v5034 = vsub.s32 0, %v5033
  %v5035 = vrot.slane %v5030, %v5034
  %5037 = vmatprep.subr.mxu0 0.0
  %5038 = vmatpush1.msra.mxu0 0.0
  %5039 = vmatprep.subr.mxu0 0.0
  %5040 = vmatpush1.msra.mxu0 0.0
  %5041 = vmatprep.subr.mxu0 0.0
  %5042 = vmatpush1.msra.mxu0 0.0
  %5043 = vmatprep.subr.mxu0 0.0
  %5044 = vmatpush1.msra.mxu0 0.0
  %5045 = vmatprep.subr.mxu0 0.0
  %5046 = vmatpush1.msra.mxu0 0.0
  %5047 = vmatprep.subr.mxu0 0.0
  %5048 = vmatpush1.msra.mxu0 0.0
  %5049 = vmatprep.subr.mxu0 0.0
  %5050 = vmatpush1.msra.mxu0 0.0
  %5051 = vmatprep.subr.mxu0 0.0
  %5052 = vmatpush1.msra.mxu0 0.0
  %5053 = vmatprep.subr.mxu0 0.0
  %5054 = vmatpush1.msra.mxu0 0.0
  %5055 = vmatprep.subr.mxu0 0.0
  %5056 = vmatpush1.msra.mxu0 0.0
  %5057 = vmatprep.subr.mxu0 0.0
  %5058 = vmatpush1.msra.mxu0 0.0
  %5059 = vmatprep.subr.mxu0 0.0
  %5060 = vmatpush1.msra.mxu0 0.0
  %5061 = vmatprep.subr.mxu0 0.0
  %5062 = vmatpush1.msra.mxu0 %v5028
  %5063 = vmatprep.subr.mxu0 0.0
  %5064 = vmatpush1.msra.mxu0 %v5027
  %5065 = vmatprep.subr.mxu0 0.0
  %5066 = vmatpush1.msra.mxu0 %v5026
  %5067 = vmatprep.subr.mxu0 0.0
  %5068 = vmatpush1.msra.mxu0 %v5025
  %5069 = vmatprep.subr.mxu0 0.0
  %5070 = vmatpush2.msra.mxu0 0.0
  %5071 = vmatprep.subr.mxu0 0.0
  %5072 = vmatpush2.msra.mxu0 0.0
  %5073 = vmatprep.subr.mxu0 0.0
  %5074 = vmatpush2.msra.mxu0 0.0
  %5075 = vmatprep.subr.mxu0 0.0
  %5076 = vmatpush2.msra.mxu0 0.0
  %5077 = vmatprep.subr.mxu0 0.0
  %5078 = vmatpush2.msra.mxu0 0.0
  %5079 = vmatprep.subr.mxu0 0.0
  %5080 = vmatpush2.msra.mxu0 0.0
  %5081 = vmatprep.subr.mxu0 0.0
  %5082 = vmatpush2.msra.mxu0 0.0
  %5083 = vmatprep.subr.mxu0 0.0
  %5084 = vmatpush2.msra.mxu0 0.0
  %5085 = vmatprep.subr.mxu0 0.0
  %5086 = vmatpush2.msra.mxu0 0.0
  %5087 = vmatprep.subr.mxu0 0.0
  %5088 = vmatpush2.msra.mxu0 0.0
  %5089 = vmatprep.subr.mxu0 0.0
  %5090 = vmatpush2.msra.mxu0 0.0
  %5091 = vmatprep.subr.mxu0 0.0
  %5092 = vmatpush2.msra.mxu0 0.0
  %5093 = vmatprep.subr.mxu0 0.0
  %5094 = vmatpush2.msra.mxu0 0.0
  %5095 = vmatprep.subr.mxu0 0.0
  %5096 = vmatpush2.msra.mxu0 0.0
  %5097 = vmatprep.subr.mxu0 0.0
  %5098 = vmatpush2.msra.mxu0 0.0
  %5099 = vmatprep.subr.mxu0 0.0
  %5100 = vmatpush2.msra.mxu0 0.0
  %5101 = vmatprep.mubr.f32.mxu0 0.0
  %5102 = vmatmul.mubr.f32.gmra.mxu0 %v4832
  %v5103 = vpop.f32.mrf.mxu0
  %v5104 = vadd.f32 %v5035, %v5103
  %v5105 = vpop.f32.mrf.mxu0
  %5106 = vmatprep.mubr.f32.mxu0 0.0
  %5107 = vmatmul.mubr.f32.gmra.mxu0 %v4835
  %v5108 = vpop.f32.mrf.mxu0
  %v5109 = vadd.f32 %v5035, %v5108
  %v5110 = vpop.f32.mrf.mxu0
  %5111 = vmatprep.mubr.f32.mxu0 0.0
  %5112 = vmatmul.mubr.f32.gmra.mxu0 %v4838
  %v5113 = vpop.f32.mrf.mxu0
  %v5114 = vadd.f32 %v5035, %v5113
  %v5115 = vpop.f32.mrf.mxu0
  %5116 = vmatprep.mubr.f32.mxu0 0.0
  %5117 = vmatmul.mubr.f32.gmra.mxu0 %v4841
  %v5118 = vpop.f32.mrf.mxu0
  %v5119 = vadd.f32 %v5035, %v5118
  %v5120 = vpop.f32.mrf.mxu0
  %5121 = vmatprep.mubr.f32.mxu0 0.0
  %5122 = vmatmul.mubr.f32.gmra.mxu0 %v4844
  %v5123 = vpop.f32.mrf.mxu0
  %v5124 = vadd.f32 %v5035, %v5123
  %v5125 = vpop.f32.mrf.mxu0
  %5126 = vmatprep.mubr.f32.mxu0 0.0
  %5127 = vmatmul.mubr.f32.gmra.mxu0 %v4847
  %v5128 = vpop.f32.mrf.mxu0
  %v5129 = vadd.f32 %v5035, %v5128
  %v5130 = vpop.f32.mrf.mxu0
  %5131 = vmatprep.mubr.f32.mxu0 0.0
  %5132 = vmatmul.mubr.f32.gmra.mxu0 %v4850
  %v5133 = vpop.f32.mrf.mxu0
  %v5134 = vadd.f32 %v5035, %v5133
  %v5135 = vpop.f32.mrf.mxu0
  %5136 = vmatprep.mubr.f32.mxu0 0.0
  %5137 = vmatmul.mubr.f32.gmra.mxu0 %v4853
  %v5138 = vpop.f32.mrf.mxu0
  %v5139 = vadd.f32 %v5035, %v5138
  %v5140 = vpop.f32.mrf.mxu0
  %5141 = vmatprep.mubr.f32.mxu0 0.0
  %5142 = vmatmul.mubr.f32.gmra.mxu0 %v4856
  %v5143 = vpop.f32.mrf.mxu0
  %v5144 = vadd.f32 %v5035, %v5143
  %v5145 = vpop.f32.mrf.mxu0
  %5146 = vmatprep.mubr.f32.mxu0 0.0
  %5147 = vmatmul.mubr.f32.gmra.mxu0 %v4859
  %v5148 = vpop.f32.mrf.mxu0
  %v5149 = vadd.f32 %v5035, %v5148
  %v5150 = vpop.f32.mrf.mxu0
  %5151 = vmatprep.mubr.f32.mxu0 0.0
  %5152 = vmatmul.mubr.f32.gmra.mxu0 %v4862
  %v5153 = vpop.f32.mrf.mxu0
  %v5154 = vadd.f32 %v5035, %v5153
  %v5155 = vpop.f32.mrf.mxu0
  %5156 = vmatprep.mubr.f32.mxu0 0.0
  %5157 = vmatmul.mubr.f32.gmra.mxu0 %v4865
  %v5158 = vpop.f32.mrf.mxu0
  %v5159 = vadd.f32 %v5035, %v5158
  %v5160 = vpop.f32.mrf.mxu0
  %5161 = vmatprep.mubr.f32.mxu0 0.0
  %5162 = vmatmul.mubr.f32.gmra.mxu0 %v4868
  %v5163 = vpop.f32.mrf.mxu0
  %v5164 = vadd.f32 %v5035, %v5163
  %v5165 = vpop.f32.mrf.mxu0
  %5166 = vmatprep.mubr.f32.mxu0 0.0
  %5167 = vmatmul.mubr.f32.gmra.mxu0 %v4871
  %v5168 = vpop.f32.mrf.mxu0
  %v5169 = vadd.f32 %v5035, %v5168
  %v5170 = vpop.f32.mrf.mxu0
  %5171 = vmatprep.mubr.f32.mxu0 0.0
  %5172 = vmatmul.mubr.f32.gmra.mxu0 %v4874
  %v5173 = vpop.f32.mrf.mxu0
  %v5174 = vadd.f32 %v5035, %v5173
  %v5175 = vpop.f32.mrf.mxu0
  %5176 = vmatprep.mubr.f32.mxu0 0.0
  %5177 = vmatmul.mubr.f32.gmra.mxu0 %v4877
  %v5178 = vpop.f32.mrf.mxu0
  %v5179 = vadd.f32 %v5035, %v5178
  %v5180 = vpop.f32.mrf.mxu0
  %5181 = vdwg.mxu0
  %s5182 = scalar_lea.vmem %s7, 64
  %v5183 = vld [vmem:[%s5182] sm:$0xff]
  %v5184 = vld [vmem:[%s5182 + $0x8] sm:$0xff]
  %v5185 = vld [vmem:[%s5182 + $0x10] sm:$0xff]
  %v5186 = vld [vmem:[%s5182 + $0x18] sm:$0xff]
  %s5187 = scalar_lea.vmem %s8, 2
  %v5188 = vld [vmem:[%s5187] sm:$0x1]
  %v5190 = vlaneseq
  %v5191 = vshrl.u32 %v5190, 7
  %v5192 = vsub.s32 0, %v5191
  %v5193 = vrot.slane %v5188, %v5192
  %5195 = vmatprep.subr.mxu0 0.0
  %5196 = vmatpush1.msra.mxu0 0.0
  %5197 = vmatprep.subr.mxu0 0.0
  %5198 = vmatpush1.msra.mxu0 0.0
  %5199 = vmatprep.subr.mxu0 0.0
  %5200 = vmatpush1.msra.mxu0 0.0
  %5201 = vmatprep.subr.mxu0 0.0
  %5202 = vmatpush1.msra.mxu0 0.0
  %5203 = vmatprep.subr.mxu0 0.0
  %5204 = vmatpush1.msra.mxu0 0.0
  %5205 = vmatprep.subr.mxu0 0.0
  %5206 = vmatpush1.msra.mxu0 0.0
  %5207 = vmatprep.subr.mxu0 0.0
  %5208 = vmatpush1.msra.mxu0 0.0
  %5209 = vmatprep.subr.mxu0 0.0
  %5210 = vmatpush1.msra.mxu0 0.0
  %5211 = vmatprep.subr.mxu0 0.0
  %5212 = vmatpush1.msra.mxu0 0.0
  %5213 = vmatprep.subr.mxu0 0.0
  %5214 = vmatpush1.msra.mxu0 0.0
  %5215 = vmatprep.subr.mxu0 0.0
  %5216 = vmatpush1.msra.mxu0 0.0
  %5217 = vmatprep.subr.mxu0 0.0
  %5218 = vmatpush1.msra.mxu0 0.0
  %5219 = vmatprep.subr.mxu0 0.0
  %5220 = vmatpush1.msra.mxu0 %v5186
  %5221 = vmatprep.subr.mxu0 0.0
  %5222 = vmatpush1.msra.mxu0 %v5185
  %5223 = vmatprep.subr.mxu0 0.0
  %5224 = vmatpush1.msra.mxu0 %v5184
  %5225 = vmatprep.subr.mxu0 0.0
  %5226 = vmatpush1.msra.mxu0 %v5183
  %5227 = vmatprep.subr.mxu0 0.0
  %5228 = vmatpush2.msra.mxu0 0.0
  %5229 = vmatprep.subr.mxu0 0.0
  %5230 = vmatpush2.msra.mxu0 0.0
  %5231 = vmatprep.subr.mxu0 0.0
  %5232 = vmatpush2.msra.mxu0 0.0
  %5233 = vmatprep.subr.mxu0 0.0
  %5234 = vmatpush2.msra.mxu0 0.0
  %5235 = vmatprep.subr.mxu0 0.0
  %5236 = vmatpush2.msra.mxu0 0.0
  %5237 = vmatprep.subr.mxu0 0.0
  %5238 = vmatpush2.msra.mxu0 0.0
  %5239 = vmatprep.subr.mxu0 0.0
  %5240 = vmatpush2.msra.mxu0 0.0
  %5241 = vmatprep.subr.mxu0 0.0
  %5242 = vmatpush2.msra.mxu0 0.0
  %5243 = vmatprep.subr.mxu0 0.0
  %5244 = vmatpush2.msra.mxu0 0.0
  %5245 = vmatprep.subr.mxu0 0.0
  %5246 = vmatpush2.msra.mxu0 0.0
  %5247 = vmatprep.subr.mxu0 0.0
  %5248 = vmatpush2.msra.mxu0 0.0
  %5249 = vmatprep.subr.mxu0 0.0
  %5250 = vmatpush2.msra.mxu0 0.0
  %5251 = vmatprep.subr.mxu0 0.0
  %5252 = vmatpush2.msra.mxu0 0.0
  %5253 = vmatprep.subr.mxu0 0.0
  %5254 = vmatpush2.msra.mxu0 0.0
  %5255 = vmatprep.subr.mxu0 0.0
  %5256 = vmatpush2.msra.mxu0 0.0
  %5257 = vmatprep.subr.mxu0 0.0
  %5258 = vmatpush2.msra.mxu0 0.0
  %5259 = vmatprep.mubr.f32.mxu0 0.0
  %5260 = vmatmul.mubr.f32.gmra.mxu0 %v4832
  %v5261 = vpop.f32.mrf.mxu0
  %v5262 = vadd.f32 %v5193, %v5261
  %v5263 = vpop.f32.mrf.mxu0
  %5264 = vmatprep.mubr.f32.mxu0 0.0
  %5265 = vmatmul.mubr.f32.gmra.mxu0 %v4835
  %v5266 = vpop.f32.mrf.mxu0
  %v5267 = vadd.f32 %v5193, %v5266
  %v5268 = vpop.f32.mrf.mxu0
  %5269 = vmatprep.mubr.f32.mxu0 0.0
  %5270 = vmatmul.mubr.f32.gmra.mxu0 %v4838
  %v5271 = vpop.f32.mrf.mxu0
  %v5272 = vadd.f32 %v5193, %v5271
  %v5273 = vpop.f32.mrf.mxu0
  %5274 = vmatprep.mubr.f32.mxu0 0.0
  %5275 = vmatmul.mubr.f32.gmra.mxu0 %v4841
  %v5276 = vpop.f32.mrf.mxu0
  %v5277 = vadd.f32 %v5193, %v5276
  %v5278 = vpop.f32.mrf.mxu0
  %5279 = vmatprep.mubr.f32.mxu0 0.0
  %5280 = vmatmul.mubr.f32.gmra.mxu0 %v4844
  %v5281 = vpop.f32.mrf.mxu0
  %v5282 = vadd.f32 %v5193, %v5281
  %v5283 = vpop.f32.mrf.mxu0
  %5284 = vmatprep.mubr.f32.mxu0 0.0
  %5285 = vmatmul.mubr.f32.gmra.mxu0 %v4847
  %v5286 = vpop.f32.mrf.mxu0
  %v5287 = vadd.f32 %v5193, %v5286
  %v5288 = vpop.f32.mrf.mxu0
  %5289 = vmatprep.mubr.f32.mxu0 0.0
  %5290 = vmatmul.mubr.f32.gmra.mxu0 %v4850
  %v5291 = vpop.f32.mrf.mxu0
  %v5292 = vadd.f32 %v5193, %v5291
  %v5293 = vpop.f32.mrf.mxu0
  %5294 = vmatprep.mubr.f32.mxu0 0.0
  %5295 = vmatmul.mubr.f32.gmra.mxu0 %v4853
  %v5296 = vpop.f32.mrf.mxu0
  %v5297 = vadd.f32 %v5193, %v5296
  %v5298 = vpop.f32.mrf.mxu0
  %5299 = vmatprep.mubr.f32.mxu0 0.0
  %5300 = vmatmul.mubr.f32.gmra.mxu0 %v4856
  %v5301 = vpop.f32.mrf.mxu0
  %v5302 = vadd.f32 %v5193, %v5301
  %v5303 = vpop.f32.mrf.mxu0
  %5304 = vmatprep.mubr.f32.mxu0 0.0
  %5305 = vmatmul.mubr.f32.gmra.mxu0 %v4859
  %v5306 = vpop.f32.mrf.mxu0
  %v5307 = vadd.f32 %v5193, %v5306
  %v5308 = vpop.f32.mrf.mxu0
  %5309 = vmatprep.mubr.f32.mxu0 0.0
  %5310 = vmatmul.mubr.f32.gmra.mxu0 %v4862
  %v5311 = vpop.f32.mrf.mxu0
  %v5312 = vadd.f32 %v5193, %v5311
  %v5313 = vpop.f32.mrf.mxu0
  %5314 = vmatprep.mubr.f32.mxu0 0.0
  %5315 = vmatmul.mubr.f32.gmra.mxu0 %v4865
  %v5316 = vpop.f32.mrf.mxu0
  %v5317 = vadd.f32 %v5193, %v5316
  %v5318 = vpop.f32.mrf.mxu0
  %5319 = vmatprep.mubr.f32.mxu0 0.0
  %5320 = vmatmul.mubr.f32.gmra.mxu0 %v4868
  %v5321 = vpop.f32.mrf.mxu0
  %v5322 = vadd.f32 %v5193, %v5321
  %v5323 = vpop.f32.mrf.mxu0
  %5324 = vmatprep.mubr.f32.mxu0 0.0
  %5325 = vmatmul.mubr.f32.gmra.mxu0 %v4871
  %v5326 = vpop.f32.mrf.mxu0
  %v5327 = vadd.f32 %v5193, %v5326
  %v5328 = vpop.f32.mrf.mxu0
  %5329 = vmatprep.mubr.f32.mxu0 0.0
  %5330 = vmatmul.mubr.f32.gmra.mxu0 %v4874
  %v5331 = vpop.f32.mrf.mxu0
  %v5332 = vadd.f32 %v5193, %v5331
  %v5333 = vpop.f32.mrf.mxu0
  %5334 = vmatprep.mubr.f32.mxu0 0.0
  %5335 = vmatmul.mubr.f32.gmra.mxu0 %v4877
  %v5336 = vpop.f32.mrf.mxu0
  %v5337 = vadd.f32 %v5193, %v5336
  %v5338 = vpop.f32.mrf.mxu0
  %5339 = vdwg.mxu0
  %v5341 = vsel %vm927, %v4946, 0
  %v5344 = vsel %vm927, %v4951, 0
  %v5347 = vsel %vm927, %v4956, 0
  %v5350 = vsel %vm927, %v4961, 0
  %v5353 = vsel %vm927, %v4966, 0
  %v5356 = vsel %vm927, %v4971, 0
  %v5359 = vsel %vm927, %v4976, 0
  %v5362 = vsel %vm927, %v4981, 0
  %v5365 = vsel %vm927, %v5104, 0
  %v5368 = vsel %vm927, %v5109, 0
  %v5371 = vsel %vm927, %v5114, 0
  %v5374 = vsel %vm927, %v5119, 0
  %v5377 = vsel %vm927, %v5124, 0
  %v5380 = vsel %vm927, %v5129, 0
  %v5383 = vsel %vm927, %v5134, 0
  %v5386 = vsel %vm927, %v5139, 0
  %5388 = vmatprep.subr.mxu0 0.0
  %5389 = vmatpush1.xpose.msra.mxu0 0.0
  %5390 = vmatprep.subr.mxu0 0.0
  %5391 = vmatpush1.xpose.msra.mxu0 0.0
  %5392 = vmatprep.subr.mxu0 0.0
  %5393 = vmatpush1.xpose.msra.mxu0 0.0
  %5394 = vmatprep.subr.mxu0 0.0
  %5395 = vmatpush1.xpose.msra.mxu0 0.0
  %5396 = vmatprep.subr.mxu0 0.0
  %5397 = vmatpush1.xpose.msra.mxu0 0.0
  %5398 = vmatprep.subr.mxu0 0.0
  %5399 = vmatpush1.xpose.msra.mxu0 0.0
  %5400 = vmatprep.subr.mxu0 0.0
  %5401 = vmatpush1.xpose.msra.mxu0 0.0
  %5402 = vmatprep.subr.mxu0 0.0
  %5403 = vmatpush1.xpose.msra.mxu0 0.0
  %5404 = vmatprep.subr.mxu0 0.0
  %5405 = vmatpush1.xpose.msra.mxu0 %v5386
  %5406 = vmatprep.subr.mxu0 0.0
  %5407 = vmatpush1.xpose.msra.mxu0 %v5383
  %5408 = vmatprep.subr.mxu0 0.0
  %5409 = vmatpush1.xpose.msra.mxu0 %v5380
  %5410 = vmatprep.subr.mxu0 0.0
  %5411 = vmatpush1.xpose.msra.mxu0 %v5377
  %5412 = vmatprep.subr.mxu0 0.0
  %5413 = vmatpush1.xpose.msra.mxu0 %v5374
  %5414 = vmatprep.subr.mxu0 0.0
  %5415 = vmatpush1.xpose.msra.mxu0 %v5371
  %5416 = vmatprep.subr.mxu0 0.0
  %5417 = vmatpush1.xpose.msra.mxu0 %v5368
  %5418 = vmatprep.subr.mxu0 0.0
  %5419 = vmatpush1.xpose.msra.mxu0 %v5365
  %5420 = vmatprep.subr.mxu0 0.0
  %5421 = vmatpush2.xpose.msra.mxu0 0.0
  %5422 = vmatprep.subr.mxu0 0.0
  %5423 = vmatpush2.xpose.msra.mxu0 0.0
  %5424 = vmatprep.subr.mxu0 0.0
  %5425 = vmatpush2.xpose.msra.mxu0 0.0
  %5426 = vmatprep.subr.mxu0 0.0
  %5427 = vmatpush2.xpose.msra.mxu0 0.0
  %5428 = vmatprep.subr.mxu0 0.0
  %5429 = vmatpush2.xpose.msra.mxu0 0.0
  %5430 = vmatprep.subr.mxu0 0.0
  %5431 = vmatpush2.xpose.msra.mxu0 0.0
  %5432 = vmatprep.subr.mxu0 0.0
  %5433 = vmatpush2.xpose.msra.mxu0 0.0
  %5434 = vmatprep.subr.mxu0 0.0
  %5435 = vmatpush2.xpose.msra.mxu0 0.0
  %5436 = vmatprep.subr.mxu0 0.0
  %5437 = vmatpush2.xpose.msra.mxu0 0.0
  %5438 = vmatprep.subr.mxu0 0.0
  %5439 = vmatpush2.xpose.msra.mxu0 0.0
  %5440 = vmatprep.subr.mxu0 0.0
  %5441 = vmatpush2.xpose.msra.mxu0 0.0
  %5442 = vmatprep.subr.mxu0 0.0
  %5443 = vmatpush2.xpose.msra.mxu0 0.0
  %5444 = vmatprep.subr.mxu0 0.0
  %5445 = vmatpush2.xpose.msra.mxu0 0.0
  %5446 = vmatprep.subr.mxu0 0.0
  %5447 = vmatpush2.xpose.msra.mxu0 0.0
  %5448 = vmatprep.subr.mxu0 0.0
  %5449 = vmatpush2.xpose.msra.mxu0 0.0
  %5450 = vmatprep.subr.mxu0 0.0
  %5451 = vmatpush2.xpose.msra.mxu0 0.0
  %5452 = vmatprep.mubr.f32.mxu0 0.0
  %5453 = vmatmul.mubr.f32.gmra.mxu0 %v5341
  %v5454 = vpop.f32.mrf.mxu0
  %v5455 = vadd.f32 0.0, %v5454
  %v5456 = vpop.f32.mrf.mxu0
  %5457 = vmatprep.mubr.f32.mxu0 0.0
  %5458 = vmatmul.mubr.f32.gmra.mxu0 %v5344
  %v5459 = vpop.f32.mrf.mxu0
  %v5460 = vadd.f32 0.0, %v5459
  %v5461 = vpop.f32.mrf.mxu0
  %5462 = vmatprep.mubr.f32.mxu0 0.0
  %5463 = vmatmul.mubr.f32.gmra.mxu0 %v5347
  %v5464 = vpop.f32.mrf.mxu0
  %v5465 = vadd.f32 0.0, %v5464
  %v5466 = vpop.f32.mrf.mxu0
  %5467 = vmatprep.mubr.f32.mxu0 0.0
  %5468 = vmatmul.mubr.f32.gmra.mxu0 %v5350
  %v5469 = vpop.f32.mrf.mxu0
  %v5470 = vadd.f32 0.0, %v5469
  %v5471 = vpop.f32.mrf.mxu0
  %5472 = vmatprep.mubr.f32.mxu0 0.0
  %5473 = vmatmul.mubr.f32.gmra.mxu0 %v5353
  %v5474 = vpop.f32.mrf.mxu0
  %v5475 = vadd.f32 0.0, %v5474
  %v5476 = vpop.f32.mrf.mxu0
  %5477 = vmatprep.mubr.f32.mxu0 0.0
  %5478 = vmatmul.mubr.f32.gmra.mxu0 %v5356
  %v5479 = vpop.f32.mrf.mxu0
  %v5480 = vadd.f32 0.0, %v5479
  %v5481 = vpop.f32.mrf.mxu0
  %5482 = vmatprep.mubr.f32.mxu0 0.0
  %5483 = vmatmul.mubr.f32.gmra.mxu0 %v5359
  %v5484 = vpop.f32.mrf.mxu0
  %v5485 = vadd.f32 0.0, %v5484
  %v5486 = vpop.f32.mrf.mxu0
  %5487 = vmatprep.mubr.f32.mxu0 0.0
  %5488 = vmatmul.mubr.f32.gmra.mxu0 %v5362
  %v5489 = vpop.f32.mrf.mxu0
  %v5490 = vadd.f32 0.0, %v5489
  %v5491 = vpop.f32.mrf.mxu0
  %5492 = vdwg.mxu0
  %v5494 = vsel %vm927, %v4986, 0
  %v5497 = vsel %vm927, %v4991, 0
  %v5500 = vsel %vm927, %v4996, 0
  %v5503 = vsel %vm927, %v5001, 0
  %v5506 = vsel %vm927, %v5006, 0
  %v5509 = vsel %vm927, %v5011, 0
  %v5512 = vsel %vm927, %v5016, 0
  %v5515 = vsel %vm927, %v5021, 0
  %v5518 = vsel %vm927, %v5144, 0
  %v5521 = vsel %vm927, %v5149, 0
  %v5524 = vsel %vm927, %v5154, 0
  %v5527 = vsel %vm927, %v5159, 0
  %v5530 = vsel %vm927, %v5164, 0
  %v5533 = vsel %vm927, %v5169, 0
  %v5536 = vsel %vm927, %v5174, 0
  %v5539 = vsel %vm927, %v5179, 0
  %5541 = vmatprep.subr.mxu0 0.0
  %5542 = vmatpush1.xpose.msra.mxu0 0.0
  %5543 = vmatprep.subr.mxu0 0.0
  %5544 = vmatpush1.xpose.msra.mxu0 0.0
  %5545 = vmatprep.subr.mxu0 0.0
  %5546 = vmatpush1.xpose.msra.mxu0 0.0
  %5547 = vmatprep.subr.mxu0 0.0
  %5548 = vmatpush1.xpose.msra.mxu0 0.0
  %5549 = vmatprep.subr.mxu0 0.0
  %5550 = vmatpush1.xpose.msra.mxu0 0.0
  %5551 = vmatprep.subr.mxu0 0.0
  %5552 = vmatpush1.xpose.msra.mxu0 0.0
  %5553 = vmatprep.subr.mxu0 0.0
  %5554 = vmatpush1.xpose.msra.mxu0 0.0
  %5555 = vmatprep.subr.mxu0 0.0
  %5556 = vmatpush1.xpose.msra.mxu0 0.0
  %5557 = vmatprep.subr.mxu0 0.0
  %5558 = vmatpush1.xpose.msra.mxu0 %v5539
  %5559 = vmatprep.subr.mxu0 0.0
  %5560 = vmatpush1.xpose.msra.mxu0 %v5536
  %5561 = vmatprep.subr.mxu0 0.0
  %5562 = vmatpush1.xpose.msra.mxu0 %v5533
  %5563 = vmatprep.subr.mxu0 0.0
  %5564 = vmatpush1.xpose.msra.mxu0 %v5530
  %5565 = vmatprep.subr.mxu0 0.0
  %5566 = vmatpush1.xpose.msra.mxu0 %v5527
  %5567 = vmatprep.subr.mxu0 0.0
  %5568 = vmatpush1.xpose.msra.mxu0 %v5524
  %5569 = vmatprep.subr.mxu0 0.0
  %5570 = vmatpush1.xpose.msra.mxu0 %v5521
  %5571 = vmatprep.subr.mxu0 0.0
  %5572 = vmatpush1.xpose.msra.mxu0 %v5518
  %5573 = vmatprep.subr.mxu0 0.0
  %5574 = vmatpush2.xpose.msra.mxu0 0.0
  %5575 = vmatprep.subr.mxu0 0.0
  %5576 = vmatpush2.xpose.msra.mxu0 0.0
  %5577 = vmatprep.subr.mxu0 0.0
  %5578 = vmatpush2.xpose.msra.mxu0 0.0
  %5579 = vmatprep.subr.mxu0 0.0
  %5580 = vmatpush2.xpose.msra.mxu0 0.0
  %5581 = vmatprep.subr.mxu0 0.0
  %5582 = vmatpush2.xpose.msra.mxu0 0.0
  %5583 = vmatprep.subr.mxu0 0.0
  %5584 = vmatpush2.xpose.msra.mxu0 0.0
  %5585 = vmatprep.subr.mxu0 0.0
  %5586 = vmatpush2.xpose.msra.mxu0 0.0
  %5587 = vmatprep.subr.mxu0 0.0
  %5588 = vmatpush2.xpose.msra.mxu0 0.0
  %5589 = vmatprep.subr.mxu0 0.0
  %5590 = vmatpush2.xpose.msra.mxu0 0.0
  %5591 = vmatprep.subr.mxu0 0.0
  %5592 = vmatpush2.xpose.msra.mxu0 0.0
  %5593 = vmatprep.subr.mxu0 0.0
  %5594 = vmatpush2.xpose.msra.mxu0 0.0
  %5595 = vmatprep.subr.mxu0 0.0
  %5596 = vmatpush2.xpose.msra.mxu0 0.0
  %5597 = vmatprep.subr.mxu0 0.0
  %5598 = vmatpush2.xpose.msra.mxu0 0.0
  %5599 = vmatprep.subr.mxu0 0.0
  %5600 = vmatpush2.xpose.msra.mxu0 0.0
  %5601 = vmatprep.subr.mxu0 0.0
  %5602 = vmatpush2.xpose.msra.mxu0 0.0
  %5603 = vmatprep.subr.mxu0 0.0
  %5604 = vmatpush2.xpose.msra.mxu0 0.0
  %5605 = vmatprep.mubr.f32.mxu0 0.0
  %5606 = vmatmul.mubr.f32.gmra.mxu0 %v5494
  %v5607 = vpop.f32.mrf.mxu0
  %v5608 = vadd.f32 0.0, %v5607
  %v5609 = vpop.f32.mrf.mxu0
  %5610 = vmatprep.mubr.f32.mxu0 0.0
  %5611 = vmatmul.mubr.f32.gmra.mxu0 %v5497
  %v5612 = vpop.f32.mrf.mxu0
  %v5613 = vadd.f32 0.0, %v5612
  %v5614 = vpop.f32.mrf.mxu0
  %5615 = vmatprep.mubr.f32.mxu0 0.0
  %5616 = vmatmul.mubr.f32.gmra.mxu0 %v5500
  %v5617 = vpop.f32.mrf.mxu0
  %v5618 = vadd.f32 0.0, %v5617
  %v5619 = vpop.f32.mrf.mxu0
  %5620 = vmatprep.mubr.f32.mxu0 0.0
  %5621 = vmatmul.mubr.f32.gmra.mxu0 %v5503
  %v5622 = vpop.f32.mrf.mxu0
  %v5623 = vadd.f32 0.0, %v5622
  %v5624 = vpop.f32.mrf.mxu0
  %5625 = vmatprep.mubr.f32.mxu0 0.0
  %5626 = vmatmul.mubr.f32.gmra.mxu0 %v5506
  %v5627 = vpop.f32.mrf.mxu0
  %v5628 = vadd.f32 0.0, %v5627
  %v5629 = vpop.f32.mrf.mxu0
  %5630 = vmatprep.mubr.f32.mxu0 0.0
  %5631 = vmatmul.mubr.f32.gmra.mxu0 %v5509
  %v5632 = vpop.f32.mrf.mxu0
  %v5633 = vadd.f32 0.0, %v5632
  %v5634 = vpop.f32.mrf.mxu0
  %5635 = vmatprep.mubr.f32.mxu0 0.0
  %5636 = vmatmul.mubr.f32.gmra.mxu0 %v5512
  %v5637 = vpop.f32.mrf.mxu0
  %v5638 = vadd.f32 0.0, %v5637
  %v5639 = vpop.f32.mrf.mxu0
  %5640 = vmatprep.mubr.f32.mxu0 0.0
  %5641 = vmatmul.mubr.f32.gmra.mxu0 %v5515
  %v5642 = vpop.f32.mrf.mxu0
  %v5643 = vadd.f32 0.0, %v5642
  %v5644 = vpop.f32.mrf.mxu0
  %5645 = vdwg.mxu0
  %v5646 = vmul.f32 %v5455, 0.25
  %v5647 = vmul.f32 %v5460, 0.25
  %v5648 = vmul.f32 %v5465, 0.25
  %v5649 = vmul.f32 %v5470, 0.25
  %v5650 = vmul.f32 %v5475, 0.25
  %v5651 = vmul.f32 %v5480, 0.25
  %v5652 = vmul.f32 %v5485, 0.25
  %v5653 = vmul.f32 %v5490, 0.25
  %v5654 = vmul.f32 %v5608, 0.25
  %v5655 = vmul.f32 %v5613, 0.25
  %v5656 = vmul.f32 %v5618, 0.25
  %v5657 = vmul.f32 %v5623, 0.25
  %v5658 = vmul.f32 %v5628, 0.25
  %v5659 = vmul.f32 %v5633, 0.25
  %v5660 = vmul.f32 %v5638, 0.25
  %v5661 = vmul.f32 %v5643, 0.25
  %v5662 = vadd.f32 %v5646, %v403
  %v5663 = vadd.f32 %v5647, %v404
  %v5664 = vadd.f32 %v5648, %v405
  %v5665 = vadd.f32 %v5649, %v406
  %v5666 = vadd.f32 %v5650, %v407
  %v5667 = vadd.f32 %v5651, %v408
  %v5668 = vadd.f32 %v5652, %v409
  %v5669 = vadd.f32 %v5653, %v410
  %v5670 = vadd.f32 %v5654, %v403
  %v5671 = vadd.f32 %v5655, %v404
  %v5672 = vadd.f32 %v5656, %v405
  %v5673 = vadd.f32 %v5657, %v406
  %v5674 = vadd.f32 %v5658, %v407
  %v5675 = vadd.f32 %v5659, %v408
  %v5676 = vadd.f32 %v5660, %v409
  %v5677 = vadd.f32 %v5661, %v410
  %v5678 = vsel %vm1266, %v5662, -inf
  %5679 = vmax.xlane.f32.xlu0 %v5678
  %v5680 = vpop.xlane.xlu0 %5679
  %v5681 = vsel %vm1266, %v5663, -inf
  %5682 = vmax.xlane.f32.xlu0 %v5681
  %v5683 = vpop.xlane.xlu0 %5682
  %v5684 = vsel %vm1266, %v5664, -inf
  %5685 = vmax.xlane.f32.xlu0 %v5684
  %v5686 = vpop.xlane.xlu0 %5685
  %v5687 = vsel %vm1266, %v5665, -inf
  %5688 = vmax.xlane.f32.xlu0 %v5687
  %v5689 = vpop.xlane.xlu0 %5688
  %v5690 = vsel %vm1266, %v5666, -inf
  %5691 = vmax.xlane.f32.xlu0 %v5690
  %v5692 = vpop.xlane.xlu0 %5691
  %v5693 = vsel %vm1266, %v5667, -inf
  %5694 = vmax.xlane.f32.xlu0 %v5693
  %v5695 = vpop.xlane.xlu0 %5694
  %v5696 = vsel %vm1266, %v5668, -inf
  %5697 = vmax.xlane.f32.xlu0 %v5696
  %v5698 = vpop.xlane.xlu0 %5697
  %v5699 = vsel %vm1266, %v5669, -inf
  %5700 = vmax.xlane.f32.xlu0 %v5699
  %v5701 = vpop.xlane.xlu0 %5700
  %v5702 = vsel %vm1266, %v5670, -inf
  %5703 = vmax.xlane.f32.xlu0 %v5702
  %v5704 = vpop.xlane.xlu0 %5703
  %v5705 = vsel %vm1266, %v5671, -inf
  %5706 = vmax.xlane.f32.xlu0 %v5705
  %v5707 = vpop.xlane.xlu0 %5706
  %v5708 = vsel %vm1266, %v5672, -inf
  %5709 = vmax.xlane.f32.xlu0 %v5708
  %v5710 = vpop.xlane.xlu0 %5709
  %v5711 = vsel %vm1266, %v5673, -inf
  %5712 = vmax.xlane.f32.xlu0 %v5711
  %v5713 = vpop.xlane.xlu0 %5712
  %v5714 = vsel %vm1266, %v5674, -inf
  %5715 = vmax.xlane.f32.xlu0 %v5714
  %v5716 = vpop.xlane.xlu0 %5715
  %v5717 = vsel %vm1266, %v5675, -inf
  %5718 = vmax.xlane.f32.xlu0 %v5717
  %v5719 = vpop.xlane.xlu0 %5718
  %v5720 = vsel %vm1266, %v5676, -inf
  %5721 = vmax.xlane.f32.xlu0 %v5720
  %v5722 = vpop.xlane.xlu0 %5721
  %v5723 = vsel %vm1266, %v5677, -inf
  %5724 = vmax.xlane.f32.xlu0 %v5723
  %v5725 = vpop.xlane.xlu0 %5724
  %v5726 = vsub.f32 %v5662, %v5680
  %v5727 = vsub.f32 %v5663, %v5683
  %v5728 = vsub.f32 %v5664, %v5686
  %v5729 = vsub.f32 %v5665, %v5689
  %v5730 = vsub.f32 %v5666, %v5692
  %v5731 = vsub.f32 %v5667, %v5695
  %v5732 = vsub.f32 %v5668, %v5698
  %v5733 = vsub.f32 %v5669, %v5701
  %v5734 = vsub.f32 %v5670, %v5704
  %v5735 = vsub.f32 %v5671, %v5707
  %v5736 = vsub.f32 %v5672, %v5710
  %v5737 = vsub.f32 %v5673, %v5713
  %v5738 = vsub.f32 %v5674, %v5716
  %v5739 = vsub.f32 %v5675, %v5719
  %v5740 = vsub.f32 %v5676, %v5722
  %v5741 = vsub.f32 %v5677, %v5725
  %v5742 = vmul.f32 %v5726, 1.442695
  %v5743 = vpow.pop %v5742
  %v5744 = vmul.f32 %v5727, 1.442695
  %v5745 = vpow.pop %v5744
  %v5746 = vmul.f32 %v5728, 1.442695
  %v5747 = vpow.pop %v5746
  %v5748 = vmul.f32 %v5729, 1.442695
  %v5749 = vpow.pop %v5748
  %v5750 = vmul.f32 %v5730, 1.442695
  %v5751 = vpow.pop %v5750
  %v5752 = vmul.f32 %v5731, 1.442695
  %v5753 = vpow.pop %v5752
  %v5754 = vmul.f32 %v5732, 1.442695
  %v5755 = vpow.pop %v5754
  %v5756 = vmul.f32 %v5733, 1.442695
  %v5757 = vpow.pop %v5756
  %v5758 = vmul.f32 %v5734, 1.442695
  %v5759 = vpow.pop %v5758
  %v5760 = vmul.f32 %v5735, 1.442695
  %v5761 = vpow.pop %v5760
  %v5762 = vmul.f32 %v5736, 1.442695
  %v5763 = vpow.pop %v5762
  %v5764 = vmul.f32 %v5737, 1.442695
  %v5765 = vpow.pop %v5764
  %v5766 = vmul.f32 %v5738, 1.442695
  %v5767 = vpow.pop %v5766
  %v5768 = vmul.f32 %v5739, 1.442695
  %v5769 = vpow.pop %v5768
  %v5770 = vmul.f32 %v5740, 1.442695
  %v5771 = vpow.pop %v5770
  %v5772 = vmul.f32 %v5741, 1.442695
  %v5773 = vpow.pop %v5772
  %v5774 = vsel %vm1266, %v5743, 0.0
  %5775 = vadd.xlane.f32.xlu0 %v5774
  %v5776 = vpop.xlane.xlu0 %5775
  %v5777 = vsel %vm1266, %v5745, 0.0
  %5778 = vadd.xlane.f32.xlu0 %v5777
  %v5779 = vpop.xlane.xlu0 %5778
  %v5780 = vsel %vm1266, %v5747, 0.0
  %5781 = vadd.xlane.f32.xlu0 %v5780
  %v5782 = vpop.xlane.xlu0 %5781
  %v5783 = vsel %vm1266, %v5749, 0.0
  %5784 = vadd.xlane.f32.xlu0 %v5783
  %v5785 = vpop.xlane.xlu0 %5784
  %v5786 = vsel %vm1266, %v5751, 0.0
  %5787 = vadd.xlane.f32.xlu0 %v5786
  %v5788 = vpop.xlane.xlu0 %5787
  %v5789 = vsel %vm1266, %v5753, 0.0
  %5790 = vadd.xlane.f32.xlu0 %v5789
  %v5791 = vpop.xlane.xlu0 %5790
  %v5792 = vsel %vm1266, %v5755, 0.0
  %5793 = vadd.xlane.f32.xlu0 %v5792
  %v5794 = vpop.xlane.xlu0 %5793
  %v5795 = vsel %vm1266, %v5757, 0.0
  %5796 = vadd.xlane.f32.xlu0 %v5795
  %v5797 = vpop.xlane.xlu0 %5796
  %v5798 = vsel %vm1266, %v5759, 0.0
  %5799 = vadd.xlane.f32.xlu0 %v5798
  %v5800 = vpop.xlane.xlu0 %5799
  %v5801 = vsel %vm1266, %v5761, 0.0
  %5802 = vadd.xlane.f32.xlu0 %v5801
  %v5803 = vpop.xlane.xlu0 %5802
  %v5804 = vsel %vm1266, %v5763, 0.0
  %5805 = vadd.xlane.f32.xlu0 %v5804
  %v5806 = vpop.xlane.xlu0 %5805
  %v5807 = vsel %vm1266, %v5765, 0.0
  %5808 = vadd.xlane.f32.xlu0 %v5807
  %v5809 = vpop.xlane.xlu0 %5808
  %v5810 = vsel %vm1266, %v5767, 0.0
  %5811 = vadd.xlane.f32.xlu0 %v5810
  %v5812 = vpop.xlane.xlu0 %5811
  %v5813 = vsel %vm1266, %v5769, 0.0
  %5814 = vadd.xlane.f32.xlu0 %v5813
  %v5815 = vpop.xlane.xlu0 %5814
  %v5816 = vsel %vm1266, %v5771, 0.0
  %5817 = vadd.xlane.f32.xlu0 %v5816
  %v5818 = vpop.xlane.xlu0 %5817
  %v5819 = vsel %vm1266, %v5773, 0.0
  %5820 = vadd.xlane.f32.xlu0 %v5819
  %v5821 = vpop.xlane.xlu0 %5820
  %v5822 = vrcp.pop %v5776
  %v5823 = vrcp.pop %v5779
  %v5824 = vrcp.pop %v5782
  %v5825 = vrcp.pop %v5785
  %v5826 = vrcp.pop %v5788
  %v5827 = vrcp.pop %v5791
  %v5828 = vrcp.pop %v5794
  %v5829 = vrcp.pop %v5797
  %v5830 = vrcp.pop %v5800
  %v5831 = vrcp.pop %v5803
  %v5832 = vrcp.pop %v5806
  %v5833 = vrcp.pop %v5809
  %v5834 = vrcp.pop %v5812
  %v5835 = vrcp.pop %v5815
  %v5836 = vrcp.pop %v5818
  %v5837 = vrcp.pop %v5821
  %v5838 = vmul.f32 %v5743, %v5822
  %v5839 = vmul.f32 %v5745, %v5823
  %v5840 = vmul.f32 %v5747, %v5824
  %v5841 = vmul.f32 %v5749, %v5825
  %v5842 = vmul.f32 %v5751, %v5826
  %v5843 = vmul.f32 %v5753, %v5827
  %v5844 = vmul.f32 %v5755, %v5828
  %v5845 = vmul.f32 %v5757, %v5829
  %v5846 = vmul.f32 %v5759, %v5830
  %v5847 = vmul.f32 %v5761, %v5831
  %v5848 = vmul.f32 %v5763, %v5832
  %v5849 = vmul.f32 %v5765, %v5833
  %v5850 = vmul.f32 %v5767, %v5834
  %v5851 = vmul.f32 %v5769, %v5835
  %v5852 = vmul.f32 %v5771, %v5836
  %v5853 = vmul.f32 %v5773, %v5837
  %s5854 = scalar_lea.vmem %s20, 256
  %5855 = vst.msk [vmem:[%s5854] sm:$0xff] %vm1266, %v5838
  %5856 = vst.msk [vmem:[%s5854 + $0x8] sm:$0xff] %vm1266, %v5839
  %5857 = vst.msk [vmem:[%s5854 + $0x10] sm:$0xff] %vm1266, %v5840
  %5858 = vst.msk [vmem:[%s5854 + $0x18] sm:$0xff] %vm1266, %v5841
  %5859 = vst.msk [vmem:[%s5854 + $0x20] sm:$0xff] %vm1266, %v5842
  %5860 = vst.msk [vmem:[%s5854 + $0x28] sm:$0xff] %vm1266, %v5843
  %5861 = vst.msk [vmem:[%s5854 + $0x30] sm:$0xff] %vm1266, %v5844
  %5862 = vst.msk [vmem:[%s5854 + $0x38] sm:$0xff] %vm1266, %v5845
  %5863 = vst.msk [vmem:[%s5854 + $0x40] sm:$0xff] %vm1266, %v5846
  %5864 = vst.msk [vmem:[%s5854 + $0x48] sm:$0xff] %vm1266, %v5847
  %5865 = vst.msk [vmem:[%s5854 + $0x50] sm:$0xff] %vm1266, %v5848
  %5866 = vst.msk [vmem:[%s5854 + $0x58] sm:$0xff] %vm1266, %v5849
  %5867 = vst.msk [vmem:[%s5854 + $0x60] sm:$0xff] %vm1266, %v5850
  %5868 = vst.msk [vmem:[%s5854 + $0x68] sm:$0xff] %vm1266, %v5851
  %5869 = vst.msk [vmem:[%s5854 + $0x70] sm:$0xff] %vm1266, %v5852
  %5870 = vst.msk [vmem:[%s5854 + $0x78] sm:$0xff] %vm1266, %v5853
  %v5872 = vsel %vm1266, %v5838, 0
  %v5875 = vsel %vm1266, %v5839, 0
  %v5878 = vsel %vm1266, %v5840, 0
  %v5881 = vsel %vm1266, %v5841, 0
  %v5884 = vsel %vm1266, %v5842, 0
  %v5887 = vsel %vm1266, %v5843, 0
  %v5890 = vsel %vm1266, %v5844, 0
  %v5893 = vsel %vm1266, %v5845, 0
  %5895 = vmatprep.subr.mxu0 0.0
  %5896 = vmatpush1.msra.mxu0 0.0
  %5897 = vmatprep.subr.mxu0 0.0
  %5898 = vmatpush1.msra.mxu0 0.0
  %5899 = vmatprep.subr.mxu0 0.0
  %5900 = vmatpush1.msra.mxu0 0.0
  %5901 = vmatprep.subr.mxu0 0.0
  %5902 = vmatpush1.msra.mxu0 0.0
  %5903 = vmatprep.subr.mxu0 0.0
  %5904 = vmatpush1.msra.mxu0 0.0
  %5905 = vmatprep.subr.mxu0 0.0
  %5906 = vmatpush1.msra.mxu0 0.0
  %5907 = vmatprep.subr.mxu0 0.0
  %5908 = vmatpush1.msra.mxu0 0.0
  %5909 = vmatprep.subr.mxu0 0.0
  %5910 = vmatpush1.msra.mxu0 0.0
  %5911 = vmatprep.subr.mxu0 0.0
  %5912 = vmatpush1.msra.mxu0 %v5297
  %5913 = vmatprep.subr.mxu0 0.0
  %5914 = vmatpush1.msra.mxu0 %v5292
  %5915 = vmatprep.subr.mxu0 0.0
  %5916 = vmatpush1.msra.mxu0 %v5287
  %5917 = vmatprep.subr.mxu0 0.0
  %5918 = vmatpush1.msra.mxu0 %v5282
  %5919 = vmatprep.subr.mxu0 0.0
  %5920 = vmatpush1.msra.mxu0 %v5277
  %5921 = vmatprep.subr.mxu0 0.0
  %5922 = vmatpush1.msra.mxu0 %v5272
  %5923 = vmatprep.subr.mxu0 0.0
  %5924 = vmatpush1.msra.mxu0 %v5267
  %5925 = vmatprep.subr.mxu0 0.0
  %5926 = vmatpush1.msra.mxu0 %v5262
  %5927 = vmatprep.subr.mxu0 0.0
  %5928 = vmatpush2.msra.mxu0 0.0
  %5929 = vmatprep.subr.mxu0 0.0
  %5930 = vmatpush2.msra.mxu0 0.0
  %5931 = vmatprep.subr.mxu0 0.0
  %5932 = vmatpush2.msra.mxu0 0.0
  %5933 = vmatprep.subr.mxu0 0.0
  %5934 = vmatpush2.msra.mxu0 0.0
  %5935 = vmatprep.subr.mxu0 0.0
  %5936 = vmatpush2.msra.mxu0 0.0
  %5937 = vmatprep.subr.mxu0 0.0
  %5938 = vmatpush2.msra.mxu0 0.0
  %5939 = vmatprep.subr.mxu0 0.0
  %5940 = vmatpush2.msra.mxu0 0.0
  %5941 = vmatprep.subr.mxu0 0.0
  %5942 = vmatpush2.msra.mxu0 0.0
  %5943 = vmatprep.subr.mxu0 0.0
  %5944 = vmatpush2.msra.mxu0 0.0
  %5945 = vmatprep.subr.mxu0 0.0
  %5946 = vmatpush2.msra.mxu0 0.0
  %5947 = vmatprep.subr.mxu0 0.0
  %5948 = vmatpush2.msra.mxu0 0.0
  %5949 = vmatprep.subr.mxu0 0.0
  %5950 = vmatpush2.msra.mxu0 0.0
  %5951 = vmatprep.subr.mxu0 0.0
  %5952 = vmatpush2.msra.mxu0 0.0
  %5953 = vmatprep.subr.mxu0 0.0
  %5954 = vmatpush2.msra.mxu0 0.0
  %5955 = vmatprep.subr.mxu0 0.0
  %5956 = vmatpush2.msra.mxu0 0.0
  %5957 = vmatprep.subr.mxu0 0.0
  %5958 = vmatpush2.msra.mxu0 0.0
  %5959 = vmatprep.mubr.f32.mxu0 0.0
  %5960 = vmatmul.mubr.f32.gmra.mxu0 %v5872
  %v5961 = vpop.f32.mrf.mxu0
  %v5962 = vadd.f32 0.0, %v5961
  %v5963 = vpop.f32.mrf.mxu0
  %5964 = vmatprep.mubr.f32.mxu0 0.0
  %5965 = vmatmul.mubr.f32.gmra.mxu0 %v5875
  %v5966 = vpop.f32.mrf.mxu0
  %v5967 = vadd.f32 0.0, %v5966
  %v5968 = vpop.f32.mrf.mxu0
  %5969 = vmatprep.mubr.f32.mxu0 0.0
  %5970 = vmatmul.mubr.f32.gmra.mxu0 %v5878
  %v5971 = vpop.f32.mrf.mxu0
  %v5972 = vadd.f32 0.0, %v5971
  %v5973 = vpop.f32.mrf.mxu0
  %5974 = vmatprep.mubr.f32.mxu0 0.0
  %5975 = vmatmul.mubr.f32.gmra.mxu0 %v5881
  %v5976 = vpop.f32.mrf.mxu0
  %v5977 = vadd.f32 0.0, %v5976
  %v5978 = vpop.f32.mrf.mxu0
  %5979 = vmatprep.mubr.f32.mxu0 0.0
  %5980 = vmatmul.mubr.f32.gmra.mxu0 %v5884
  %v5981 = vpop.f32.mrf.mxu0
  %v5982 = vadd.f32 0.0, %v5981
  %v5983 = vpop.f32.mrf.mxu0
  %5984 = vmatprep.mubr.f32.mxu0 0.0
  %5985 = vmatmul.mubr.f32.gmra.mxu0 %v5887
  %v5986 = vpop.f32.mrf.mxu0
  %v5987 = vadd.f32 0.0, %v5986
  %v5988 = vpop.f32.mrf.mxu0
  %5989 = vmatprep.mubr.f32.mxu0 0.0
  %5990 = vmatmul.mubr.f32.gmra.mxu0 %v5890
  %v5991 = vpop.f32.mrf.mxu0
  %v5992 = vadd.f32 0.0, %v5991
  %v5993 = vpop.f32.mrf.mxu0
  %5994 = vmatprep.mubr.f32.mxu0 0.0
  %5995 = vmatmul.mubr.f32.gmra.mxu0 %v5893
  %v5996 = vpop.f32.mrf.mxu0
  %v5997 = vadd.f32 0.0, %v5996
  %v5998 = vpop.f32.mrf.mxu0
  %5999 = vdwg.mxu0
  %v6001 = vsel %vm1266, %v5846, 0
  %v6004 = vsel %vm1266, %v5847, 0
  %v6007 = vsel %vm1266, %v5848, 0
  %v6010 = vsel %vm1266, %v5849, 0
  %v6013 = vsel %vm1266, %v5850, 0
  %v6016 = vsel %vm1266, %v5851, 0
  %v6019 = vsel %vm1266, %v5852, 0
  %v6022 = vsel %vm1266, %v5853, 0
  %6024 = vmatprep.subr.mxu0 0.0
  %6025 = vmatpush1.msra.mxu0 0.0
  %6026 = vmatprep.subr.mxu0 0.0
  %6027 = vmatpush1.msra.mxu0 0.0
  %6028 = vmatprep.subr.mxu0 0.0
  %6029 = vmatpush1.msra.mxu0 0.0
  %6030 = vmatprep.subr.mxu0 0.0
  %6031 = vmatpush1.msra.mxu0 0.0
  %6032 = vmatprep.subr.mxu0 0.0
  %6033 = vmatpush1.msra.mxu0 0.0
  %6034 = vmatprep.subr.mxu0 0.0
  %6035 = vmatpush1.msra.mxu0 0.0
  %6036 = vmatprep.subr.mxu0 0.0
  %6037 = vmatpush1.msra.mxu0 0.0
  %6038 = vmatprep.subr.mxu0 0.0
  %6039 = vmatpush1.msra.mxu0 0.0
  %6040 = vmatprep.subr.mxu0 0.0
  %6041 = vmatpush1.msra.mxu0 %v5337
  %6042 = vmatprep.subr.mxu0 0.0
  %6043 = vmatpush1.msra.mxu0 %v5332
  %6044 = vmatprep.subr.mxu0 0.0
  %6045 = vmatpush1.msra.mxu0 %v5327
  %6046 = vmatprep.subr.mxu0 0.0
  %6047 = vmatpush1.msra.mxu0 %v5322
  %6048 = vmatprep.subr.mxu0 0.0
  %6049 = vmatpush1.msra.mxu0 %v5317
  %6050 = vmatprep.subr.mxu0 0.0
  %6051 = vmatpush1.msra.mxu0 %v5312
  %6052 = vmatprep.subr.mxu0 0.0
  %6053 = vmatpush1.msra.mxu0 %v5307
  %6054 = vmatprep.subr.mxu0 0.0
  %6055 = vmatpush1.msra.mxu0 %v5302
  %6056 = vmatprep.subr.mxu0 0.0
  %6057 = vmatpush2.msra.mxu0 0.0
  %6058 = vmatprep.subr.mxu0 0.0
  %6059 = vmatpush2.msra.mxu0 0.0
  %6060 = vmatprep.subr.mxu0 0.0
  %6061 = vmatpush2.msra.mxu0 0.0
  %6062 = vmatprep.subr.mxu0 0.0
  %6063 = vmatpush2.msra.mxu0 0.0
  %6064 = vmatprep.subr.mxu0 0.0
  %6065 = vmatpush2.msra.mxu0 0.0
  %6066 = vmatprep.subr.mxu0 0.0
  %6067 = vmatpush2.msra.mxu0 0.0
  %6068 = vmatprep.subr.mxu0 0.0
  %6069 = vmatpush2.msra.mxu0 0.0
  %6070 = vmatprep.subr.mxu0 0.0
  %6071 = vmatpush2.msra.mxu0 0.0
  %6072 = vmatprep.subr.mxu0 0.0
  %6073 = vmatpush2.msra.mxu0 0.0
  %6074 = vmatprep.subr.mxu0 0.0
  %6075 = vmatpush2.msra.mxu0 0.0
  %6076 = vmatprep.subr.mxu0 0.0
  %6077 = vmatpush2.msra.mxu0 0.0
  %6078 = vmatprep.subr.mxu0 0.0
  %6079 = vmatpush2.msra.mxu0 0.0
  %6080 = vmatprep.subr.mxu0 0.0
  %6081 = vmatpush2.msra.mxu0 0.0
  %6082 = vmatprep.subr.mxu0 0.0
  %6083 = vmatpush2.msra.mxu0 0.0
  %6084 = vmatprep.subr.mxu0 0.0
  %6085 = vmatpush2.msra.mxu0 0.0
  %6086 = vmatprep.subr.mxu0 0.0
  %6087 = vmatpush2.msra.mxu0 0.0
  %6088 = vmatprep.mubr.f32.mxu0 0.0
  %6089 = vmatmul.mubr.f32.gmra.mxu0 %v6001
  %v6090 = vpop.f32.mrf.mxu0
  %v6091 = vadd.f32 0.0, %v6090
  %v6092 = vpop.f32.mrf.mxu0
  %6093 = vmatprep.mubr.f32.mxu0 0.0
  %6094 = vmatmul.mubr.f32.gmra.mxu0 %v6004
  %v6095 = vpop.f32.mrf.mxu0
  %v6096 = vadd.f32 0.0, %v6095
  %v6097 = vpop.f32.mrf.mxu0
  %6098 = vmatprep.mubr.f32.mxu0 0.0
  %6099 = vmatmul.mubr.f32.gmra.mxu0 %v6007
  %v6100 = vpop.f32.mrf.mxu0
  %v6101 = vadd.f32 0.0, %v6100
  %v6102 = vpop.f32.mrf.mxu0
  %6103 = vmatprep.mubr.f32.mxu0 0.0
  %6104 = vmatmul.mubr.f32.gmra.mxu0 %v6010
  %v6105 = vpop.f32.mrf.mxu0
  %v6106 = vadd.f32 0.0, %v6105
  %v6107 = vpop.f32.mrf.mxu0
  %6108 = vmatprep.mubr.f32.mxu0 0.0
  %6109 = vmatmul.mubr.f32.gmra.mxu0 %v6013
  %v6110 = vpop.f32.mrf.mxu0
  %v6111 = vadd.f32 0.0, %v6110
  %v6112 = vpop.f32.mrf.mxu0
  %6113 = vmatprep.mubr.f32.mxu0 0.0
  %6114 = vmatmul.mubr.f32.gmra.mxu0 %v6016
  %v6115 = vpop.f32.mrf.mxu0
  %v6116 = vadd.f32 0.0, %v6115
  %v6117 = vpop.f32.mrf.mxu0
  %6118 = vmatprep.mubr.f32.mxu0 0.0
  %6119 = vmatmul.mubr.f32.gmra.mxu0 %v6019
  %v6120 = vpop.f32.mrf.mxu0
  %v6121 = vadd.f32 0.0, %v6120
  %v6122 = vpop.f32.mrf.mxu0
  %6123 = vmatprep.mubr.f32.mxu0 0.0
  %6124 = vmatmul.mubr.f32.gmra.mxu0 %v6022
  %v6125 = vpop.f32.mrf.mxu0
  %v6126 = vadd.f32 0.0, %v6125
  %v6127 = vpop.f32.mrf.mxu0
  %6128 = vdwg.mxu0
  %s6129 = scalar_lea.vmem %s9, 32
  %v6130 = vld [vmem:[%s6129] sm:$0xff]
  %v6131 = vld [vmem:[%s6129 + $0x8] sm:$0xff]
  %s6132 = scalar_lea.vmem %s3, 96
  %v6133 = vld [vmem:[%s6132] sm:$0xff]
  %v6134 = vld [vmem:[%s6132 + $0x8] sm:$0xff]
  %v6135 = vld [vmem:[%s6132 + $0x10] sm:$0xff]
  %v6136 = vld [vmem:[%s6132 + $0x18] sm:$0xff]
  %s6137 = scalar_lea.vmem %s4, 3
  %v6138 = vld [vmem:[%s6137] sm:$0x1]
  %v6140 = vlaneseq
  %v6141 = vshrl.u32 %v6140, 7
  %v6142 = vsub.s32 0, %v6141
  %v6143 = vrot.slane %v6138, %v6142
  %6145 = vmatprep.subr.mxu0 0.0
  %6146 = vmatpush1.msra.mxu0 0.0
  %6147 = vmatprep.subr.mxu0 0.0
  %6148 = vmatpush1.msra.mxu0 0.0
  %6149 = vmatprep.subr.mxu0 0.0
  %6150 = vmatpush1.msra.mxu0 0.0
  %6151 = vmatprep.subr.mxu0 0.0
  %6152 = vmatpush1.msra.mxu0 0.0
  %6153 = vmatprep.subr.mxu0 0.0
  %6154 = vmatpush1.msra.mxu0 0.0
  %6155 = vmatprep.subr.mxu0 0.0
  %6156 = vmatpush1.msra.mxu0 0.0
  %6157 = vmatprep.subr.mxu0 0.0
  %6158 = vmatpush1.msra.mxu0 0.0
  %6159 = vmatprep.subr.mxu0 0.0
  %6160 = vmatpush1.msra.mxu0 0.0
  %6161 = vmatprep.subr.mxu0 0.0
  %6162 = vmatpush1.msra.mxu0 0.0
  %6163 = vmatprep.subr.mxu0 0.0
  %6164 = vmatpush1.msra.mxu0 0.0
  %6165 = vmatprep.subr.mxu0 0.0
  %6166 = vmatpush1.msra.mxu0 0.0
  %6167 = vmatprep.subr.mxu0 0.0
  %6168 = vmatpush1.msra.mxu0 0.0
  %6169 = vmatprep.subr.mxu0 0.0
  %6170 = vmatpush1.msra.mxu0 %v6136
  %6171 = vmatprep.subr.mxu0 0.0
  %6172 = vmatpush1.msra.mxu0 %v6135
  %6173 = vmatprep.subr.mxu0 0.0
  %6174 = vmatpush1.msra.mxu0 %v6134
  %6175 = vmatprep.subr.mxu0 0.0
  %6176 = vmatpush1.msra.mxu0 %v6133
  %6177 = vmatprep.subr.mxu0 0.0
  %6178 = vmatpush2.msra.mxu0 0.0
  %6179 = vmatprep.subr.mxu0 0.0
  %6180 = vmatpush2.msra.mxu0 0.0
  %6181 = vmatprep.subr.mxu0 0.0
  %6182 = vmatpush2.msra.mxu0 0.0
  %6183 = vmatprep.subr.mxu0 0.0
  %6184 = vmatpush2.msra.mxu0 0.0
  %6185 = vmatprep.subr.mxu0 0.0
  %6186 = vmatpush2.msra.mxu0 0.0
  %6187 = vmatprep.subr.mxu0 0.0
  %6188 = vmatpush2.msra.mxu0 0.0
  %6189 = vmatprep.subr.mxu0 0.0
  %6190 = vmatpush2.msra.mxu0 0.0
  %6191 = vmatprep.subr.mxu0 0.0
  %6192 = vmatpush2.msra.mxu0 0.0
  %6193 = vmatprep.subr.mxu0 0.0
  %6194 = vmatpush2.msra.mxu0 0.0
  %6195 = vmatprep.subr.mxu0 0.0
  %6196 = vmatpush2.msra.mxu0 0.0
  %6197 = vmatprep.subr.mxu0 0.0
  %6198 = vmatpush2.msra.mxu0 0.0
  %6199 = vmatprep.subr.mxu0 0.0
  %6200 = vmatpush2.msra.mxu0 0.0
  %6201 = vmatprep.subr.mxu0 0.0
  %6202 = vmatpush2.msra.mxu0 0.0
  %6203 = vmatprep.subr.mxu0 0.0
  %6204 = vmatpush2.msra.mxu0 0.0
  %6205 = vmatprep.subr.mxu0 0.0
  %6206 = vmatpush2.msra.mxu0 0.0
  %6207 = vmatprep.subr.mxu0 0.0
  %6208 = vmatpush2.msra.mxu0 0.0
  %6209 = vmatprep.mubr.f32.mxu0 0.0
  %6210 = vmatmul.mubr.f32.gmra.mxu0 %v4832
  %v6211 = vpop.f32.mrf.mxu0
  %v6212 = vadd.f32 %v6143, %v6211
  %v6213 = vpop.f32.mrf.mxu0
  %6214 = vmatprep.mubr.f32.mxu0 0.0
  %6215 = vmatmul.mubr.f32.gmra.mxu0 %v4835
  %v6216 = vpop.f32.mrf.mxu0
  %v6217 = vadd.f32 %v6143, %v6216
  %v6218 = vpop.f32.mrf.mxu0
  %6219 = vmatprep.mubr.f32.mxu0 0.0
  %6220 = vmatmul.mubr.f32.gmra.mxu0 %v4838
  %v6221 = vpop.f32.mrf.mxu0
  %v6222 = vadd.f32 %v6143, %v6221
  %v6223 = vpop.f32.mrf.mxu0
  %6224 = vmatprep.mubr.f32.mxu0 0.0
  %6225 = vmatmul.mubr.f32.gmra.mxu0 %v4841
  %v6226 = vpop.f32.mrf.mxu0
  %v6227 = vadd.f32 %v6143, %v6226
  %v6228 = vpop.f32.mrf.mxu0
  %6229 = vmatprep.mubr.f32.mxu0 0.0
  %6230 = vmatmul.mubr.f32.gmra.mxu0 %v4844
  %v6231 = vpop.f32.mrf.mxu0
  %v6232 = vadd.f32 %v6143, %v6231
  %v6233 = vpop.f32.mrf.mxu0
  %6234 = vmatprep.mubr.f32.mxu0 0.0
  %6235 = vmatmul.mubr.f32.gmra.mxu0 %v4847
  %v6236 = vpop.f32.mrf.mxu0
  %v6237 = vadd.f32 %v6143, %v6236
  %v6238 = vpop.f32.mrf.mxu0
  %6239 = vmatprep.mubr.f32.mxu0 0.0
  %6240 = vmatmul.mubr.f32.gmra.mxu0 %v4850
  %v6241 = vpop.f32.mrf.mxu0
  %v6242 = vadd.f32 %v6143, %v6241
  %v6243 = vpop.f32.mrf.mxu0
  %6244 = vmatprep.mubr.f32.mxu0 0.0
  %6245 = vmatmul.mubr.f32.gmra.mxu0 %v4853
  %v6246 = vpop.f32.mrf.mxu0
  %v6247 = vadd.f32 %v6143, %v6246
  %v6248 = vpop.f32.mrf.mxu0
  %6249 = vmatprep.mubr.f32.mxu0 0.0
  %6250 = vmatmul.mubr.f32.gmra.mxu0 %v4856
  %v6251 = vpop.f32.mrf.mxu0
  %v6252 = vadd.f32 %v6143, %v6251
  %v6253 = vpop.f32.mrf.mxu0
  %6254 = vmatprep.mubr.f32.mxu0 0.0
  %6255 = vmatmul.mubr.f32.gmra.mxu0 %v4859
  %v6256 = vpop.f32.mrf.mxu0
  %v6257 = vadd.f32 %v6143, %v6256
  %v6258 = vpop.f32.mrf.mxu0
  %6259 = vmatprep.mubr.f32.mxu0 0.0
  %6260 = vmatmul.mubr.f32.gmra.mxu0 %v4862
  %v6261 = vpop.f32.mrf.mxu0
  %v6262 = vadd.f32 %v6143, %v6261
  %v6263 = vpop.f32.mrf.mxu0
  %6264 = vmatprep.mubr.f32.mxu0 0.0
  %6265 = vmatmul.mubr.f32.gmra.mxu0 %v4865
  %v6266 = vpop.f32.mrf.mxu0
  %v6267 = vadd.f32 %v6143, %v6266
  %v6268 = vpop.f32.mrf.mxu0
  %6269 = vmatprep.mubr.f32.mxu0 0.0
  %6270 = vmatmul.mubr.f32.gmra.mxu0 %v4868
  %v6271 = vpop.f32.mrf.mxu0
  %v6272 = vadd.f32 %v6143, %v6271
  %v6273 = vpop.f32.mrf.mxu0
  %6274 = vmatprep.mubr.f32.mxu0 0.0
  %6275 = vmatmul.mubr.f32.gmra.mxu0 %v4871
  %v6276 = vpop.f32.mrf.mxu0
  %v6277 = vadd.f32 %v6143, %v6276
  %v6278 = vpop.f32.mrf.mxu0
  %6279 = vmatprep.mubr.f32.mxu0 0.0
  %6280 = vmatmul.mubr.f32.gmra.mxu0 %v4874
  %v6281 = vpop.f32.mrf.mxu0
  %v6282 = vadd.f32 %v6143, %v6281
  %v6283 = vpop.f32.mrf.mxu0
  %6284 = vmatprep.mubr.f32.mxu0 0.0
  %6285 = vmatmul.mubr.f32.gmra.mxu0 %v4877
  %v6286 = vpop.f32.mrf.mxu0
  %v6287 = vadd.f32 %v6143, %v6286
  %v6288 = vpop.f32.mrf.mxu0
  %6289 = vdwg.mxu0
  %s6290 = scalar_lea.vmem %s5, 96
  %v6291 = vld [vmem:[%s6290] sm:$0xff]
  %v6292 = vld [vmem:[%s6290 + $0x8] sm:$0xff]
  %v6293 = vld [vmem:[%s6290 + $0x10] sm:$0xff]
  %v6294 = vld [vmem:[%s6290 + $0x18] sm:$0xff]
  %s6295 = scalar_lea.vmem %s6, 3
  %v6296 = vld [vmem:[%s6295] sm:$0x1]
  %v6298 = vlaneseq
  %v6299 = vshrl.u32 %v6298, 7
  %v6300 = vsub.s32 0, %v6299
  %v6301 = vrot.slane %v6296, %v6300
  %6303 = vmatprep.subr.mxu0 0.0
  %6304 = vmatpush1.msra.mxu0 0.0
  %6305 = vmatprep.subr.mxu0 0.0
  %6306 = vmatpush1.msra.mxu0 0.0
  %6307 = vmatprep.subr.mxu0 0.0
  %6308 = vmatpush1.msra.mxu0 0.0
  %6309 = vmatprep.subr.mxu0 0.0
  %6310 = vmatpush1.msra.mxu0 0.0
  %6311 = vmatprep.subr.mxu0 0.0
  %6312 = vmatpush1.msra.mxu0 0.0
  %6313 = vmatprep.subr.mxu0 0.0
  %6314 = vmatpush1.msra.mxu0 0.0
  %6315 = vmatprep.subr.mxu0 0.0
  %6316 = vmatpush1.msra.mxu0 0.0
  %6317 = vmatprep.subr.mxu0 0.0
  %6318 = vmatpush1.msra.mxu0 0.0
  %6319 = vmatprep.subr.mxu0 0.0
  %6320 = vmatpush1.msra.mxu0 0.0
  %6321 = vmatprep.subr.mxu0 0.0
  %6322 = vmatpush1.msra.mxu0 0.0
  %6323 = vmatprep.subr.mxu0 0.0
  %6324 = vmatpush1.msra.mxu0 0.0
  %6325 = vmatprep.subr.mxu0 0.0
  %6326 = vmatpush1.msra.mxu0 0.0
  %6327 = vmatprep.subr.mxu0 0.0
  %6328 = vmatpush1.msra.mxu0 %v6294
  %6329 = vmatprep.subr.mxu0 0.0
  %6330 = vmatpush1.msra.mxu0 %v6293
  %6331 = vmatprep.subr.mxu0 0.0
  %6332 = vmatpush1.msra.mxu0 %v6292
  %6333 = vmatprep.subr.mxu0 0.0
  %6334 = vmatpush1.msra.mxu0 %v6291
  %6335 = vmatprep.subr.mxu0 0.0
  %6336 = vmatpush2.msra.mxu0 0.0
  %6337 = vmatprep.subr.mxu0 0.0
  %6338 = vmatpush2.msra.mxu0 0.0
  %6339 = vmatprep.subr.mxu0 0.0
  %6340 = vmatpush2.msra.mxu0 0.0
  %6341 = vmatprep.subr.mxu0 0.0
  %6342 = vmatpush2.msra.mxu0 0.0
  %6343 = vmatprep.subr.mxu0 0.0
  %6344 = vmatpush2.msra.mxu0 0.0
  %6345 = vmatprep.subr.mxu0 0.0
  %6346 = vmatpush2.msra.mxu0 0.0
  %6347 = vmatprep.subr.mxu0 0.0
  %6348 = vmatpush2.msra.mxu0 0.0
  %6349 = vmatprep.subr.mxu0 0.0
  %6350 = vmatpush2.msra.mxu0 0.0
  %6351 = vmatprep.subr.mxu0 0.0
  %6352 = vmatpush2.msra.mxu0 0.0
  %6353 = vmatprep.subr.mxu0 0.0
  %6354 = vmatpush2.msra.mxu0 0.0
  %6355 = vmatprep.subr.mxu0 0.0
  %6356 = vmatpush2.msra.mxu0 0.0
  %6357 = vmatprep.subr.mxu0 0.0
  %6358 = vmatpush2.msra.mxu0 0.0
  %6359 = vmatprep.subr.mxu0 0.0
  %6360 = vmatpush2.msra.mxu0 0.0
  %6361 = vmatprep.subr.mxu0 0.0
  %6362 = vmatpush2.msra.mxu0 0.0
  %6363 = vmatprep.subr.mxu0 0.0
  %6364 = vmatpush2.msra.mxu0 0.0
  %6365 = vmatprep.subr.mxu0 0.0
  %6366 = vmatpush2.msra.mxu0 0.0
  %6367 = vmatprep.mubr.f32.mxu0 0.0
  %6368 = vmatmul.mubr.f32.gmra.mxu0 %v4832
  %v6369 = vpop.f32.mrf.mxu0
  %v6370 = vadd.f32 %v6301, %v6369
  %v6371 = vpop.f32.mrf.mxu0
  %6372 = vmatprep.mubr.f32.mxu0 0.0
  %6373 = vmatmul.mubr.f32.gmra.mxu0 %v4835
  %v6374 = vpop.f32.mrf.mxu0
  %v6375 = vadd.f32 %v6301, %v6374
  %v6376 = vpop.f32.mrf.mxu0
  %6377 = vmatprep.mubr.f32.mxu0 0.0
  %6378 = vmatmul.mubr.f32.gmra.mxu0 %v4838
  %v6379 = vpop.f32.mrf.mxu0
  %v6380 = vadd.f32 %v6301, %v6379
  %v6381 = vpop.f32.mrf.mxu0
  %6382 = vmatprep.mubr.f32.mxu0 0.0
  %6383 = vmatmul.mubr.f32.gmra.mxu0 %v4841
  %v6384 = vpop.f32.mrf.mxu0
  %v6385 = vadd.f32 %v6301, %v6384
  %v6386 = vpop.f32.mrf.mxu0
  %6387 = vmatprep.mubr.f32.mxu0 0.0
  %6388 = vmatmul.mubr.f32.gmra.mxu0 %v4844
  %v6389 = vpop.f32.mrf.mxu0
  %v6390 = vadd.f32 %v6301, %v6389
  %v6391 = vpop.f32.mrf.mxu0
  %6392 = vmatprep.mubr.f32.mxu0 0.0
  %6393 = vmatmul.mubr.f32.gmra.mxu0 %v4847
  %v6394 = vpop.f32.mrf.mxu0
  %v6395 = vadd.f32 %v6301, %v6394
  %v6396 = vpop.f32.mrf.mxu0
  %6397 = vmatprep.mubr.f32.mxu0 0.0
  %6398 = vmatmul.mubr.f32.gmra.mxu0 %v4850
  %v6399 = vpop.f32.mrf.mxu0
  %v6400 = vadd.f32 %v6301, %v6399
  %v6401 = vpop.f32.mrf.mxu0
  %6402 = vmatprep.mubr.f32.mxu0 0.0
  %6403 = vmatmul.mubr.f32.gmra.mxu0 %v4853
  %v6404 = vpop.f32.mrf.mxu0
  %v6405 = vadd.f32 %v6301, %v6404
  %v6406 = vpop.f32.mrf.mxu0
  %6407 = vmatprep.mubr.f32.mxu0 0.0
  %6408 = vmatmul.mubr.f32.gmra.mxu0 %v4856
  %v6409 = vpop.f32.mrf.mxu0
  %v6410 = vadd.f32 %v6301, %v6409
  %v6411 = vpop.f32.mrf.mxu0
  %6412 = vmatprep.mubr.f32.mxu0 0.0
  %6413 = vmatmul.mubr.f32.gmra.mxu0 %v4859
  %v6414 = vpop.f32.mrf.mxu0
  %v6415 = vadd.f32 %v6301, %v6414
  %v6416 = vpop.f32.mrf.mxu0
  %6417 = vmatprep.mubr.f32.mxu0 0.0
  %6418 = vmatmul.mubr.f32.gmra.mxu0 %v4862
  %v6419 = vpop.f32.mrf.mxu0
  %v6420 = vadd.f32 %v6301, %v6419
  %v6421 = vpop.f32.mrf.mxu0
  %6422 = vmatprep.mubr.f32.mxu0 0.0
  %6423 = vmatmul.mubr.f32.gmra.mxu0 %v4865
  %v6424 = vpop.f32.mrf.mxu0
  %v6425 = vadd.f32 %v6301, %v6424
  %v6426 = vpop.f32.mrf.mxu0
  %6427 = vmatprep.mubr.f32.mxu0 0.0
  %6428 = vmatmul.mubr.f32.gmra.mxu0 %v4868
  %v6429 = vpop.f32.mrf.mxu0
  %v6430 = vadd.f32 %v6301, %v6429
  %v6431 = vpop.f32.mrf.mxu0
  %6432 = vmatprep.mubr.f32.mxu0 0.0
  %6433 = vmatmul.mubr.f32.gmra.mxu0 %v4871
  %v6434 = vpop.f32.mrf.mxu0
  %v6435 = vadd.f32 %v6301, %v6434
  %v6436 = vpop.f32.mrf.mxu0
  %6437 = vmatprep.mubr.f32.mxu0 0.0
  %6438 = vmatmul.mubr.f32.gmra.mxu0 %v4874
  %v6439 = vpop.f32.mrf.mxu0
  %v6440 = vadd.f32 %v6301, %v6439
  %v6441 = vpop.f32.mrf.mxu0
  %6442 = vmatprep.mubr.f32.mxu0 0.0
  %6443 = vmatmul.mubr.f32.gmra.mxu0 %v4877
  %v6444 = vpop.f32.mrf.mxu0
  %v6445 = vadd.f32 %v6301, %v6444
  %v6446 = vpop.f32.mrf.mxu0
  %6447 = vdwg.mxu0
  %s6448 = scalar_lea.vmem %s7, 96
  %v6449 = vld [vmem:[%s6448] sm:$0xff]
  %v6450 = vld [vmem:[%s6448 + $0x8] sm:$0xff]
  %v6451 = vld [vmem:[%s6448 + $0x10] sm:$0xff]
  %v6452 = vld [vmem:[%s6448 + $0x18] sm:$0xff]
  %s6453 = scalar_lea.vmem %s8, 3
  %v6454 = vld [vmem:[%s6453] sm:$0x1]
  %v6456 = vlaneseq
  %v6457 = vshrl.u32 %v6456, 7
  %v6458 = vsub.s32 0, %v6457
  %v6459 = vrot.slane %v6454, %v6458
  %6461 = vmatprep.subr.mxu0 0.0
  %6462 = vmatpush1.msra.mxu0 0.0
  %6463 = vmatprep.subr.mxu0 0.0
  %6464 = vmatpush1.msra.mxu0 0.0
  %6465 = vmatprep.subr.mxu0 0.0
  %6466 = vmatpush1.msra.mxu0 0.0
  %6467 = vmatprep.subr.mxu0 0.0
  %6468 = vmatpush1.msra.mxu0 0.0
  %6469 = vmatprep.subr.mxu0 0.0
  %6470 = vmatpush1.msra.mxu0 0.0
  %6471 = vmatprep.subr.mxu0 0.0
  %6472 = vmatpush1.msra.mxu0 0.0
  %6473 = vmatprep.subr.mxu0 0.0
  %6474 = vmatpush1.msra.mxu0 0.0
  %6475 = vmatprep.subr.mxu0 0.0
  %6476 = vmatpush1.msra.mxu0 0.0
  %6477 = vmatprep.subr.mxu0 0.0
  %6478 = vmatpush1.msra.mxu0 0.0
  %6479 = vmatprep.subr.mxu0 0.0
  %6480 = vmatpush1.msra.mxu0 0.0
  %6481 = vmatprep.subr.mxu0 0.0
  %6482 = vmatpush1.msra.mxu0 0.0
  %6483 = vmatprep.subr.mxu0 0.0
  %6484 = vmatpush1.msra.mxu0 0.0
  %6485 = vmatprep.subr.mxu0 0.0
  %6486 = vmatpush1.msra.mxu0 %v6452
  %6487 = vmatprep.subr.mxu0 0.0
  %6488 = vmatpush1.msra.mxu0 %v6451
  %6489 = vmatprep.subr.mxu0 0.0
  %6490 = vmatpush1.msra.mxu0 %v6450
  %6491 = vmatprep.subr.mxu0 0.0
  %6492 = vmatpush1.msra.mxu0 %v6449
  %6493 = vmatprep.subr.mxu0 0.0
  %6494 = vmatpush2.msra.mxu0 0.0
  %6495 = vmatprep.subr.mxu0 0.0
  %6496 = vmatpush2.msra.mxu0 0.0
  %6497 = vmatprep.subr.mxu0 0.0
  %6498 = vmatpush2.msra.mxu0 0.0
  %6499 = vmatprep.subr.mxu0 0.0
  %6500 = vmatpush2.msra.mxu0 0.0
  %6501 = vmatprep.subr.mxu0 0.0
  %6502 = vmatpush2.msra.mxu0 0.0
  %6503 = vmatprep.subr.mxu0 0.0
  %6504 = vmatpush2.msra.mxu0 0.0
  %6505 = vmatprep.subr.mxu0 0.0
  %6506 = vmatpush2.msra.mxu0 0.0
  %6507 = vmatprep.subr.mxu0 0.0
  %6508 = vmatpush2.msra.mxu0 0.0
  %6509 = vmatprep.subr.mxu0 0.0
  %6510 = vmatpush2.msra.mxu0 0.0
  %6511 = vmatprep.subr.mxu0 0.0
  %6512 = vmatpush2.msra.mxu0 0.0
  %6513 = vmatprep.subr.mxu0 0.0
  %6514 = vmatpush2.msra.mxu0 0.0
  %6515 = vmatprep.subr.mxu0 0.0
  %6516 = vmatpush2.msra.mxu0 0.0
  %6517 = vmatprep.subr.mxu0 0.0
  %6518 = vmatpush2.msra.mxu0 0.0
  %6519 = vmatprep.subr.mxu0 0.0
  %6520 = vmatpush2.msra.mxu0 0.0
  %6521 = vmatprep.subr.mxu0 0.0
  %6522 = vmatpush2.msra.mxu0 0.0
  %6523 = vmatprep.subr.mxu0 0.0
  %6524 = vmatpush2.msra.mxu0 0.0
  %6525 = vmatprep.mubr.f32.mxu0 0.0
  %6526 = vmatmul.mubr.f32.gmra.mxu0 %v4832
  %v6527 = vpop.f32.mrf.mxu0
  %v6528 = vadd.f32 %v6459, %v6527
  %v6529 = vpop.f32.mrf.mxu0
  %6530 = vmatprep.mubr.f32.mxu0 0.0
  %6531 = vmatmul.mubr.f32.gmra.mxu0 %v4835
  %v6532 = vpop.f32.mrf.mxu0
  %v6533 = vadd.f32 %v6459, %v6532
  %v6534 = vpop.f32.mrf.mxu0
  %6535 = vmatprep.mubr.f32.mxu0 0.0
  %6536 = vmatmul.mubr.f32.gmra.mxu0 %v4838
  %v6537 = vpop.f32.mrf.mxu0
  %v6538 = vadd.f32 %v6459, %v6537
  %v6539 = vpop.f32.mrf.mxu0
  %6540 = vmatprep.mubr.f32.mxu0 0.0
  %6541 = vmatmul.mubr.f32.gmra.mxu0 %v4841
  %v6542 = vpop.f32.mrf.mxu0
  %v6543 = vadd.f32 %v6459, %v6542
  %v6544 = vpop.f32.mrf.mxu0
  %6545 = vmatprep.mubr.f32.mxu0 0.0
  %6546 = vmatmul.mubr.f32.gmra.mxu0 %v4844
  %v6547 = vpop.f32.mrf.mxu0
  %v6548 = vadd.f32 %v6459, %v6547
  %v6549 = vpop.f32.mrf.mxu0
  %6550 = vmatprep.mubr.f32.mxu0 0.0
  %6551 = vmatmul.mubr.f32.gmra.mxu0 %v4847
  %v6552 = vpop.f32.mrf.mxu0
  %v6553 = vadd.f32 %v6459, %v6552
  %v6554 = vpop.f32.mrf.mxu0
  %6555 = vmatprep.mubr.f32.mxu0 0.0
  %6556 = vmatmul.mubr.f32.gmra.mxu0 %v4850
  %v6557 = vpop.f32.mrf.mxu0
  %v6558 = vadd.f32 %v6459, %v6557
  %v6559 = vpop.f32.mrf.mxu0
  %6560 = vmatprep.mubr.f32.mxu0 0.0
  %6561 = vmatmul.mubr.f32.gmra.mxu0 %v4853
  %v6562 = vpop.f32.mrf.mxu0
  %v6563 = vadd.f32 %v6459, %v6562
  %v6564 = vpop.f32.mrf.mxu0
  %6565 = vmatprep.mubr.f32.mxu0 0.0
  %6566 = vmatmul.mubr.f32.gmra.mxu0 %v4856
  %v6567 = vpop.f32.mrf.mxu0
  %v6568 = vadd.f32 %v6459, %v6567
  %v6569 = vpop.f32.mrf.mxu0
  %6570 = vmatprep.mubr.f32.mxu0 0.0
  %6571 = vmatmul.mubr.f32.gmra.mxu0 %v4859
  %v6572 = vpop.f32.mrf.mxu0
  %v6573 = vadd.f32 %v6459, %v6572
  %v6574 = vpop.f32.mrf.mxu0
  %6575 = vmatprep.mubr.f32.mxu0 0.0
  %6576 = vmatmul.mubr.f32.gmra.mxu0 %v4862
  %v6577 = vpop.f32.mrf.mxu0
  %v6578 = vadd.f32 %v6459, %v6577
  %v6579 = vpop.f32.mrf.mxu0
  %6580 = vmatprep.mubr.f32.mxu0 0.0
  %6581 = vmatmul.mubr.f32.gmra.mxu0 %v4865
  %v6582 = vpop.f32.mrf.mxu0
  %v6583 = vadd.f32 %v6459, %v6582
  %v6584 = vpop.f32.mrf.mxu0
  %6585 = vmatprep.mubr.f32.mxu0 0.0
  %6586 = vmatmul.mubr.f32.gmra.mxu0 %v4868
  %v6587 = vpop.f32.mrf.mxu0
  %v6588 = vadd.f32 %v6459, %v6587
  %v6589 = vpop.f32.mrf.mxu0
  %6590 = vmatprep.mubr.f32.mxu0 0.0
  %6591 = vmatmul.mubr.f32.gmra.mxu0 %v4871
  %v6592 = vpop.f32.mrf.mxu0
  %v6593 = vadd.f32 %v6459, %v6592
  %v6594 = vpop.f32.mrf.mxu0
  %6595 = vmatprep.mubr.f32.mxu0 0.0
  %6596 = vmatmul.mubr.f32.gmra.mxu0 %v4874
  %v6597 = vpop.f32.mrf.mxu0
  %v6598 = vadd.f32 %v6459, %v6597
  %v6599 = vpop.f32.mrf.mxu0
  %6600 = vmatprep.mubr.f32.mxu0 0.0
  %6601 = vmatmul.mubr.f32.gmra.mxu0 %v4877
  %v6602 = vpop.f32.mrf.mxu0
  %v6603 = vadd.f32 %v6459, %v6602
  %v6604 = vpop.f32.mrf.mxu0
  %6605 = vdwg.mxu0
  %v6607 = vsel %vm927, %v6212, 0
  %v6610 = vsel %vm927, %v6217, 0
  %v6613 = vsel %vm927, %v6222, 0
  %v6616 = vsel %vm927, %v6227, 0
  %v6619 = vsel %vm927, %v6232, 0
  %v6622 = vsel %vm927, %v6237, 0
  %v6625 = vsel %vm927, %v6242, 0
  %v6628 = vsel %vm927, %v6247, 0
  %v6631 = vsel %vm927, %v6370, 0
  %v6634 = vsel %vm927, %v6375, 0
  %v6637 = vsel %vm927, %v6380, 0
  %v6640 = vsel %vm927, %v6385, 0
  %v6643 = vsel %vm927, %v6390, 0
  %v6646 = vsel %vm927, %v6395, 0
  %v6649 = vsel %vm927, %v6400, 0
  %v6652 = vsel %vm927, %v6405, 0
  %6654 = vmatprep.subr.mxu0 0.0
  %6655 = vmatpush1.xpose.msra.mxu0 0.0
  %6656 = vmatprep.subr.mxu0 0.0
  %6657 = vmatpush1.xpose.msra.mxu0 0.0
  %6658 = vmatprep.subr.mxu0 0.0
  %6659 = vmatpush1.xpose.msra.mxu0 0.0
  %6660 = vmatprep.subr.mxu0 0.0
  %6661 = vmatpush1.xpose.msra.mxu0 0.0
  %6662 = vmatprep.subr.mxu0 0.0
  %6663 = vmatpush1.xpose.msra.mxu0 0.0
  %6664 = vmatprep.subr.mxu0 0.0
  %6665 = vmatpush1.xpose.msra.mxu0 0.0
  %6666 = vmatprep.subr.mxu0 0.0
  %6667 = vmatpush1.xpose.msra.mxu0 0.0
  %6668 = vmatprep.subr.mxu0 0.0
  %6669 = vmatpush1.xpose.msra.mxu0 0.0
  %6670 = vmatprep.subr.mxu0 0.0
  %6671 = vmatpush1.xpose.msra.mxu0 %v6652
  %6672 = vmatprep.subr.mxu0 0.0
  %6673 = vmatpush1.xpose.msra.mxu0 %v6649
  %6674 = vmatprep.subr.mxu0 0.0
  %6675 = vmatpush1.xpose.msra.mxu0 %v6646
  %6676 = vmatprep.subr.mxu0 0.0
  %6677 = vmatpush1.xpose.msra.mxu0 %v6643
  %6678 = vmatprep.subr.mxu0 0.0
  %6679 = vmatpush1.xpose.msra.mxu0 %v6640
  %6680 = vmatprep.subr.mxu0 0.0
  %6681 = vmatpush1.xpose.msra.mxu0 %v6637
  %6682 = vmatprep.subr.mxu0 0.0
  %6683 = vmatpush1.xpose.msra.mxu0 %v6634
  %6684 = vmatprep.subr.mxu0 0.0
  %6685 = vmatpush1.xpose.msra.mxu0 %v6631
  %6686 = vmatprep.subr.mxu0 0.0
  %6687 = vmatpush2.xpose.msra.mxu0 0.0
  %6688 = vmatprep.subr.mxu0 0.0
  %6689 = vmatpush2.xpose.msra.mxu0 0.0
  %6690 = vmatprep.subr.mxu0 0.0
  %6691 = vmatpush2.xpose.msra.mxu0 0.0
  %6692 = vmatprep.subr.mxu0 0.0
  %6693 = vmatpush2.xpose.msra.mxu0 0.0
  %6694 = vmatprep.subr.mxu0 0.0
  %6695 = vmatpush2.xpose.msra.mxu0 0.0
  %6696 = vmatprep.subr.mxu0 0.0
  %6697 = vmatpush2.xpose.msra.mxu0 0.0
  %6698 = vmatprep.subr.mxu0 0.0
  %6699 = vmatpush2.xpose.msra.mxu0 0.0
  %6700 = vmatprep.subr.mxu0 0.0
  %6701 = vmatpush2.xpose.msra.mxu0 0.0
  %6702 = vmatprep.subr.mxu0 0.0
  %6703 = vmatpush2.xpose.msra.mxu0 0.0
  %6704 = vmatprep.subr.mxu0 0.0
  %6705 = vmatpush2.xpose.msra.mxu0 0.0
  %6706 = vmatprep.subr.mxu0 0.0
  %6707 = vmatpush2.xpose.msra.mxu0 0.0
  %6708 = vmatprep.subr.mxu0 0.0
  %6709 = vmatpush2.xpose.msra.mxu0 0.0
  %6710 = vmatprep.subr.mxu0 0.0
  %6711 = vmatpush2.xpose.msra.mxu0 0.0
  %6712 = vmatprep.subr.mxu0 0.0
  %6713 = vmatpush2.xpose.msra.mxu0 0.0
  %6714 = vmatprep.subr.mxu0 0.0
  %6715 = vmatpush2.xpose.msra.mxu0 0.0
  %6716 = vmatprep.subr.mxu0 0.0
  %6717 = vmatpush2.xpose.msra.mxu0 0.0
  %6718 = vmatprep.mubr.f32.mxu0 0.0
  %6719 = vmatmul.mubr.f32.gmra.mxu0 %v6607
  %v6720 = vpop.f32.mrf.mxu0
  %v6721 = vadd.f32 0.0, %v6720
  %v6722 = vpop.f32.mrf.mxu0
  %6723 = vmatprep.mubr.f32.mxu0 0.0
  %6724 = vmatmul.mubr.f32.gmra.mxu0 %v6610
  %v6725 = vpop.f32.mrf.mxu0
  %v6726 = vadd.f32 0.0, %v6725
  %v6727 = vpop.f32.mrf.mxu0
  %6728 = vmatprep.mubr.f32.mxu0 0.0
  %6729 = vmatmul.mubr.f32.gmra.mxu0 %v6613
  %v6730 = vpop.f32.mrf.mxu0
  %v6731 = vadd.f32 0.0, %v6730
  %v6732 = vpop.f32.mrf.mxu0
  %6733 = vmatprep.mubr.f32.mxu0 0.0
  %6734 = vmatmul.mubr.f32.gmra.mxu0 %v6616
  %v6735 = vpop.f32.mrf.mxu0
  %v6736 = vadd.f32 0.0, %v6735
  %v6737 = vpop.f32.mrf.mxu0
  %6738 = vmatprep.mubr.f32.mxu0 0.0
  %6739 = vmatmul.mubr.f32.gmra.mxu0 %v6619
  %v6740 = vpop.f32.mrf.mxu0
  %v6741 = vadd.f32 0.0, %v6740
  %v6742 = vpop.f32.mrf.mxu0
  %6743 = vmatprep.mubr.f32.mxu0 0.0
  %6744 = vmatmul.mubr.f32.gmra.mxu0 %v6622
  %v6745 = vpop.f32.mrf.mxu0
  %v6746 = vadd.f32 0.0, %v6745
  %v6747 = vpop.f32.mrf.mxu0
  %6748 = vmatprep.mubr.f32.mxu0 0.0
  %6749 = vmatmul.mubr.f32.gmra.mxu0 %v6625
  %v6750 = vpop.f32.mrf.mxu0
  %v6751 = vadd.f32 0.0, %v6750
  %v6752 = vpop.f32.mrf.mxu0
  %6753 = vmatprep.mubr.f32.mxu0 0.0
  %6754 = vmatmul.mubr.f32.gmra.mxu0 %v6628
  %v6755 = vpop.f32.mrf.mxu0
  %v6756 = vadd.f32 0.0, %v6755
  %v6757 = vpop.f32.mrf.mxu0
  %6758 = vdwg.mxu0
  %v6760 = vsel %vm927, %v6252, 0
  %v6763 = vsel %vm927, %v6257, 0
  %v6766 = vsel %vm927, %v6262, 0
  %v6769 = vsel %vm927, %v6267, 0
  %v6772 = vsel %vm927, %v6272, 0
  %v6775 = vsel %vm927, %v6277, 0
  %v6778 = vsel %vm927, %v6282, 0
  %v6781 = vsel %vm927, %v6287, 0
  %v6784 = vsel %vm927, %v6410, 0
  %v6787 = vsel %vm927, %v6415, 0
  %v6790 = vsel %vm927, %v6420, 0
  %v6793 = vsel %vm927, %v6425, 0
  %v6796 = vsel %vm927, %v6430, 0
  %v6799 = vsel %vm927, %v6435, 0
  %v6802 = vsel %vm927, %v6440, 0
  %v6805 = vsel %vm927, %v6445, 0
  %6807 = vmatprep.subr.mxu0 0.0
  %6808 = vmatpush1.xpose.msra.mxu0 0.0
  %6809 = vmatprep.subr.mxu0 0.0
  %6810 = vmatpush1.xpose.msra.mxu0 0.0
  %6811 = vmatprep.subr.mxu0 0.0
  %6812 = vmatpush1.xpose.msra.mxu0 0.0
  %6813 = vmatprep.subr.mxu0 0.0
  %6814 = vmatpush1.xpose.msra.mxu0 0.0
  %6815 = vmatprep.subr.mxu0 0.0
  %6816 = vmatpush1.xpose.msra.mxu0 0.0
  %6817 = vmatprep.subr.mxu0 0.0
  %6818 = vmatpush1.xpose.msra.mxu0 0.0
  %6819 = vmatprep.subr.mxu0 0.0
  %6820 = vmatpush1.xpose.msra.mxu0 0.0
  %6821 = vmatprep.subr.mxu0 0.0
  %6822 = vmatpush1.xpose.msra.mxu0 0.0
  %6823 = vmatprep.subr.mxu0 0.0
  %6824 = vmatpush1.xpose.msra.mxu0 %v6805
  %6825 = vmatprep.subr.mxu0 0.0
  %6826 = vmatpush1.xpose.msra.mxu0 %v6802
  %6827 = vmatprep.subr.mxu0 0.0
  %6828 = vmatpush1.xpose.msra.mxu0 %v6799
  %6829 = vmatprep.subr.mxu0 0.0
  %6830 = vmatpush1.xpose.msra.mxu0 %v6796
  %6831 = vmatprep.subr.mxu0 0.0
  %6832 = vmatpush1.xpose.msra.mxu0 %v6793
  %6833 = vmatprep.subr.mxu0 0.0
  %6834 = vmatpush1.xpose.msra.mxu0 %v6790
  %6835 = vmatprep.subr.mxu0 0.0
  %6836 = vmatpush1.xpose.msra.mxu0 %v6787
  %6837 = vmatprep.subr.mxu0 0.0
  %6838 = vmatpush1.xpose.msra.mxu0 %v6784
  %6839 = vmatprep.subr.mxu0 0.0
  %6840 = vmatpush2.xpose.msra.mxu0 0.0
  %6841 = vmatprep.subr.mxu0 0.0
  %6842 = vmatpush2.xpose.msra.mxu0 0.0
  %6843 = vmatprep.subr.mxu0 0.0
  %6844 = vmatpush2.xpose.msra.mxu0 0.0
  %6845 = vmatprep.subr.mxu0 0.0
  %6846 = vmatpush2.xpose.msra.mxu0 0.0
  %6847 = vmatprep.subr.mxu0 0.0
  %6848 = vmatpush2.xpose.msra.mxu0 0.0
  %6849 = vmatprep.subr.mxu0 0.0
  %6850 = vmatpush2.xpose.msra.mxu0 0.0
  %6851 = vmatprep.subr.mxu0 0.0
  %6852 = vmatpush2.xpose.msra.mxu0 0.0
  %6853 = vmatprep.subr.mxu0 0.0
  %6854 = vmatpush2.xpose.msra.mxu0 0.0
  %6855 = vmatprep.subr.mxu0 0.0
  %6856 = vmatpush2.xpose.msra.mxu0 0.0
  %6857 = vmatprep.subr.mxu0 0.0
  %6858 = vmatpush2.xpose.msra.mxu0 0.0
  %6859 = vmatprep.subr.mxu0 0.0
  %6860 = vmatpush2.xpose.msra.mxu0 0.0
  %6861 = vmatprep.subr.mxu0 0.0
  %6862 = vmatpush2.xpose.msra.mxu0 0.0
  %6863 = vmatprep.subr.mxu0 0.0
  %6864 = vmatpush2.xpose.msra.mxu0 0.0
  %6865 = vmatprep.subr.mxu0 0.0
  %6866 = vmatpush2.xpose.msra.mxu0 0.0
  %6867 = vmatprep.subr.mxu0 0.0
  %6868 = vmatpush2.xpose.msra.mxu0 0.0
  %6869 = vmatprep.subr.mxu0 0.0
  %6870 = vmatpush2.xpose.msra.mxu0 0.0
  %6871 = vmatprep.mubr.f32.mxu0 0.0
  %6872 = vmatmul.mubr.f32.gmra.mxu0 %v6760
  %v6873 = vpop.f32.mrf.mxu0
  %v6874 = vadd.f32 0.0, %v6873
  %v6875 = vpop.f32.mrf.mxu0
  %6876 = vmatprep.mubr.f32.mxu0 0.0
  %6877 = vmatmul.mubr.f32.gmra.mxu0 %v6763
  %v6878 = vpop.f32.mrf.mxu0
  %v6879 = vadd.f32 0.0, %v6878
  %v6880 = vpop.f32.mrf.mxu0
  %6881 = vmatprep.mubr.f32.mxu0 0.0
  %6882 = vmatmul.mubr.f32.gmra.mxu0 %v6766
  %v6883 = vpop.f32.mrf.mxu0
  %v6884 = vadd.f32 0.0, %v6883
  %v6885 = vpop.f32.mrf.mxu0
  %6886 = vmatprep.mubr.f32.mxu0 0.0
  %6887 = vmatmul.mubr.f32.gmra.mxu0 %v6769
  %v6888 = vpop.f32.mrf.mxu0
  %v6889 = vadd.f32 0.0, %v6888
  %v6890 = vpop.f32.mrf.mxu0
  %6891 = vmatprep.mubr.f32.mxu0 0.0
  %6892 = vmatmul.mubr.f32.gmra.mxu0 %v6772
  %v6893 = vpop.f32.mrf.mxu0
  %v6894 = vadd.f32 0.0, %v6893
  %v6895 = vpop.f32.mrf.mxu0
  %6896 = vmatprep.mubr.f32.mxu0 0.0
  %6897 = vmatmul.mubr.f32.gmra.mxu0 %v6775
  %v6898 = vpop.f32.mrf.mxu0
  %v6899 = vadd.f32 0.0, %v6898
  %v6900 = vpop.f32.mrf.mxu0
  %6901 = vmatprep.mubr.f32.mxu0 0.0
  %6902 = vmatmul.mubr.f32.gmra.mxu0 %v6778
  %v6903 = vpop.f32.mrf.mxu0
  %v6904 = vadd.f32 0.0, %v6903
  %v6905 = vpop.f32.mrf.mxu0
  %6906 = vmatprep.mubr.f32.mxu0 0.0
  %6907 = vmatmul.mubr.f32.gmra.mxu0 %v6781
  %v6908 = vpop.f32.mrf.mxu0
  %v6909 = vadd.f32 0.0, %v6908
  %v6910 = vpop.f32.mrf.mxu0
  %6911 = vdwg.mxu0
  %v6912 = vmul.f32 %v6721, 0.25
  %v6913 = vmul.f32 %v6726, 0.25
  %v6914 = vmul.f32 %v6731, 0.25
  %v6915 = vmul.f32 %v6736, 0.25
  %v6916 = vmul.f32 %v6741, 0.25
  %v6917 = vmul.f32 %v6746, 0.25
  %v6918 = vmul.f32 %v6751, 0.25
  %v6919 = vmul.f32 %v6756, 0.25
  %v6920 = vmul.f32 %v6874, 0.25
  %v6921 = vmul.f32 %v6879, 0.25
  %v6922 = vmul.f32 %v6884, 0.25
  %v6923 = vmul.f32 %v6889, 0.25
  %v6924 = vmul.f32 %v6894, 0.25
  %v6925 = vmul.f32 %v6899, 0.25
  %v6926 = vmul.f32 %v6904, 0.25
  %v6927 = vmul.f32 %v6909, 0.25
  %v6928 = vadd.f32 %v6912, %v403
  %v6929 = vadd.f32 %v6913, %v404
  %v6930 = vadd.f32 %v6914, %v405
  %v6931 = vadd.f32 %v6915, %v406
  %v6932 = vadd.f32 %v6916, %v407
  %v6933 = vadd.f32 %v6917, %v408
  %v6934 = vadd.f32 %v6918, %v409
  %v6935 = vadd.f32 %v6919, %v410
  %v6936 = vadd.f32 %v6920, %v403
  %v6937 = vadd.f32 %v6921, %v404
  %v6938 = vadd.f32 %v6922, %v405
  %v6939 = vadd.f32 %v6923, %v406
  %v6940 = vadd.f32 %v6924, %v407
  %v6941 = vadd.f32 %v6925, %v408
  %v6942 = vadd.f32 %v6926, %v409
  %v6943 = vadd.f32 %v6927, %v410
  %v6944 = vsel %vm1266, %v6928, -inf
  %6945 = vmax.xlane.f32.xlu0 %v6944
  %v6946 = vpop.xlane.xlu0 %6945
  %v6947 = vsel %vm1266, %v6929, -inf
  %6948 = vmax.xlane.f32.xlu0 %v6947
  %v6949 = vpop.xlane.xlu0 %6948
  %v6950 = vsel %vm1266, %v6930, -inf
  %6951 = vmax.xlane.f32.xlu0 %v6950
  %v6952 = vpop.xlane.xlu0 %6951
  %v6953 = vsel %vm1266, %v6931, -inf
  %6954 = vmax.xlane.f32.xlu0 %v6953
  %v6955 = vpop.xlane.xlu0 %6954
  %v6956 = vsel %vm1266, %v6932, -inf
  %6957 = vmax.xlane.f32.xlu0 %v6956
  %v6958 = vpop.xlane.xlu0 %6957
  %v6959 = vsel %vm1266, %v6933, -inf
  %6960 = vmax.xlane.f32.xlu0 %v6959
  %v6961 = vpop.xlane.xlu0 %6960
  %v6962 = vsel %vm1266, %v6934, -inf
  %6963 = vmax.xlane.f32.xlu0 %v6962
  %v6964 = vpop.xlane.xlu0 %6963
  %v6965 = vsel %vm1266, %v6935, -inf
  %6966 = vmax.xlane.f32.xlu0 %v6965
  %v6967 = vpop.xlane.xlu0 %6966
  %v6968 = vsel %vm1266, %v6936, -inf
  %6969 = vmax.xlane.f32.xlu0 %v6968
  %v6970 = vpop.xlane.xlu0 %6969
  %v6971 = vsel %vm1266, %v6937, -inf
  %6972 = vmax.xlane.f32.xlu0 %v6971
  %v6973 = vpop.xlane.xlu0 %6972
  %v6974 = vsel %vm1266, %v6938, -inf
  %6975 = vmax.xlane.f32.xlu0 %v6974
  %v6976 = vpop.xlane.xlu0 %6975
  %v6977 = vsel %vm1266, %v6939, -inf
  %6978 = vmax.xlane.f32.xlu0 %v6977
  %v6979 = vpop.xlane.xlu0 %6978
  %v6980 = vsel %vm1266, %v6940, -inf
  %6981 = vmax.xlane.f32.xlu0 %v6980
  %v6982 = vpop.xlane.xlu0 %6981
  %v6983 = vsel %vm1266, %v6941, -inf
  %6984 = vmax.xlane.f32.xlu0 %v6983
  %v6985 = vpop.xlane.xlu0 %6984
  %v6986 = vsel %vm1266, %v6942, -inf
  %6987 = vmax.xlane.f32.xlu0 %v6986
  %v6988 = vpop.xlane.xlu0 %6987
  %v6989 = vsel %vm1266, %v6943, -inf
  %6990 = vmax.xlane.f32.xlu0 %v6989
  %v6991 = vpop.xlane.xlu0 %6990
  %v6992 = vsub.f32 %v6928, %v6946
  %v6993 = vsub.f32 %v6929, %v6949
  %v6994 = vsub.f32 %v6930, %v6952
  %v6995 = vsub.f32 %v6931, %v6955
  %v6996 = vsub.f32 %v6932, %v6958
  %v6997 = vsub.f32 %v6933, %v6961
  %v6998 = vsub.f32 %v6934, %v6964
  %v6999 = vsub.f32 %v6935, %v6967
  %v7000 = vsub.f32 %v6936, %v6970
  %v7001 = vsub.f32 %v6937, %v6973
  %v7002 = vsub.f32 %v6938, %v6976
  %v7003 = vsub.f32 %v6939, %v6979
  %v7004 = vsub.f32 %v6940, %v6982
  %v7005 = vsub.f32 %v6941, %v6985
  %v7006 = vsub.f32 %v6942, %v6988
  %v7007 = vsub.f32 %v6943, %v6991
  %v7008 = vmul.f32 %v6992, 1.442695
  %v7009 = vpow.pop %v7008
  %v7010 = vmul.f32 %v6993, 1.442695
  %v7011 = vpow.pop %v7010
  %v7012 = vmul.f32 %v6994, 1.442695
  %v7013 = vpow.pop %v7012
  %v7014 = vmul.f32 %v6995, 1.442695
  %v7015 = vpow.pop %v7014
  %v7016 = vmul.f32 %v6996, 1.442695
  %v7017 = vpow.pop %v7016
  %v7018 = vmul.f32 %v6997, 1.442695
  %v7019 = vpow.pop %v7018
  %v7020 = vmul.f32 %v6998, 1.442695
  %v7021 = vpow.pop %v7020
  %v7022 = vmul.f32 %v6999, 1.442695
  %v7023 = vpow.pop %v7022
  %v7024 = vmul.f32 %v7000, 1.442695
  %v7025 = vpow.pop %v7024
  %v7026 = vmul.f32 %v7001, 1.442695
  %v7027 = vpow.pop %v7026
  %v7028 = vmul.f32 %v7002, 1.442695
  %v7029 = vpow.pop %v7028
  %v7030 = vmul.f32 %v7003, 1.442695
  %v7031 = vpow.pop %v7030
  %v7032 = vmul.f32 %v7004, 1.442695
  %v7033 = vpow.pop %v7032
  %v7034 = vmul.f32 %v7005, 1.442695
  %v7035 = vpow.pop %v7034
  %v7036 = vmul.f32 %v7006, 1.442695
  %v7037 = vpow.pop %v7036
  %v7038 = vmul.f32 %v7007, 1.442695
  %v7039 = vpow.pop %v7038
  %v7040 = vsel %vm1266, %v7009, 0.0
  %7041 = vadd.xlane.f32.xlu0 %v7040
  %v7042 = vpop.xlane.xlu0 %7041
  %v7043 = vsel %vm1266, %v7011, 0.0
  %7044 = vadd.xlane.f32.xlu0 %v7043
  %v7045 = vpop.xlane.xlu0 %7044
  %v7046 = vsel %vm1266, %v7013, 0.0
  %7047 = vadd.xlane.f32.xlu0 %v7046
  %v7048 = vpop.xlane.xlu0 %7047
  %v7049 = vsel %vm1266, %v7015, 0.0
  %7050 = vadd.xlane.f32.xlu0 %v7049
  %v7051 = vpop.xlane.xlu0 %7050
  %v7052 = vsel %vm1266, %v7017, 0.0
  %7053 = vadd.xlane.f32.xlu0 %v7052
  %v7054 = vpop.xlane.xlu0 %7053
  %v7055 = vsel %vm1266, %v7019, 0.0
  %7056 = vadd.xlane.f32.xlu0 %v7055
  %v7057 = vpop.xlane.xlu0 %7056
  %v7058 = vsel %vm1266, %v7021, 0.0
  %7059 = vadd.xlane.f32.xlu0 %v7058
  %v7060 = vpop.xlane.xlu0 %7059
  %v7061 = vsel %vm1266, %v7023, 0.0
  %7062 = vadd.xlane.f32.xlu0 %v7061
  %v7063 = vpop.xlane.xlu0 %7062
  %v7064 = vsel %vm1266, %v7025, 0.0
  %7065 = vadd.xlane.f32.xlu0 %v7064
  %v7066 = vpop.xlane.xlu0 %7065
  %v7067 = vsel %vm1266, %v7027, 0.0
  %7068 = vadd.xlane.f32.xlu0 %v7067
  %v7069 = vpop.xlane.xlu0 %7068
  %v7070 = vsel %vm1266, %v7029, 0.0
  %7071 = vadd.xlane.f32.xlu0 %v7070
  %v7072 = vpop.xlane.xlu0 %7071
  %v7073 = vsel %vm1266, %v7031, 0.0
  %7074 = vadd.xlane.f32.xlu0 %v7073
  %v7075 = vpop.xlane.xlu0 %7074
  %v7076 = vsel %vm1266, %v7033, 0.0
  %7077 = vadd.xlane.f32.xlu0 %v7076
  %v7078 = vpop.xlane.xlu0 %7077
  %v7079 = vsel %vm1266, %v7035, 0.0
  %7080 = vadd.xlane.f32.xlu0 %v7079
  %v7081 = vpop.xlane.xlu0 %7080
  %v7082 = vsel %vm1266, %v7037, 0.0
  %7083 = vadd.xlane.f32.xlu0 %v7082
  %v7084 = vpop.xlane.xlu0 %7083
  %v7085 = vsel %vm1266, %v7039, 0.0
  %7086 = vadd.xlane.f32.xlu0 %v7085
  %v7087 = vpop.xlane.xlu0 %7086
  %v7088 = vrcp.pop %v7042
  %v7089 = vrcp.pop %v7045
  %v7090 = vrcp.pop %v7048
  %v7091 = vrcp.pop %v7051
  %v7092 = vrcp.pop %v7054
  %v7093 = vrcp.pop %v7057
  %v7094 = vrcp.pop %v7060
  %v7095 = vrcp.pop %v7063
  %v7096 = vrcp.pop %v7066
  %v7097 = vrcp.pop %v7069
  %v7098 = vrcp.pop %v7072
  %v7099 = vrcp.pop %v7075
  %v7100 = vrcp.pop %v7078
  %v7101 = vrcp.pop %v7081
  %v7102 = vrcp.pop %v7084
  %v7103 = vrcp.pop %v7087
  %v7104 = vmul.f32 %v7009, %v7088
  %v7105 = vmul.f32 %v7011, %v7089
  %v7106 = vmul.f32 %v7013, %v7090
  %v7107 = vmul.f32 %v7015, %v7091
  %v7108 = vmul.f32 %v7017, %v7092
  %v7109 = vmul.f32 %v7019, %v7093
  %v7110 = vmul.f32 %v7021, %v7094
  %v7111 = vmul.f32 %v7023, %v7095
  %v7112 = vmul.f32 %v7025, %v7096
  %v7113 = vmul.f32 %v7027, %v7097
  %v7114 = vmul.f32 %v7029, %v7098
  %v7115 = vmul.f32 %v7031, %v7099
  %v7116 = vmul.f32 %v7033, %v7100
  %v7117 = vmul.f32 %v7035, %v7101
  %v7118 = vmul.f32 %v7037, %v7102
  %v7119 = vmul.f32 %v7039, %v7103
  %s7120 = scalar_lea.vmem %s20, 384
  %7121 = vst.msk [vmem:[%s7120] sm:$0xff] %vm1266, %v7104
  %7122 = vst.msk [vmem:[%s7120 + $0x8] sm:$0xff] %vm1266, %v7105
  %7123 = vst.msk [vmem:[%s7120 + $0x10] sm:$0xff] %vm1266, %v7106
  %7124 = vst.msk [vmem:[%s7120 + $0x18] sm:$0xff] %vm1266, %v7107
  %7125 = vst.msk [vmem:[%s7120 + $0x20] sm:$0xff] %vm1266, %v7108
  %7126 = vst.msk [vmem:[%s7120 + $0x28] sm:$0xff] %vm1266, %v7109
  %7127 = vst.msk [vmem:[%s7120 + $0x30] sm:$0xff] %vm1266, %v7110
  %7128 = vst.msk [vmem:[%s7120 + $0x38] sm:$0xff] %vm1266, %v7111
  %7129 = vst.msk [vmem:[%s7120 + $0x40] sm:$0xff] %vm1266, %v7112
  %7130 = vst.msk [vmem:[%s7120 + $0x48] sm:$0xff] %vm1266, %v7113
  %7131 = vst.msk [vmem:[%s7120 + $0x50] sm:$0xff] %vm1266, %v7114
  %7132 = vst.msk [vmem:[%s7120 + $0x58] sm:$0xff] %vm1266, %v7115
  %7133 = vst.msk [vmem:[%s7120 + $0x60] sm:$0xff] %vm1266, %v7116
  %7134 = vst.msk [vmem:[%s7120 + $0x68] sm:$0xff] %vm1266, %v7117
  %7135 = vst.msk [vmem:[%s7120 + $0x70] sm:$0xff] %vm1266, %v7118
  %7136 = vst.msk [vmem:[%s7120 + $0x78] sm:$0xff] %vm1266, %v7119
  %v7138 = vsel %vm1266, %v7104, 0
  %v7141 = vsel %vm1266, %v7105, 0
  %v7144 = vsel %vm1266, %v7106, 0
  %v7147 = vsel %vm1266, %v7107, 0
  %v7150 = vsel %vm1266, %v7108, 0
  %v7153 = vsel %vm1266, %v7109, 0
  %v7156 = vsel %vm1266, %v7110, 0
  %v7159 = vsel %vm1266, %v7111, 0
  %7161 = vmatprep.subr.mxu0 0.0
  %7162 = vmatpush1.msra.mxu0 0.0
  %7163 = vmatprep.subr.mxu0 0.0
  %7164 = vmatpush1.msra.mxu0 0.0
  %7165 = vmatprep.subr.mxu0 0.0
  %7166 = vmatpush1.msra.mxu0 0.0
  %7167 = vmatprep.subr.mxu0 0.0
  %7168 = vmatpush1.msra.mxu0 0.0
  %7169 = vmatprep.subr.mxu0 0.0
  %7170 = vmatpush1.msra.mxu0 0.0
  %7171 = vmatprep.subr.mxu0 0.0
  %7172 = vmatpush1.msra.mxu0 0.0
  %7173 = vmatprep.subr.mxu0 0.0
  %7174 = vmatpush1.msra.mxu0 0.0
  %7175 = vmatprep.subr.mxu0 0.0
  %7176 = vmatpush1.msra.mxu0 0.0
  %7177 = vmatprep.subr.mxu0 0.0
  %7178 = vmatpush1.msra.mxu0 %v6563
  %7179 = vmatprep.subr.mxu0 0.0
  %7180 = vmatpush1.msra.mxu0 %v6558
  %7181 = vmatprep.subr.mxu0 0.0
  %7182 = vmatpush1.msra.mxu0 %v6553
  %7183 = vmatprep.subr.mxu0 0.0
  %7184 = vmatpush1.msra.mxu0 %v6548
  %7185 = vmatprep.subr.mxu0 0.0
  %7186 = vmatpush1.msra.mxu0 %v6543
  %7187 = vmatprep.subr.mxu0 0.0
  %7188 = vmatpush1.msra.mxu0 %v6538
  %7189 = vmatprep.subr.mxu0 0.0
  %7190 = vmatpush1.msra.mxu0 %v6533
  %7191 = vmatprep.subr.mxu0 0.0
  %7192 = vmatpush1.msra.mxu0 %v6528
  %7193 = vmatprep.subr.mxu0 0.0
  %7194 = vmatpush2.msra.mxu0 0.0
  %7195 = vmatprep.subr.mxu0 0.0
  %7196 = vmatpush2.msra.mxu0 0.0
  %7197 = vmatprep.subr.mxu0 0.0
  %7198 = vmatpush2.msra.mxu0 0.0
  %7199 = vmatprep.subr.mxu0 0.0
  %7200 = vmatpush2.msra.mxu0 0.0
  %7201 = vmatprep.subr.mxu0 0.0
  %7202 = vmatpush2.msra.mxu0 0.0
  %7203 = vmatprep.subr.mxu0 0.0
  %7204 = vmatpush2.msra.mxu0 0.0
  %7205 = vmatprep.subr.mxu0 0.0
  %7206 = vmatpush2.msra.mxu0 0.0
  %7207 = vmatprep.subr.mxu0 0.0
  %7208 = vmatpush2.msra.mxu0 0.0
  %7209 = vmatprep.subr.mxu0 0.0
  %7210 = vmatpush2.msra.mxu0 0.0
  %7211 = vmatprep.subr.mxu0 0.0
  %7212 = vmatpush2.msra.mxu0 0.0
  %7213 = vmatprep.subr.mxu0 0.0
  %7214 = vmatpush2.msra.mxu0 0.0
  %7215 = vmatprep.subr.mxu0 0.0
  %7216 = vmatpush2.msra.mxu0 0.0
  %7217 = vmatprep.subr.mxu0 0.0
  %7218 = vmatpush2.msra.mxu0 0.0
  %7219 = vmatprep.subr.mxu0 0.0
  %7220 = vmatpush2.msra.mxu0 0.0
  %7221 = vmatprep.subr.mxu0 0.0
  %7222 = vmatpush2.msra.mxu0 0.0
  %7223 = vmatprep.subr.mxu0 0.0
  %7224 = vmatpush2.msra.mxu0 0.0
  %7225 = vmatprep.mubr.f32.mxu0 0.0
  %7226 = vmatmul.mubr.f32.gmra.mxu0 %v7138
  %v7227 = vpop.f32.mrf.mxu0
  %v7228 = vadd.f32 0.0, %v7227
  %v7229 = vpop.f32.mrf.mxu0
  %7230 = vmatprep.mubr.f32.mxu0 0.0
  %7231 = vmatmul.mubr.f32.gmra.mxu0 %v7141
  %v7232 = vpop.f32.mrf.mxu0
  %v7233 = vadd.f32 0.0, %v7232
  %v7234 = vpop.f32.mrf.mxu0
  %7235 = vmatprep.mubr.f32.mxu0 0.0
  %7236 = vmatmul.mubr.f32.gmra.mxu0 %v7144
  %v7237 = vpop.f32.mrf.mxu0
  %v7238 = vadd.f32 0.0, %v7237
  %v7239 = vpop.f32.mrf.mxu0
  %7240 = vmatprep.mubr.f32.mxu0 0.0
  %7241 = vmatmul.mubr.f32.gmra.mxu0 %v7147
  %v7242 = vpop.f32.mrf.mxu0
  %v7243 = vadd.f32 0.0, %v7242
  %v7244 = vpop.f32.mrf.mxu0
  %7245 = vmatprep.mubr.f32.mxu0 0.0
  %7246 = vmatmul.mubr.f32.gmra.mxu0 %v7150
  %v7247 = vpop.f32.mrf.mxu0
  %v7248 = vadd.f32 0.0, %v7247
  %v7249 = vpop.f32.mrf.mxu0
  %7250 = vmatprep.mubr.f32.mxu0 0.0
  %7251 = vmatmul.mubr.f32.gmra.mxu0 %v7153
  %v7252 = vpop.f32.mrf.mxu0
  %v7253 = vadd.f32 0.0, %v7252
  %v7254 = vpop.f32.mrf.mxu0
  %7255 = vmatprep.mubr.f32.mxu0 0.0
  %7256 = vmatmul.mubr.f32.gmra.mxu0 %v7156
  %v7257 = vpop.f32.mrf.mxu0
  %v7258 = vadd.f32 0.0, %v7257
  %v7259 = vpop.f32.mrf.mxu0
  %7260 = vmatprep.mubr.f32.mxu0 0.0
  %7261 = vmatmul.mubr.f32.gmra.mxu0 %v7159
  %v7262 = vpop.f32.mrf.mxu0
  %v7263 = vadd.f32 0.0, %v7262
  %v7264 = vpop.f32.mrf.mxu0
  %7265 = vdwg.mxu0
  %v7267 = vsel %vm1266, %v7112, 0
  %v7270 = vsel %vm1266, %v7113, 0
  %v7273 = vsel %vm1266, %v7114, 0
  %v7276 = vsel %vm1266, %v7115, 0
  %v7279 = vsel %vm1266, %v7116, 0
  %v7282 = vsel %vm1266, %v7117, 0
  %v7285 = vsel %vm1266, %v7118, 0
  %v7288 = vsel %vm1266, %v7119, 0
  %7290 = vmatprep.subr.mxu0 0.0
  %7291 = vmatpush1.msra.mxu0 0.0
  %7292 = vmatprep.subr.mxu0 0.0
  %7293 = vmatpush1.msra.mxu0 0.0
  %7294 = vmatprep.subr.mxu0 0.0
  %7295 = vmatpush1.msra.mxu0 0.0
  %7296 = vmatprep.subr.mxu0 0.0
  %7297 = vmatpush1.msra.mxu0 0.0
  %7298 = vmatprep.subr.mxu0 0.0
  %7299 = vmatpush1.msra.mxu0 0.0
  %7300 = vmatprep.subr.mxu0 0.0
  %7301 = vmatpush1.msra.mxu0 0.0
  %7302 = vmatprep.subr.mxu0 0.0
  %7303 = vmatpush1.msra.mxu0 0.0
  %7304 = vmatprep.subr.mxu0 0.0
  %7305 = vmatpush1.msra.mxu0 0.0
  %7306 = vmatprep.subr.mxu0 0.0
  %7307 = vmatpush1.msra.mxu0 %v6603
  %7308 = vmatprep.subr.mxu0 0.0
  %7309 = vmatpush1.msra.mxu0 %v6598
  %7310 = vmatprep.subr.mxu0 0.0
  %7311 = vmatpush1.msra.mxu0 %v6593
  %7312 = vmatprep.subr.mxu0 0.0
  %7313 = vmatpush1.msra.mxu0 %v6588
  %7314 = vmatprep.subr.mxu0 0.0
  %7315 = vmatpush1.msra.mxu0 %v6583
  %7316 = vmatprep.subr.mxu0 0.0
  %7317 = vmatpush1.msra.mxu0 %v6578
  %7318 = vmatprep.subr.mxu0 0.0
  %7319 = vmatpush1.msra.mxu0 %v6573
  %7320 = vmatprep.subr.mxu0 0.0
  %7321 = vmatpush1.msra.mxu0 %v6568
  %7322 = vmatprep.subr.mxu0 0.0
  %7323 = vmatpush2.msra.mxu0 0.0
  %7324 = vmatprep.subr.mxu0 0.0
  %7325 = vmatpush2.msra.mxu0 0.0
  %7326 = vmatprep.subr.mxu0 0.0
  %7327 = vmatpush2.msra.mxu0 0.0
  %7328 = vmatprep.subr.mxu0 0.0
  %7329 = vmatpush2.msra.mxu0 0.0
  %7330 = vmatprep.subr.mxu0 0.0
  %7331 = vmatpush2.msra.mxu0 0.0
  %7332 = vmatprep.subr.mxu0 0.0
  %7333 = vmatpush2.msra.mxu0 0.0
  %7334 = vmatprep.subr.mxu0 0.0
  %7335 = vmatpush2.msra.mxu0 0.0
  %7336 = vmatprep.subr.mxu0 0.0
  %7337 = vmatpush2.msra.mxu0 0.0
  %7338 = vmatprep.subr.mxu0 0.0
  %7339 = vmatpush2.msra.mxu0 0.0
  %7340 = vmatprep.subr.mxu0 0.0
  %7341 = vmatpush2.msra.mxu0 0.0
  %7342 = vmatprep.subr.mxu0 0.0
  %7343 = vmatpush2.msra.mxu0 0.0
  %7344 = vmatprep.subr.mxu0 0.0
  %7345 = vmatpush2.msra.mxu0 0.0
  %7346 = vmatprep.subr.mxu0 0.0
  %7347 = vmatpush2.msra.mxu0 0.0
  %7348 = vmatprep.subr.mxu0 0.0
  %7349 = vmatpush2.msra.mxu0 0.0
  %7350 = vmatprep.subr.mxu0 0.0
  %7351 = vmatpush2.msra.mxu0 0.0
  %7352 = vmatprep.subr.mxu0 0.0
  %7353 = vmatpush2.msra.mxu0 0.0
  %7354 = vmatprep.mubr.f32.mxu0 0.0
  %7355 = vmatmul.mubr.f32.gmra.mxu0 %v7267
  %v7356 = vpop.f32.mrf.mxu0
  %v7357 = vadd.f32 0.0, %v7356
  %v7358 = vpop.f32.mrf.mxu0
  %7359 = vmatprep.mubr.f32.mxu0 0.0
  %7360 = vmatmul.mubr.f32.gmra.mxu0 %v7270
  %v7361 = vpop.f32.mrf.mxu0
  %v7362 = vadd.f32 0.0, %v7361
  %v7363 = vpop.f32.mrf.mxu0
  %7364 = vmatprep.mubr.f32.mxu0 0.0
  %7365 = vmatmul.mubr.f32.gmra.mxu0 %v7273
  %v7366 = vpop.f32.mrf.mxu0
  %v7367 = vadd.f32 0.0, %v7366
  %v7368 = vpop.f32.mrf.mxu0
  %7369 = vmatprep.mubr.f32.mxu0 0.0
  %7370 = vmatmul.mubr.f32.gmra.mxu0 %v7276
  %v7371 = vpop.f32.mrf.mxu0
  %v7372 = vadd.f32 0.0, %v7371
  %v7373 = vpop.f32.mrf.mxu0
  %7374 = vmatprep.mubr.f32.mxu0 0.0
  %7375 = vmatmul.mubr.f32.gmra.mxu0 %v7279
  %v7376 = vpop.f32.mrf.mxu0
  %v7377 = vadd.f32 0.0, %v7376
  %v7378 = vpop.f32.mrf.mxu0
  %7379 = vmatprep.mubr.f32.mxu0 0.0
  %7380 = vmatmul.mubr.f32.gmra.mxu0 %v7282
  %v7381 = vpop.f32.mrf.mxu0
  %v7382 = vadd.f32 0.0, %v7381
  %v7383 = vpop.f32.mrf.mxu0
  %7384 = vmatprep.mubr.f32.mxu0 0.0
  %7385 = vmatmul.mubr.f32.gmra.mxu0 %v7285
  %v7386 = vpop.f32.mrf.mxu0
  %v7387 = vadd.f32 0.0, %v7386
  %v7388 = vpop.f32.mrf.mxu0
  %7389 = vmatprep.mubr.f32.mxu0 0.0
  %7390 = vmatmul.mubr.f32.gmra.mxu0 %v7288
  %v7391 = vpop.f32.mrf.mxu0
  %v7392 = vadd.f32 0.0, %v7391
  %v7393 = vpop.f32.mrf.mxu0
  %7394 = vdwg.mxu0
  %s7395 = scalar_lea.vmem %s9, 48
  %v7396 = vld [vmem:[%s7395] sm:$0xff]
  %v7397 = vld [vmem:[%s7395 + $0x8] sm:$0xff]
  %v7399 = vsel %vm927, %v7228, 0
  %v7402 = vsel %vm927, %v7233, 0
  %v7405 = vsel %vm927, %v7238, 0
  %v7408 = vsel %vm927, %v7243, 0
  %v7411 = vsel %vm927, %v7248, 0
  %v7414 = vsel %vm927, %v7253, 0
  %v7417 = vsel %vm927, %v7258, 0
  %v7420 = vsel %vm927, %v7263, 0
  %v7423 = vsel %vm927, %v7357, 0
  %v7426 = vsel %vm927, %v7362, 0
  %v7429 = vsel %vm927, %v7367, 0
  %v7432 = vsel %vm927, %v7372, 0
  %v7435 = vsel %vm927, %v7377, 0
  %v7438 = vsel %vm927, %v7382, 0
  %v7441 = vsel %vm927, %v7387, 0
  %v7444 = vsel %vm927, %v7392, 0
  %7446 = vmatprep.subr.mxu0 0.0
  %7447 = vmatpush1.msra.mxu0 0.0
  %7448 = vmatprep.subr.mxu0 0.0
  %7449 = vmatpush1.msra.mxu0 0.0
  %7450 = vmatprep.subr.mxu0 0.0
  %7451 = vmatpush1.msra.mxu0 0.0
  %7452 = vmatprep.subr.mxu0 0.0
  %7453 = vmatpush1.msra.mxu0 0.0
  %7454 = vmatprep.subr.mxu0 0.0
  %7455 = vmatpush1.msra.mxu0 0.0
  %7456 = vmatprep.subr.mxu0 0.0
  %7457 = vmatpush1.msra.mxu0 0.0
  %7458 = vmatprep.subr.mxu0 0.0
  %7459 = vmatpush1.msra.mxu0 0.0
  %7460 = vmatprep.subr.mxu0 0.0
  %7461 = vmatpush1.msra.mxu0 0.0
  %7462 = vmatprep.subr.mxu0 0.0
  %7463 = vmatpush1.msra.mxu0 0.0
  %7464 = vmatprep.subr.mxu0 0.0
  %7465 = vmatpush1.msra.mxu0 0.0
  %7466 = vmatprep.subr.mxu0 0.0
  %7467 = vmatpush1.msra.mxu0 0.0
  %7468 = vmatprep.subr.mxu0 0.0
  %7469 = vmatpush1.msra.mxu0 0.0
  %7470 = vmatprep.subr.mxu0 0.0
  %7471 = vmatpush1.msra.mxu0 0.0
  %7472 = vmatprep.subr.mxu0 0.0
  %7473 = vmatpush1.msra.mxu0 0.0
  %7474 = vmatprep.subr.mxu0 0.0
  %7475 = vmatpush1.msra.mxu0 %v7397
  %7476 = vmatprep.subr.mxu0 0.0
  %7477 = vmatpush1.msra.mxu0 %v7396
  %7478 = vmatprep.subr.mxu0 0.0
  %7479 = vmatpush2.msra.mxu0 0.0
  %7480 = vmatprep.subr.mxu0 0.0
  %7481 = vmatpush2.msra.mxu0 0.0
  %7482 = vmatprep.subr.mxu0 0.0
  %7483 = vmatpush2.msra.mxu0 0.0
  %7484 = vmatprep.subr.mxu0 0.0
  %7485 = vmatpush2.msra.mxu0 0.0
  %7486 = vmatprep.subr.mxu0 0.0
  %7487 = vmatpush2.msra.mxu0 0.0
  %7488 = vmatprep.subr.mxu0 0.0
  %7489 = vmatpush2.msra.mxu0 0.0
  %7490 = vmatprep.subr.mxu0 0.0
  %7491 = vmatpush2.msra.mxu0 0.0
  %7492 = vmatprep.subr.mxu0 0.0
  %7493 = vmatpush2.msra.mxu0 0.0
  %7494 = vmatprep.subr.mxu0 0.0
  %7495 = vmatpush2.msra.mxu0 0.0
  %7496 = vmatprep.subr.mxu0 0.0
  %7497 = vmatpush2.msra.mxu0 0.0
  %7498 = vmatprep.subr.mxu0 0.0
  %7499 = vmatpush2.msra.mxu0 0.0
  %7500 = vmatprep.subr.mxu0 0.0
  %7501 = vmatpush2.msra.mxu0 0.0
  %7502 = vmatprep.subr.mxu0 0.0
  %7503 = vmatpush2.msra.mxu0 0.0
  %7504 = vmatprep.subr.mxu0 0.0
  %7505 = vmatpush2.msra.mxu0 0.0
  %7506 = vmatprep.subr.mxu0 0.0
  %7507 = vmatpush2.msra.mxu0 0.0
  %7508 = vmatprep.subr.mxu0 0.0
  %7509 = vmatpush2.msra.mxu0 0.0
  %7510 = vmatprep.mubr.f32.mxu0 0.0
  %7511 = vmatmul.mubr.f32.gmra.mxu0 %v7399
  %v7512 = vpop.f32.mrf.mxu0
  %v7513 = vadd.f32 0.0, %v7512
  %v7514 = vpop.f32.mrf.mxu0
  %7515 = vmatprep.mubr.f32.mxu0 0.0
  %7516 = vmatmul.mubr.f32.gmra.mxu0 %v7402
  %v7517 = vpop.f32.mrf.mxu0
  %v7518 = vadd.f32 0.0, %v7517
  %v7519 = vpop.f32.mrf.mxu0
  %7520 = vmatprep.mubr.f32.mxu0 0.0
  %7521 = vmatmul.mubr.f32.gmra.mxu0 %v7405
  %v7522 = vpop.f32.mrf.mxu0
  %v7523 = vadd.f32 0.0, %v7522
  %v7524 = vpop.f32.mrf.mxu0
  %7525 = vmatprep.mubr.f32.mxu0 0.0
  %7526 = vmatmul.mubr.f32.gmra.mxu0 %v7408
  %v7527 = vpop.f32.mrf.mxu0
  %v7528 = vadd.f32 0.0, %v7527
  %v7529 = vpop.f32.mrf.mxu0
  %7530 = vmatprep.mubr.f32.mxu0 0.0
  %7531 = vmatmul.mubr.f32.gmra.mxu0 %v7411
  %v7532 = vpop.f32.mrf.mxu0
  %v7533 = vadd.f32 0.0, %v7532
  %v7534 = vpop.f32.mrf.mxu0
  %7535 = vmatprep.mubr.f32.mxu0 0.0
  %7536 = vmatmul.mubr.f32.gmra.mxu0 %v7414
  %v7537 = vpop.f32.mrf.mxu0
  %v7538 = vadd.f32 0.0, %v7537
  %v7539 = vpop.f32.mrf.mxu0
  %7540 = vmatprep.mubr.f32.mxu0 0.0
  %7541 = vmatmul.mubr.f32.gmra.mxu0 %v7417
  %v7542 = vpop.f32.mrf.mxu0
  %v7543 = vadd.f32 0.0, %v7542
  %v7544 = vpop.f32.mrf.mxu0
  %7545 = vmatprep.mubr.f32.mxu0 0.0
  %7546 = vmatmul.mubr.f32.gmra.mxu0 %v7420
  %v7547 = vpop.f32.mrf.mxu0
  %v7548 = vadd.f32 0.0, %v7547
  %v7549 = vpop.f32.mrf.mxu0
  %7550 = vmatprep.mubr.f32.mxu0 0.0
  %7551 = vmatmul.mubr.f32.gmra.mxu0 %v7423
  %v7552 = vpop.f32.mrf.mxu0
  %v7553 = vadd.f32 0.0, %v7552
  %v7554 = vpop.f32.mrf.mxu0
  %7555 = vmatprep.mubr.f32.mxu0 0.0
  %7556 = vmatmul.mubr.f32.gmra.mxu0 %v7426
  %v7557 = vpop.f32.mrf.mxu0
  %v7558 = vadd.f32 0.0, %v7557
  %v7559 = vpop.f32.mrf.mxu0
  %7560 = vmatprep.mubr.f32.mxu0 0.0
  %7561 = vmatmul.mubr.f32.gmra.mxu0 %v7429
  %v7562 = vpop.f32.mrf.mxu0
  %v7563 = vadd.f32 0.0, %v7562
  %v7564 = vpop.f32.mrf.mxu0
  %7565 = vmatprep.mubr.f32.mxu0 0.0
  %7566 = vmatmul.mubr.f32.gmra.mxu0 %v7432
  %v7567 = vpop.f32.mrf.mxu0
  %v7568 = vadd.f32 0.0, %v7567
  %v7569 = vpop.f32.mrf.mxu0
  %7570 = vmatprep.mubr.f32.mxu0 0.0
  %7571 = vmatmul.mubr.f32.gmra.mxu0 %v7435
  %v7572 = vpop.f32.mrf.mxu0
  %v7573 = vadd.f32 0.0, %v7572
  %v7574 = vpop.f32.mrf.mxu0
  %7575 = vmatprep.mubr.f32.mxu0 0.0
  %7576 = vmatmul.mubr.f32.gmra.mxu0 %v7438
  %v7577 = vpop.f32.mrf.mxu0
  %v7578 = vadd.f32 0.0, %v7577
  %v7579 = vpop.f32.mrf.mxu0
  %7580 = vmatprep.mubr.f32.mxu0 0.0
  %7581 = vmatmul.mubr.f32.gmra.mxu0 %v7441
  %v7582 = vpop.f32.mrf.mxu0
  %v7583 = vadd.f32 0.0, %v7582
  %v7584 = vpop.f32.mrf.mxu0
  %7585 = vmatprep.mubr.f32.mxu0 0.0
  %7586 = vmatmul.mubr.f32.gmra.mxu0 %v7444
  %v7587 = vpop.f32.mrf.mxu0
  %v7588 = vadd.f32 0.0, %v7587
  %v7589 = vpop.f32.mrf.mxu0
  %7590 = vdwg.mxu0
  %v7592 = vsel %vm927, %v5962, 0
  %v7595 = vsel %vm927, %v5967, 0
  %v7598 = vsel %vm927, %v5972, 0
  %v7601 = vsel %vm927, %v5977, 0
  %v7604 = vsel %vm927, %v5982, 0
  %v7607 = vsel %vm927, %v5987, 0
  %v7610 = vsel %vm927, %v5992, 0
  %v7613 = vsel %vm927, %v5997, 0
  %v7616 = vsel %vm927, %v6091, 0
  %v7619 = vsel %vm927, %v6096, 0
  %v7622 = vsel %vm927, %v6101, 0
  %v7625 = vsel %vm927, %v6106, 0
  %v7628 = vsel %vm927, %v6111, 0
  %v7631 = vsel %vm927, %v6116, 0
  %v7634 = vsel %vm927, %v6121, 0
  %v7637 = vsel %vm927, %v6126, 0
  %7639 = vmatprep.subr.mxu0 0.0
  %7640 = vmatpush1.msra.mxu0 0.0
  %7641 = vmatprep.subr.mxu0 0.0
  %7642 = vmatpush1.msra.mxu0 0.0
  %7643 = vmatprep.subr.mxu0 0.0
  %7644 = vmatpush1.msra.mxu0 0.0
  %7645 = vmatprep.subr.mxu0 0.0
  %7646 = vmatpush1.msra.mxu0 0.0
  %7647 = vmatprep.subr.mxu0 0.0
  %7648 = vmatpush1.msra.mxu0 0.0
  %7649 = vmatprep.subr.mxu0 0.0
  %7650 = vmatpush1.msra.mxu0 0.0
  %7651 = vmatprep.subr.mxu0 0.0
  %7652 = vmatpush1.msra.mxu0 0.0
  %7653 = vmatprep.subr.mxu0 0.0
  %7654 = vmatpush1.msra.mxu0 0.0
  %7655 = vmatprep.subr.mxu0 0.0
  %7656 = vmatpush1.msra.mxu0 0.0
  %7657 = vmatprep.subr.mxu0 0.0
  %7658 = vmatpush1.msra.mxu0 0.0
  %7659 = vmatprep.subr.mxu0 0.0
  %7660 = vmatpush1.msra.mxu0 0.0
  %7661 = vmatprep.subr.mxu0 0.0
  %7662 = vmatpush1.msra.mxu0 0.0
  %7663 = vmatprep.subr.mxu0 0.0
  %7664 = vmatpush1.msra.mxu0 0.0
  %7665 = vmatprep.subr.mxu0 0.0
  %7666 = vmatpush1.msra.mxu0 0.0
  %7667 = vmatprep.subr.mxu0 0.0
  %7668 = vmatpush1.msra.mxu0 %v6131
  %7669 = vmatprep.subr.mxu0 0.0
  %7670 = vmatpush1.msra.mxu0 %v6130
  %7671 = vmatprep.subr.mxu0 0.0
  %7672 = vmatpush2.msra.mxu0 0.0
  %7673 = vmatprep.subr.mxu0 0.0
  %7674 = vmatpush2.msra.mxu0 0.0
  %7675 = vmatprep.subr.mxu0 0.0
  %7676 = vmatpush2.msra.mxu0 0.0
  %7677 = vmatprep.subr.mxu0 0.0
  %7678 = vmatpush2.msra.mxu0 0.0
  %7679 = vmatprep.subr.mxu0 0.0
  %7680 = vmatpush2.msra.mxu0 0.0
  %7681 = vmatprep.subr.mxu0 0.0
  %7682 = vmatpush2.msra.mxu0 0.0
  %7683 = vmatprep.subr.mxu0 0.0
  %7684 = vmatpush2.msra.mxu0 0.0
  %7685 = vmatprep.subr.mxu0 0.0
  %7686 = vmatpush2.msra.mxu0 0.0
  %7687 = vmatprep.subr.mxu0 0.0
  %7688 = vmatpush2.msra.mxu0 0.0
  %7689 = vmatprep.subr.mxu0 0.0
  %7690 = vmatpush2.msra.mxu0 0.0
  %7691 = vmatprep.subr.mxu0 0.0
  %7692 = vmatpush2.msra.mxu0 0.0
  %7693 = vmatprep.subr.mxu0 0.0
  %7694 = vmatpush2.msra.mxu0 0.0
  %7695 = vmatprep.subr.mxu0 0.0
  %7696 = vmatpush2.msra.mxu0 0.0
  %7697 = vmatprep.subr.mxu0 0.0
  %7698 = vmatpush2.msra.mxu0 0.0
  %7699 = vmatprep.subr.mxu0 0.0
  %7700 = vmatpush2.msra.mxu0 0.0
  %7701 = vmatprep.subr.mxu0 0.0
  %7702 = vmatpush2.msra.mxu0 0.0
  %7703 = vmatprep.mubr.f32.mxu0 0.0
  %7704 = vmatmul.mubr.f32.gmra.mxu0 %v7592
  %v7705 = vpop.f32.mrf.mxu0
  %v7706 = vadd.f32 %v7513, %v7705
  %v7707 = vpop.f32.mrf.mxu0
  %7708 = vmatprep.mubr.f32.mxu0 0.0
  %7709 = vmatmul.mubr.f32.gmra.mxu0 %v7595
  %v7710 = vpop.f32.mrf.mxu0
  %v7711 = vadd.f32 %v7518, %v7710
  %v7712 = vpop.f32.mrf.mxu0
  %7713 = vmatprep.mubr.f32.mxu0 0.0
  %7714 = vmatmul.mubr.f32.gmra.mxu0 %v7598
  %v7715 = vpop.f32.mrf.mxu0
  %v7716 = vadd.f32 %v7523, %v7715
  %v7717 = vpop.f32.mrf.mxu0
  %7718 = vmatprep.mubr.f32.mxu0 0.0
  %7719 = vmatmul.mubr.f32.gmra.mxu0 %v7601
  %v7720 = vpop.f32.mrf.mxu0
  %v7721 = vadd.f32 %v7528, %v7720
  %v7722 = vpop.f32.mrf.mxu0
  %7723 = vmatprep.mubr.f32.mxu0 0.0
  %7724 = vmatmul.mubr.f32.gmra.mxu0 %v7604
  %v7725 = vpop.f32.mrf.mxu0
  %v7726 = vadd.f32 %v7533, %v7725
  %v7727 = vpop.f32.mrf.mxu0
  %7728 = vmatprep.mubr.f32.mxu0 0.0
  %7729 = vmatmul.mubr.f32.gmra.mxu0 %v7607
  %v7730 = vpop.f32.mrf.mxu0
  %v7731 = vadd.f32 %v7538, %v7730
  %v7732 = vpop.f32.mrf.mxu0
  %7733 = vmatprep.mubr.f32.mxu0 0.0
  %7734 = vmatmul.mubr.f32.gmra.mxu0 %v7610
  %v7735 = vpop.f32.mrf.mxu0
  %v7736 = vadd.f32 %v7543, %v7735
  %v7737 = vpop.f32.mrf.mxu0
  %7738 = vmatprep.mubr.f32.mxu0 0.0
  %7739 = vmatmul.mubr.f32.gmra.mxu0 %v7613
  %v7740 = vpop.f32.mrf.mxu0
  %v7741 = vadd.f32 %v7548, %v7740
  %v7742 = vpop.f32.mrf.mxu0
  %7743 = vmatprep.mubr.f32.mxu0 0.0
  %7744 = vmatmul.mubr.f32.gmra.mxu0 %v7616
  %v7745 = vpop.f32.mrf.mxu0
  %v7746 = vadd.f32 %v7553, %v7745
  %v7747 = vpop.f32.mrf.mxu0
  %7748 = vmatprep.mubr.f32.mxu0 0.0
  %7749 = vmatmul.mubr.f32.gmra.mxu0 %v7619
  %v7750 = vpop.f32.mrf.mxu0
  %v7751 = vadd.f32 %v7558, %v7750
  %v7752 = vpop.f32.mrf.mxu0
  %7753 = vmatprep.mubr.f32.mxu0 0.0
  %7754 = vmatmul.mubr.f32.gmra.mxu0 %v7622
  %v7755 = vpop.f32.mrf.mxu0
  %v7756 = vadd.f32 %v7563, %v7755
  %v7757 = vpop.f32.mrf.mxu0
  %7758 = vmatprep.mubr.f32.mxu0 0.0
  %7759 = vmatmul.mubr.f32.gmra.mxu0 %v7625
  %v7760 = vpop.f32.mrf.mxu0
  %v7761 = vadd.f32 %v7568, %v7760
  %v7762 = vpop.f32.mrf.mxu0
  %7763 = vmatprep.mubr.f32.mxu0 0.0
  %7764 = vmatmul.mubr.f32.gmra.mxu0 %v7628
  %v7765 = vpop.f32.mrf.mxu0
  %v7766 = vadd.f32 %v7573, %v7765
  %v7767 = vpop.f32.mrf.mxu0
  %7768 = vmatprep.mubr.f32.mxu0 0.0
  %7769 = vmatmul.mubr.f32.gmra.mxu0 %v7631
  %v7770 = vpop.f32.mrf.mxu0
  %v7771 = vadd.f32 %v7578, %v7770
  %v7772 = vpop.f32.mrf.mxu0
  %7773 = vmatprep.mubr.f32.mxu0 0.0
  %7774 = vmatmul.mubr.f32.gmra.mxu0 %v7634
  %v7775 = vpop.f32.mrf.mxu0
  %v7776 = vadd.f32 %v7583, %v7775
  %v7777 = vpop.f32.mrf.mxu0
  %7778 = vmatprep.mubr.f32.mxu0 0.0
  %7779 = vmatmul.mubr.f32.gmra.mxu0 %v7637
  %v7780 = vpop.f32.mrf.mxu0
  %v7781 = vadd.f32 %v7588, %v7780
  %v7782 = vpop.f32.mrf.mxu0
  %7783 = vdwg.mxu0
  %s7784 = scalar_lea.vmem %s10, 1
  %v7785 = vld [vmem:[%s7784] sm:$0x1]
  %v7787 = vlaneseq
  %v7788 = vshrl.u32 %v7787, 7
  %v7789 = vsub.s32 0, %v7788
  %v7790 = vrot.slane %v7785, %v7789
  %v7792 = vadd.f32 %v7706, %v7790
  %v7793 = vadd.f32 %v7711, %v7790
  %v7794 = vadd.f32 %v7716, %v7790
  %v7795 = vadd.f32 %v7721, %v7790
  %v7796 = vadd.f32 %v7726, %v7790
  %v7797 = vadd.f32 %v7731, %v7790
  %v7798 = vadd.f32 %v7736, %v7790
  %v7799 = vadd.f32 %v7741, %v7790
  %v7800 = vadd.f32 %v7746, %v7790
  %v7801 = vadd.f32 %v7751, %v7790
  %v7802 = vadd.f32 %v7756, %v7790
  %v7803 = vadd.f32 %v7761, %v7790
  %v7804 = vadd.f32 %v7766, %v7790
  %v7805 = vadd.f32 %v7771, %v7790
  %v7806 = vadd.f32 %v7776, %v7790
  %v7807 = vadd.f32 %v7781, %v7790
  %v7808 = vadd.f32 %v4802, %v7792
  %v7809 = vadd.f32 %v4803, %v7793
  %v7810 = vadd.f32 %v4804, %v7794
  %v7811 = vadd.f32 %v4805, %v7795
  %v7812 = vadd.f32 %v4806, %v7796
  %v7813 = vadd.f32 %v4807, %v7797
  %v7814 = vadd.f32 %v4808, %v7798
  %v7815 = vadd.f32 %v4809, %v7799
  %v7816 = vadd.f32 %v4810, %v7800
  %v7817 = vadd.f32 %v4811, %v7801
  %v7818 = vadd.f32 %v4812, %v7802
  %v7819 = vadd.f32 %v4813, %v7803
  %v7820 = vadd.f32 %v4814, %v7804
  %v7821 = vadd.f32 %v4815, %v7805
  %v7822 = vadd.f32 %v4816, %v7806
  %v7823 = vadd.f32 %v4817, %v7807
  %s7824 = scalar_lea.vmem %s11, 1
  %v7825 = vld [vmem:[%s7824] sm:$0x1]
  %s7826 = scalar_lea.vmem %s12, 1
  %v7827 = vld [vmem:[%s7826] sm:$0x1]
  %v7828 = vsel %vm82, %v7808, 0.0
  %7829 = vadd.xlane.f32.xlu0 %v7828
  %v7830 = vpop.xlane.xlu0 %7829
  %v7831 = vsel %vm82, %v7809, 0.0
  %7832 = vadd.xlane.f32.xlu0 %v7831
  %v7833 = vpop.xlane.xlu0 %7832
  %v7834 = vsel %vm82, %v7810, 0.0
  %7835 = vadd.xlane.f32.xlu0 %v7834
  %v7836 = vpop.xlane.xlu0 %7835
  %v7837 = vsel %vm82, %v7811, 0.0
  %7838 = vadd.xlane.f32.xlu0 %v7837
  %v7839 = vpop.xlane.xlu0 %7838
  %v7840 = vsel %vm82, %v7812, 0.0
  %7841 = vadd.xlane.f32.xlu0 %v7840
  %v7842 = vpop.xlane.xlu0 %7841
  %v7843 = vsel %vm82, %v7813, 0.0
  %7844 = vadd.xlane.f32.xlu0 %v7843
  %v7845 = vpop.xlane.xlu0 %7844
  %v7846 = vsel %vm82, %v7814, 0.0
  %7847 = vadd.xlane.f32.xlu0 %v7846
  %v7848 = vpop.xlane.xlu0 %7847
  %v7849 = vsel %vm82, %v7815, 0.0
  %7850 = vadd.xlane.f32.xlu0 %v7849
  %v7851 = vpop.xlane.xlu0 %7850
  %v7852 = vsel %vm82, %v7816, 0.0
  %7853 = vadd.xlane.f32.xlu0 %v7852
  %v7854 = vpop.xlane.xlu0 %7853
  %v7855 = vsel %vm82, %v7817, 0.0
  %7856 = vadd.xlane.f32.xlu0 %v7855
  %v7857 = vpop.xlane.xlu0 %7856
  %v7858 = vsel %vm82, %v7818, 0.0
  %7859 = vadd.xlane.f32.xlu0 %v7858
  %v7860 = vpop.xlane.xlu0 %7859
  %v7861 = vsel %vm82, %v7819, 0.0
  %7862 = vadd.xlane.f32.xlu0 %v7861
  %v7863 = vpop.xlane.xlu0 %7862
  %v7864 = vsel %vm82, %v7820, 0.0
  %7865 = vadd.xlane.f32.xlu0 %v7864
  %v7866 = vpop.xlane.xlu0 %7865
  %v7867 = vsel %vm82, %v7821, 0.0
  %7868 = vadd.xlane.f32.xlu0 %v7867
  %v7869 = vpop.xlane.xlu0 %7868
  %v7870 = vsel %vm82, %v7822, 0.0
  %7871 = vadd.xlane.f32.xlu0 %v7870
  %v7872 = vpop.xlane.xlu0 %7871
  %v7873 = vsel %vm82, %v7823, 0.0
  %7874 = vadd.xlane.f32.xlu0 %v7873
  %v7875 = vpop.xlane.xlu0 %7874
  %v7876 = vmul.f32 %v7830, %v131
  %v7877 = vmul.f32 %v7833, %v131
  %v7878 = vmul.f32 %v7836, %v131
  %v7879 = vmul.f32 %v7839, %v131
  %v7880 = vmul.f32 %v7842, %v131
  %v7881 = vmul.f32 %v7845, %v131
  %v7882 = vmul.f32 %v7848, %v131
  %v7883 = vmul.f32 %v7851, %v131
  %v7884 = vmul.f32 %v7854, %v131
  %v7885 = vmul.f32 %v7857, %v131
  %v7886 = vmul.f32 %v7860, %v131
  %v7887 = vmul.f32 %v7863, %v131
  %v7888 = vmul.f32 %v7866, %v131
  %v7889 = vmul.f32 %v7869, %v131
  %v7890 = vmul.f32 %v7872, %v131
  %v7891 = vmul.f32 %v7875, %v131
  %v7892 = vmul.f32 %v7808, %v7808
  %v7893 = vmul.f32 %v7809, %v7809
  %v7894 = vmul.f32 %v7810, %v7810
  %v7895 = vmul.f32 %v7811, %v7811
  %v7896 = vmul.f32 %v7812, %v7812
  %v7897 = vmul.f32 %v7813, %v7813
  %v7898 = vmul.f32 %v7814, %v7814
  %v7899 = vmul.f32 %v7815, %v7815
  %v7900 = vmul.f32 %v7816, %v7816
  %v7901 = vmul.f32 %v7817, %v7817
  %v7902 = vmul.f32 %v7818, %v7818
  %v7903 = vmul.f32 %v7819, %v7819
  %v7904 = vmul.f32 %v7820, %v7820
  %v7905 = vmul.f32 %v7821, %v7821
  %v7906 = vmul.f32 %v7822, %v7822
  %v7907 = vmul.f32 %v7823, %v7823
  %v7908 = vsel %vm82, %v7892, 0.0
  %7909 = vadd.xlane.f32.xlu0 %v7908
  %v7910 = vpop.xlane.xlu0 %7909
  %v7911 = vsel %vm82, %v7893, 0.0
  %7912 = vadd.xlane.f32.xlu0 %v7911
  %v7913 = vpop.xlane.xlu0 %7912
  %v7914 = vsel %vm82, %v7894, 0.0
  %7915 = vadd.xlane.f32.xlu0 %v7914
  %v7916 = vpop.xlane.xlu0 %7915
  %v7917 = vsel %vm82, %v7895, 0.0
  %7918 = vadd.xlane.f32.xlu0 %v7917
  %v7919 = vpop.xlane.xlu0 %7918
  %v7920 = vsel %vm82, %v7896, 0.0
  %7921 = vadd.xlane.f32.xlu0 %v7920
  %v7922 = vpop.xlane.xlu0 %7921
  %v7923 = vsel %vm82, %v7897, 0.0
  %7924 = vadd.xlane.f32.xlu0 %v7923
  %v7925 = vpop.xlane.xlu0 %7924
  %v7926 = vsel %vm82, %v7898, 0.0
  %7927 = vadd.xlane.f32.xlu0 %v7926
  %v7928 = vpop.xlane.xlu0 %7927
  %v7929 = vsel %vm82, %v7899, 0.0
  %7930 = vadd.xlane.f32.xlu0 %v7929
  %v7931 = vpop.xlane.xlu0 %7930
  %v7932 = vsel %vm82, %v7900, 0.0
  %7933 = vadd.xlane.f32.xlu0 %v7932
  %v7934 = vpop.xlane.xlu0 %7933
  %v7935 = vsel %vm82, %v7901, 0.0
  %7936 = vadd.xlane.f32.xlu0 %v7935
  %v7937 = vpop.xlane.xlu0 %7936
  %v7938 = vsel %vm82, %v7902, 0.0
  %7939 = vadd.xlane.f32.xlu0 %v7938
  %v7940 = vpop.xlane.xlu0 %7939
  %v7941 = vsel %vm82, %v7903, 0.0
  %7942 = vadd.xlane.f32.xlu0 %v7941
  %v7943 = vpop.xlane.xlu0 %7942
  %v7944 = vsel %vm82, %v7904, 0.0
  %7945 = vadd.xlane.f32.xlu0 %v7944
  %v7946 = vpop.xlane.xlu0 %7945
  %v7947 = vsel %vm82, %v7905, 0.0
  %7948 = vadd.xlane.f32.xlu0 %v7947
  %v7949 = vpop.xlane.xlu0 %7948
  %v7950 = vsel %vm82, %v7906, 0.0
  %7951 = vadd.xlane.f32.xlu0 %v7950
  %v7952 = vpop.xlane.xlu0 %7951
  %v7953 = vsel %vm82, %v7907, 0.0
  %7954 = vadd.xlane.f32.xlu0 %v7953
  %v7955 = vpop.xlane.xlu0 %7954
  %v7956 = vmul.f32 %v7910, %v131
  %v7957 = vmul.f32 %v7913, %v131
  %v7958 = vmul.f32 %v7916, %v131
  %v7959 = vmul.f32 %v7919, %v131
  %v7960 = vmul.f32 %v7922, %v131
  %v7961 = vmul.f32 %v7925, %v131
  %v7962 = vmul.f32 %v7928, %v131
  %v7963 = vmul.f32 %v7931, %v131
  %v7964 = vmul.f32 %v7934, %v131
  %v7965 = vmul.f32 %v7937, %v131
  %v7966 = vmul.f32 %v7940, %v131
  %v7967 = vmul.f32 %v7943, %v131
  %v7968 = vmul.f32 %v7946, %v131
  %v7969 = vmul.f32 %v7949, %v131
  %v7970 = vmul.f32 %v7952, %v131
  %v7971 = vmul.f32 %v7955, %v131
  %v7972 = vmul.f32 %v7876, %v7876
  %v7973 = vmul.f32 %v7877, %v7877
  %v7974 = vmul.f32 %v7878, %v7878
  %v7975 = vmul.f32 %v7879, %v7879
  %v7976 = vmul.f32 %v7880, %v7880
  %v7977 = vmul.f32 %v7881, %v7881
  %v7978 = vmul.f32 %v7882, %v7882
  %v7979 = vmul.f32 %v7883, %v7883
  %v7980 = vmul.f32 %v7884, %v7884
  %v7981 = vmul.f32 %v7885, %v7885
  %v7982 = vmul.f32 %v7886, %v7886
  %v7983 = vmul.f32 %v7887, %v7887
  %v7984 = vmul.f32 %v7888, %v7888
  %v7985 = vmul.f32 %v7889, %v7889
  %v7986 = vmul.f32 %v7890, %v7890
  %v7987 = vmul.f32 %v7891, %v7891
  %v7988 = vsub.f32 %v7956, %v7972
  %v7989 = vsub.f32 %v7957, %v7973
  %v7990 = vsub.f32 %v7958, %v7974
  %v7991 = vsub.f32 %v7959, %v7975
  %v7992 = vsub.f32 %v7960, %v7976
  %v7993 = vsub.f32 %v7961, %v7977
  %v7994 = vsub.f32 %v7962, %v7978
  %v7995 = vsub.f32 %v7963, %v7979
  %v7996 = vsub.f32 %v7964, %v7980
  %v7997 = vsub.f32 %v7965, %v7981
  %v7998 = vsub.f32 %v7966, %v7982
  %v7999 = vsub.f32 %v7967, %v7983
  %v8000 = vsub.f32 %v7968, %v7984
  %v8001 = vsub.f32 %v7969, %v7985
  %v8002 = vsub.f32 %v7970, %v7986
  %v8003 = vsub.f32 %v7971, %v7987
  %v8004 = vmax.f32 %v7988, 0.0
  %v8005 = vmax.f32 %v7989, 0.0
  %v8006 = vmax.f32 %v7990, 0.0
  %v8007 = vmax.f32 %v7991, 0.0
  %v8008 = vmax.f32 %v7992, 0.0
  %v8009 = vmax.f32 %v7993, 0.0
  %v8010 = vmax.f32 %v7994, 0.0
  %v8011 = vmax.f32 %v7995, 0.0
  %v8012 = vmax.f32 %v7996, 0.0
  %v8013 = vmax.f32 %v7997, 0.0
  %v8014 = vmax.f32 %v7998, 0.0
  %v8015 = vmax.f32 %v7999, 0.0
  %v8016 = vmax.f32 %v8000, 0.0
  %v8017 = vmax.f32 %v8001, 0.0
  %v8018 = vmax.f32 %v8002, 0.0
  %v8019 = vmax.f32 %v8003, 0.0
  %v8020 = vsub.f32 %v7808, %v7876
  %v8021 = vsub.f32 %v7809, %v7877
  %v8022 = vsub.f32 %v7810, %v7878
  %v8023 = vsub.f32 %v7811, %v7879
  %v8024 = vsub.f32 %v7812, %v7880
  %v8025 = vsub.f32 %v7813, %v7881
  %v8026 = vsub.f32 %v7814, %v7882
  %v8027 = vsub.f32 %v7815, %v7883
  %v8028 = vsub.f32 %v7816, %v7884
  %v8029 = vsub.f32 %v7817, %v7885
  %v8030 = vsub.f32 %v7818, %v7886
  %v8031 = vsub.f32 %v7819, %v7887
  %v8032 = vsub.f32 %v7820, %v7888
  %v8033 = vsub.f32 %v7821, %v7889
  %v8034 = vsub.f32 %v7822, %v7890
  %v8035 = vsub.f32 %v7823, %v7891
  %v8036 = vadd.f32 %v8004, 1e-05
  %v8037 = vadd.f32 %v8005, 1e-05
  %v8038 = vadd.f32 %v8006, 1e-05
  %v8039 = vadd.f32 %v8007, 1e-05
  %v8040 = vadd.f32 %v8008, 1e-05
  %v8041 = vadd.f32 %v8009, 1e-05
  %v8042 = vadd.f32 %v8010, 1e-05
  %v8043 = vadd.f32 %v8011, 1e-05
  %v8044 = vadd.f32 %v8012, 1e-05
  %v8045 = vadd.f32 %v8013, 1e-05
  %v8046 = vadd.f32 %v8014, 1e-05
  %v8047 = vadd.f32 %v8015, 1e-05
  %v8048 = vadd.f32 %v8016, 1e-05
  %v8049 = vadd.f32 %v8017, 1e-05
  %v8050 = vadd.f32 %v8018, 1e-05
  %v8051 = vadd.f32 %v8019, 1e-05
  %v8052 = vrsqrt.pop %v8036
  %v8053 = vrsqrt.pop %v8037
  %v8054 = vrsqrt.pop %v8038
  %v8055 = vrsqrt.pop %v8039
  %v8056 = vrsqrt.pop %v8040
  %v8057 = vrsqrt.pop %v8041
  %v8058 = vrsqrt.pop %v8042
  %v8059 = vrsqrt.pop %v8043
  %v8060 = vrsqrt.pop %v8044
  %v8061 = vrsqrt.pop %v8045
  %v8062 = vrsqrt.pop %v8046
  %v8063 = vrsqrt.pop %v8047
  %v8064 = vrsqrt.pop %v8048
  %v8065 = vrsqrt.pop %v8049
  %v8066 = vrsqrt.pop %v8050
  %v8067 = vrsqrt.pop %v8051
  %v8068 = vmul.f32 %v8020, %v8052
  %v8069 = vmul.f32 %v8021, %v8053
  %v8070 = vmul.f32 %v8022, %v8054
  %v8071 = vmul.f32 %v8023, %v8055
  %v8072 = vmul.f32 %v8024, %v8056
  %v8073 = vmul.f32 %v8025, %v8057
  %v8074 = vmul.f32 %v8026, %v8058
  %v8075 = vmul.f32 %v8027, %v8059
  %v8076 = vmul.f32 %v8028, %v8060
  %v8077 = vmul.f32 %v8029, %v8061
  %v8078 = vmul.f32 %v8030, %v8062
  %v8079 = vmul.f32 %v8031, %v8063
  %v8080 = vmul.f32 %v8032, %v8064
  %v8081 = vmul.f32 %v8033, %v8065
  %v8082 = vmul.f32 %v8034, %v8066
  %v8083 = vmul.f32 %v8035, %v8067
  %v8085 = vlaneseq
  %v8086 = vshrl.u32 %v8085, 7
  %v8087 = vsub.s32 0, %v8086
  %v8088 = vrot.slane %v7825, %v8087
  %v8090 = vmul.f32 %v8068, %v8088
  %v8091 = vmul.f32 %v8069, %v8088
  %v8092 = vmul.f32 %v8070, %v8088
  %v8093 = vmul.f32 %v8071, %v8088
  %v8094 = vmul.f32 %v8072, %v8088
  %v8095 = vmul.f32 %v8073, %v8088
  %v8096 = vmul.f32 %v8074, %v8088
  %v8097 = vmul.f32 %v8075, %v8088
  %v8098 = vmul.f32 %v8076, %v8088
  %v8099 = vmul.f32 %v8077, %v8088
  %v8100 = vmul.f32 %v8078, %v8088
  %v8101 = vmul.f32 %v8079, %v8088
  %v8102 = vmul.f32 %v8080, %v8088
  %v8103 = vmul.f32 %v8081, %v8088
  %v8104 = vmul.f32 %v8082, %v8088
  %v8105 = vmul.f32 %v8083, %v8088
  %v8107 = vlaneseq
  %v8108 = vshrl.u32 %v8107, 7
  %v8109 = vsub.s32 0, %v8108
  %v8110 = vrot.slane %v7827, %v8109
  %v8112 = vadd.f32 %v8090, %v8110
  %v8113 = vadd.f32 %v8091, %v8110
  %v8114 = vadd.f32 %v8092, %v8110
  %v8115 = vadd.f32 %v8093, %v8110
  %v8116 = vadd.f32 %v8094, %v8110
  %v8117 = vadd.f32 %v8095, %v8110
  %v8118 = vadd.f32 %v8096, %v8110
  %v8119 = vadd.f32 %v8097, %v8110
  %v8120 = vadd.f32 %v8098, %v8110
  %v8121 = vadd.f32 %v8099, %v8110
  %v8122 = vadd.f32 %v8100, %v8110
  %v8123 = vadd.f32 %v8101, %v8110
  %v8124 = vadd.f32 %v8102, %v8110
  %v8125 = vadd.f32 %v8103, %v8110
  %v8126 = vadd.f32 %v8104, %v8110
  %v8127 = vadd.f32 %v8105, %v8110
  %s8128 = scalar_lea.vmem %s13, 32
  %v8129 = vld [vmem:[%s8128] sm:$0xff]
  %v8130 = vld [vmem:[%s8128 + $0x8] sm:$0xff]
  %v8131 = vld [vmem:[%s8128 + $0x10] sm:$0xff]
  %v8132 = vld [vmem:[%s8128 + $0x18] sm:$0xff]
  %s8133 = scalar_lea.vmem %s14, 1
  %v8134 = vld [vmem:[%s8133] sm:$0x1]
  %v8136 = vlaneseq
  %v8137 = vshrl.u32 %v8136, 7
  %v8138 = vsub.s32 0, %v8137
  %v8139 = vrot.slane %v8134, %v8138
  %v8142 = vsel %vm82, %v8112, 0
  %v8145 = vsel %vm82, %v8113, 0
  %v8148 = vsel %vm82, %v8114, 0
  %v8151 = vsel %vm82, %v8115, 0
  %v8154 = vsel %vm82, %v8116, 0
  %v8157 = vsel %vm82, %v8117, 0
  %v8160 = vsel %vm82, %v8118, 0
  %v8163 = vsel %vm82, %v8119, 0
  %v8166 = vsel %vm82, %v8120, 0
  %v8169 = vsel %vm82, %v8121, 0
  %v8172 = vsel %vm82, %v8122, 0
  %v8175 = vsel %vm82, %v8123, 0
  %v8178 = vsel %vm82, %v8124, 0
  %v8181 = vsel %vm82, %v8125, 0
  %v8184 = vsel %vm82, %v8126, 0
  %v8187 = vsel %vm82, %v8127, 0
  %8189 = vmatprep.subr.mxu0 0.0
  %8190 = vmatpush1.msra.mxu0 0.0
  %8191 = vmatprep.subr.mxu0 0.0
  %8192 = vmatpush1.msra.mxu0 0.0
  %8193 = vmatprep.subr.mxu0 0.0
  %8194 = vmatpush1.msra.mxu0 0.0
  %8195 = vmatprep.subr.mxu0 0.0
  %8196 = vmatpush1.msra.mxu0 0.0
  %8197 = vmatprep.subr.mxu0 0.0
  %8198 = vmatpush1.msra.mxu0 0.0
  %8199 = vmatprep.subr.mxu0 0.0
  %8200 = vmatpush1.msra.mxu0 0.0
  %8201 = vmatprep.subr.mxu0 0.0
  %8202 = vmatpush1.msra.mxu0 0.0
  %8203 = vmatprep.subr.mxu0 0.0
  %8204 = vmatpush1.msra.mxu0 0.0
  %8205 = vmatprep.subr.mxu0 0.0
  %8206 = vmatpush1.msra.mxu0 0.0
  %8207 = vmatprep.subr.mxu0 0.0
  %8208 = vmatpush1.msra.mxu0 0.0
  %8209 = vmatprep.subr.mxu0 0.0
  %8210 = vmatpush1.msra.mxu0 0.0
  %8211 = vmatprep.subr.mxu0 0.0
  %8212 = vmatpush1.msra.mxu0 0.0
  %8213 = vmatprep.subr.mxu0 0.0
  %8214 = vmatpush1.msra.mxu0 %v8132
  %8215 = vmatprep.subr.mxu0 0.0
  %8216 = vmatpush1.msra.mxu0 %v8131
  %8217 = vmatprep.subr.mxu0 0.0
  %8218 = vmatpush1.msra.mxu0 %v8130
  %8219 = vmatprep.subr.mxu0 0.0
  %8220 = vmatpush1.msra.mxu0 %v8129
  %8221 = vmatprep.subr.mxu0 0.0
  %8222 = vmatpush2.msra.mxu0 0.0
  %8223 = vmatprep.subr.mxu0 0.0
  %8224 = vmatpush2.msra.mxu0 0.0
  %8225 = vmatprep.subr.mxu0 0.0
  %8226 = vmatpush2.msra.mxu0 0.0
  %8227 = vmatprep.subr.mxu0 0.0
  %8228 = vmatpush2.msra.mxu0 0.0
  %8229 = vmatprep.subr.mxu0 0.0
  %8230 = vmatpush2.msra.mxu0 0.0
  %8231 = vmatprep.subr.mxu0 0.0
  %8232 = vmatpush2.msra.mxu0 0.0
  %8233 = vmatprep.subr.mxu0 0.0
  %8234 = vmatpush2.msra.mxu0 0.0
  %8235 = vmatprep.subr.mxu0 0.0
  %8236 = vmatpush2.msra.mxu0 0.0
  %8237 = vmatprep.subr.mxu0 0.0
  %8238 = vmatpush2.msra.mxu0 0.0
  %8239 = vmatprep.subr.mxu0 0.0
  %8240 = vmatpush2.msra.mxu0 0.0
  %8241 = vmatprep.subr.mxu0 0.0
  %8242 = vmatpush2.msra.mxu0 0.0
  %8243 = vmatprep.subr.mxu0 0.0
  %8244 = vmatpush2.msra.mxu0 0.0
  %8245 = vmatprep.subr.mxu0 0.0
  %8246 = vmatpush2.msra.mxu0 0.0
  %8247 = vmatprep.subr.mxu0 0.0
  %8248 = vmatpush2.msra.mxu0 0.0
  %8249 = vmatprep.subr.mxu0 0.0
  %8250 = vmatpush2.msra.mxu0 0.0
  %8251 = vmatprep.subr.mxu0 0.0
  %8252 = vmatpush2.msra.mxu0 0.0
  %8253 = vmatprep.mubr.f32.mxu0 0.0
  %8254 = vmatmul.mubr.f32.gmra.mxu0 %v8142
  %v8255 = vpop.f32.mrf.mxu0
  %v8256 = vadd.f32 %v8139, %v8255
  %v8257 = vpop.f32.mrf.mxu0
  %8258 = vmatprep.mubr.f32.mxu0 0.0
  %8259 = vmatmul.mubr.f32.gmra.mxu0 %v8145
  %v8260 = vpop.f32.mrf.mxu0
  %v8261 = vadd.f32 %v8139, %v8260
  %v8262 = vpop.f32.mrf.mxu0
  %8263 = vmatprep.mubr.f32.mxu0 0.0
  %8264 = vmatmul.mubr.f32.gmra.mxu0 %v8148
  %v8265 = vpop.f32.mrf.mxu0
  %v8266 = vadd.f32 %v8139, %v8265
  %v8267 = vpop.f32.mrf.mxu0
  %8268 = vmatprep.mubr.f32.mxu0 0.0
  %8269 = vmatmul.mubr.f32.gmra.mxu0 %v8151
  %v8270 = vpop.f32.mrf.mxu0
  %v8271 = vadd.f32 %v8139, %v8270
  %v8272 = vpop.f32.mrf.mxu0
  %8273 = vmatprep.mubr.f32.mxu0 0.0
  %8274 = vmatmul.mubr.f32.gmra.mxu0 %v8154
  %v8275 = vpop.f32.mrf.mxu0
  %v8276 = vadd.f32 %v8139, %v8275
  %v8277 = vpop.f32.mrf.mxu0
  %8278 = vmatprep.mubr.f32.mxu0 0.0
  %8279 = vmatmul.mubr.f32.gmra.mxu0 %v8157
  %v8280 = vpop.f32.mrf.mxu0
  %v8281 = vadd.f32 %v8139, %v8280
  %v8282 = vpop.f32.mrf.mxu0
  %8283 = vmatprep.mubr.f32.mxu0 0.0
  %8284 = vmatmul.mubr.f32.gmra.mxu0 %v8160
  %v8285 = vpop.f32.mrf.mxu0
  %v8286 = vadd.f32 %v8139, %v8285
  %v8287 = vpop.f32.mrf.mxu0
  %8288 = vmatprep.mubr.f32.mxu0 0.0
  %8289 = vmatmul.mubr.f32.gmra.mxu0 %v8163
  %v8290 = vpop.f32.mrf.mxu0
  %v8291 = vadd.f32 %v8139, %v8290
  %v8292 = vpop.f32.mrf.mxu0
  %8293 = vmatprep.mubr.f32.mxu0 0.0
  %8294 = vmatmul.mubr.f32.gmra.mxu0 %v8166
  %v8295 = vpop.f32.mrf.mxu0
  %v8296 = vadd.f32 %v8139, %v8295
  %v8297 = vpop.f32.mrf.mxu0
  %8298 = vmatprep.mubr.f32.mxu0 0.0
  %8299 = vmatmul.mubr.f32.gmra.mxu0 %v8169
  %v8300 = vpop.f32.mrf.mxu0
  %v8301 = vadd.f32 %v8139, %v8300
  %v8302 = vpop.f32.mrf.mxu0
  %8303 = vmatprep.mubr.f32.mxu0 0.0
  %8304 = vmatmul.mubr.f32.gmra.mxu0 %v8172
  %v8305 = vpop.f32.mrf.mxu0
  %v8306 = vadd.f32 %v8139, %v8305
  %v8307 = vpop.f32.mrf.mxu0
  %8308 = vmatprep.mubr.f32.mxu0 0.0
  %8309 = vmatmul.mubr.f32.gmra.mxu0 %v8175
  %v8310 = vpop.f32.mrf.mxu0
  %v8311 = vadd.f32 %v8139, %v8310
  %v8312 = vpop.f32.mrf.mxu0
  %8313 = vmatprep.mubr.f32.mxu0 0.0
  %8314 = vmatmul.mubr.f32.gmra.mxu0 %v8178
  %v8315 = vpop.f32.mrf.mxu0
  %v8316 = vadd.f32 %v8139, %v8315
  %v8317 = vpop.f32.mrf.mxu0
  %8318 = vmatprep.mubr.f32.mxu0 0.0
  %8319 = vmatmul.mubr.f32.gmra.mxu0 %v8181
  %v8320 = vpop.f32.mrf.mxu0
  %v8321 = vadd.f32 %v8139, %v8320
  %v8322 = vpop.f32.mrf.mxu0
  %8323 = vmatprep.mubr.f32.mxu0 0.0
  %8324 = vmatmul.mubr.f32.gmra.mxu0 %v8184
  %v8325 = vpop.f32.mrf.mxu0
  %v8326 = vadd.f32 %v8139, %v8325
  %v8327 = vpop.f32.mrf.mxu0
  %8328 = vmatprep.mubr.f32.mxu0 0.0
  %8329 = vmatmul.mubr.f32.gmra.mxu0 %v8187
  %v8330 = vpop.f32.mrf.mxu0
  %v8331 = vadd.f32 %v8139, %v8330
  %v8332 = vpop.f32.mrf.mxu0
  %8333 = vdwg.mxu0
  %v8334 = vmul.f32 %v8256, 0.5
  %v8335 = vmul.f32 %v8261, 0.5
  %v8336 = vmul.f32 %v8266, 0.5
  %v8337 = vmul.f32 %v8271, 0.5
  %v8338 = vmul.f32 %v8276, 0.5
  %v8339 = vmul.f32 %v8281, 0.5
  %v8340 = vmul.f32 %v8286, 0.5
  %v8341 = vmul.f32 %v8291, 0.5
  %v8342 = vmul.f32 %v8296, 0.5
  %v8343 = vmul.f32 %v8301, 0.5
  %v8344 = vmul.f32 %v8306, 0.5
  %v8345 = vmul.f32 %v8311, 0.5
  %v8346 = vmul.f32 %v8316, 0.5
  %v8347 = vmul.f32 %v8321, 0.5
  %v8348 = vmul.f32 %v8326, 0.5
  %v8349 = vmul.f32 %v8331, 0.5
  %v8350 = vmul.f32 %v8256, 0.70710677
  %v8351 = vmul.f32 %v8261, 0.70710677
  %v8352 = vmul.f32 %v8266, 0.70710677
  %v8353 = vmul.f32 %v8271, 0.70710677
  %v8354 = vmul.f32 %v8276, 0.70710677
  %v8355 = vmul.f32 %v8281, 0.70710677
  %v8356 = vmul.f32 %v8286, 0.70710677
  %v8357 = vmul.f32 %v8291, 0.70710677
  %v8358 = vmul.f32 %v8296, 0.70710677
  %v8359 = vmul.f32 %v8301, 0.70710677
  %v8360 = vmul.f32 %v8306, 0.70710677
  %v8361 = vmul.f32 %v8311, 0.70710677
  %v8362 = vmul.f32 %v8316, 0.70710677
  %v8363 = vmul.f32 %v8321, 0.70710677
  %v8364 = vmul.f32 %v8326, 0.70710677
  %v8365 = vmul.f32 %v8331, 0.70710677
  %vm8366 = vcmp.ge.f32.partialorder %v8350, 0.0
  %vm8367 = vcmp.ge.f32.partialorder %v8351, 0.0
  %vm8368 = vcmp.ge.f32.partialorder %v8352, 0.0
  %vm8369 = vcmp.ge.f32.partialorder %v8353, 0.0
  %vm8370 = vcmp.ge.f32.partialorder %v8354, 0.0
  %vm8371 = vcmp.ge.f32.partialorder %v8355, 0.0
  %vm8372 = vcmp.ge.f32.partialorder %v8356, 0.0
  %vm8373 = vcmp.ge.f32.partialorder %v8357, 0.0
  %vm8374 = vcmp.ge.f32.partialorder %v8358, 0.0
  %vm8375 = vcmp.ge.f32.partialorder %v8359, 0.0
  %vm8376 = vcmp.ge.f32.partialorder %v8360, 0.0
  %vm8377 = vcmp.ge.f32.partialorder %v8361, 0.0
  %vm8378 = vcmp.ge.f32.partialorder %v8362, 0.0
  %vm8379 = vcmp.ge.f32.partialorder %v8363, 0.0
  %vm8380 = vcmp.ge.f32.partialorder %v8364, 0.0
  %vm8381 = vcmp.ge.f32.partialorder %v8365, 0.0
  %v8382 = vsel %vm8366, 1.0, -1.0
  %v8383 = vsel %vm8367, 1.0, -1.0
  %v8384 = vsel %vm8368, 1.0, -1.0
  %v8385 = vsel %vm8369, 1.0, -1.0
  %v8386 = vsel %vm8370, 1.0, -1.0
  %v8387 = vsel %vm8371, 1.0, -1.0
  %v8388 = vsel %vm8372, 1.0, -1.0
  %v8389 = vsel %vm8373, 1.0, -1.0
  %v8390 = vsel %vm8374, 1.0, -1.0
  %v8391 = vsel %vm8375, 1.0, -1.0
  %v8392 = vsel %vm8376, 1.0, -1.0
  %v8393 = vsel %vm8377, 1.0, -1.0
  %v8394 = vsel %vm8378, 1.0, -1.0
  %v8395 = vsel %vm8379, 1.0, -1.0
  %v8396 = vsel %vm8380, 1.0, -1.0
  %v8397 = vsel %vm8381, 1.0, -1.0
  %v8398 = vand.u32 2147483647, %v8350
  %v8399 = vand.u32 2147483647, %v8351
  %v8400 = vand.u32 2147483647, %v8352
  %v8401 = vand.u32 2147483647, %v8353
  %v8402 = vand.u32 2147483647, %v8354
  %v8403 = vand.u32 2147483647, %v8355
  %v8404 = vand.u32 2147483647, %v8356
  %v8405 = vand.u32 2147483647, %v8357
  %v8406 = vand.u32 2147483647, %v8358
  %v8407 = vand.u32 2147483647, %v8359
  %v8408 = vand.u32 2147483647, %v8360
  %v8409 = vand.u32 2147483647, %v8361
  %v8410 = vand.u32 2147483647, %v8362
  %v8411 = vand.u32 2147483647, %v8363
  %v8412 = vand.u32 2147483647, %v8364
  %v8413 = vand.u32 2147483647, %v8365
  %v8414 = vmul.f32 %v8398, 0.3275911
  %v8415 = vmul.f32 %v8399, 0.3275911
  %v8416 = vmul.f32 %v8400, 0.3275911
  %v8417 = vmul.f32 %v8401, 0.3275911
  %v8418 = vmul.f32 %v8402, 0.3275911
  %v8419 = vmul.f32 %v8403, 0.3275911
  %v8420 = vmul.f32 %v8404, 0.3275911
  %v8421 = vmul.f32 %v8405, 0.3275911
  %v8422 = vmul.f32 %v8406, 0.3275911
  %v8423 = vmul.f32 %v8407, 0.3275911
  %v8424 = vmul.f32 %v8408, 0.3275911
  %v8425 = vmul.f32 %v8409, 0.3275911
  %v8426 = vmul.f32 %v8410, 0.3275911
  %v8427 = vmul.f32 %v8411, 0.3275911
  %v8428 = vmul.f32 %v8412, 0.3275911
  %v8429 = vmul.f32 %v8413, 0.3275911
  %v8430 = vadd.f32 %v8414, 1.0
  %v8431 = vadd.f32 %v8415, 1.0
  %v8432 = vadd.f32 %v8416, 1.0
  %v8433 = vadd.f32 %v8417, 1.0
  %v8434 = vadd.f32 %v8418, 1.0
  %v8435 = vadd.f32 %v8419, 1.0
  %v8436 = vadd.f32 %v8420, 1.0
  %v8437 = vadd.f32 %v8421, 1.0
  %v8438 = vadd.f32 %v8422, 1.0
  %v8439 = vadd.f32 %v8423, 1.0
  %v8440 = vadd.f32 %v8424, 1.0
  %v8441 = vadd.f32 %v8425, 1.0
  %v8442 = vadd.f32 %v8426, 1.0
  %v8443 = vadd.f32 %v8427, 1.0
  %v8444 = vadd.f32 %v8428, 1.0
  %v8445 = vadd.f32 %v8429, 1.0
  %v8446 = vrcp.pop %v8430
  %v8447 = vrcp.pop %v8431
  %v8448 = vrcp.pop %v8432
  %v8449 = vrcp.pop %v8433
  %v8450 = vrcp.pop %v8434
  %v8451 = vrcp.pop %v8435
  %v8452 = vrcp.pop %v8436
  %v8453 = vrcp.pop %v8437
  %v8454 = vrcp.pop %v8438
  %v8455 = vrcp.pop %v8439
  %v8456 = vrcp.pop %v8440
  %v8457 = vrcp.pop %v8441
  %v8458 = vrcp.pop %v8442
  %v8459 = vrcp.pop %v8443
  %v8460 = vrcp.pop %v8444
  %v8461 = vrcp.pop %v8445
  %v8462 = vmul.f32 %v8446, 1.0614054
  %v8463 = vmul.f32 %v8447, 1.0614054
  %v8464 = vmul.f32 %v8448, 1.0614054
  %v8465 = vmul.f32 %v8449, 1.0614054
  %v8466 = vmul.f32 %v8450, 1.0614054
  %v8467 = vmul.f32 %v8451, 1.0614054
  %v8468 = vmul.f32 %v8452, 1.0614054
  %v8469 = vmul.f32 %v8453, 1.0614054
  %v8470 = vmul.f32 %v8454, 1.0614054
  %v8471 = vmul.f32 %v8455, 1.0614054
  %v8472 = vmul.f32 %v8456, 1.0614054
  %v8473 = vmul.f32 %v8457, 1.0614054
  %v8474 = vmul.f32 %v8458, 1.0614054
  %v8475 = vmul.f32 %v8459, 1.0614054
  %v8476 = vmul.f32 %v8460, 1.0614054
  %v8477 = vmul.f32 %v8461, 1.0614054
  %v8478 = vadd.f32 %v8462, -1.4531521
  %v8479 = vadd.f32 %v8463, -1.4531521
  %v8480 = vadd.f32 %v8464, -1.4531521
  %v8481 = vadd.f32 %v8465, -1.4531521
  %v8482 = vadd.f32 %v8466, -1.4531521
  %v8483 = vadd.f32 %v8467, -1.4531521
  %v8484 = vadd.f32 %v8468, -1.4531521
  %v8485 = vadd.f32 %v8469, -1.4531521
  %v8486 = vadd.f32 %v8470, -1.4531521
  %v8487 = vadd.f32 %v8471, -1.4531521
  %v8488 = vadd.f32 %v8472, -1.4531521
  %v8489 = vadd.f32 %v8473, -1.4531521
  %v8490 = vadd.f32 %v8474, -1.4531521
  %v8491 = vadd.f32 %v8475, -1.4531521
  %v8492 = vadd.f32 %v8476, -1.4531521
  %v8493 = vadd.f32 %v8477, -1.4531521
  %v8494 = vmul.f32 %v8478, %v8446
  %v8495 = vmul.f32 %v8479, %v8447
  %v8496 = vmul.f32 %v8480, %v8448
  %v8497 = vmul.f32 %v8481, %v8449
  %v8498 = vmul.f32 %v8482, %v8450
  %v8499 = vmul.f32 %v8483, %v8451
  %v8500 = vmul.f32 %v8484, %v8452
  %v8501 = vmul.f32 %v8485, %v8453
  %v8502 = vmul.f32 %v8486, %v8454
  %v8503 = vmul.f32 %v8487, %v8455
  %v8504 = vmul.f32 %v8488, %v8456
  %v8505 = vmul.f32 %v8489, %v8457
  %v8506 = vmul.f32 %v8490, %v8458
  %v8507 = vmul.f32 %v8491, %v8459
  %v8508 = vmul.f32 %v8492, %v8460
  %v8509 = vmul.f32 %v8493, %v8461
  %v8510 = vadd.f32 %v8494, 1.4214138
  %v8511 = vadd.f32 %v8495, 1.4214138
  %v8512 = vadd.f32 %v8496, 1.4214138
  %v8513 = vadd.f32 %v8497, 1.4214138
  %v8514 = vadd.f32 %v8498, 1.4214138
  %v8515 = vadd.f32 %v8499, 1.4214138
  %v8516 = vadd.f32 %v8500, 1.4214138
  %v8517 = vadd.f32 %v8501, 1.4214138
  %v8518 = vadd.f32 %v8502, 1.4214138
  %v8519 = vadd.f32 %v8503, 1.4214138
  %v8520 = vadd.f32 %v8504, 1.4214138
  %v8521 = vadd.f32 %v8505, 1.4214138
  %v8522 = vadd.f32 %v8506, 1.4214138
  %v8523 = vadd.f32 %v8507, 1.4214138
  %v8524 = vadd.f32 %v8508, 1.4214138
  %v8525 = vadd.f32 %v8509, 1.4214138
  %v8526 = vmul.f32 %v8510, %v8446
  %v8527 = vmul.f32 %v8511, %v8447
  %v8528 = vmul.f32 %v8512, %v8448
  %v8529 = vmul.f32 %v8513, %v8449
  %v8530 = vmul.f32 %v8514, %v8450
  %v8531 = vmul.f32 %v8515, %v8451
  %v8532 = vmul.f32 %v8516, %v8452
  %v8533 = vmul.f32 %v8517, %v8453
  %v8534 = vmul.f32 %v8518, %v8454
  %v8535 = vmul.f32 %v8519, %v8455
  %v8536 = vmul.f32 %v8520, %v8456
  %v8537 = vmul.f32 %v8521, %v8457
  %v8538 = vmul.f32 %v8522, %v8458
  %v8539 = vmul.f32 %v8523, %v8459
  %v8540 = vmul.f32 %v8524, %v8460
  %v8541 = vmul.f32 %v8525, %v8461
  %v8542 = vadd.f32 %v8526, -0.28449672
  %v8543 = vadd.f32 %v8527, -0.28449672
  %v8544 = vadd.f32 %v8528, -0.28449672
  %v8545 = vadd.f32 %v8529, -0.28449672
  %v8546 = vadd.f32 %v8530, -0.28449672
  %v8547 = vadd.f32 %v8531, -0.28449672
  %v8548 = vadd.f32 %v8532, -0.28449672
  %v8549 = vadd.f32 %v8533, -0.28449672
  %v8550 = vadd.f32 %v8534, -0.28449672
  %v8551 = vadd.f32 %v8535, -0.28449672
  %v8552 = vadd.f32 %v8536, -0.28449672
  %v8553 = vadd.f32 %v8537, -0.28449672
  %v8554 = vadd.f32 %v8538, -0.28449672
  %v8555 = vadd.f32 %v8539, -0.28449672
  %v8556 = vadd.f32 %v8540, -0.28449672
  %v8557 = vadd.f32 %v8541, -0.28449672
  %v8558 = vmul.f32 %v8542, %v8446
  %v8559 = vmul.f32 %v8543, %v8447
  %v8560 = vmul.f32 %v8544, %v8448
  %v8561 = vmul.f32 %v8545, %v8449
  %v8562 = vmul.f32 %v8546, %v8450
  %v8563 = vmul.f32 %v8547, %v8451
  %v8564 = vmul.f32 %v8548, %v8452
  %v8565 = vmul.f32 %v8549, %v8453
  %v8566 = vmul.f32 %v8550, %v8454
  %v8567 = vmul.f32 %v8551, %v8455
  %v8568 = vmul.f32 %v8552, %v8456
  %v8569 = vmul.f32 %v8553, %v8457
  %v8570 = vmul.f32 %v8554, %v8458
  %v8571 = vmul.f32 %v8555, %v8459
  %v8572 = vmul.f32 %v8556, %v8460
  %v8573 = vmul.f32 %v8557, %v8461
  %v8574 = vadd.f32 %v8558, 0.2548296
  %v8575 = vadd.f32 %v8559, 0.2548296
  %v8576 = vadd.f32 %v8560, 0.2548296
  %v8577 = vadd.f32 %v8561, 0.2548296
  %v8578 = vadd.f32 %v8562, 0.2548296
  %v8579 = vadd.f32 %v8563, 0.2548296
  %v8580 = vadd.f32 %v8564, 0.2548296
  %v8581 = vadd.f32 %v8565, 0.2548296
  %v8582 = vadd.f32 %v8566, 0.2548296
  %v8583 = vadd.f32 %v8567, 0.2548296
  %v8584 = vadd.f32 %v8568, 0.2548296
  %v8585 = vadd.f32 %v8569, 0.2548296
  %v8586 = vadd.f32 %v8570, 0.2548296
  %v8587 = vadd.f32 %v8571, 0.2548296
  %v8588 = vadd.f32 %v8572, 0.2548296
  %v8589 = vadd.f32 %v8573, 0.2548296
  %v8590 = vmul.f32 %v8574, %v8446
  %v8591 = vmul.f32 %v8575, %v8447
  %v8592 = vmul.f32 %v8576, %v8448
  %v8593 = vmul.f32 %v8577, %v8449
  %v8594 = vmul.f32 %v8578, %v8450
  %v8595 = vmul.f32 %v8579, %v8451
  %v8596 = vmul.f32 %v8580, %v8452
  %v8597 = vmul.f32 %v8581, %v8453
  %v8598 = vmul.f32 %v8582, %v8454
  %v8599 = vmul.f32 %v8583, %v8455
  %v8600 = vmul.f32 %v8584, %v8456
  %v8601 = vmul.f32 %v8585, %v8457
  %v8602 = vmul.f32 %v8586, %v8458
  %v8603 = vmul.f32 %v8587, %v8459
  %v8604 = vmul.f32 %v8588, %v8460
  %v8605 = vmul.f32 %v8589, %v8461
  %v8606 = vsub.f32 0.0, %v8398
  %v8607 = vsub.f32 0.0, %v8399
  %v8608 = vsub.f32 0.0, %v8400
  %v8609 = vsub.f32 0.0, %v8401
  %v8610 = vsub.f32 0.0, %v8402
  %v8611 = vsub.f32 0.0, %v8403
  %v8612 = vsub.f32 0.0, %v8404
  %v8613 = vsub.f32 0.0, %v8405
  %v8614 = vsub.f32 0.0, %v8406
  %v8615 = vsub.f32 0.0, %v8407
  %v8616 = vsub.f32 0.0, %v8408
  %v8617 = vsub.f32 0.0, %v8409
  %v8618 = vsub.f32 0.0, %v8410
  %v8619 = vsub.f32 0.0, %v8411
  %v8620 = vsub.f32 0.0, %v8412
  %v8621 = vsub.f32 0.0, %v8413
  %v8622 = vmul.f32 %v8606, %v8398
  %v8623 = vmul.f32 %v8607, %v8399
  %v8624 = vmul.f32 %v8608, %v8400
  %v8625 = vmul.f32 %v8609, %v8401
  %v8626 = vmul.f32 %v8610, %v8402
  %v8627 = vmul.f32 %v8611, %v8403
  %v8628 = vmul.f32 %v8612, %v8404
  %v8629 = vmul.f32 %v8613, %v8405
  %v8630 = vmul.f32 %v8614, %v8406
  %v8631 = vmul.f32 %v8615, %v8407
  %v8632 = vmul.f32 %v8616, %v8408
  %v8633 = vmul.f32 %v8617, %v8409
  %v8634 = vmul.f32 %v8618, %v8410
  %v8635 = vmul.f32 %v8619, %v8411
  %v8636 = vmul.f32 %v8620, %v8412
  %v8637 = vmul.f32 %v8621, %v8413
  %v8638 = vmul.f32 %v8622, 1.442695
  %v8639 = vpow.pop %v8638
  %v8640 = vmul.f32 %v8623, 1.442695
  %v8641 = vpow.pop %v8640
  %v8642 = vmul.f32 %v8624, 1.442695
  %v8643 = vpow.pop %v8642
  %v8644 = vmul.f32 %v8625, 1.442695
  %v8645 = vpow.pop %v8644
  %v8646 = vmul.f32 %v8626, 1.442695
  %v8647 = vpow.pop %v8646
  %v8648 = vmul.f32 %v8627, 1.442695
  %v8649 = vpow.pop %v8648
  %v8650 = vmul.f32 %v8628, 1.442695
  %v8651 = vpow.pop %v8650
  %v8652 = vmul.f32 %v8629, 1.442695
  %v8653 = vpow.pop %v8652
  %v8654 = vmul.f32 %v8630, 1.442695
  %v8655 = vpow.pop %v8654
  %v8656 = vmul.f32 %v8631, 1.442695
  %v8657 = vpow.pop %v8656
  %v8658 = vmul.f32 %v8632, 1.442695
  %v8659 = vpow.pop %v8658
  %v8660 = vmul.f32 %v8633, 1.442695
  %v8661 = vpow.pop %v8660
  %v8662 = vmul.f32 %v8634, 1.442695
  %v8663 = vpow.pop %v8662
  %v8664 = vmul.f32 %v8635, 1.442695
  %v8665 = vpow.pop %v8664
  %v8666 = vmul.f32 %v8636, 1.442695
  %v8667 = vpow.pop %v8666
  %v8668 = vmul.f32 %v8637, 1.442695
  %v8669 = vpow.pop %v8668
  %v8670 = vmul.f32 %v8590, %v8639
  %v8671 = vmul.f32 %v8591, %v8641
  %v8672 = vmul.f32 %v8592, %v8643
  %v8673 = vmul.f32 %v8593, %v8645
  %v8674 = vmul.f32 %v8594, %v8647
  %v8675 = vmul.f32 %v8595, %v8649
  %v8676 = vmul.f32 %v8596, %v8651
  %v8677 = vmul.f32 %v8597, %v8653
  %v8678 = vmul.f32 %v8598, %v8655
  %v8679 = vmul.f32 %v8599, %v8657
  %v8680 = vmul.f32 %v8600, %v8659
  %v8681 = vmul.f32 %v8601, %v8661
  %v8682 = vmul.f32 %v8602, %v8663
  %v8683 = vmul.f32 %v8603, %v8665
  %v8684 = vmul.f32 %v8604, %v8667
  %v8685 = vmul.f32 %v8605, %v8669
  %v8686 = vsub.f32 1.0, %v8670
  %v8687 = vsub.f32 1.0, %v8671
  %v8688 = vsub.f32 1.0, %v8672
  %v8689 = vsub.f32 1.0, %v8673
  %v8690 = vsub.f32 1.0, %v8674
  %v8691 = vsub.f32 1.0, %v8675
  %v8692 = vsub.f32 1.0, %v8676
  %v8693 = vsub.f32 1.0, %v8677
  %v8694 = vsub.f32 1.0, %v8678
  %v8695 = vsub.f32 1.0, %v8679
  %v8696 = vsub.f32 1.0, %v8680
  %v8697 = vsub.f32 1.0, %v8681
  %v8698 = vsub.f32 1.0, %v8682
  %v8699 = vsub.f32 1.0, %v8683
  %v8700 = vsub.f32 1.0, %v8684
  %v8701 = vsub.f32 1.0, %v8685
  %v8702 = vmul.f32 %v8382, %v8686
  %v8703 = vmul.f32 %v8383, %v8687
  %v8704 = vmul.f32 %v8384, %v8688
  %v8705 = vmul.f32 %v8385, %v8689
  %v8706 = vmul.f32 %v8386, %v8690
  %v8707 = vmul.f32 %v8387, %v8691
  %v8708 = vmul.f32 %v8388, %v8692
  %v8709 = vmul.f32 %v8389, %v8693
  %v8710 = vmul.f32 %v8390, %v8694
  %v8711 = vmul.f32 %v8391, %v8695
  %v8712 = vmul.f32 %v8392, %v8696
  %v8713 = vmul.f32 %v8393, %v8697
  %v8714 = vmul.f32 %v8394, %v8698
  %v8715 = vmul.f32 %v8395, %v8699
  %v8716 = vmul.f32 %v8396, %v8700
  %v8717 = vmul.f32 %v8397, %v8701
  %v8718 = vadd.f32 %v8702, 1.0
  %v8719 = vadd.f32 %v8703, 1.0
  %v8720 = vadd.f32 %v8704, 1.0
  %v8721 = vadd.f32 %v8705, 1.0
  %v8722 = vadd.f32 %v8706, 1.0
  %v8723 = vadd.f32 %v8707, 1.0
  %v8724 = vadd.f32 %v8708, 1.0
  %v8725 = vadd.f32 %v8709, 1.0
  %v8726 = vadd.f32 %v8710, 1.0
  %v8727 = vadd.f32 %v8711, 1.0
  %v8728 = vadd.f32 %v8712, 1.0
  %v8729 = vadd.f32 %v8713, 1.0
  %v8730 = vadd.f32 %v8714, 1.0
  %v8731 = vadd.f32 %v8715, 1.0
  %v8732 = vadd.f32 %v8716, 1.0
  %v8733 = vadd.f32 %v8717, 1.0
  %v8734 = vmul.f32 %v8334, %v8718
  %v8735 = vmul.f32 %v8335, %v8719
  %v8736 = vmul.f32 %v8336, %v8720
  %v8737 = vmul.f32 %v8337, %v8721
  %v8738 = vmul.f32 %v8338, %v8722
  %v8739 = vmul.f32 %v8339, %v8723
  %v8740 = vmul.f32 %v8340, %v8724
  %v8741 = vmul.f32 %v8341, %v8725
  %v8742 = vmul.f32 %v8342, %v8726
  %v8743 = vmul.f32 %v8343, %v8727
  %v8744 = vmul.f32 %v8344, %v8728
  %v8745 = vmul.f32 %v8345, %v8729
  %v8746 = vmul.f32 %v8346, %v8730
  %v8747 = vmul.f32 %v8347, %v8731
  %v8748 = vmul.f32 %v8348, %v8732
  %v8749 = vmul.f32 %v8349, %v8733
  %s8750 = scalar_lea.vmem %s15, 128
  %v8751 = vld [vmem:[%s8750] sm:$0xff]
  %v8752 = vld [vmem:[%s8750 + $0x8] sm:$0xff]
  %v8753 = vld [vmem:[%s8750 + $0x10] sm:$0xff]
  %v8754 = vld [vmem:[%s8750 + $0x18] sm:$0xff]
  %v8755 = vld [vmem:[%s8750 + $0x20] sm:$0xff]
  %v8756 = vld [vmem:[%s8750 + $0x28] sm:$0xff]
  %v8757 = vld [vmem:[%s8750 + $0x30] sm:$0xff]
  %v8758 = vld [vmem:[%s8750 + $0x38] sm:$0xff]
  %v8759 = vld [vmem:[%s8750 + $0x40] sm:$0xff]
  %v8760 = vld [vmem:[%s8750 + $0x48] sm:$0xff]
  %v8761 = vld [vmem:[%s8750 + $0x50] sm:$0xff]
  %v8762 = vld [vmem:[%s8750 + $0x58] sm:$0xff]
  %v8763 = vld [vmem:[%s8750 + $0x60] sm:$0xff]
  %v8764 = vld [vmem:[%s8750 + $0x68] sm:$0xff]
  %v8765 = vld [vmem:[%s8750 + $0x70] sm:$0xff]
  %v8766 = vld [vmem:[%s8750 + $0x78] sm:$0xff]
  %s8767 = scalar_lea.vmem %s16, 1
  %v8768 = vld [vmem:[%s8767] sm:$0x1]
  %v8770 = vlaneseq
  %v8771 = vshrl.u32 %v8770, 7
  %v8772 = vsub.s32 0, %v8771
  %v8773 = vrot.slane %v8768, %v8772
  %8775 = vmatprep.subr.mxu0 0.0
  %8776 = vmatpush1.msra.mxu0 %v8766
  %8777 = vmatprep.subr.mxu0 0.0
  %8778 = vmatpush1.msra.mxu0 %v8765
  %8779 = vmatprep.subr.mxu0 0.0
  %8780 = vmatpush1.msra.mxu0 %v8764
  %8781 = vmatprep.subr.mxu0 0.0
  %8782 = vmatpush1.msra.mxu0 %v8763
  %8783 = vmatprep.subr.mxu0 0.0
  %8784 = vmatpush1.msra.mxu0 %v8762
  %8785 = vmatprep.subr.mxu0 0.0
  %8786 = vmatpush1.msra.mxu0 %v8761
  %8787 = vmatprep.subr.mxu0 0.0
  %8788 = vmatpush1.msra.mxu0 %v8760
  %8789 = vmatprep.subr.mxu0 0.0
  %8790 = vmatpush1.msra.mxu0 %v8759
  %8791 = vmatprep.subr.mxu0 0.0
  %8792 = vmatpush1.msra.mxu0 %v8758
  %8793 = vmatprep.subr.mxu0 0.0
  %8794 = vmatpush1.msra.mxu0 %v8757
  %8795 = vmatprep.subr.mxu0 0.0
  %8796 = vmatpush1.msra.mxu0 %v8756
  %8797 = vmatprep.subr.mxu0 0.0
  %8798 = vmatpush1.msra.mxu0 %v8755
  %8799 = vmatprep.subr.mxu0 0.0
  %8800 = vmatpush1.msra.mxu0 %v8754
  %8801 = vmatprep.subr.mxu0 0.0
  %8802 = vmatpush1.msra.mxu0 %v8753
  %8803 = vmatprep.subr.mxu0 0.0
  %8804 = vmatpush1.msra.mxu0 %v8752
  %8805 = vmatprep.subr.mxu0 0.0
  %8806 = vmatpush1.msra.mxu0 %v8751
  %8807 = vmatprep.subr.mxu0 0.0
  %8808 = vmatpush2.msra.mxu0 0.0
  %8809 = vmatprep.subr.mxu0 0.0
  %8810 = vmatpush2.msra.mxu0 0.0
  %8811 = vmatprep.subr.mxu0 0.0
  %8812 = vmatpush2.msra.mxu0 0.0
  %8813 = vmatprep.subr.mxu0 0.0
  %8814 = vmatpush2.msra.mxu0 0.0
  %8815 = vmatprep.subr.mxu0 0.0
  %8816 = vmatpush2.msra.mxu0 0.0
  %8817 = vmatprep.subr.mxu0 0.0
  %8818 = vmatpush2.msra.mxu0 0.0
  %8819 = vmatprep.subr.mxu0 0.0
  %8820 = vmatpush2.msra.mxu0 0.0
  %8821 = vmatprep.subr.mxu0 0.0
  %8822 = vmatpush2.msra.mxu0 0.0
  %8823 = vmatprep.subr.mxu0 0.0
  %8824 = vmatpush2.msra.mxu0 0.0
  %8825 = vmatprep.subr.mxu0 0.0
  %8826 = vmatpush2.msra.mxu0 0.0
  %8827 = vmatprep.subr.mxu0 0.0
  %8828 = vmatpush2.msra.mxu0 0.0
  %8829 = vmatprep.subr.mxu0 0.0
  %8830 = vmatpush2.msra.mxu0 0.0
  %8831 = vmatprep.subr.mxu0 0.0
  %8832 = vmatpush2.msra.mxu0 0.0
  %8833 = vmatprep.subr.mxu0 0.0
  %8834 = vmatpush2.msra.mxu0 0.0
  %8835 = vmatprep.subr.mxu0 0.0
  %8836 = vmatpush2.msra.mxu0 0.0
  %8837 = vmatprep.subr.mxu0 0.0
  %8838 = vmatpush2.msra.mxu0 0.0
  %8839 = vmatprep.mubr.f32.mxu0 0.0
  %8840 = vmatmul.mubr.f32.gmra.mxu0 %v8734
  %v8841 = vpop.f32.mrf.mxu0
  %v8842 = vadd.f32 %v8773, %v8841
  %v8843 = vpop.f32.mrf.mxu0
  %8844 = vmatprep.mubr.f32.mxu0 0.0
  %8845 = vmatmul.mubr.f32.gmra.mxu0 %v8735
  %v8846 = vpop.f32.mrf.mxu0
  %v8847 = vadd.f32 %v8773, %v8846
  %v8848 = vpop.f32.mrf.mxu0
  %8849 = vmatprep.mubr.f32.mxu0 0.0
  %8850 = vmatmul.mubr.f32.gmra.mxu0 %v8736
  %v8851 = vpop.f32.mrf.mxu0
  %v8852 = vadd.f32 %v8773, %v8851
  %v8853 = vpop.f32.mrf.mxu0
  %8854 = vmatprep.mubr.f32.mxu0 0.0
  %8855 = vmatmul.mubr.f32.gmra.mxu0 %v8737
  %v8856 = vpop.f32.mrf.mxu0
  %v8857 = vadd.f32 %v8773, %v8856
  %v8858 = vpop.f32.mrf.mxu0
  %8859 = vmatprep.mubr.f32.mxu0 0.0
  %8860 = vmatmul.mubr.f32.gmra.mxu0 %v8738
  %v8861 = vpop.f32.mrf.mxu0
  %v8862 = vadd.f32 %v8773, %v8861
  %v8863 = vpop.f32.mrf.mxu0
  %8864 = vmatprep.mubr.f32.mxu0 0.0
  %8865 = vmatmul.mubr.f32.gmra.mxu0 %v8739
  %v8866 = vpop.f32.mrf.mxu0
  %v8867 = vadd.f32 %v8773, %v8866
  %v8868 = vpop.f32.mrf.mxu0
  %8869 = vmatprep.mubr.f32.mxu0 0.0
  %8870 = vmatmul.mubr.f32.gmra.mxu0 %v8740
  %v8871 = vpop.f32.mrf.mxu0
  %v8872 = vadd.f32 %v8773, %v8871
  %v8873 = vpop.f32.mrf.mxu0
  %8874 = vmatprep.mubr.f32.mxu0 0.0
  %8875 = vmatmul.mubr.f32.gmra.mxu0 %v8741
  %v8876 = vpop.f32.mrf.mxu0
  %v8877 = vadd.f32 %v8773, %v8876
  %v8878 = vpop.f32.mrf.mxu0
  %8879 = vmatprep.mubr.f32.mxu0 0.0
  %8880 = vmatmul.mubr.f32.gmra.mxu0 %v8742
  %v8881 = vpop.f32.mrf.mxu0
  %v8882 = vadd.f32 %v8773, %v8881
  %v8883 = vpop.f32.mrf.mxu0
  %8884 = vmatprep.mubr.f32.mxu0 0.0
  %8885 = vmatmul.mubr.f32.gmra.mxu0 %v8743
  %v8886 = vpop.f32.mrf.mxu0
  %v8887 = vadd.f32 %v8773, %v8886
  %v8888 = vpop.f32.mrf.mxu0
  %8889 = vmatprep.mubr.f32.mxu0 0.0
  %8890 = vmatmul.mubr.f32.gmra.mxu0 %v8744
  %v8891 = vpop.f32.mrf.mxu0
  %v8892 = vadd.f32 %v8773, %v8891
  %v8893 = vpop.f32.mrf.mxu0
  %8894 = vmatprep.mubr.f32.mxu0 0.0
  %8895 = vmatmul.mubr.f32.gmra.mxu0 %v8745
  %v8896 = vpop.f32.mrf.mxu0
  %v8897 = vadd.f32 %v8773, %v8896
  %v8898 = vpop.f32.mrf.mxu0
  %8899 = vmatprep.mubr.f32.mxu0 0.0
  %8900 = vmatmul.mubr.f32.gmra.mxu0 %v8746
  %v8901 = vpop.f32.mrf.mxu0
  %v8902 = vadd.f32 %v8773, %v8901
  %v8903 = vpop.f32.mrf.mxu0
  %8904 = vmatprep.mubr.f32.mxu0 0.0
  %8905 = vmatmul.mubr.f32.gmra.mxu0 %v8747
  %v8906 = vpop.f32.mrf.mxu0
  %v8907 = vadd.f32 %v8773, %v8906
  %v8908 = vpop.f32.mrf.mxu0
  %8909 = vmatprep.mubr.f32.mxu0 0.0
  %8910 = vmatmul.mubr.f32.gmra.mxu0 %v8748
  %v8911 = vpop.f32.mrf.mxu0
  %v8912 = vadd.f32 %v8773, %v8911
  %v8913 = vpop.f32.mrf.mxu0
  %8914 = vmatprep.mubr.f32.mxu0 0.0
  %8915 = vmatmul.mubr.f32.gmra.mxu0 %v8749
  %v8916 = vpop.f32.mrf.mxu0
  %v8917 = vadd.f32 %v8773, %v8916
  %v8918 = vpop.f32.mrf.mxu0
  %8919 = vdwg.mxu0
  %v8920 = vadd.f32 %v8112, %v8842
  %v8921 = vadd.f32 %v8113, %v8847
  %v8922 = vadd.f32 %v8114, %v8852
  %v8923 = vadd.f32 %v8115, %v8857
  %v8924 = vadd.f32 %v8116, %v8862
  %v8925 = vadd.f32 %v8117, %v8867
  %v8926 = vadd.f32 %v8118, %v8872
  %v8927 = vadd.f32 %v8119, %v8877
  %v8928 = vadd.f32 %v8120, %v8882
  %v8929 = vadd.f32 %v8121, %v8887
  %v8930 = vadd.f32 %v8122, %v8892
  %v8931 = vadd.f32 %v8123, %v8897
  %v8932 = vadd.f32 %v8124, %v8902
  %v8933 = vadd.f32 %v8125, %v8907
  %v8934 = vadd.f32 %v8126, %v8912
  %v8935 = vadd.f32 %v8127, %v8917
  %s8936 = scalar_lea.vmem %s17, 1
  %v8937 = vld [vmem:[%s8936] sm:$0x1]
  %s8938 = scalar_lea.vmem %s18, 1
  %v8939 = vld [vmem:[%s8938] sm:$0x1]
  %v8940 = vsel %vm82, %v8920, 0.0
  %8941 = vadd.xlane.f32.xlu0 %v8940
  %v8942 = vpop.xlane.xlu0 %8941
  %v8943 = vsel %vm82, %v8921, 0.0
  %8944 = vadd.xlane.f32.xlu0 %v8943
  %v8945 = vpop.xlane.xlu0 %8944
  %v8946 = vsel %vm82, %v8922, 0.0
  %8947 = vadd.xlane.f32.xlu0 %v8946
  %v8948 = vpop.xlane.xlu0 %8947
  %v8949 = vsel %vm82, %v8923, 0.0
  %8950 = vadd.xlane.f32.xlu0 %v8949
  %v8951 = vpop.xlane.xlu0 %8950
  %v8952 = vsel %vm82, %v8924, 0.0
  %8953 = vadd.xlane.f32.xlu0 %v8952
  %v8954 = vpop.xlane.xlu0 %8953
  %v8955 = vsel %vm82, %v8925, 0.0
  %8956 = vadd.xlane.f32.xlu0 %v8955
  %v8957 = vpop.xlane.xlu0 %8956
  %v8958 = vsel %vm82, %v8926, 0.0
  %8959 = vadd.xlane.f32.xlu0 %v8958
  %v8960 = vpop.xlane.xlu0 %8959
  %v8961 = vsel %vm82, %v8927, 0.0
  %8962 = vadd.xlane.f32.xlu0 %v8961
  %v8963 = vpop.xlane.xlu0 %8962
  %v8964 = vsel %vm82, %v8928, 0.0
  %8965 = vadd.xlane.f32.xlu0 %v8964
  %v8966 = vpop.xlane.xlu0 %8965
  %v8967 = vsel %vm82, %v8929, 0.0
  %8968 = vadd.xlane.f32.xlu0 %v8967
  %v8969 = vpop.xlane.xlu0 %8968
  %v8970 = vsel %vm82, %v8930, 0.0
  %8971 = vadd.xlane.f32.xlu0 %v8970
  %v8972 = vpop.xlane.xlu0 %8971
  %v8973 = vsel %vm82, %v8931, 0.0
  %8974 = vadd.xlane.f32.xlu0 %v8973
  %v8975 = vpop.xlane.xlu0 %8974
  %v8976 = vsel %vm82, %v8932, 0.0
  %8977 = vadd.xlane.f32.xlu0 %v8976
  %v8978 = vpop.xlane.xlu0 %8977
  %v8979 = vsel %vm82, %v8933, 0.0
  %8980 = vadd.xlane.f32.xlu0 %v8979
  %v8981 = vpop.xlane.xlu0 %8980
  %v8982 = vsel %vm82, %v8934, 0.0
  %8983 = vadd.xlane.f32.xlu0 %v8982
  %v8984 = vpop.xlane.xlu0 %8983
  %v8985 = vsel %vm82, %v8935, 0.0
  %8986 = vadd.xlane.f32.xlu0 %v8985
  %v8987 = vpop.xlane.xlu0 %8986
  %v8988 = vmul.f32 %v8942, %v131
  %v8989 = vmul.f32 %v8945, %v131
  %v8990 = vmul.f32 %v8948, %v131
  %v8991 = vmul.f32 %v8951, %v131
  %v8992 = vmul.f32 %v8954, %v131
  %v8993 = vmul.f32 %v8957, %v131
  %v8994 = vmul.f32 %v8960, %v131
  %v8995 = vmul.f32 %v8963, %v131
  %v8996 = vmul.f32 %v8966, %v131
  %v8997 = vmul.f32 %v8969, %v131
  %v8998 = vmul.f32 %v8972, %v131
  %v8999 = vmul.f32 %v8975, %v131
  %v9000 = vmul.f32 %v8978, %v131
  %v9001 = vmul.f32 %v8981, %v131
  %v9002 = vmul.f32 %v8984, %v131
  %v9003 = vmul.f32 %v8987, %v131
  %v9004 = vmul.f32 %v8920, %v8920
  %v9005 = vmul.f32 %v8921, %v8921
  %v9006 = vmul.f32 %v8922, %v8922
  %v9007 = vmul.f32 %v8923, %v8923
  %v9008 = vmul.f32 %v8924, %v8924
  %v9009 = vmul.f32 %v8925, %v8925
  %v9010 = vmul.f32 %v8926, %v8926
  %v9011 = vmul.f32 %v8927, %v8927
  %v9012 = vmul.f32 %v8928, %v8928
  %v9013 = vmul.f32 %v8929, %v8929
  %v9014 = vmul.f32 %v8930, %v8930
  %v9015 = vmul.f32 %v8931, %v8931
  %v9016 = vmul.f32 %v8932, %v8932
  %v9017 = vmul.f32 %v8933, %v8933
  %v9018 = vmul.f32 %v8934, %v8934
  %v9019 = vmul.f32 %v8935, %v8935
  %v9020 = vsel %vm82, %v9004, 0.0
  %9021 = vadd.xlane.f32.xlu0 %v9020
  %v9022 = vpop.xlane.xlu0 %9021
  %v9023 = vsel %vm82, %v9005, 0.0
  %9024 = vadd.xlane.f32.xlu0 %v9023
  %v9025 = vpop.xlane.xlu0 %9024
  %v9026 = vsel %vm82, %v9006, 0.0
  %9027 = vadd.xlane.f32.xlu0 %v9026
  %v9028 = vpop.xlane.xlu0 %9027
  %v9029 = vsel %vm82, %v9007, 0.0
  %9030 = vadd.xlane.f32.xlu0 %v9029
  %v9031 = vpop.xlane.xlu0 %9030
  %v9032 = vsel %vm82, %v9008, 0.0
  %9033 = vadd.xlane.f32.xlu0 %v9032
  %v9034 = vpop.xlane.xlu0 %9033
  %v9035 = vsel %vm82, %v9009, 0.0
  %9036 = vadd.xlane.f32.xlu0 %v9035
  %v9037 = vpop.xlane.xlu0 %9036
  %v9038 = vsel %vm82, %v9010, 0.0
  %9039 = vadd.xlane.f32.xlu0 %v9038
  %v9040 = vpop.xlane.xlu0 %9039
  %v9041 = vsel %vm82, %v9011, 0.0
  %9042 = vadd.xlane.f32.xlu0 %v9041
  %v9043 = vpop.xlane.xlu0 %9042
  %v9044 = vsel %vm82, %v9012, 0.0
  %9045 = vadd.xlane.f32.xlu0 %v9044
  %v9046 = vpop.xlane.xlu0 %9045
  %v9047 = vsel %vm82, %v9013, 0.0
  %9048 = vadd.xlane.f32.xlu0 %v9047
  %v9049 = vpop.xlane.xlu0 %9048
  %v9050 = vsel %vm82, %v9014, 0.0
  %9051 = vadd.xlane.f32.xlu0 %v9050
  %v9052 = vpop.xlane.xlu0 %9051
  %v9053 = vsel %vm82, %v9015, 0.0
  %9054 = vadd.xlane.f32.xlu0 %v9053
  %v9055 = vpop.xlane.xlu0 %9054
  %v9056 = vsel %vm82, %v9016, 0.0
  %9057 = vadd.xlane.f32.xlu0 %v9056
  %v9058 = vpop.xlane.xlu0 %9057
  %v9059 = vsel %vm82, %v9017, 0.0
  %9060 = vadd.xlane.f32.xlu0 %v9059
  %v9061 = vpop.xlane.xlu0 %9060
  %v9062 = vsel %vm82, %v9018, 0.0
  %9063 = vadd.xlane.f32.xlu0 %v9062
  %v9064 = vpop.xlane.xlu0 %9063
  %v9065 = vsel %vm82, %v9019, 0.0
  %9066 = vadd.xlane.f32.xlu0 %v9065
  %v9067 = vpop.xlane.xlu0 %9066
  %v9068 = vmul.f32 %v9022, %v131
  %v9069 = vmul.f32 %v9025, %v131
  %v9070 = vmul.f32 %v9028, %v131
  %v9071 = vmul.f32 %v9031, %v131
  %v9072 = vmul.f32 %v9034, %v131
  %v9073 = vmul.f32 %v9037, %v131
  %v9074 = vmul.f32 %v9040, %v131
  %v9075 = vmul.f32 %v9043, %v131
  %v9076 = vmul.f32 %v9046, %v131
  %v9077 = vmul.f32 %v9049, %v131
  %v9078 = vmul.f32 %v9052, %v131
  %v9079 = vmul.f32 %v9055, %v131
  %v9080 = vmul.f32 %v9058, %v131
  %v9081 = vmul.f32 %v9061, %v131
  %v9082 = vmul.f32 %v9064, %v131
  %v9083 = vmul.f32 %v9067, %v131
  %v9084 = vmul.f32 %v8988, %v8988
  %v9085 = vmul.f32 %v8989, %v8989
  %v9086 = vmul.f32 %v8990, %v8990
  %v9087 = vmul.f32 %v8991, %v8991
  %v9088 = vmul.f32 %v8992, %v8992
  %v9089 = vmul.f32 %v8993, %v8993
  %v9090 = vmul.f32 %v8994, %v8994
  %v9091 = vmul.f32 %v8995, %v8995
  %v9092 = vmul.f32 %v8996, %v8996
  %v9093 = vmul.f32 %v8997, %v8997
  %v9094 = vmul.f32 %v8998, %v8998
  %v9095 = vmul.f32 %v8999, %v8999
  %v9096 = vmul.f32 %v9000, %v9000
  %v9097 = vmul.f32 %v9001, %v9001
  %v9098 = vmul.f32 %v9002, %v9002
  %v9099 = vmul.f32 %v9003, %v9003
  %v9100 = vsub.f32 %v9068, %v9084
  %v9101 = vsub.f32 %v9069, %v9085
  %v9102 = vsub.f32 %v9070, %v9086
  %v9103 = vsub.f32 %v9071, %v9087
  %v9104 = vsub.f32 %v9072, %v9088
  %v9105 = vsub.f32 %v9073, %v9089
  %v9106 = vsub.f32 %v9074, %v9090
  %v9107 = vsub.f32 %v9075, %v9091
  %v9108 = vsub.f32 %v9076, %v9092
  %v9109 = vsub.f32 %v9077, %v9093
  %v9110 = vsub.f32 %v9078, %v9094
  %v9111 = vsub.f32 %v9079, %v9095
  %v9112 = vsub.f32 %v9080, %v9096
  %v9113 = vsub.f32 %v9081, %v9097
  %v9114 = vsub.f32 %v9082, %v9098
  %v9115 = vsub.f32 %v9083, %v9099
  %v9116 = vmax.f32 %v9100, 0.0
  %v9117 = vmax.f32 %v9101, 0.0
  %v9118 = vmax.f32 %v9102, 0.0
  %v9119 = vmax.f32 %v9103, 0.0
  %v9120 = vmax.f32 %v9104, 0.0
  %v9121 = vmax.f32 %v9105, 0.0
  %v9122 = vmax.f32 %v9106, 0.0
  %v9123 = vmax.f32 %v9107, 0.0
  %v9124 = vmax.f32 %v9108, 0.0
  %v9125 = vmax.f32 %v9109, 0.0
  %v9126 = vmax.f32 %v9110, 0.0
  %v9127 = vmax.f32 %v9111, 0.0
  %v9128 = vmax.f32 %v9112, 0.0
  %v9129 = vmax.f32 %v9113, 0.0
  %v9130 = vmax.f32 %v9114, 0.0
  %v9131 = vmax.f32 %v9115, 0.0
  %v9132 = vsub.f32 %v8920, %v8988
  %v9133 = vsub.f32 %v8921, %v8989
  %v9134 = vsub.f32 %v8922, %v8990
  %v9135 = vsub.f32 %v8923, %v8991
  %v9136 = vsub.f32 %v8924, %v8992
  %v9137 = vsub.f32 %v8925, %v8993
  %v9138 = vsub.f32 %v8926, %v8994
  %v9139 = vsub.f32 %v8927, %v8995
  %v9140 = vsub.f32 %v8928, %v8996
  %v9141 = vsub.f32 %v8929, %v8997
  %v9142 = vsub.f32 %v8930, %v8998
  %v9143 = vsub.f32 %v8931, %v8999
  %v9144 = vsub.f32 %v8932, %v9000
  %v9145 = vsub.f32 %v8933, %v9001
  %v9146 = vsub.f32 %v8934, %v9002
  %v9147 = vsub.f32 %v8935, %v9003
  %v9148 = vadd.f32 %v9116, 1e-05
  %v9149 = vadd.f32 %v9117, 1e-05
  %v9150 = vadd.f32 %v9118, 1e-05
  %v9151 = vadd.f32 %v9119, 1e-05
  %v9152 = vadd.f32 %v9120, 1e-05
  %v9153 = vadd.f32 %v9121, 1e-05
  %v9154 = vadd.f32 %v9122, 1e-05
  %v9155 = vadd.f32 %v9123, 1e-05
  %v9156 = vadd.f32 %v9124, 1e-05
  %v9157 = vadd.f32 %v9125, 1e-05
  %v9158 = vadd.f32 %v9126, 1e-05
  %v9159 = vadd.f32 %v9127, 1e-05
  %v9160 = vadd.f32 %v9128, 1e-05
  %v9161 = vadd.f32 %v9129, 1e-05
  %v9162 = vadd.f32 %v9130, 1e-05
  %v9163 = vadd.f32 %v9131, 1e-05
  %v9164 = vrsqrt.pop %v9148
  %v9165 = vrsqrt.pop %v9149
  %v9166 = vrsqrt.pop %v9150
  %v9167 = vrsqrt.pop %v9151
  %v9168 = vrsqrt.pop %v9152
  %v9169 = vrsqrt.pop %v9153
  %v9170 = vrsqrt.pop %v9154
  %v9171 = vrsqrt.pop %v9155
  %v9172 = vrsqrt.pop %v9156
  %v9173 = vrsqrt.pop %v9157
  %v9174 = vrsqrt.pop %v9158
  %v9175 = vrsqrt.pop %v9159
  %v9176 = vrsqrt.pop %v9160
  %v9177 = vrsqrt.pop %v9161
  %v9178 = vrsqrt.pop %v9162
  %v9179 = vrsqrt.pop %v9163
  %v9180 = vmul.f32 %v9132, %v9164
  %v9181 = vmul.f32 %v9133, %v9165
  %v9182 = vmul.f32 %v9134, %v9166
  %v9183 = vmul.f32 %v9135, %v9167
  %v9184 = vmul.f32 %v9136, %v9168
  %v9185 = vmul.f32 %v9137, %v9169
  %v9186 = vmul.f32 %v9138, %v9170
  %v9187 = vmul.f32 %v9139, %v9171
  %v9188 = vmul.f32 %v9140, %v9172
  %v9189 = vmul.f32 %v9141, %v9173
  %v9190 = vmul.f32 %v9142, %v9174
  %v9191 = vmul.f32 %v9143, %v9175
  %v9192 = vmul.f32 %v9144, %v9176
  %v9193 = vmul.f32 %v9145, %v9177
  %v9194 = vmul.f32 %v9146, %v9178
  %v9195 = vmul.f32 %v9147, %v9179
  %v9197 = vlaneseq
  %v9198 = vshrl.u32 %v9197, 7
  %v9199 = vsub.s32 0, %v9198
  %v9200 = vrot.slane %v8937, %v9199
  %v9202 = vmul.f32 %v9180, %v9200
  %v9203 = vmul.f32 %v9181, %v9200
  %v9204 = vmul.f32 %v9182, %v9200
  %v9205 = vmul.f32 %v9183, %v9200
  %v9206 = vmul.f32 %v9184, %v9200
  %v9207 = vmul.f32 %v9185, %v9200
  %v9208 = vmul.f32 %v9186, %v9200
  %v9209 = vmul.f32 %v9187, %v9200
  %v9210 = vmul.f32 %v9188, %v9200
  %v9211 = vmul.f32 %v9189, %v9200
  %v9212 = vmul.f32 %v9190, %v9200
  %v9213 = vmul.f32 %v9191, %v9200
  %v9214 = vmul.f32 %v9192, %v9200
  %v9215 = vmul.f32 %v9193, %v9200
  %v9216 = vmul.f32 %v9194, %v9200
  %v9217 = vmul.f32 %v9195, %v9200
  %v9219 = vlaneseq
  %v9220 = vshrl.u32 %v9219, 7
  %v9221 = vsub.s32 0, %v9220
  %v9222 = vrot.slane %v8939, %v9221
  %v9224 = vadd.f32 %v9202, %v9222
  %v9225 = vadd.f32 %v9203, %v9222
  %v9226 = vadd.f32 %v9204, %v9222
  %v9227 = vadd.f32 %v9205, %v9222
  %v9228 = vadd.f32 %v9206, %v9222
  %v9229 = vadd.f32 %v9207, %v9222
  %v9230 = vadd.f32 %v9208, %v9222
  %v9231 = vadd.f32 %v9209, %v9222
  %v9232 = vadd.f32 %v9210, %v9222
  %v9233 = vadd.f32 %v9211, %v9222
  %v9234 = vadd.f32 %v9212, %v9222
  %v9235 = vadd.f32 %v9213, %v9222
  %v9236 = vadd.f32 %v9214, %v9222
  %v9237 = vadd.f32 %v9215, %v9222
  %v9238 = vadd.f32 %v9216, %v9222
  %v9239 = vadd.f32 %v9217, %v9222
  %9240 = vst.msk [vmem:[%s19] sm:$0xff] %vm82, %v9224
  %9241 = vst.msk [vmem:[%s19 + $0x8] sm:$0xff] %vm82, %v9225
  %9242 = vst.msk [vmem:[%s19 + $0x10] sm:$0xff] %vm82, %v9226
  %9243 = vst.msk [vmem:[%s19 + $0x18] sm:$0xff] %vm82, %v9227
  %9244 = vst.msk [vmem:[%s19 + $0x20] sm:$0xff] %vm82, %v9228
  %9245 = vst.msk [vmem:[%s19 + $0x28] sm:$0xff] %vm82, %v9229
  %9246 = vst.msk [vmem:[%s19 + $0x30] sm:$0xff] %vm82, %v9230
  %9247 = vst.msk [vmem:[%s19 + $0x38] sm:$0xff] %vm82, %v9231
  %9248 = vst.msk [vmem:[%s19 + $0x40] sm:$0xff] %vm82, %v9232
  %9249 = vst.msk [vmem:[%s19 + $0x48] sm:$0xff] %vm82, %v9233
  %9250 = vst.msk [vmem:[%s19 + $0x50] sm:$0xff] %vm82, %v9234
  %9251 = vst.msk [vmem:[%s19 + $0x58] sm:$0xff] %vm82, %v9235
  %9252 = vst.msk [vmem:[%s19 + $0x60] sm:$0xff] %vm82, %v9236
  %9253 = vst.msk [vmem:[%s19 + $0x68] sm:$0xff] %vm82, %v9237
  %9254 = vst.msk [vmem:[%s19 + $0x70] sm:$0xff] %vm82, %v9238
  %9255 = vst.msk [vmem:[%s19 + $0x78] sm:$0xff] %vm82, %v9239
  // Predicated region
  $region78: #{decision_transformer_forward.1} parent=0 // pred_check
    _
  $region79: #{decision_transformer_forward.1} parent=0 // pred_check_branch
    %9257 = sbr.rel (0) target = $region81
  $region80: #{decision_transformer_forward.1} parent=0 // pred_region
    _
  $region81: #{decision_transformer_forward.1} parent=0 // pred_fallthru
    _
  // Predicated region
  $region82: #{decision_transformer_forward.1} parent=0 // pred_check
    _
  $region83: #{decision_transformer_forward.1} parent=0 // pred_check_branch
    %9259 = sbr.rel (0) target = $region85
  $region84: #{decision_transformer_forward.1} parent=0 // pred_region
    _
  $region85: #{decision_transformer_forward.1} parent=0 // pred_fallthru
    _
  // Predicated region
  $region86: #{decision_transformer_forward.1} parent=0 // pred_check
    _
  $region87: #{decision_transformer_forward.1} parent=0 // pred_check_branch
    %9261 = sbr.rel (0) target = $region89
  $region88: #{decision_transformer_forward.1} parent=0 // pred_region
    _
  $region89: #{decision_transformer_forward.1} parent=0 // pred_fallthru
    _
  // Predicated region
  $region90: #{decision_transformer_forward.1} parent=0 // pred_check
    _
  $region91: #{decision_transformer_forward.1} parent=0 // pred_check_branch
    %9263 = sbr.rel (0) target = $region93
  $region92: #{decision_transformer_forward.1} parent=0 // pred_region
    _
  $region93: #{decision_transformer_forward.1} parent=0 // pred_fallthru
    _

</llo_original>
